<compile_context>
chip_gen: v7x
topology: tpu7x:2x2x1
jax: 0.10.0
libtpu: 0.0.40
codegen_flags: <defaults>
</compile_context>

<pallas_src>
import math

import jax
import jax.numpy as jnp
from jax.experimental import pallas as pl
from jax.experimental.pallas import tpu as pltpu

# use full-f32 matmuls in the pure-JAX reference so it matches the kernel
jax.config.update("jax_default_matmul_precision", "highest")

# ---------------------------------------------------------------------------
# small hyper-params consistent with the module (N must be num_patches + 1)
# ---------------------------------------------------------------------------
B = 2                    # batch
NUM_PATCHES = 15
N = NUM_PATCHES + 1      # 16 tokens
C = 32                   # embedding dim
NUM_HEADS = 4            # dim % num_heads == 0
HEAD_DIM = C // NUM_HEADS
SCALE = HEAD_DIM ** (-0.5)
BN = B * N               # 32 rows processed in one shot
MASK_VALUE = -1e30       # cross-batch mask (exp -> exactly 0 in f32)


# ---------------------------------------------------------------------------
# Pallas kernel: single invocation, everything resident in VMEM
# ---------------------------------------------------------------------------
def rpe_attn_kernel(x_ref, wqkv_ref, wproj_ref, bproj_ref, bias_ref, out_ref):
    x = x_ref[...]                                                       # (BN, C)

    qkv = jnp.dot(x, wqkv_ref[...], preferred_element_type=jnp.float32)  # (BN, 3C)
    # column order is (3, num_heads, head_dim), exactly like the torch reshape
    q = qkv[:, 0 * C:1 * C] * SCALE
    k = qkv[:, 1 * C:2 * C]
    v = qkv[:, 2 * C:3 * C]

    head_ctx = []
    for h in range(NUM_HEADS):                                           # static unroll
        lo, hi = h * HEAD_DIM, (h + 1) * HEAD_DIM
        q_h = q[:, lo:hi]                                                # (BN, hd)
        k_h = k[:, lo:hi]
        v_h = v[:, lo:hi]

        # q @ k^T without materializing a transpose (contract last axes)
        s = jax.lax.dot_general(
            q_h, k_h,
            dimension_numbers=(((1,), (1,)), ((), ())),
            preferred_element_type=jnp.float32,
        )                                                                # (BN, BN)

        # relative-position bias (block-diagonal) + cross-batch mask
        s = s + bias_ref[h]

        s = s - jnp.max(s, axis=-1, keepdims=True)
        p = jnp.exp(s)                                                   # masked -> 0.0
        p = p * pl.reciprocal(jnp.sum(p, axis=-1, keepdims=True), approx=True)

        head_ctx.append(jnp.dot(p, v_h, preferred_element_type=jnp.float32))

    ctx = jnp.concatenate(head_ctx, axis=-1)                             # (BN, C)
    out_ref[...] = (
        jnp.dot(ctx, wproj_ref[...], preferred_element_type=jnp.float32)
        + bproj_ref[...]
    )                                                                    # one full store


# ---------------------------------------------------------------------------
# wrapper
# ---------------------------------------------------------------------------
def _build_attn_bias(learnable):
    """(H, BN, BN) bias: per-head RPE on in-batch blocks, -1e30 cross-batch."""
    p = NUM_PATCHES
    pos_mat = jnp.arange(p)[:, None] - jnp.arange(p)[None, :] + (p - 1)   # (P, P)
    rpe = learnable[:, pos_mat]                                           # (H, P, P)
    rpe = jnp.pad(rpe, ((0, 0), (1, 0), (1, 0)))                          # (H, N, N)

    batch_ids = jnp.repeat(jnp.arange(B), N)                              # (BN,)
    same_batch = batch_ids[:, None] == batch_ids[None, :]                 # (BN, BN)
    tiled = jnp.tile(rpe, (1, B, B))                                      # (H, BN, BN)
    return jnp.where(same_batch[None], tiled, MASK_VALUE).astype(jnp.float32)


def reg_rpe_attention(x, params):
    bx, nx, cx = x.shape
    x2d = x.reshape(bx * nx, cx)
    bias = _build_attn_bias(params["learnable"])

    out2d = pl.pallas_call(
        rpe_attn_kernel,
        out_shape=jax.ShapeDtypeStruct((bx * nx, cx), jnp.float32),
        grid_spec=pltpu.PrefetchScalarGridSpec(
            num_scalar_prefetch=0,
            grid=(1,),                                     # single step: no pipeline overhead
            in_specs=[
                pl.BlockSpec((bx * nx, cx), lambda i: (0, 0)),            # x
                pl.BlockSpec(params["wqkv"].shape, lambda i: (0, 0)),     # (C, 3C)
                pl.BlockSpec(params["wproj"].shape, lambda i: (0, 0)),    # (C, C)
                pl.BlockSpec(params["bproj"].shape, lambda i: (0, 0)),    # (1, C)
                pl.BlockSpec(bias.shape, lambda i: (0, 0, 0)),            # (H, BN, BN)
            ],
            out_specs=pl.BlockSpec((bx * nx, cx), lambda i: (0, 0)),
        ),
        compiler_params=pltpu.CompilerParams(
            dimension_semantics=("arbitrary",),
        ),
    )(x2d, params["wqkv"], params["wproj"], params["bproj"], bias)

    return out2d.reshape(bx, nx, cx)


# ---------------------------------------------------------------------------
# deterministic synthetic parameters (weights stored pre-transposed (in, out))
# ---------------------------------------------------------------------------
def make_params(key):
    k1, k2, k3, k4 = jax.random.split(key, 4)
    std = 0.02
    return {
        # qkv Linear(dim, 3*dim, bias=False)
        "wqkv": (std * jax.random.normal(k1, (C, 3 * C))).astype(jnp.float32),
        # proj Linear(dim, dim) with bias
        "wproj": (std * jax.random.normal(k2, (C, C))).astype(jnp.float32),
        "bproj": (std * jax.random.normal(k3, (1, C))).astype(jnp.float32),
        # learnable relative-position table (num_heads, 2*num_patches - 1)
        "learnable": jax.random.normal(
            k4, (NUM_HEADS, 2 * NUM_PATCHES - 1)
        ).astype(jnp.float32),
    }


# pure-JAX reference: faithful translation of RegRPEAttention.forward
def reference(x, p):
    bx, nx, cx = x.shape
    qkv = (x @ p["wqkv"]).reshape(bx, nx, 3, NUM_HEADS, HEAD_DIM)
    qkv = qkv.transpose(2, 0, 3, 1, 4)                                   # (3, B, H, N, hd)
    q, k, v = qkv[0] * SCALE, qkv[1], qkv[2]

    pos_mat = (jnp.arange(NUM_PATCHES)[:, None]
               - jnp.arange(NUM_PATCHES)[None, :] + NUM_PATCHES - 1)
    rpe = p["learnable"][:, pos_mat]                                     # (H, P, P)
    rpe = jnp.pad(rpe, ((0, 0), (1, 0), (1, 0)))                         # (H, N, N)

    attn = q @ jnp.swapaxes(k, -1, -2) + rpe[None]                       # (B, H, N, N)
    attn = jax.nn.softmax(attn, axis=-1)
    # attn_drop / proj_drop have p=0 -> identity
    o = (attn @ v).transpose(0, 2, 1, 3).reshape(bx, nx, cx)
    return o @ p["wproj"] + p["bproj"]


if __name__ == "__main__":
    key = jax.random.PRNGKey(0)
    kx, kp = jax.random.split(key)
    x = jax.random.normal(kx, (B, N, C), dtype=jnp.float32)
    params = make_params(kp)

    out = reg_rpe_attention(x, params)
    out = jax.block_until_ready(out)

    ref = reference(x, params)
    assert out.shape == (B, N, C)
    max_err = float(jnp.max(jnp.abs(out - ref)))
    assert jnp.allclose(out, ref, atol=1e-4, rtol=1e-3), max_err
    print("KERNEL_OK")
</pallas_src>

<mosaic_0001>
module attributes {stable_mosaic.version = 11 : i64} {
  func.func @rpe_attn_kernel(%arg0: i32, %arg1: memref<32x32xf32, #tpu.memory_space<vmem>>, %arg2: memref<32x96xf32, #tpu.memory_space<vmem>>, %arg3: memref<32x32xf32, #tpu.memory_space<vmem>>, %arg4: memref<1x32xf32, #tpu.memory_space<vmem>>, %arg5: memref<4x32x32xf32, #tpu.memory_space<vmem>>, %arg6: memref<32x32xf32, #tpu.memory_space<vmem>>) attributes {dimension_semantics = [#tpu.dimension_semantics<arbitrary>], iteration_bounds = array<i64: 1>, scalar_prefetch = 0 : i64, scratch_operands = 0 : i64, tpu.core_type = #tpu.core_type<tc>, window_params = [{pipeline_mode = #tpu.pipeline_mode<synchronous>, transform_indices = @transform_0, window_bounds = array<i64: 32, 32>}, {pipeline_mode = #tpu.pipeline_mode<synchronous>, transform_indices = @transform_1, window_bounds = array<i64: 32, 96>}, {pipeline_mode = #tpu.pipeline_mode<synchronous>, transform_indices = @transform_2, window_bounds = array<i64: 32, 32>}, {pipeline_mode = #tpu.pipeline_mode<synchronous>, transform_indices = @transform_3, window_bounds = array<i64: 1, 32>}, {pipeline_mode = #tpu.pipeline_mode<synchronous>, transform_indices = @transform_4, window_bounds = array<i64: 4, 32, 32>}, {pipeline_mode = #tpu.pipeline_mode<synchronous>, transform_indices = @transform_5, window_bounds = array<i64: 32, 32>}]} {
    %c0 = arith.constant 0 : index
    %c0_0 = arith.constant 0 : index
    %0 = vector.load %arg1[%c0, %c0_0] : memref<32x32xf32, #tpu.memory_space<vmem>>, vector<32x32xf32>
    %c0_1 = arith.constant 0 : index
    %c0_2 = arith.constant 0 : index
    %1 = vector.load %arg2[%c0_1, %c0_2] : memref<32x96xf32, #tpu.memory_space<vmem>>, vector<32x96xf32>
    %cst = arith.constant dense<0.000000e+00> : vector<32x96xf32>
    %2 = tpu.matmul %0, %1, %cst {dimension_numbers = #tpu.dot_dimension_numbers<[1], [0], [0], [1], [0, 0, 1, 1], [], []>, precision = #tpu.contract_precision<fp32>} : vector<32x32xf32>, vector<32x96xf32>, vector<32x96xf32> -> vector<32x96xf32>
    %3 = vector.extract_strided_slice %2 {offsets = [0, 0], sizes = [32, 32], strides = [1, 1]} : vector<32x96xf32> to vector<32x32xf32>
    %cst_3 = arith.constant 0.353553385 : f32
    %4 = vector.broadcast %cst_3 : f32 to vector<32x32xf32>
    %5 = arith.mulf %3, %4 : vector<32x32xf32>
    %6 = vector.extract_strided_slice %2 {offsets = [0, 32], sizes = [32, 32], strides = [1, 1]} : vector<32x96xf32> to vector<32x32xf32>
    %7 = vector.extract_strided_slice %2 {offsets = [0, 64], sizes = [32, 32], strides = [1, 1]} : vector<32x96xf32> to vector<32x32xf32>
    %8 = vector.extract_strided_slice %5 {offsets = [0, 0], sizes = [32, 8], strides = [1, 1]} : vector<32x32xf32> to vector<32x8xf32>
    %9 = vector.extract_strided_slice %6 {offsets = [0, 0], sizes = [32, 8], strides = [1, 1]} : vector<32x32xf32> to vector<32x8xf32>
    %10 = vector.extract_strided_slice %7 {offsets = [0, 0], sizes = [32, 8], strides = [1, 1]} : vector<32x32xf32> to vector<32x8xf32>
    %cst_4 = arith.constant dense<0.000000e+00> : vector<32x32xf32>
    %11 = tpu.matmul %8, %9, %cst_4 {dimension_numbers = #tpu.dot_dimension_numbers<[1], [1], [0], [0], [0, 0, 1, 0], [], []>, precision = #tpu.contract_precision<fp32>} : vector<32x8xf32>, vector<32x8xf32>, vector<32x32xf32> -> vector<32x32xf32>
    %c0_5 = arith.constant 0 : index
    %c0_6 = arith.constant 0 : index
    %c0_7 = arith.constant 0 : index
    %12 = vector.load %arg5[%c0_5, %c0_6, %c0_7] : memref<4x32x32xf32, #tpu.memory_space<vmem>>, vector<1x32x32xf32>
    %13 = vector.shape_cast %12 : vector<1x32x32xf32> to vector<32x32xf32>
    %14 = arith.addf %11, %13 : vector<32x32xf32>
    %cst_8 = arith.constant dense<0xFF800000> : vector<32xf32>
    %15 = vector.multi_reduction <maximumf>, %14, %cst_8 [1] : vector<32x32xf32> to vector<32xf32>
    %16 = vector.shape_cast %15 : vector<32xf32> to vector<32x1xf32>
    %17 = vector.broadcast %16 : vector<32x1xf32> to vector<32x32xf32>
    %18 = arith.subf %14, %17 : vector<32x32xf32>
    %19 = math.exp %18 : vector<32x32xf32>
    %cst_9 = arith.constant dense<0.000000e+00> : vector<32xf32>
    %20 = vector.multi_reduction <add>, %19, %cst_9 [1] : vector<32x32xf32> to vector<32xf32>
    %21 = vector.shape_cast %20 : vector<32xf32> to vector<32x1xf32>
    %22 = tpu.reciprocal %21 {approx = true} : vector<32x1xf32> -> vector<32x1xf32>
    %23 = vector.broadcast %22 : vector<32x1xf32> to vector<32x32xf32>
    %24 = arith.mulf %19, %23 : vector<32x32xf32>
    %cst_10 = arith.constant dense<0.000000e+00> : vector<32x8xf32>
    %25 = tpu.matmul %24, %10, %cst_10 {dimension_numbers = #tpu.dot_dimension_numbers<[1], [0], [0], [1], [0, 0, 1, 1], [], []>, precision = #tpu.contract_precision<fp32>} : vector<32x32xf32>, vector<32x8xf32>, vector<32x8xf32> -> vector<32x8xf32>
    %26 = vector.extract_strided_slice %5 {offsets = [0, 8], sizes = [32, 8], strides = [1, 1]} : vector<32x32xf32> to vector<32x8xf32>
    %27 = vector.extract_strided_slice %6 {offsets = [0, 8], sizes = [32, 8], strides = [1, 1]} : vector<32x32xf32> to vector<32x8xf32>
    %28 = vector.extract_strided_slice %7 {offsets = [0, 8], sizes = [32, 8], strides = [1, 1]} : vector<32x32xf32> to vector<32x8xf32>
    %cst_11 = arith.constant dense<0.000000e+00> : vector<32x32xf32>
    %29 = tpu.matmul %26, %27, %cst_11 {dimension_numbers = #tpu.dot_dimension_numbers<[1], [1], [0], [0], [0, 0, 1, 0], [], []>, precision = #tpu.contract_precision<fp32>} : vector<32x8xf32>, vector<32x8xf32>, vector<32x32xf32> -> vector<32x32xf32>
    %c1 = arith.constant 1 : index
    %c0_12 = arith.constant 0 : index
    %c0_13 = arith.constant 0 : index
    %30 = vector.load %arg5[%c1, %c0_12, %c0_13] : memref<4x32x32xf32, #tpu.memory_space<vmem>>, vector<1x32x32xf32>
    %31 = vector.shape_cast %30 : vector<1x32x32xf32> to vector<32x32xf32>
    %32 = arith.addf %29, %31 : vector<32x32xf32>
    %cst_14 = arith.constant dense<0xFF800000> : vector<32xf32>
    %33 = vector.multi_reduction <maximumf>, %32, %cst_14 [1] : vector<32x32xf32> to vector<32xf32>
    %34 = vector.shape_cast %33 : vector<32xf32> to vector<32x1xf32>
    %35 = vector.broadcast %34 : vector<32x1xf32> to vector<32x32xf32>
    %36 = arith.subf %32, %35 : vector<32x32xf32>
    %37 = math.exp %36 : vector<32x32xf32>
    %cst_15 = arith.constant dense<0.000000e+00> : vector<32xf32>
    %38 = vector.multi_reduction <add>, %37, %cst_15 [1] : vector<32x32xf32> to vector<32xf32>
    %39 = vector.shape_cast %38 : vector<32xf32> to vector<32x1xf32>
    %40 = tpu.reciprocal %39 {approx = true} : vector<32x1xf32> -> vector<32x1xf32>
    %41 = vector.broadcast %40 : vector<32x1xf32> to vector<32x32xf32>
    %42 = arith.mulf %37, %41 : vector<32x32xf32>
    %cst_16 = arith.constant dense<0.000000e+00> : vector<32x8xf32>
    %43 = tpu.matmul %42, %28, %cst_16 {dimension_numbers = #tpu.dot_dimension_numbers<[1], [0], [0], [1], [0, 0, 1, 1], [], []>, precision = #tpu.contract_precision<fp32>} : vector<32x32xf32>, vector<32x8xf32>, vector<32x8xf32> -> vector<32x8xf32>
    %44 = vector.extract_strided_slice %5 {offsets = [0, 16], sizes = [32, 8], strides = [1, 1]} : vector<32x32xf32> to vector<32x8xf32>
    %45 = vector.extract_strided_slice %6 {offsets = [0, 16], sizes = [32, 8], strides = [1, 1]} : vector<32x32xf32> to vector<32x8xf32>
    %46 = vector.extract_strided_slice %7 {offsets = [0, 16], sizes = [32, 8], strides = [1, 1]} : vector<32x32xf32> to vector<32x8xf32>
    %cst_17 = arith.constant dense<0.000000e+00> : vector<32x32xf32>
    %47 = tpu.matmul %44, %45, %cst_17 {dimension_numbers = #tpu.dot_dimension_numbers<[1], [1], [0], [0], [0, 0, 1, 0], [], []>, precision = #tpu.contract_precision<fp32>} : vector<32x8xf32>, vector<32x8xf32>, vector<32x32xf32> -> vector<32x32xf32>
    %c2 = arith.constant 2 : index
    %c0_18 = arith.constant 0 : index
    %c0_19 = arith.constant 0 : index
    %48 = vector.load %arg5[%c2, %c0_18, %c0_19] : memref<4x32x32xf32, #tpu.memory_space<vmem>>, vector<1x32x32xf32>
    %49 = vector.shape_cast %48 : vector<1x32x32xf32> to vector<32x32xf32>
    %50 = arith.addf %47, %49 : vector<32x32xf32>
    %cst_20 = arith.constant dense<0xFF800000> : vector<32xf32>
    %51 = vector.multi_reduction <maximumf>, %50, %cst_20 [1] : vector<32x32xf32> to vector<32xf32>
    %52 = vector.shape_cast %51 : vector<32xf32> to vector<32x1xf32>
    %53 = vector.broadcast %52 : vector<32x1xf32> to vector<32x32xf32>
    %54 = arith.subf %50, %53 : vector<32x32xf32>
    %55 = math.exp %54 : vector<32x32xf32>
    %cst_21 = arith.constant dense<0.000000e+00> : vector<32xf32>
    %56 = vector.multi_reduction <add>, %55, %cst_21 [1] : vector<32x32xf32> to vector<32xf32>
    %57 = vector.shape_cast %56 : vector<32xf32> to vector<32x1xf32>
    %58 = tpu.reciprocal %57 {approx = true} : vector<32x1xf32> -> vector<32x1xf32>
    %59 = vector.broadcast %58 : vector<32x1xf32> to vector<32x32xf32>
    %60 = arith.mulf %55, %59 : vector<32x32xf32>
    %cst_22 = arith.constant dense<0.000000e+00> : vector<32x8xf32>
    %61 = tpu.matmul %60, %46, %cst_22 {dimension_numbers = #tpu.dot_dimension_numbers<[1], [0], [0], [1], [0, 0, 1, 1], [], []>, precision = #tpu.contract_precision<fp32>} : vector<32x32xf32>, vector<32x8xf32>, vector<32x8xf32> -> vector<32x8xf32>
    %62 = vector.extract_strided_slice %5 {offsets = [0, 24], sizes = [32, 8], strides = [1, 1]} : vector<32x32xf32> to vector<32x8xf32>
    %63 = vector.extract_strided_slice %6 {offsets = [0, 24], sizes = [32, 8], strides = [1, 1]} : vector<32x32xf32> to vector<32x8xf32>
    %64 = vector.extract_strided_slice %7 {offsets = [0, 24], sizes = [32, 8], strides = [1, 1]} : vector<32x32xf32> to vector<32x8xf32>
    %cst_23 = arith.constant dense<0.000000e+00> : vector<32x32xf32>
    %65 = tpu.matmul %62, %63, %cst_23 {dimension_numbers = #tpu.dot_dimension_numbers<[1], [1], [0], [0], [0, 0, 1, 0], [], []>, precision = #tpu.contract_precision<fp32>} : vector<32x8xf32>, vector<32x8xf32>, vector<32x32xf32> -> vector<32x32xf32>
    %c3 = arith.constant 3 : index
    %c0_24 = arith.constant 0 : index
    %c0_25 = arith.constant 0 : index
    %66 = vector.load %arg5[%c3, %c0_24, %c0_25] : memref<4x32x32xf32, #tpu.memory_space<vmem>>, vector<1x32x32xf32>
    %67 = vector.shape_cast %66 : vector<1x32x32xf32> to vector<32x32xf32>
    %68 = arith.addf %65, %67 : vector<32x32xf32>
    %cst_26 = arith.constant dense<0xFF800000> : vector<32xf32>
    %69 = vector.multi_reduction <maximumf>, %68, %cst_26 [1] : vector<32x32xf32> to vector<32xf32>
    %70 = vector.shape_cast %69 : vector<32xf32> to vector<32x1xf32>
    %71 = vector.broadcast %70 : vector<32x1xf32> to vector<32x32xf32>
    %72 = arith.subf %68, %71 : vector<32x32xf32>
    %73 = math.exp %72 : vector<32x32xf32>
    %cst_27 = arith.constant dense<0.000000e+00> : vector<32xf32>
    %74 = vector.multi_reduction <add>, %73, %cst_27 [1] : vector<32x32xf32> to vector<32xf32>
    %75 = vector.shape_cast %74 : vector<32xf32> to vector<32x1xf32>
    %76 = tpu.reciprocal %75 {approx = true} : vector<32x1xf32> -> vector<32x1xf32>
    %77 = vector.broadcast %76 : vector<32x1xf32> to vector<32x32xf32>
    %78 = arith.mulf %73, %77 : vector<32x32xf32>
    %cst_28 = arith.constant dense<0.000000e+00> : vector<32x8xf32>
    %79 = tpu.matmul %78, %64, %cst_28 {dimension_numbers = #tpu.dot_dimension_numbers<[1], [0], [0], [1], [0, 0, 1, 1], [], []>, precision = #tpu.contract_precision<fp32>} : vector<32x32xf32>, vector<32x8xf32>, vector<32x8xf32> -> vector<32x8xf32>
    %80 = tpu.concatenate %25, %43, %61, %79 in 1 : vector<32x8xf32>, vector<32x8xf32>, vector<32x8xf32>, vector<32x8xf32> -> vector<32x32xf32>
    %c0_29 = arith.constant 0 : index
    %c0_30 = arith.constant 0 : index
    %81 = vector.load %arg3[%c0_29, %c0_30] : memref<32x32xf32, #tpu.memory_space<vmem>>, vector<32x32xf32>
    %cst_31 = arith.constant dense<0.000000e+00> : vector<32x32xf32>
    %82 = tpu.matmul %80, %81, %cst_31 {dimension_numbers = #tpu.dot_dimension_numbers<[1], [0], [0], [1], [0, 0, 1, 1], [], []>, precision = #tpu.contract_precision<fp32>} : vector<32x32xf32>, vector<32x32xf32>, vector<32x32xf32> -> vector<32x32xf32>
    %c0_32 = arith.constant 0 : index
    %c0_33 = arith.constant 0 : index
    %83 = vector.load %arg4[%c0_32, %c0_33] : memref<1x32xf32, #tpu.memory_space<vmem>>, vector<1x32xf32>
    %84 = vector.broadcast %83 : vector<1x32xf32> to vector<32x32xf32>
    %85 = arith.addf %82, %84 : vector<32x32xf32>
    %c0_34 = arith.constant 0 : index
    %c0_35 = arith.constant 0 : index
    %86 = vector.load %arg6[%c0_34, %c0_35] : memref<32x32xf32, #tpu.memory_space<vmem>>, vector<32x32xf32>
    tpu.vector_store %arg6[%c0_34, %c0_35], %85 {strides = array<i32>} : memref<32x32xf32, #tpu.memory_space<vmem>>, vector<32x32xf32>,
    return
  }
  func.func @transform_0(%arg0: i32) -> (i32, i32) {
    %c0_i32 = arith.constant 0 : i32
    %c0_i32_0 = arith.constant 0 : i32
    %c0_i32_1 = arith.constant 0 : i32
    return %c0_i32, %c0_i32_0 : i32, i32
  }
  func.func @transform_1(%arg0: i32) -> (i32, i32) {
    %c0_i32 = arith.constant 0 : i32
    %c0_i32_0 = arith.constant 0 : i32
    %c0_i32_1 = arith.constant 0 : i32
    return %c0_i32, %c0_i32_0 : i32, i32
  }
  func.func @transform_2(%arg0: i32) -> (i32, i32) {
    %c0_i32 = arith.constant 0 : i32
    %c0_i32_0 = arith.constant 0 : i32
    %c0_i32_1 = arith.constant 0 : i32
    return %c0_i32, %c0_i32_0 : i32, i32
  }
  func.func @transform_3(%arg0: i32) -> (i32, i32) {
    %c0_i32 = arith.constant 0 : i32
    %c0_i32_0 = arith.constant 0 : i32
    %c0_i32_1 = arith.constant 0 : i32
    return %c0_i32, %c0_i32_0 : i32, i32
  }
  func.func @transform_4(%arg0: i32) -> (i32, i32, i32) {
    %c0_i32 = arith.constant 0 : i32
    %c0_i32_0 = arith.constant 0 : i32
    %c0_i32_1 = arith.constant 0 : i32
    %c0_i32_2 = arith.constant 0 : i32
    return %c0_i32, %c0_i32_0, %c0_i32_1 : i32, i32, i32
  }
  func.func @transform_5(%arg0: i32) -> (i32, i32) {
    %c0_i32 = arith.constant 0 : i32
    %c0_i32_0 = arith.constant 0 : i32
    %c0_i32_1 = arith.constant 0 : i32
    return %c0_i32, %c0_i32_0 : i32, i32
  }
}

</mosaic_0001>

<llo_original>
// kernel: tpu_custom_call.1
$region0: #{tpu_custom_call.1}
  #allocation0 [shape = 'u32[]', space=smem, size = 0x4, offset = 0x4, fixed_abs, tag = 'smem constant byte address 0x4 - core index']
  #allocation1 [shape = 'u32[144,128]{1,0:T(1,128)}', space=vmem, size = 0x12000, scoped, tag = 'internal scratch']
  %s0 = inlined_call_operand.hbm [shape: f32[32,32], index: 0, kind: input, shape index: {}]
  %s1 = inlined_call_operand.hbm [shape: f32[32,96], index: 1, kind: input, shape index: {}]
  %s2 = inlined_call_operand.hbm [shape: f32[32,32], index: 2, kind: input, shape index: {}]
  %s3 = inlined_call_operand.vmem [shape: f32[1,32], index: 3, kind: input, shape index: {}]
  %s4 = inlined_call_operand.hbm [shape: f32[4,32,32], index: 4, kind: input, shape index: {}]
  %s5 = inlined_call_operand.hbm [shape: f32[32,32], index: 5, kind: output, shape index: {}]
  %s6 = sld [smem:[#allocation0]]
  $region46: #{tpu_custom_call.1} parent=0
    _
  %s8 = ssub.s32 1, %s6
  %s9 = scalar_select 0, %s8, %s6
  $region1: #{tpu_custom_call.1} parent=0
    #allocation2 [shape = 'u8[16384]{0}', space=vmem, size = 0x4000, scoped, tag = 'input window, operand 0, single buffered']
    #allocation3 [shape = 's32[1]{0}', space=sflag, size = 0x4, scoped, tag = 'scoped memory for tpu_custom_call.1']
    #allocation4 [shape = 's32[1]{0}', space=sflag, size = 0x4, scoped, tag = 'scoped memory for tpu_custom_call.1']
    #allocation5 [shape = 'u8[16384]{0}', space=vmem, size = 0x4000, scoped, tag = 'input window, operand 1, single buffered']
    #allocation6 [shape = 's32[1]{0}', space=sflag, size = 0x4, scoped, tag = 'scoped memory for tpu_custom_call.1']
    #allocation7 [shape = 'u8[16384]{0}', space=vmem, size = 0x4000, scoped, tag = 'input window, operand 2, single buffered']
    #allocation8 [shape = 'u8[65536]{0}', space=vmem, size = 0x10000, scoped, tag = 'input window, operand 4, single buffered']
    #allocation9 [shape = 's32[1]{0}', space=sflag, size = 0x4, scoped, tag = 'scoped memory for tpu_custom_call.1']
    #allocation10 [shape = 'u8[16384]{0}', space=vmem, size = 0x4000, scoped, tag = 'output window, operand 0, single buffered']
    %10 = vsyncpa [#allocation3], 0
    %11 = vsyncpa [#allocation6], 0
    %12 = vsyncpa [#allocation9], 0
    %13 = vsyncpa [#allocation4], 0
    // Predicated region
    $region2: #{tpu_custom_call.1} parent=1 // pred_check
      _
    $region3: #{tpu_custom_call.1} parent=1 // pred_check_branch
      %15 = sbr.rel (0) target = $region5
    $region4: #{tpu_custom_call.1} parent=1 // pred_region
      %s17 = ssub.s32 512, 512
      %18 = vsyncadd [#allocation3], %s17
      %s19 = sshll.u32 [#allocation2], 4
      %s20 = int_to_ptr.vmem [resolvable:$true] %s19
      %25 = dma.hbm_to_vmem [thread:$0]  %s0, 512, %s20, [#allocation3], 128, 128, 8
    $region5: #{tpu_custom_call.1} parent=1 // pred_fallthru
      _
    // Predicated region
    $region6: #{tpu_custom_call.1} parent=1 // pred_check
      _
    $region7: #{tpu_custom_call.1} parent=1 // pred_check_branch
      %27 = sbr.rel (0) target = $region9
    $region8: #{tpu_custom_call.1} parent=1 // pred_region
      %s29 = ssub.s32 512, 512
      %30 = vsyncadd [#allocation6], %s29
      %s31 = sshll.u32 [#allocation5], 4
      %s32 = int_to_ptr.vmem [resolvable:$true] %s31
      %37 = dma.hbm_to_vmem [thread:$0]  %s1, 512, %s32, [#allocation6], 128, 128, 8
    $region9: #{tpu_custom_call.1} parent=1 // pred_fallthru
      _
    // Predicated region
    $region10: #{tpu_custom_call.1} parent=1 // pred_check
      _
    $region11: #{tpu_custom_call.1} parent=1 // pred_check_branch
      %39 = sbr.rel (0) target = $region13
    $region12: #{tpu_custom_call.1} parent=1 // pred_region
      %s41 = ssub.s32 512, 512
      %42 = vsyncadd [#allocation6], %s41
      %s43 = sshll.u32 [#allocation7], 4
      %s44 = int_to_ptr.vmem [resolvable:$true] %s43
      %49 = dma.hbm_to_vmem [thread:$0]  %s2, 512, %s44, [#allocation6], 128, 128, 8
    $region13: #{tpu_custom_call.1} parent=1 // pred_fallthru
      _
    // Predicated region
    $region14: #{tpu_custom_call.1} parent=1 // pred_check
      _
    $region15: #{tpu_custom_call.1} parent=1 // pred_check_branch
      %51 = sbr.rel (0) target = $region17
    $region16: #{tpu_custom_call.1} parent=1 // pred_region
      _
    $region17: #{tpu_custom_call.1} parent=1 // pred_fallthru
      _
    // Predicated region
    $region18: #{tpu_custom_call.1} parent=1 // pred_check
      _
    $region19: #{tpu_custom_call.1} parent=1 // pred_check_branch
      %53 = sbr.rel (0) target = $region21
    $region20: #{tpu_custom_call.1} parent=1 // pred_region
      %s55 = ssub.s32 2048, 2048
      %56 = vsyncadd [#allocation9], %s55
      %s57 = sshll.u32 [#allocation8], 4
      %s58 = int_to_ptr.vmem [resolvable:$true] %s57
      %63 = dma.hbm_to_vmem [thread:$0]  %s4, 2048, %s58, [#allocation9], 128, 128, 8
    $region21: #{tpu_custom_call.1} parent=1 // pred_fallthru
      _
    // Predicated region
    $region22: #{tpu_custom_call.1} parent=1 // pred_check
      _
    $region23: #{tpu_custom_call.1} parent=1 // pred_check_branch
      %65 = sbr.rel (0) target = $region25
    $region24: #{tpu_custom_call.1} parent=1 // pred_region
      %66 = dma.done [#allocation3], 512
    $region25: #{tpu_custom_call.1} parent=1 // pred_fallthru
      _
    // Predicated region
    $region26: #{tpu_custom_call.1} parent=1 // pred_check
      _
    $region27: #{tpu_custom_call.1} parent=1 // pred_check_branch
      %68 = sbr.rel (0) target = $region29
    $region28: #{tpu_custom_call.1} parent=1 // pred_region
      %69 = dma.done [#allocation6], 512
    $region29: #{tpu_custom_call.1} parent=1 // pred_fallthru
      _
    // Predicated region
    $region30: #{tpu_custom_call.1} parent=1 // pred_check
      _
    $region31: #{tpu_custom_call.1} parent=1 // pred_check_branch
      %71 = sbr.rel (0) target = $region33
    $region32: #{tpu_custom_call.1} parent=1 // pred_region
      %72 = dma.done [#allocation6], 512
    $region33: #{tpu_custom_call.1} parent=1 // pred_fallthru
      _
    // Predicated region
    $region34: #{tpu_custom_call.1} parent=1 // pred_check
      _
    $region35: #{tpu_custom_call.1} parent=1 // pred_check_branch
      %74 = sbr.rel (0) target = $region37
    $region36: #{tpu_custom_call.1} parent=1 // pred_region
      %75 = dma.done [#allocation9], 2048
    $region37: #{tpu_custom_call.1} parent=1 // pred_fallthru
      _
    %v76 = vld [vmem:[#allocation2] sm:$0xff]
    %v77 = vld [vmem:[#allocation2 + $0x8] sm:$0xff]
    %v78 = vld [vmem:[#allocation2 + $0x10] sm:$0xff]
    %v79 = vld [vmem:[#allocation2 + $0x18] sm:$0xff]
    %v80 = vld [vmem:[#allocation5] sm:$0xff]
    %v81 = vld [vmem:[#allocation5 + $0x8] sm:$0xff]
    %v82 = vld [vmem:[#allocation5 + $0x10] sm:$0xff]
    %v83 = vld [vmem:[#allocation5 + $0x18] sm:$0xff]
    %vm84 = vcmask 261120
    %v86 = vsel %vm84, %v76, 0
    %v89 = vsel %vm84, %v77, 0
    %v92 = vsel %vm84, %v78, 0
    %v95 = vsel %vm84, %v79, 0
    %97 = vmatprep.subr.mxu0 0.0
    %v98 = vand.u32 %v80, 4294901760
    %99 = vmatpush1.msra.mxu0 %v98
    %100 = vmatprep.subr.mxu0 0.0
    %v101 = vand.u32 %v81, 4294901760
    %102 = vmatpush1.msra.mxu0 %v101
    %103 = vmatprep.subr.mxu0 0.0
    %v104 = vand.u32 %v82, 4294901760
    %105 = vmatpush1.msra.mxu0 %v104
    %106 = vmatprep.subr.mxu0 0.0
    %v107 = vand.u32 %v83, 4294901760
    %108 = vmatpush1.msra.mxu0 %v107
    %109 = vmatprep.subr.mxu0 0.0
    %110 = vmatpush1.msra.mxu0 0.0
    %111 = vmatprep.subr.mxu0 0.0
    %112 = vmatpush1.msra.mxu0 0.0
    %113 = vmatprep.subr.mxu0 0.0
    %114 = vmatpush1.msra.mxu0 0.0
    %115 = vmatprep.subr.mxu0 0.0
    %116 = vmatpush1.msra.mxu0 0.0
    %117 = vmatprep.subr.mxu0 0.0
    %118 = vmatpush1.msra.mxu0 0.0
    %119 = vmatprep.subr.mxu0 0.0
    %120 = vmatpush1.msra.mxu0 0.0
    %121 = vmatprep.subr.mxu0 0.0
    %122 = vmatpush1.msra.mxu0 0.0
    %123 = vmatprep.subr.mxu0 0.0
    %124 = vmatpush1.msra.mxu0 0.0
    %125 = vmatprep.subr.mxu0 0.0
    %126 = vmatpush1.msra.mxu0 0.0
    %127 = vmatprep.subr.mxu0 0.0
    %128 = vmatpush1.msra.mxu0 0.0
    %129 = vmatprep.subr.mxu0 0.0
    %130 = vmatpush1.msra.mxu0 0.0
    %131 = vmatprep.subr.mxu0 0.0
    %132 = vmatpush1.msra.mxu0 0.0
    %133 = vmatprep.subr.mxu0 0.0
    %134 = vmatpush1.msra.mxu0 0.0
    %135 = vmatprep.subr.mxu0 0.0
    %136 = vmatpush1.msra.mxu0 0.0
    %137 = vmatprep.subr.mxu0 0.0
    %138 = vmatpush1.msra.mxu0 0.0
    %139 = vmatprep.subr.mxu0 0.0
    %140 = vmatpush1.msra.mxu0 0.0
    %141 = vmatprep.subr.mxu0 0.0
    %142 = vmatpush1.msra.mxu0 0.0
    %143 = vmatprep.subr.mxu0 0.0
    %144 = vmatpush1.msra.mxu0 0.0
    %145 = vmatprep.subr.mxu0 0.0
    %146 = vmatpush1.msra.mxu0 0.0
    %147 = vmatprep.subr.mxu0 0.0
    %148 = vmatpush1.msra.mxu0 0.0
    %149 = vmatprep.subr.mxu0 0.0
    %150 = vmatpush1.msra.mxu0 0.0
    %151 = vmatprep.subr.mxu0 0.0
    %152 = vmatpush1.msra.mxu0 0.0
    %153 = vmatprep.subr.mxu0 0.0
    %154 = vmatpush1.msra.mxu0 0.0
    %155 = vmatprep.subr.mxu0 0.0
    %156 = vmatpush1.msra.mxu0 0.0
    %157 = vmatprep.subr.mxu0 0.0
    %158 = vmatpush1.msra.mxu0 0.0
    %159 = vmatprep.subr.mxu0 0.0
    %160 = vmatpush1.msra.mxu0 0.0
    %161 = vmatprep.subr.mxu0 0.0
    %162 = vmatpush1.msra.mxu0 0.0
    %163 = vmatprep.subr.mxu0 0.0
    %164 = vmatpush1.msra.mxu0 0.0
    %165 = vmatprep.mubr.f32.mxu0 0.0
    %v166 = vand.u32 %v86, 4294901760
    %v167 = vsub.f32 %v86, %v166
    %v168 = vand.u32 %v167, 4294901760
    %v169 = vsub.f32 %v167, %v168
    %v170 = vand.u32 %v169, 4294901760
    %171 = vmatmul.mubr.f32.gmra.mrb[0].mxu0 %v170
    %v172 = vpop.f32.mrb[0].mxu0
    %v173 = vadd.f32 0.0, %v172
    %v174 = vpop.f32.mrb[0].mxu0
    %175 = vmatprep.mubr.f32.mxu0 0.0
    %v176 = vand.u32 %v89, 4294901760
    %v177 = vsub.f32 %v89, %v176
    %v178 = vand.u32 %v177, 4294901760
    %v179 = vsub.f32 %v177, %v178
    %v180 = vand.u32 %v179, 4294901760
    %181 = vmatmul.mubr.f32.gmra.mrb[0].mxu0 %v180
    %v182 = vpop.f32.mrb[0].mxu0
    %v183 = vadd.f32 0.0, %v182
    %v184 = vpop.f32.mrb[0].mxu0
    %185 = vmatprep.mubr.f32.mxu0 0.0
    %v186 = vand.u32 %v92, 4294901760
    %v187 = vsub.f32 %v92, %v186
    %v188 = vand.u32 %v187, 4294901760
    %v189 = vsub.f32 %v187, %v188
    %v190 = vand.u32 %v189, 4294901760
    %191 = vmatmul.mubr.f32.gmra.mrb[0].mxu0 %v190
    %v192 = vpop.f32.mrb[0].mxu0
    %v193 = vadd.f32 0.0, %v192
    %v194 = vpop.f32.mrb[0].mxu0
    %195 = vmatprep.mubr.f32.mxu0 0.0
    %v196 = vand.u32 %v95, 4294901760
    %v197 = vsub.f32 %v95, %v196
    %v198 = vand.u32 %v197, 4294901760
    %v199 = vsub.f32 %v197, %v198
    %v200 = vand.u32 %v199, 4294901760
    %201 = vmatmul.mubr.f32.gmra.mrb[0].mxu0 %v200
    %v202 = vpop.f32.mrb[0].mxu0
    %v203 = vadd.f32 0.0, %v202
    %v204 = vpop.f32.mrb[0].mxu0
    %205 = vdwg.mxu0
    %206 = vmatprep.subr.mxu0 0.0
    %v207 = vand.u32 %v80, 4294901760
    %v208 = vsub.f32 %v80, %v207
    %v209 = vand.u32 %v208, 4294901760
    %v210 = vsub.f32 %v208, %v209
    %v211 = vand.u32 %v210, 4294901760
    %212 = vmatpush1.msra.mxu0 %v211
    %213 = vmatprep.subr.mxu0 0.0
    %v214 = vand.u32 %v81, 4294901760
    %v215 = vsub.f32 %v81, %v214
    %v216 = vand.u32 %v215, 4294901760
    %v217 = vsub.f32 %v215, %v216
    %v218 = vand.u32 %v217, 4294901760
    %219 = vmatpush1.msra.mxu0 %v218
    %220 = vmatprep.subr.mxu0 0.0
    %v221 = vand.u32 %v82, 4294901760
    %v222 = vsub.f32 %v82, %v221
    %v223 = vand.u32 %v222, 4294901760
    %v224 = vsub.f32 %v222, %v223
    %v225 = vand.u32 %v224, 4294901760
    %226 = vmatpush1.msra.mxu0 %v225
    %227 = vmatprep.subr.mxu0 0.0
    %v228 = vand.u32 %v83, 4294901760
    %v229 = vsub.f32 %v83, %v228
    %v230 = vand.u32 %v229, 4294901760
    %v231 = vsub.f32 %v229, %v230
    %v232 = vand.u32 %v231, 4294901760
    %233 = vmatpush1.msra.mxu0 %v232
    %234 = vmatprep.subr.mxu0 0.0
    %235 = vmatpush1.msra.mxu0 0.0
    %236 = vmatprep.subr.mxu0 0.0
    %237 = vmatpush1.msra.mxu0 0.0
    %238 = vmatprep.subr.mxu0 0.0
    %239 = vmatpush1.msra.mxu0 0.0
    %240 = vmatprep.subr.mxu0 0.0
    %241 = vmatpush1.msra.mxu0 0.0
    %242 = vmatprep.subr.mxu0 0.0
    %243 = vmatpush1.msra.mxu0 0.0
    %244 = vmatprep.subr.mxu0 0.0
    %245 = vmatpush1.msra.mxu0 0.0
    %246 = vmatprep.subr.mxu0 0.0
    %247 = vmatpush1.msra.mxu0 0.0
    %248 = vmatprep.subr.mxu0 0.0
    %249 = vmatpush1.msra.mxu0 0.0
    %250 = vmatprep.subr.mxu0 0.0
    %251 = vmatpush1.msra.mxu0 0.0
    %252 = vmatprep.subr.mxu0 0.0
    %253 = vmatpush1.msra.mxu0 0.0
    %254 = vmatprep.subr.mxu0 0.0
    %255 = vmatpush1.msra.mxu0 0.0
    %256 = vmatprep.subr.mxu0 0.0
    %257 = vmatpush1.msra.mxu0 0.0
    %258 = vmatprep.subr.mxu0 0.0
    %259 = vmatpush1.msra.mxu0 0.0
    %260 = vmatprep.subr.mxu0 0.0
    %261 = vmatpush1.msra.mxu0 0.0
    %262 = vmatprep.subr.mxu0 0.0
    %263 = vmatpush1.msra.mxu0 0.0
    %264 = vmatprep.subr.mxu0 0.0
    %265 = vmatpush1.msra.mxu0 0.0
    %266 = vmatprep.subr.mxu0 0.0
    %267 = vmatpush1.msra.mxu0 0.0
    %268 = vmatprep.subr.mxu0 0.0
    %269 = vmatpush1.msra.mxu0 0.0
    %270 = vmatprep.subr.mxu0 0.0
    %271 = vmatpush1.msra.mxu0 0.0
    %272 = vmatprep.subr.mxu0 0.0
    %273 = vmatpush1.msra.mxu0 0.0
    %274 = vmatprep.subr.mxu0 0.0
    %275 = vmatpush1.msra.mxu0 0.0
    %276 = vmatprep.subr.mxu0 0.0
    %277 = vmatpush1.msra.mxu0 0.0
    %278 = vmatprep.subr.mxu0 0.0
    %279 = vmatpush1.msra.mxu0 0.0
    %280 = vmatprep.subr.mxu0 0.0
    %281 = vmatpush1.msra.mxu0 0.0
    %282 = vmatprep.subr.mxu0 0.0
    %283 = vmatpush1.msra.mxu0 0.0
    %284 = vmatprep.subr.mxu0 0.0
    %285 = vmatpush1.msra.mxu0 0.0
    %286 = vmatprep.subr.mxu0 0.0
    %287 = vmatpush1.msra.mxu0 0.0
    %288 = vmatprep.subr.mxu0 0.0
    %289 = vmatpush1.msra.mxu0 0.0
    %290 = vmatprep.mubr.f32.mxu0 0.0
    %v291 = vand.u32 %v86, 4294901760
    %292 = vmatmul.mubr.f32.gmra.mrb[0].mxu0 %v291
    %v293 = vpop.f32.mrb[0].mxu0
    %v294 = vadd.f32 %v173, %v293
    %v295 = vpop.f32.mrb[0].mxu0
    %296 = vmatprep.mubr.f32.mxu0 0.0
    %v297 = vand.u32 %v89, 4294901760
    %298 = vmatmul.mubr.f32.gmra.mrb[0].mxu0 %v297
    %v299 = vpop.f32.mrb[0].mxu0
    %v300 = vadd.f32 %v183, %v299
    %v301 = vpop.f32.mrb[0].mxu0
    %302 = vmatprep.mubr.f32.mxu0 0.0
    %v303 = vand.u32 %v92, 4294901760
    %304 = vmatmul.mubr.f32.gmra.mrb[0].mxu0 %v303
    %v305 = vpop.f32.mrb[0].mxu0
    %v306 = vadd.f32 %v193, %v305
    %v307 = vpop.f32.mrb[0].mxu0
    %308 = vmatprep.mubr.f32.mxu0 0.0
    %v309 = vand.u32 %v95, 4294901760
    %310 = vmatmul.mubr.f32.gmra.mrb[0].mxu0 %v309
    %v311 = vpop.f32.mrb[0].mxu0
    %v312 = vadd.f32 %v203, %v311
    %v313 = vpop.f32.mrb[0].mxu0
    %314 = vdwg.mxu0
    %315 = vmatprep.subr.mxu0 0.0
    %v316 = vand.u32 %v80, 4294901760
    %v317 = vsub.f32 %v80, %v316
    %318 = vmatpush1.msra.mxu0 %v317
    %319 = vmatprep.subr.mxu0 0.0
    %v320 = vand.u32 %v81, 4294901760
    %v321 = vsub.f32 %v81, %v320
    %322 = vmatpush1.msra.mxu0 %v321
    %323 = vmatprep.subr.mxu0 0.0
    %v324 = vand.u32 %v82, 4294901760
    %v325 = vsub.f32 %v82, %v324
    %326 = vmatpush1.msra.mxu0 %v325
    %327 = vmatprep.subr.mxu0 0.0
    %v328 = vand.u32 %v83, 4294901760
    %v329 = vsub.f32 %v83, %v328
    %330 = vmatpush1.msra.mxu0 %v329
    %331 = vmatprep.subr.mxu0 0.0
    %332 = vmatpush1.msra.mxu0 0.0
    %333 = vmatprep.subr.mxu0 0.0
    %334 = vmatpush1.msra.mxu0 0.0
    %335 = vmatprep.subr.mxu0 0.0
    %336 = vmatpush1.msra.mxu0 0.0
    %337 = vmatprep.subr.mxu0 0.0
    %338 = vmatpush1.msra.mxu0 0.0
    %339 = vmatprep.subr.mxu0 0.0
    %340 = vmatpush1.msra.mxu0 0.0
    %341 = vmatprep.subr.mxu0 0.0
    %342 = vmatpush1.msra.mxu0 0.0
    %343 = vmatprep.subr.mxu0 0.0
    %344 = vmatpush1.msra.mxu0 0.0
    %345 = vmatprep.subr.mxu0 0.0
    %346 = vmatpush1.msra.mxu0 0.0
    %347 = vmatprep.subr.mxu0 0.0
    %348 = vmatpush1.msra.mxu0 0.0
    %349 = vmatprep.subr.mxu0 0.0
    %350 = vmatpush1.msra.mxu0 0.0
    %351 = vmatprep.subr.mxu0 0.0
    %352 = vmatpush1.msra.mxu0 0.0
    %353 = vmatprep.subr.mxu0 0.0
    %354 = vmatpush1.msra.mxu0 0.0
    %355 = vmatprep.subr.mxu0 0.0
    %356 = vmatpush1.msra.mxu0 0.0
    %357 = vmatprep.subr.mxu0 0.0
    %358 = vmatpush1.msra.mxu0 0.0
    %359 = vmatprep.subr.mxu0 0.0
    %360 = vmatpush1.msra.mxu0 0.0
    %361 = vmatprep.subr.mxu0 0.0
    %362 = vmatpush1.msra.mxu0 0.0
    %363 = vmatprep.subr.mxu0 0.0
    %364 = vmatpush1.msra.mxu0 0.0
    %365 = vmatprep.subr.mxu0 0.0
    %366 = vmatpush1.msra.mxu0 0.0
    %367 = vmatprep.subr.mxu0 0.0
    %368 = vmatpush1.msra.mxu0 0.0
    %369 = vmatprep.subr.mxu0 0.0
    %370 = vmatpush1.msra.mxu0 0.0
    %371 = vmatprep.subr.mxu0 0.0
    %372 = vmatpush1.msra.mxu0 0.0
    %373 = vmatprep.subr.mxu0 0.0
    %374 = vmatpush1.msra.mxu0 0.0
    %375 = vmatprep.subr.mxu0 0.0
    %376 = vmatpush1.msra.mxu0 0.0
    %377 = vmatprep.subr.mxu0 0.0
    %378 = vmatpush1.msra.mxu0 0.0
    %379 = vmatprep.subr.mxu0 0.0
    %380 = vmatpush1.msra.mxu0 0.0
    %381 = vmatprep.subr.mxu0 0.0
    %382 = vmatpush1.msra.mxu0 0.0
    %383 = vmatprep.subr.mxu0 0.0
    %384 = vmatpush1.msra.mxu0 0.0
    %385 = vmatprep.subr.mxu0 0.0
    %386 = vmatpush1.msra.mxu0 0.0
    %387 = vmatprep.mubr.f32.mxu0 0.0
    %v388 = vand.u32 %v86, 4294901760
    %v389 = vsub.f32 %v86, %v388
    %390 = vmatmul.mubr.f32.gmra.mrb[0].mxu0 %v389
    %v391 = vpop.f32.mrb[0].mxu0
    %v392 = vadd.f32 %v294, %v391
    %v393 = vpop.f32.mrb[0].mxu0
    %394 = vmatprep.mubr.f32.mxu0 0.0
    %v395 = vand.u32 %v89, 4294901760
    %v396 = vsub.f32 %v89, %v395
    %397 = vmatmul.mubr.f32.gmra.mrb[0].mxu0 %v396
    %v398 = vpop.f32.mrb[0].mxu0
    %v399 = vadd.f32 %v300, %v398
    %v400 = vpop.f32.mrb[0].mxu0
    %401 = vmatprep.mubr.f32.mxu0 0.0
    %v402 = vand.u32 %v92, 4294901760
    %v403 = vsub.f32 %v92, %v402
    %404 = vmatmul.mubr.f32.gmra.mrb[0].mxu0 %v403
    %v405 = vpop.f32.mrb[0].mxu0
    %v406 = vadd.f32 %v306, %v405
    %v407 = vpop.f32.mrb[0].mxu0
    %408 = vmatprep.mubr.f32.mxu0 0.0
    %v409 = vand.u32 %v95, 4294901760
    %v410 = vsub.f32 %v95, %v409
    %411 = vmatmul.mubr.f32.gmra.mrb[0].mxu0 %v410
    %v412 = vpop.f32.mrb[0].mxu0
    %v413 = vadd.f32 %v312, %v412
    %v414 = vpop.f32.mrb[0].mxu0
    %415 = vdwg.mxu0
    %416 = vmatprep.subr.mxu0 0.0
    %v417 = vand.u32 %v80, 4294901760
    %418 = vmatpush1.msra.mxu0 %v417
    %419 = vmatprep.subr.mxu0 0.0
    %v420 = vand.u32 %v81, 4294901760
    %421 = vmatpush1.msra.mxu0 %v420
    %422 = vmatprep.subr.mxu0 0.0
    %v423 = vand.u32 %v82, 4294901760
    %424 = vmatpush1.msra.mxu0 %v423
    %425 = vmatprep.subr.mxu0 0.0
    %v426 = vand.u32 %v83, 4294901760
    %427 = vmatpush1.msra.mxu0 %v426
    %428 = vmatprep.subr.mxu0 0.0
    %429 = vmatpush1.msra.mxu0 0.0
    %430 = vmatprep.subr.mxu0 0.0
    %431 = vmatpush1.msra.mxu0 0.0
    %432 = vmatprep.subr.mxu0 0.0
    %433 = vmatpush1.msra.mxu0 0.0
    %434 = vmatprep.subr.mxu0 0.0
    %435 = vmatpush1.msra.mxu0 0.0
    %436 = vmatprep.subr.mxu0 0.0
    %437 = vmatpush1.msra.mxu0 0.0
    %438 = vmatprep.subr.mxu0 0.0
    %439 = vmatpush1.msra.mxu0 0.0
    %440 = vmatprep.subr.mxu0 0.0
    %441 = vmatpush1.msra.mxu0 0.0
    %442 = vmatprep.subr.mxu0 0.0
    %443 = vmatpush1.msra.mxu0 0.0
    %444 = vmatprep.subr.mxu0 0.0
    %445 = vmatpush1.msra.mxu0 0.0
    %446 = vmatprep.subr.mxu0 0.0
    %447 = vmatpush1.msra.mxu0 0.0
    %448 = vmatprep.subr.mxu0 0.0
    %449 = vmatpush1.msra.mxu0 0.0
    %450 = vmatprep.subr.mxu0 0.0
    %451 = vmatpush1.msra.mxu0 0.0
    %452 = vmatprep.subr.mxu0 0.0
    %453 = vmatpush1.msra.mxu0 0.0
    %454 = vmatprep.subr.mxu0 0.0
    %455 = vmatpush1.msra.mxu0 0.0
    %456 = vmatprep.subr.mxu0 0.0
    %457 = vmatpush1.msra.mxu0 0.0
    %458 = vmatprep.subr.mxu0 0.0
    %459 = vmatpush1.msra.mxu0 0.0
    %460 = vmatprep.subr.mxu0 0.0
    %461 = vmatpush1.msra.mxu0 0.0
    %462 = vmatprep.subr.mxu0 0.0
    %463 = vmatpush1.msra.mxu0 0.0
    %464 = vmatprep.subr.mxu0 0.0
    %465 = vmatpush1.msra.mxu0 0.0
    %466 = vmatprep.subr.mxu0 0.0
    %467 = vmatpush1.msra.mxu0 0.0
    %468 = vmatprep.subr.mxu0 0.0
    %469 = vmatpush1.msra.mxu0 0.0
    %470 = vmatprep.subr.mxu0 0.0
    %471 = vmatpush1.msra.mxu0 0.0
    %472 = vmatprep.subr.mxu0 0.0
    %473 = vmatpush1.msra.mxu0 0.0
    %474 = vmatprep.subr.mxu0 0.0
    %475 = vmatpush1.msra.mxu0 0.0
    %476 = vmatprep.subr.mxu0 0.0
    %477 = vmatpush1.msra.mxu0 0.0
    %478 = vmatprep.subr.mxu0 0.0
    %479 = vmatpush1.msra.mxu0 0.0
    %480 = vmatprep.subr.mxu0 0.0
    %481 = vmatpush1.msra.mxu0 0.0
    %482 = vmatprep.subr.mxu0 0.0
    %483 = vmatpush1.msra.mxu0 0.0
    %484 = vmatprep.mubr.f32.mxu0 0.0
    %v485 = vand.u32 %v86, 4294901760
    %v486 = vsub.f32 %v86, %v485
    %v487 = vand.u32 %v486, 4294901760
    %488 = vmatmul.mubr.f32.gmra.mrb[0].mxu0 %v487
    %v489 = vpop.f32.mrb[0].mxu0
    %v490 = vadd.f32 %v392, %v489
    %v491 = vpop.f32.mrb[0].mxu0
    %492 = vmatprep.mubr.f32.mxu0 0.0
    %v493 = vand.u32 %v89, 4294901760
    %v494 = vsub.f32 %v89, %v493
    %v495 = vand.u32 %v494, 4294901760
    %496 = vmatmul.mubr.f32.gmra.mrb[0].mxu0 %v495
    %v497 = vpop.f32.mrb[0].mxu0
    %v498 = vadd.f32 %v399, %v497
    %v499 = vpop.f32.mrb[0].mxu0
    %500 = vmatprep.mubr.f32.mxu0 0.0
    %v501 = vand.u32 %v92, 4294901760
    %v502 = vsub.f32 %v92, %v501
    %v503 = vand.u32 %v502, 4294901760
    %504 = vmatmul.mubr.f32.gmra.mrb[0].mxu0 %v503
    %v505 = vpop.f32.mrb[0].mxu0
    %v506 = vadd.f32 %v406, %v505
    %v507 = vpop.f32.mrb[0].mxu0
    %508 = vmatprep.mubr.f32.mxu0 0.0
    %v509 = vand.u32 %v95, 4294901760
    %v510 = vsub.f32 %v95, %v509
    %v511 = vand.u32 %v510, 4294901760
    %512 = vmatmul.mubr.f32.gmra.mrb[0].mxu0 %v511
    %v513 = vpop.f32.mrb[0].mxu0
    %v514 = vadd.f32 %v413, %v513
    %v515 = vpop.f32.mrb[0].mxu0
    %516 = vdwg.mxu0
    %517 = vmatprep.subr.mxu0 0.0
    %v518 = vand.u32 %v80, 4294901760
    %v519 = vsub.f32 %v80, %v518
    %v520 = vand.u32 %v519, 4294901760
    %521 = vmatpush1.msra.mxu0 %v520
    %522 = vmatprep.subr.mxu0 0.0
    %v523 = vand.u32 %v81, 4294901760
    %v524 = vsub.f32 %v81, %v523
    %v525 = vand.u32 %v524, 4294901760
    %526 = vmatpush1.msra.mxu0 %v525
    %527 = vmatprep.subr.mxu0 0.0
    %v528 = vand.u32 %v82, 4294901760
    %v529 = vsub.f32 %v82, %v528
    %v530 = vand.u32 %v529, 4294901760
    %531 = vmatpush1.msra.mxu0 %v530
    %532 = vmatprep.subr.mxu0 0.0
    %v533 = vand.u32 %v83, 4294901760
    %v534 = vsub.f32 %v83, %v533
    %v535 = vand.u32 %v534, 4294901760
    %536 = vmatpush1.msra.mxu0 %v535
    %537 = vmatprep.subr.mxu0 0.0
    %538 = vmatpush1.msra.mxu0 0.0
    %539 = vmatprep.subr.mxu0 0.0
    %540 = vmatpush1.msra.mxu0 0.0
    %541 = vmatprep.subr.mxu0 0.0
    %542 = vmatpush1.msra.mxu0 0.0
    %543 = vmatprep.subr.mxu0 0.0
    %544 = vmatpush1.msra.mxu0 0.0
    %545 = vmatprep.subr.mxu0 0.0
    %546 = vmatpush1.msra.mxu0 0.0
    %547 = vmatprep.subr.mxu0 0.0
    %548 = vmatpush1.msra.mxu0 0.0
    %549 = vmatprep.subr.mxu0 0.0
    %550 = vmatpush1.msra.mxu0 0.0
    %551 = vmatprep.subr.mxu0 0.0
    %552 = vmatpush1.msra.mxu0 0.0
    %553 = vmatprep.subr.mxu0 0.0
    %554 = vmatpush1.msra.mxu0 0.0
    %555 = vmatprep.subr.mxu0 0.0
    %556 = vmatpush1.msra.mxu0 0.0
    %557 = vmatprep.subr.mxu0 0.0
    %558 = vmatpush1.msra.mxu0 0.0
    %559 = vmatprep.subr.mxu0 0.0
    %560 = vmatpush1.msra.mxu0 0.0
    %561 = vmatprep.subr.mxu0 0.0
    %562 = vmatpush1.msra.mxu0 0.0
    %563 = vmatprep.subr.mxu0 0.0
    %564 = vmatpush1.msra.mxu0 0.0
    %565 = vmatprep.subr.mxu0 0.0
    %566 = vmatpush1.msra.mxu0 0.0
    %567 = vmatprep.subr.mxu0 0.0
    %568 = vmatpush1.msra.mxu0 0.0
    %569 = vmatprep.subr.mxu0 0.0
    %570 = vmatpush1.msra.mxu0 0.0
    %571 = vmatprep.subr.mxu0 0.0
    %572 = vmatpush1.msra.mxu0 0.0
    %573 = vmatprep.subr.mxu0 0.0
    %574 = vmatpush1.msra.mxu0 0.0
    %575 = vmatprep.subr.mxu0 0.0
    %576 = vmatpush1.msra.mxu0 0.0
    %577 = vmatprep.subr.mxu0 0.0
    %578 = vmatpush1.msra.mxu0 0.0
    %579 = vmatprep.subr.mxu0 0.0
    %580 = vmatpush1.msra.mxu0 0.0
    %581 = vmatprep.subr.mxu0 0.0
    %582 = vmatpush1.msra.mxu0 0.0
    %583 = vmatprep.subr.mxu0 0.0
    %584 = vmatpush1.msra.mxu0 0.0
    %585 = vmatprep.subr.mxu0 0.0
    %586 = vmatpush1.msra.mxu0 0.0
    %587 = vmatprep.subr.mxu0 0.0
    %588 = vmatpush1.msra.mxu0 0.0
    %589 = vmatprep.subr.mxu0 0.0
    %590 = vmatpush1.msra.mxu0 0.0
    %591 = vmatprep.subr.mxu0 0.0
    %592 = vmatpush1.msra.mxu0 0.0
    %593 = vmatprep.mubr.f32.mxu0 0.0
    %v594 = vand.u32 %v86, 4294901760
    %595 = vmatmul.mubr.f32.gmra.mrb[0].mxu0 %v594
    %v596 = vpop.f32.mrb[0].mxu0
    %v597 = vadd.f32 %v490, %v596
    %v598 = vpop.f32.mrb[0].mxu0
    %599 = vmatprep.mubr.f32.mxu0 0.0
    %v600 = vand.u32 %v89, 4294901760
    %601 = vmatmul.mubr.f32.gmra.mrb[0].mxu0 %v600
    %v602 = vpop.f32.mrb[0].mxu0
    %v603 = vadd.f32 %v498, %v602
    %v604 = vpop.f32.mrb[0].mxu0
    %605 = vmatprep.mubr.f32.mxu0 0.0
    %v606 = vand.u32 %v92, 4294901760
    %607 = vmatmul.mubr.f32.gmra.mrb[0].mxu0 %v606
    %v608 = vpop.f32.mrb[0].mxu0
    %v609 = vadd.f32 %v506, %v608
    %v610 = vpop.f32.mrb[0].mxu0
    %611 = vmatprep.mubr.f32.mxu0 0.0
    %v612 = vand.u32 %v95, 4294901760
    %613 = vmatmul.mubr.f32.gmra.mrb[0].mxu0 %v612
    %v614 = vpop.f32.mrb[0].mxu0
    %v615 = vadd.f32 %v514, %v614
    %v616 = vpop.f32.mrb[0].mxu0
    %617 = vdwg.mxu0
    %618 = vmatprep.subr.mxu0 0.0
    %v619 = vand.u32 %v80, 4294901760
    %620 = vmatpush1.msra.mxu0 %v619
    %621 = vmatprep.subr.mxu0 0.0
    %v622 = vand.u32 %v81, 4294901760
    %623 = vmatpush1.msra.mxu0 %v622
    %624 = vmatprep.subr.mxu0 0.0
    %v625 = vand.u32 %v82, 4294901760
    %626 = vmatpush1.msra.mxu0 %v625
    %627 = vmatprep.subr.mxu0 0.0
    %v628 = vand.u32 %v83, 4294901760
    %629 = vmatpush1.msra.mxu0 %v628
    %630 = vmatprep.subr.mxu0 0.0
    %631 = vmatpush1.msra.mxu0 0.0
    %632 = vmatprep.subr.mxu0 0.0
    %633 = vmatpush1.msra.mxu0 0.0
    %634 = vmatprep.subr.mxu0 0.0
    %635 = vmatpush1.msra.mxu0 0.0
    %636 = vmatprep.subr.mxu0 0.0
    %637 = vmatpush1.msra.mxu0 0.0
    %638 = vmatprep.subr.mxu0 0.0
    %639 = vmatpush1.msra.mxu0 0.0
    %640 = vmatprep.subr.mxu0 0.0
    %641 = vmatpush1.msra.mxu0 0.0
    %642 = vmatprep.subr.mxu0 0.0
    %643 = vmatpush1.msra.mxu0 0.0
    %644 = vmatprep.subr.mxu0 0.0
    %645 = vmatpush1.msra.mxu0 0.0
    %646 = vmatprep.subr.mxu0 0.0
    %647 = vmatpush1.msra.mxu0 0.0
    %648 = vmatprep.subr.mxu0 0.0
    %649 = vmatpush1.msra.mxu0 0.0
    %650 = vmatprep.subr.mxu0 0.0
    %651 = vmatpush1.msra.mxu0 0.0
    %652 = vmatprep.subr.mxu0 0.0
    %653 = vmatpush1.msra.mxu0 0.0
    %654 = vmatprep.subr.mxu0 0.0
    %655 = vmatpush1.msra.mxu0 0.0
    %656 = vmatprep.subr.mxu0 0.0
    %657 = vmatpush1.msra.mxu0 0.0
    %658 = vmatprep.subr.mxu0 0.0
    %659 = vmatpush1.msra.mxu0 0.0
    %660 = vmatprep.subr.mxu0 0.0
    %661 = vmatpush1.msra.mxu0 0.0
    %662 = vmatprep.subr.mxu0 0.0
    %663 = vmatpush1.msra.mxu0 0.0
    %664 = vmatprep.subr.mxu0 0.0
    %665 = vmatpush1.msra.mxu0 0.0
    %666 = vmatprep.subr.mxu0 0.0
    %667 = vmatpush1.msra.mxu0 0.0
    %668 = vmatprep.subr.mxu0 0.0
    %669 = vmatpush1.msra.mxu0 0.0
    %670 = vmatprep.subr.mxu0 0.0
    %671 = vmatpush1.msra.mxu0 0.0
    %672 = vmatprep.subr.mxu0 0.0
    %673 = vmatpush1.msra.mxu0 0.0
    %674 = vmatprep.subr.mxu0 0.0
    %675 = vmatpush1.msra.mxu0 0.0
    %676 = vmatprep.subr.mxu0 0.0
    %677 = vmatpush1.msra.mxu0 0.0
    %678 = vmatprep.subr.mxu0 0.0
    %679 = vmatpush1.msra.mxu0 0.0
    %680 = vmatprep.subr.mxu0 0.0
    %681 = vmatpush1.msra.mxu0 0.0
    %682 = vmatprep.subr.mxu0 0.0
    %683 = vmatpush1.msra.mxu0 0.0
    %684 = vmatprep.subr.mxu0 0.0
    %685 = vmatpush1.msra.mxu0 0.0
    %686 = vmatprep.mubr.f32.mxu0 0.0
    %v687 = vand.u32 %v86, 4294901760
    %688 = vmatmul.mubr.f32.gmra.mrb[0].mxu0 %v687
    %v689 = vpop.f32.mrb[0].mxu0
    %v690 = vadd.f32 %v597, %v689
    %v691 = vpop.f32.mrb[0].mxu0
    %692 = vmatprep.mubr.f32.mxu0 0.0
    %v693 = vand.u32 %v89, 4294901760
    %694 = vmatmul.mubr.f32.gmra.mrb[0].mxu0 %v693
    %v695 = vpop.f32.mrb[0].mxu0
    %v696 = vadd.f32 %v603, %v695
    %v697 = vpop.f32.mrb[0].mxu0
    %698 = vmatprep.mubr.f32.mxu0 0.0
    %v699 = vand.u32 %v92, 4294901760
    %700 = vmatmul.mubr.f32.gmra.mrb[0].mxu0 %v699
    %v701 = vpop.f32.mrb[0].mxu0
    %v702 = vadd.f32 %v609, %v701
    %v703 = vpop.f32.mrb[0].mxu0
    %704 = vmatprep.mubr.f32.mxu0 0.0
    %v705 = vand.u32 %v95, 4294901760
    %706 = vmatmul.mubr.f32.gmra.mrb[0].mxu0 %v705
    %v707 = vpop.f32.mrb[0].mxu0
    %v708 = vadd.f32 %v615, %v707
    %v709 = vpop.f32.mrb[0].mxu0
    %710 = vdwg.mxu0
    %v711 = vmul.f32 %v690, 0.35355338
    %v712 = vmul.f32 %v696, 0.35355338
    %v713 = vmul.f32 %v702, 0.35355338
    %v714 = vmul.f32 %v708, 0.35355338
    %v715 = vld [vmem:[#allocation8] sm:$0xff]
    %v716 = vld [vmem:[#allocation8 + $0x8] sm:$0xff]
    %v717 = vld [vmem:[#allocation8 + $0x10] sm:$0xff]
    %v718 = vld [vmem:[#allocation8 + $0x18] sm:$0xff]
    %723 = vrot.lane.b32.xlu0 %v690, 96
    %v724 = vpop.permute.xlu0 %723
    %725 = vrot.lane.b32.xlu0 %v696, 96
    %v726 = vpop.permute.xlu0 %725
    %727 = vrot.lane.b32.xlu0 %v702, 96
    %v728 = vpop.permute.xlu0 %727
    %729 = vrot.lane.b32.xlu0 %v708, 96
    %v730 = vpop.permute.xlu0 %729
    %vm731 = vcmask 64512
    %v733 = vsel %vm731, %v711, 0
    %v736 = vsel %vm731, %v712, 0
    %v739 = vsel %vm731, %v713, 0
    %v742 = vsel %vm731, %v714, 0
    %v744 = vsel %vm731, %v724, 0
    %v746 = vsel %vm731, %v726, 0
    %v748 = vsel %vm731, %v728, 0
    %v750 = vsel %vm731, %v730, 0
    %752 = vmatprep.subr.mxu0 0.0
    %v753 = vand.u32 %v744, 4294901760
    %754 = vmatpush1.xpose.msra.mxu0 %v753
    %755 = vmatprep.subr.mxu0 0.0
    %v756 = vand.u32 %v746, 4294901760
    %757 = vmatpush1.xpose.msra.mxu0 %v756
    %758 = vmatprep.subr.mxu0 0.0
    %v759 = vand.u32 %v748, 4294901760
    %760 = vmatpush1.xpose.msra.mxu0 %v759
    %761 = vmatprep.subr.mxu0 0.0
    %v762 = vand.u32 %v750, 4294901760
    %763 = vmatpush1.xpose.msra.mxu0 %v762
    %764 = vmatprep.subr.mxu0 0.0
    %765 = vmatpush1.xpose.msra.mxu0 0.0
    %766 = vmatprep.subr.mxu0 0.0
    %767 = vmatpush1.xpose.msra.mxu0 0.0
    %768 = vmatprep.subr.mxu0 0.0
    %769 = vmatpush1.xpose.msra.mxu0 0.0
    %770 = vmatprep.subr.mxu0 0.0
    %771 = vmatpush1.xpose.msra.mxu0 0.0
    %772 = vmatprep.subr.mxu0 0.0
    %773 = vmatpush1.xpose.msra.mxu0 0.0
    %774 = vmatprep.subr.mxu0 0.0
    %775 = vmatpush1.xpose.msra.mxu0 0.0
    %776 = vmatprep.subr.mxu0 0.0
    %777 = vmatpush1.xpose.msra.mxu0 0.0
    %778 = vmatprep.subr.mxu0 0.0
    %779 = vmatpush1.xpose.msra.mxu0 0.0
    %780 = vmatprep.subr.mxu0 0.0
    %781 = vmatpush1.xpose.msra.mxu0 0.0
    %782 = vmatprep.subr.mxu0 0.0
    %783 = vmatpush1.xpose.msra.mxu0 0.0
    %784 = vmatprep.subr.mxu0 0.0
    %785 = vmatpush1.xpose.msra.mxu0 0.0
    %786 = vmatprep.subr.mxu0 0.0
    %787 = vmatpush1.xpose.msra.mxu0 0.0
    %788 = vmatprep.subr.mxu0 0.0
    %789 = vmatpush1.xpose.msra.mxu0 0.0
    %790 = vmatprep.subr.mxu0 0.0
    %791 = vmatpush1.xpose.msra.mxu0 0.0
    %792 = vmatprep.subr.mxu0 0.0
    %793 = vmatpush1.xpose.msra.mxu0 0.0
    %794 = vmatprep.subr.mxu0 0.0
    %795 = vmatpush1.xpose.msra.mxu0 0.0
    %796 = vmatprep.subr.mxu0 0.0
    %797 = vmatpush1.xpose.msra.mxu0 0.0
    %798 = vmatprep.subr.mxu0 0.0
    %799 = vmatpush1.xpose.msra.mxu0 0.0
    %800 = vmatprep.subr.mxu0 0.0
    %801 = vmatpush1.xpose.msra.mxu0 0.0
    %802 = vmatprep.subr.mxu0 0.0
    %803 = vmatpush1.xpose.msra.mxu0 0.0
    %804 = vmatprep.subr.mxu0 0.0
    %805 = vmatpush1.xpose.msra.mxu0 0.0
    %806 = vmatprep.subr.mxu0 0.0
    %807 = vmatpush1.xpose.msra.mxu0 0.0
    %808 = vmatprep.subr.mxu0 0.0
    %809 = vmatpush1.xpose.msra.mxu0 0.0
    %810 = vmatprep.subr.mxu0 0.0
    %811 = vmatpush1.xpose.msra.mxu0 0.0
    %812 = vmatprep.subr.mxu0 0.0
    %813 = vmatpush1.xpose.msra.mxu0 0.0
    %814 = vmatprep.subr.mxu0 0.0
    %815 = vmatpush1.xpose.msra.mxu0 0.0
    %816 = vmatprep.subr.mxu0 0.0
    %817 = vmatpush1.xpose.msra.mxu0 0.0
    %818 = vmatprep.subr.mxu0 0.0
    %819 = vmatpush1.xpose.msra.mxu0 0.0
    %820 = vmatprep.mubr.f32.mxu0 0.0
    %v821 = vand.u32 %v733, 4294901760
    %v822 = vsub.f32 %v733, %v821
    %v823 = vand.u32 %v822, 4294901760
    %v824 = vsub.f32 %v822, %v823
    %v825 = vand.u32 %v824, 4294901760
    %826 = vmatmul.mubr.f32.gmra.mrb[0].mxu0 %v825
    %v827 = vpop.f32.mrb[0].mxu0
    %v828 = vadd.f32 %v715, %v827
    %v829 = vpop.f32.mrb[0].mxu0
    %830 = vmatprep.mubr.f32.mxu0 0.0
    %v831 = vand.u32 %v736, 4294901760
    %v832 = vsub.f32 %v736, %v831
    %v833 = vand.u32 %v832, 4294901760
    %v834 = vsub.f32 %v832, %v833
    %v835 = vand.u32 %v834, 4294901760
    %836 = vmatmul.mubr.f32.gmra.mrb[0].mxu0 %v835
    %v837 = vpop.f32.mrb[0].mxu0
    %v838 = vadd.f32 %v716, %v837
    %v839 = vpop.f32.mrb[0].mxu0
    %840 = vmatprep.mubr.f32.mxu0 0.0
    %v841 = vand.u32 %v739, 4294901760
    %v842 = vsub.f32 %v739, %v841
    %v843 = vand.u32 %v842, 4294901760
    %v844 = vsub.f32 %v842, %v843
    %v845 = vand.u32 %v844, 4294901760
    %846 = vmatmul.mubr.f32.gmra.mrb[0].mxu0 %v845
    %v847 = vpop.f32.mrb[0].mxu0
    %v848 = vadd.f32 %v717, %v847
    %v849 = vpop.f32.mrb[0].mxu0
    %850 = vmatprep.mubr.f32.mxu0 0.0
    %v851 = vand.u32 %v742, 4294901760
    %v852 = vsub.f32 %v742, %v851
    %v853 = vand.u32 %v852, 4294901760
    %v854 = vsub.f32 %v852, %v853
    %v855 = vand.u32 %v854, 4294901760
    %856 = vmatmul.mubr.f32.gmra.mrb[0].mxu0 %v855
    %v857 = vpop.f32.mrb[0].mxu0
    %v858 = vadd.f32 %v718, %v857
    %v859 = vpop.f32.mrb[0].mxu0
    %860 = vdwg.mxu0
    %861 = vmatprep.subr.mxu0 0.0
    %v862 = vand.u32 %v744, 4294901760
    %v863 = vsub.f32 %v744, %v862
    %v864 = vand.u32 %v863, 4294901760
    %v865 = vsub.f32 %v863, %v864
    %v866 = vand.u32 %v865, 4294901760
    %867 = vmatpush1.xpose.msra.mxu0 %v866
    %868 = vmatprep.subr.mxu0 0.0
    %v869 = vand.u32 %v746, 4294901760
    %v870 = vsub.f32 %v746, %v869
    %v871 = vand.u32 %v870, 4294901760
    %v872 = vsub.f32 %v870, %v871
    %v873 = vand.u32 %v872, 4294901760
    %874 = vmatpush1.xpose.msra.mxu0 %v873
    %875 = vmatprep.subr.mxu0 0.0
    %v876 = vand.u32 %v748, 4294901760
    %v877 = vsub.f32 %v748, %v876
    %v878 = vand.u32 %v877, 4294901760
    %v879 = vsub.f32 %v877, %v878
    %v880 = vand.u32 %v879, 4294901760
    %881 = vmatpush1.xpose.msra.mxu0 %v880
    %882 = vmatprep.subr.mxu0 0.0
    %v883 = vand.u32 %v750, 4294901760
    %v884 = vsub.f32 %v750, %v883
    %v885 = vand.u32 %v884, 4294901760
    %v886 = vsub.f32 %v884, %v885
    %v887 = vand.u32 %v886, 4294901760
    %888 = vmatpush1.xpose.msra.mxu0 %v887
    %889 = vmatprep.subr.mxu0 0.0
    %890 = vmatpush1.xpose.msra.mxu0 0.0
    %891 = vmatprep.subr.mxu0 0.0
    %892 = vmatpush1.xpose.msra.mxu0 0.0
    %893 = vmatprep.subr.mxu0 0.0
    %894 = vmatpush1.xpose.msra.mxu0 0.0
    %895 = vmatprep.subr.mxu0 0.0
    %896 = vmatpush1.xpose.msra.mxu0 0.0
    %897 = vmatprep.subr.mxu0 0.0
    %898 = vmatpush1.xpose.msra.mxu0 0.0
    %899 = vmatprep.subr.mxu0 0.0
    %900 = vmatpush1.xpose.msra.mxu0 0.0
    %901 = vmatprep.subr.mxu0 0.0
    %902 = vmatpush1.xpose.msra.mxu0 0.0
    %903 = vmatprep.subr.mxu0 0.0
    %904 = vmatpush1.xpose.msra.mxu0 0.0
    %905 = vmatprep.subr.mxu0 0.0
    %906 = vmatpush1.xpose.msra.mxu0 0.0
    %907 = vmatprep.subr.mxu0 0.0
    %908 = vmatpush1.xpose.msra.mxu0 0.0
    %909 = vmatprep.subr.mxu0 0.0
    %910 = vmatpush1.xpose.msra.mxu0 0.0
    %911 = vmatprep.subr.mxu0 0.0
    %912 = vmatpush1.xpose.msra.mxu0 0.0
    %913 = vmatprep.subr.mxu0 0.0
    %914 = vmatpush1.xpose.msra.mxu0 0.0
    %915 = vmatprep.subr.mxu0 0.0
    %916 = vmatpush1.xpose.msra.mxu0 0.0
    %917 = vmatprep.subr.mxu0 0.0
    %918 = vmatpush1.xpose.msra.mxu0 0.0
    %919 = vmatprep.subr.mxu0 0.0
    %920 = vmatpush1.xpose.msra.mxu0 0.0
    %921 = vmatprep.subr.mxu0 0.0
    %922 = vmatpush1.xpose.msra.mxu0 0.0
    %923 = vmatprep.subr.mxu0 0.0
    %924 = vmatpush1.xpose.msra.mxu0 0.0
    %925 = vmatprep.subr.mxu0 0.0
    %926 = vmatpush1.xpose.msra.mxu0 0.0
    %927 = vmatprep.subr.mxu0 0.0
    %928 = vmatpush1.xpose.msra.mxu0 0.0
    %929 = vmatprep.subr.mxu0 0.0
    %930 = vmatpush1.xpose.msra.mxu0 0.0
    %931 = vmatprep.subr.mxu0 0.0
    %932 = vmatpush1.xpose.msra.mxu0 0.0
    %933 = vmatprep.subr.mxu0 0.0
    %934 = vmatpush1.xpose.msra.mxu0 0.0
    %935 = vmatprep.subr.mxu0 0.0
    %936 = vmatpush1.xpose.msra.mxu0 0.0
    %937 = vmatprep.subr.mxu0 0.0
    %938 = vmatpush1.xpose.msra.mxu0 0.0
    %939 = vmatprep.subr.mxu0 0.0
    %940 = vmatpush1.xpose.msra.mxu0 0.0
    %941 = vmatprep.subr.mxu0 0.0
    %942 = vmatpush1.xpose.msra.mxu0 0.0
    %943 = vmatprep.subr.mxu0 0.0
    %944 = vmatpush1.xpose.msra.mxu0 0.0
    %945 = vmatprep.mubr.f32.mxu0 0.0
    %v946 = vand.u32 %v733, 4294901760
    %947 = vmatmul.mubr.f32.gmra.mrb[0].mxu0 %v946
    %v948 = vpop.f32.mrb[0].mxu0
    %v949 = vadd.f32 %v828, %v948
    %v950 = vpop.f32.mrb[0].mxu0
    %951 = vmatprep.mubr.f32.mxu0 0.0
    %v952 = vand.u32 %v736, 4294901760
    %953 = vmatmul.mubr.f32.gmra.mrb[0].mxu0 %v952
    %v954 = vpop.f32.mrb[0].mxu0
    %v955 = vadd.f32 %v838, %v954
    %v956 = vpop.f32.mrb[0].mxu0
    %957 = vmatprep.mubr.f32.mxu0 0.0
    %v958 = vand.u32 %v739, 4294901760
    %959 = vmatmul.mubr.f32.gmra.mrb[0].mxu0 %v958
    %v960 = vpop.f32.mrb[0].mxu0
    %v961 = vadd.f32 %v848, %v960
    %v962 = vpop.f32.mrb[0].mxu0
    %963 = vmatprep.mubr.f32.mxu0 0.0
    %v964 = vand.u32 %v742, 4294901760
    %965 = vmatmul.mubr.f32.gmra.mrb[0].mxu0 %v964
    %v966 = vpop.f32.mrb[0].mxu0
    %v967 = vadd.f32 %v858, %v966
    %v968 = vpop.f32.mrb[0].mxu0
    %969 = vdwg.mxu0
    %970 = vmatprep.subr.mxu0 0.0
    %v971 = vand.u32 %v744, 4294901760
    %v972 = vsub.f32 %v744, %v971
    %973 = vmatpush1.xpose.msra.mxu0 %v972
    %974 = vmatprep.subr.mxu0 0.0
    %v975 = vand.u32 %v746, 4294901760
    %v976 = vsub.f32 %v746, %v975
    %977 = vmatpush1.xpose.msra.mxu0 %v976
    %978 = vmatprep.subr.mxu0 0.0
    %v979 = vand.u32 %v748, 4294901760
    %v980 = vsub.f32 %v748, %v979
    %981 = vmatpush1.xpose.msra.mxu0 %v980
    %982 = vmatprep.subr.mxu0 0.0
    %v983 = vand.u32 %v750, 4294901760
    %v984 = vsub.f32 %v750, %v983
    %985 = vmatpush1.xpose.msra.mxu0 %v984
    %986 = vmatprep.subr.mxu0 0.0
    %987 = vmatpush1.xpose.msra.mxu0 0.0
    %988 = vmatprep.subr.mxu0 0.0
    %989 = vmatpush1.xpose.msra.mxu0 0.0
    %990 = vmatprep.subr.mxu0 0.0
    %991 = vmatpush1.xpose.msra.mxu0 0.0
    %992 = vmatprep.subr.mxu0 0.0
    %993 = vmatpush1.xpose.msra.mxu0 0.0
    %994 = vmatprep.subr.mxu0 0.0
    %995 = vmatpush1.xpose.msra.mxu0 0.0
    %996 = vmatprep.subr.mxu0 0.0
    %997 = vmatpush1.xpose.msra.mxu0 0.0
    %998 = vmatprep.subr.mxu0 0.0
    %999 = vmatpush1.xpose.msra.mxu0 0.0
    %1000 = vmatprep.subr.mxu0 0.0
    %1001 = vmatpush1.xpose.msra.mxu0 0.0
    %1002 = vmatprep.subr.mxu0 0.0
    %1003 = vmatpush1.xpose.msra.mxu0 0.0
    %1004 = vmatprep.subr.mxu0 0.0
    %1005 = vmatpush1.xpose.msra.mxu0 0.0
    %1006 = vmatprep.subr.mxu0 0.0
    %1007 = vmatpush1.xpose.msra.mxu0 0.0
    %1008 = vmatprep.subr.mxu0 0.0
    %1009 = vmatpush1.xpose.msra.mxu0 0.0
    %1010 = vmatprep.subr.mxu0 0.0
    %1011 = vmatpush1.xpose.msra.mxu0 0.0
    %1012 = vmatprep.subr.mxu0 0.0
    %1013 = vmatpush1.xpose.msra.mxu0 0.0
    %1014 = vmatprep.subr.mxu0 0.0
    %1015 = vmatpush1.xpose.msra.mxu0 0.0
    %1016 = vmatprep.subr.mxu0 0.0
    %1017 = vmatpush1.xpose.msra.mxu0 0.0
    %1018 = vmatprep.subr.mxu0 0.0
    %1019 = vmatpush1.xpose.msra.mxu0 0.0
    %1020 = vmatprep.subr.mxu0 0.0
    %1021 = vmatpush1.xpose.msra.mxu0 0.0
    %1022 = vmatprep.subr.mxu0 0.0
    %1023 = vmatpush1.xpose.msra.mxu0 0.0
    %1024 = vmatprep.subr.mxu0 0.0
    %1025 = vmatpush1.xpose.msra.mxu0 0.0
    %1026 = vmatprep.subr.mxu0 0.0
    %1027 = vmatpush1.xpose.msra.mxu0 0.0
    %1028 = vmatprep.subr.mxu0 0.0
    %1029 = vmatpush1.xpose.msra.mxu0 0.0
    %1030 = vmatprep.subr.mxu0 0.0
    %1031 = vmatpush1.xpose.msra.mxu0 0.0
    %1032 = vmatprep.subr.mxu0 0.0
    %1033 = vmatpush1.xpose.msra.mxu0 0.0
    %1034 = vmatprep.subr.mxu0 0.0
    %1035 = vmatpush1.xpose.msra.mxu0 0.0
    %1036 = vmatprep.subr.mxu0 0.0
    %1037 = vmatpush1.xpose.msra.mxu0 0.0
    %1038 = vmatprep.subr.mxu0 0.0
    %1039 = vmatpush1.xpose.msra.mxu0 0.0
    %1040 = vmatprep.subr.mxu0 0.0
    %1041 = vmatpush1.xpose.msra.mxu0 0.0
    %1042 = vmatprep.mubr.f32.mxu0 0.0
    %v1043 = vand.u32 %v733, 4294901760
    %v1044 = vsub.f32 %v733, %v1043
    %1045 = vmatmul.mubr.f32.gmra.mrb[0].mxu0 %v1044
    %v1046 = vpop.f32.mrb[0].mxu0
    %v1047 = vadd.f32 %v949, %v1046
    %v1048 = vpop.f32.mrb[0].mxu0
    %1049 = vmatprep.mubr.f32.mxu0 0.0
    %v1050 = vand.u32 %v736, 4294901760
    %v1051 = vsub.f32 %v736, %v1050
    %1052 = vmatmul.mubr.f32.gmra.mrb[0].mxu0 %v1051
    %v1053 = vpop.f32.mrb[0].mxu0
    %v1054 = vadd.f32 %v955, %v1053
    %v1055 = vpop.f32.mrb[0].mxu0
    %1056 = vmatprep.mubr.f32.mxu0 0.0
    %v1057 = vand.u32 %v739, 4294901760
    %v1058 = vsub.f32 %v739, %v1057
    %1059 = vmatmul.mubr.f32.gmra.mrb[0].mxu0 %v1058
    %v1060 = vpop.f32.mrb[0].mxu0
    %v1061 = vadd.f32 %v961, %v1060
    %v1062 = vpop.f32.mrb[0].mxu0
    %1063 = vmatprep.mubr.f32.mxu0 0.0
    %v1064 = vand.u32 %v742, 4294901760
    %v1065 = vsub.f32 %v742, %v1064
    %1066 = vmatmul.mubr.f32.gmra.mrb[0].mxu0 %v1065
    %v1067 = vpop.f32.mrb[0].mxu0
    %v1068 = vadd.f32 %v967, %v1067
    %v1069 = vpop.f32.mrb[0].mxu0
    %1070 = vdwg.mxu0
    %1071 = vmatprep.subr.mxu0 0.0
    %v1072 = vand.u32 %v744, 4294901760
    %1073 = vmatpush1.xpose.msra.mxu0 %v1072
    %1074 = vmatprep.subr.mxu0 0.0
    %v1075 = vand.u32 %v746, 4294901760
    %1076 = vmatpush1.xpose.msra.mxu0 %v1075
    %1077 = vmatprep.subr.mxu0 0.0
    %v1078 = vand.u32 %v748, 4294901760
    %1079 = vmatpush1.xpose.msra.mxu0 %v1078
    %1080 = vmatprep.subr.mxu0 0.0
    %v1081 = vand.u32 %v750, 4294901760
    %1082 = vmatpush1.xpose.msra.mxu0 %v1081
    %1083 = vmatprep.subr.mxu0 0.0
    %1084 = vmatpush1.xpose.msra.mxu0 0.0
    %1085 = vmatprep.subr.mxu0 0.0
    %1086 = vmatpush1.xpose.msra.mxu0 0.0
    %1087 = vmatprep.subr.mxu0 0.0
    %1088 = vmatpush1.xpose.msra.mxu0 0.0
    %1089 = vmatprep.subr.mxu0 0.0
    %1090 = vmatpush1.xpose.msra.mxu0 0.0
    %1091 = vmatprep.subr.mxu0 0.0
    %1092 = vmatpush1.xpose.msra.mxu0 0.0
    %1093 = vmatprep.subr.mxu0 0.0
    %1094 = vmatpush1.xpose.msra.mxu0 0.0
    %1095 = vmatprep.subr.mxu0 0.0
    %1096 = vmatpush1.xpose.msra.mxu0 0.0
    %1097 = vmatprep.subr.mxu0 0.0
    %1098 = vmatpush1.xpose.msra.mxu0 0.0
    %1099 = vmatprep.subr.mxu0 0.0
    %1100 = vmatpush1.xpose.msra.mxu0 0.0
    %1101 = vmatprep.subr.mxu0 0.0
    %1102 = vmatpush1.xpose.msra.mxu0 0.0
    %1103 = vmatprep.subr.mxu0 0.0
    %1104 = vmatpush1.xpose.msra.mxu0 0.0
    %1105 = vmatprep.subr.mxu0 0.0
    %1106 = vmatpush1.xpose.msra.mxu0 0.0
    %1107 = vmatprep.subr.mxu0 0.0
    %1108 = vmatpush1.xpose.msra.mxu0 0.0
    %1109 = vmatprep.subr.mxu0 0.0
    %1110 = vmatpush1.xpose.msra.mxu0 0.0
    %1111 = vmatprep.subr.mxu0 0.0
    %1112 = vmatpush1.xpose.msra.mxu0 0.0
    %1113 = vmatprep.subr.mxu0 0.0
    %1114 = vmatpush1.xpose.msra.mxu0 0.0
    %1115 = vmatprep.subr.mxu0 0.0
    %1116 = vmatpush1.xpose.msra.mxu0 0.0
    %1117 = vmatprep.subr.mxu0 0.0
    %1118 = vmatpush1.xpose.msra.mxu0 0.0
    %1119 = vmatprep.subr.mxu0 0.0
    %1120 = vmatpush1.xpose.msra.mxu0 0.0
    %1121 = vmatprep.subr.mxu0 0.0
    %1122 = vmatpush1.xpose.msra.mxu0 0.0
    %1123 = vmatprep.subr.mxu0 0.0
    %1124 = vmatpush1.xpose.msra.mxu0 0.0
    %1125 = vmatprep.subr.mxu0 0.0
    %1126 = vmatpush1.xpose.msra.mxu0 0.0
    %1127 = vmatprep.subr.mxu0 0.0
    %1128 = vmatpush1.xpose.msra.mxu0 0.0
    %1129 = vmatprep.subr.mxu0 0.0
    %1130 = vmatpush1.xpose.msra.mxu0 0.0
    %1131 = vmatprep.subr.mxu0 0.0
    %1132 = vmatpush1.xpose.msra.mxu0 0.0
    %1133 = vmatprep.subr.mxu0 0.0
    %1134 = vmatpush1.xpose.msra.mxu0 0.0
    %1135 = vmatprep.subr.mxu0 0.0
    %1136 = vmatpush1.xpose.msra.mxu0 0.0
    %1137 = vmatprep.subr.mxu0 0.0
    %1138 = vmatpush1.xpose.msra.mxu0 0.0
    %1139 = vmatprep.mubr.f32.mxu0 0.0
    %v1140 = vand.u32 %v733, 4294901760
    %v1141 = vsub.f32 %v733, %v1140
    %v1142 = vand.u32 %v1141, 4294901760
    %1143 = vmatmul.mubr.f32.gmra.mrb[0].mxu0 %v1142
    %v1144 = vpop.f32.mrb[0].mxu0
    %v1145 = vadd.f32 %v1047, %v1144
    %v1146 = vpop.f32.mrb[0].mxu0
    %1147 = vmatprep.mubr.f32.mxu0 0.0
    %v1148 = vand.u32 %v736, 4294901760
    %v1149 = vsub.f32 %v736, %v1148
    %v1150 = vand.u32 %v1149, 4294901760
    %1151 = vmatmul.mubr.f32.gmra.mrb[0].mxu0 %v1150
    %v1152 = vpop.f32.mrb[0].mxu0
    %v1153 = vadd.f32 %v1054, %v1152
    %v1154 = vpop.f32.mrb[0].mxu0
    %1155 = vmatprep.mubr.f32.mxu0 0.0
    %v1156 = vand.u32 %v739, 4294901760
    %v1157 = vsub.f32 %v739, %v1156
    %v1158 = vand.u32 %v1157, 4294901760
    %1159 = vmatmul.mubr.f32.gmra.mrb[0].mxu0 %v1158
    %v1160 = vpop.f32.mrb[0].mxu0
    %v1161 = vadd.f32 %v1061, %v1160
    %v1162 = vpop.f32.mrb[0].mxu0
    %1163 = vmatprep.mubr.f32.mxu0 0.0
    %v1164 = vand.u32 %v742, 4294901760
    %v1165 = vsub.f32 %v742, %v1164
    %v1166 = vand.u32 %v1165, 4294901760
    %1167 = vmatmul.mubr.f32.gmra.mrb[0].mxu0 %v1166
    %v1168 = vpop.f32.mrb[0].mxu0
    %v1169 = vadd.f32 %v1068, %v1168
    %v1170 = vpop.f32.mrb[0].mxu0
    %1171 = vdwg.mxu0
    %1172 = vmatprep.subr.mxu0 0.0
    %v1173 = vand.u32 %v744, 4294901760
    %v1174 = vsub.f32 %v744, %v1173
    %v1175 = vand.u32 %v1174, 4294901760
    %1176 = vmatpush1.xpose.msra.mxu0 %v1175
    %1177 = vmatprep.subr.mxu0 0.0
    %v1178 = vand.u32 %v746, 4294901760
    %v1179 = vsub.f32 %v746, %v1178
    %v1180 = vand.u32 %v1179, 4294901760
    %1181 = vmatpush1.xpose.msra.mxu0 %v1180
    %1182 = vmatprep.subr.mxu0 0.0
    %v1183 = vand.u32 %v748, 4294901760
    %v1184 = vsub.f32 %v748, %v1183
    %v1185 = vand.u32 %v1184, 4294901760
    %1186 = vmatpush1.xpose.msra.mxu0 %v1185
    %1187 = vmatprep.subr.mxu0 0.0
    %v1188 = vand.u32 %v750, 4294901760
    %v1189 = vsub.f32 %v750, %v1188
    %v1190 = vand.u32 %v1189, 4294901760
    %1191 = vmatpush1.xpose.msra.mxu0 %v1190
    %1192 = vmatprep.subr.mxu0 0.0
    %1193 = vmatpush1.xpose.msra.mxu0 0.0
    %1194 = vmatprep.subr.mxu0 0.0
    %1195 = vmatpush1.xpose.msra.mxu0 0.0
    %1196 = vmatprep.subr.mxu0 0.0
    %1197 = vmatpush1.xpose.msra.mxu0 0.0
    %1198 = vmatprep.subr.mxu0 0.0
    %1199 = vmatpush1.xpose.msra.mxu0 0.0
    %1200 = vmatprep.subr.mxu0 0.0
    %1201 = vmatpush1.xpose.msra.mxu0 0.0
    %1202 = vmatprep.subr.mxu0 0.0
    %1203 = vmatpush1.xpose.msra.mxu0 0.0
    %1204 = vmatprep.subr.mxu0 0.0
    %1205 = vmatpush1.xpose.msra.mxu0 0.0
    %1206 = vmatprep.subr.mxu0 0.0
    %1207 = vmatpush1.xpose.msra.mxu0 0.0
    %1208 = vmatprep.subr.mxu0 0.0
    %1209 = vmatpush1.xpose.msra.mxu0 0.0
    %1210 = vmatprep.subr.mxu0 0.0
    %1211 = vmatpush1.xpose.msra.mxu0 0.0
    %1212 = vmatprep.subr.mxu0 0.0
    %1213 = vmatpush1.xpose.msra.mxu0 0.0
    %1214 = vmatprep.subr.mxu0 0.0
    %1215 = vmatpush1.xpose.msra.mxu0 0.0
    %1216 = vmatprep.subr.mxu0 0.0
    %1217 = vmatpush1.xpose.msra.mxu0 0.0
    %1218 = vmatprep.subr.mxu0 0.0
    %1219 = vmatpush1.xpose.msra.mxu0 0.0
    %1220 = vmatprep.subr.mxu0 0.0
    %1221 = vmatpush1.xpose.msra.mxu0 0.0
    %1222 = vmatprep.subr.mxu0 0.0
    %1223 = vmatpush1.xpose.msra.mxu0 0.0
    %1224 = vmatprep.subr.mxu0 0.0
    %1225 = vmatpush1.xpose.msra.mxu0 0.0
    %1226 = vmatprep.subr.mxu0 0.0
    %1227 = vmatpush1.xpose.msra.mxu0 0.0
    %1228 = vmatprep.subr.mxu0 0.0
    %1229 = vmatpush1.xpose.msra.mxu0 0.0
    %1230 = vmatprep.subr.mxu0 0.0
    %1231 = vmatpush1.xpose.msra.mxu0 0.0
    %1232 = vmatprep.subr.mxu0 0.0
    %1233 = vmatpush1.xpose.msra.mxu0 0.0
    %1234 = vmatprep.subr.mxu0 0.0
    %1235 = vmatpush1.xpose.msra.mxu0 0.0
    %1236 = vmatprep.subr.mxu0 0.0
    %1237 = vmatpush1.xpose.msra.mxu0 0.0
    %1238 = vmatprep.subr.mxu0 0.0
    %1239 = vmatpush1.xpose.msra.mxu0 0.0
    %1240 = vmatprep.subr.mxu0 0.0
    %1241 = vmatpush1.xpose.msra.mxu0 0.0
    %1242 = vmatprep.subr.mxu0 0.0
    %1243 = vmatpush1.xpose.msra.mxu0 0.0
    %1244 = vmatprep.subr.mxu0 0.0
    %1245 = vmatpush1.xpose.msra.mxu0 0.0
    %1246 = vmatprep.subr.mxu0 0.0
    %1247 = vmatpush1.xpose.msra.mxu0 0.0
    %1248 = vmatprep.mubr.f32.mxu0 0.0
    %v1249 = vand.u32 %v733, 4294901760
    %1250 = vmatmul.mubr.f32.gmra.mrb[0].mxu0 %v1249
    %v1251 = vpop.f32.mrb[0].mxu0
    %v1252 = vadd.f32 %v1145, %v1251
    %v1253 = vpop.f32.mrb[0].mxu0
    %1254 = vmatprep.mubr.f32.mxu0 0.0
    %v1255 = vand.u32 %v736, 4294901760
    %1256 = vmatmul.mubr.f32.gmra.mrb[0].mxu0 %v1255
    %v1257 = vpop.f32.mrb[0].mxu0
    %v1258 = vadd.f32 %v1153, %v1257
    %v1259 = vpop.f32.mrb[0].mxu0
    %1260 = vmatprep.mubr.f32.mxu0 0.0
    %v1261 = vand.u32 %v739, 4294901760
    %1262 = vmatmul.mubr.f32.gmra.mrb[0].mxu0 %v1261
    %v1263 = vpop.f32.mrb[0].mxu0
    %v1264 = vadd.f32 %v1161, %v1263
    %v1265 = vpop.f32.mrb[0].mxu0
    %1266 = vmatprep.mubr.f32.mxu0 0.0
    %v1267 = vand.u32 %v742, 4294901760
    %1268 = vmatmul.mubr.f32.gmra.mrb[0].mxu0 %v1267
    %v1269 = vpop.f32.mrb[0].mxu0
    %v1270 = vadd.f32 %v1169, %v1269
    %v1271 = vpop.f32.mrb[0].mxu0
    %1272 = vdwg.mxu0
    %1273 = vmatprep.subr.mxu0 0.0
    %v1274 = vand.u32 %v744, 4294901760
    %1275 = vmatpush1.xpose.msra.mxu0 %v1274
    %1276 = vmatprep.subr.mxu0 0.0
    %v1277 = vand.u32 %v746, 4294901760
    %1278 = vmatpush1.xpose.msra.mxu0 %v1277
    %1279 = vmatprep.subr.mxu0 0.0
    %v1280 = vand.u32 %v748, 4294901760
    %1281 = vmatpush1.xpose.msra.mxu0 %v1280
    %1282 = vmatprep.subr.mxu0 0.0
    %v1283 = vand.u32 %v750, 4294901760
    %1284 = vmatpush1.xpose.msra.mxu0 %v1283
    %1285 = vmatprep.subr.mxu0 0.0
    %1286 = vmatpush1.xpose.msra.mxu0 0.0
    %1287 = vmatprep.subr.mxu0 0.0
    %1288 = vmatpush1.xpose.msra.mxu0 0.0
    %1289 = vmatprep.subr.mxu0 0.0
    %1290 = vmatpush1.xpose.msra.mxu0 0.0
    %1291 = vmatprep.subr.mxu0 0.0
    %1292 = vmatpush1.xpose.msra.mxu0 0.0
    %1293 = vmatprep.subr.mxu0 0.0
    %1294 = vmatpush1.xpose.msra.mxu0 0.0
    %1295 = vmatprep.subr.mxu0 0.0
    %1296 = vmatpush1.xpose.msra.mxu0 0.0
    %1297 = vmatprep.subr.mxu0 0.0
    %1298 = vmatpush1.xpose.msra.mxu0 0.0
    %1299 = vmatprep.subr.mxu0 0.0
    %1300 = vmatpush1.xpose.msra.mxu0 0.0
    %1301 = vmatprep.subr.mxu0 0.0
    %1302 = vmatpush1.xpose.msra.mxu0 0.0
    %1303 = vmatprep.subr.mxu0 0.0
    %1304 = vmatpush1.xpose.msra.mxu0 0.0
    %1305 = vmatprep.subr.mxu0 0.0
    %1306 = vmatpush1.xpose.msra.mxu0 0.0
    %1307 = vmatprep.subr.mxu0 0.0
    %1308 = vmatpush1.xpose.msra.mxu0 0.0
    %1309 = vmatprep.subr.mxu0 0.0
    %1310 = vmatpush1.xpose.msra.mxu0 0.0
    %1311 = vmatprep.subr.mxu0 0.0
    %1312 = vmatpush1.xpose.msra.mxu0 0.0
    %1313 = vmatprep.subr.mxu0 0.0
    %1314 = vmatpush1.xpose.msra.mxu0 0.0
    %1315 = vmatprep.subr.mxu0 0.0
    %1316 = vmatpush1.xpose.msra.mxu0 0.0
    %1317 = vmatprep.subr.mxu0 0.0
    %1318 = vmatpush1.xpose.msra.mxu0 0.0
    %1319 = vmatprep.subr.mxu0 0.0
    %1320 = vmatpush1.xpose.msra.mxu0 0.0
    %1321 = vmatprep.subr.mxu0 0.0
    %1322 = vmatpush1.xpose.msra.mxu0 0.0
    %1323 = vmatprep.subr.mxu0 0.0
    %1324 = vmatpush1.xpose.msra.mxu0 0.0
    %1325 = vmatprep.subr.mxu0 0.0
    %1326 = vmatpush1.xpose.msra.mxu0 0.0
    %1327 = vmatprep.subr.mxu0 0.0
    %1328 = vmatpush1.xpose.msra.mxu0 0.0
    %1329 = vmatprep.subr.mxu0 0.0
    %1330 = vmatpush1.xpose.msra.mxu0 0.0
    %1331 = vmatprep.subr.mxu0 0.0
    %1332 = vmatpush1.xpose.msra.mxu0 0.0
    %1333 = vmatprep.subr.mxu0 0.0
    %1334 = vmatpush1.xpose.msra.mxu0 0.0
    %1335 = vmatprep.subr.mxu0 0.0
    %1336 = vmatpush1.xpose.msra.mxu0 0.0
    %1337 = vmatprep.subr.mxu0 0.0
    %1338 = vmatpush1.xpose.msra.mxu0 0.0
    %1339 = vmatprep.subr.mxu0 0.0
    %1340 = vmatpush1.xpose.msra.mxu0 0.0
    %1341 = vmatprep.mubr.f32.mxu0 0.0
    %v1342 = vand.u32 %v733, 4294901760
    %1343 = vmatmul.mubr.f32.gmra.mrb[0].mxu0 %v1342
    %v1344 = vpop.f32.mrb[0].mxu0
    %v1345 = vadd.f32 %v1252, %v1344
    %v1346 = vpop.f32.mrb[0].mxu0
    %1347 = vmatprep.mubr.f32.mxu0 0.0
    %v1348 = vand.u32 %v736, 4294901760
    %1349 = vmatmul.mubr.f32.gmra.mrb[0].mxu0 %v1348
    %v1350 = vpop.f32.mrb[0].mxu0
    %v1351 = vadd.f32 %v1258, %v1350
    %v1352 = vpop.f32.mrb[0].mxu0
    %1353 = vmatprep.mubr.f32.mxu0 0.0
    %v1354 = vand.u32 %v739, 4294901760
    %1355 = vmatmul.mubr.f32.gmra.mrb[0].mxu0 %v1354
    %v1356 = vpop.f32.mrb[0].mxu0
    %v1357 = vadd.f32 %v1264, %v1356
    %v1358 = vpop.f32.mrb[0].mxu0
    %1359 = vmatprep.mubr.f32.mxu0 0.0
    %v1360 = vand.u32 %v742, 4294901760
    %1361 = vmatmul.mubr.f32.gmra.mrb[0].mxu0 %v1360
    %v1362 = vpop.f32.mrb[0].mxu0
    %v1363 = vadd.f32 %v1270, %v1362
    %v1364 = vpop.f32.mrb[0].mxu0
    %1365 = vdwg.mxu0
    %v1366 = vsel %vm84, %v1345, -inf
    %1367 = vmax.xlane.f32.xlu0 %v1366
    %v1368 = vpop.xlane.xlu0 %1367
    %v1369 = vsel %vm84, %v1351, -inf
    %1370 = vmax.xlane.f32.xlu0 %v1369
    %v1371 = vpop.xlane.xlu0 %1370
    %v1372 = vsel %vm84, %v1357, -inf
    %1373 = vmax.xlane.f32.xlu0 %v1372
    %v1374 = vpop.xlane.xlu0 %1373
    %v1375 = vsel %vm84, %v1363, -inf
    %1376 = vmax.xlane.f32.xlu0 %v1375
    %v1377 = vpop.xlane.xlu0 %1376
    %v1378 = vsub.f32 %v1345, %v1368
    %v1379 = vsub.f32 %v1351, %v1371
    %v1380 = vsub.f32 %v1357, %v1374
    %v1381 = vsub.f32 %v1363, %v1377
    %v1382 = vmul.f32 %v1378, 1.442695
    %v1383 = vpow.pop %v1382
    %v1384 = vmul.f32 %v1379, 1.442695
    %v1385 = vpow.pop %v1384
    %v1386 = vmul.f32 %v1380, 1.442695
    %v1387 = vpow.pop %v1386
    %v1388 = vmul.f32 %v1381, 1.442695
    %v1389 = vpow.pop %v1388
    %v1390 = vsel %vm84, %v1383, 0.0
    %1391 = vadd.xlane.f32.xlu0 %v1390
    %v1392 = vpop.xlane.xlu0 %1391
    %v1393 = vsel %vm84, %v1385, 0.0
    %1394 = vadd.xlane.f32.xlu0 %v1393
    %v1395 = vpop.xlane.xlu0 %1394
    %v1396 = vsel %vm84, %v1387, 0.0
    %1397 = vadd.xlane.f32.xlu0 %v1396
    %v1398 = vpop.xlane.xlu0 %1397
    %v1399 = vsel %vm84, %v1389, 0.0
    %1400 = vadd.xlane.f32.xlu0 %v1399
    %v1401 = vpop.xlane.xlu0 %1400
    %v1402 = vrcp.pop %v1392
    %v1403 = vrcp.pop %v1395
    %v1404 = vrcp.pop %v1398
    %v1405 = vrcp.pop %v1401
    %v1406 = vmul.f32 %v1383, %v1402
    %v1407 = vmul.f32 %v1385, %v1403
    %v1408 = vmul.f32 %v1387, %v1404
    %v1409 = vmul.f32 %v1389, %v1405
    %1410 = vrot.lane.b32.xlu0 %v690, 64
    %v1411 = vpop.permute.xlu0 %1410
    %1412 = vrot.lane.b32.xlu0 %v696, 64
    %v1413 = vpop.permute.xlu0 %1412
    %1414 = vrot.lane.b32.xlu0 %v702, 64
    %v1415 = vpop.permute.xlu0 %1414
    %1416 = vrot.lane.b32.xlu0 %v708, 64
    %v1417 = vpop.permute.xlu0 %1416
    %v1423 = vsel %vm84, %v1406, 0
    %v1426 = vsel %vm84, %v1407, 0
    %v1429 = vsel %vm84, %v1408, 0
    %v1432 = vsel %vm84, %v1409, 0
    %1434 = vmatprep.subr.mxu0 0.0
    %v1435 = vand.u32 %v1411, 4294901760
    %1436 = vmatpush1.msra.mxu0 %v1435
    %1437 = vmatprep.subr.mxu0 0.0
    %v1438 = vand.u32 %v1413, 4294901760
    %1439 = vmatpush1.msra.mxu0 %v1438
    %1440 = vmatprep.subr.mxu0 0.0
    %v1441 = vand.u32 %v1415, 4294901760
    %1442 = vmatpush1.msra.mxu0 %v1441
    %1443 = vmatprep.subr.mxu0 0.0
    %v1444 = vand.u32 %v1417, 4294901760
    %1445 = vmatpush1.msra.mxu0 %v1444
    %1446 = vmatprep.subr.mxu0 0.0
    %1447 = vmatpush1.msra.mxu0 0.0
    %1448 = vmatprep.subr.mxu0 0.0
    %1449 = vmatpush1.msra.mxu0 0.0
    %1450 = vmatprep.subr.mxu0 0.0
    %1451 = vmatpush1.msra.mxu0 0.0
    %1452 = vmatprep.subr.mxu0 0.0
    %1453 = vmatpush1.msra.mxu0 0.0
    %1454 = vmatprep.subr.mxu0 0.0
    %1455 = vmatpush1.msra.mxu0 0.0
    %1456 = vmatprep.subr.mxu0 0.0
    %1457 = vmatpush1.msra.mxu0 0.0
    %1458 = vmatprep.subr.mxu0 0.0
    %1459 = vmatpush1.msra.mxu0 0.0
    %1460 = vmatprep.subr.mxu0 0.0
    %1461 = vmatpush1.msra.mxu0 0.0
    %1462 = vmatprep.subr.mxu0 0.0
    %1463 = vmatpush1.msra.mxu0 0.0
    %1464 = vmatprep.subr.mxu0 0.0
    %1465 = vmatpush1.msra.mxu0 0.0
    %1466 = vmatprep.subr.mxu0 0.0
    %1467 = vmatpush1.msra.mxu0 0.0
    %1468 = vmatprep.subr.mxu0 0.0
    %1469 = vmatpush1.msra.mxu0 0.0
    %1470 = vmatprep.subr.mxu0 0.0
    %1471 = vmatpush1.msra.mxu0 0.0
    %1472 = vmatprep.subr.mxu0 0.0
    %1473 = vmatpush1.msra.mxu0 0.0
    %1474 = vmatprep.subr.mxu0 0.0
    %1475 = vmatpush1.msra.mxu0 0.0
    %1476 = vmatprep.subr.mxu0 0.0
    %1477 = vmatpush1.msra.mxu0 0.0
    %1478 = vmatprep.subr.mxu0 0.0
    %1479 = vmatpush1.msra.mxu0 0.0
    %1480 = vmatprep.subr.mxu0 0.0
    %1481 = vmatpush1.msra.mxu0 0.0
    %1482 = vmatprep.subr.mxu0 0.0
    %1483 = vmatpush1.msra.mxu0 0.0
    %1484 = vmatprep.subr.mxu0 0.0
    %1485 = vmatpush1.msra.mxu0 0.0
    %1486 = vmatprep.subr.mxu0 0.0
    %1487 = vmatpush1.msra.mxu0 0.0
    %1488 = vmatprep.subr.mxu0 0.0
    %1489 = vmatpush1.msra.mxu0 0.0
    %1490 = vmatprep.subr.mxu0 0.0
    %1491 = vmatpush1.msra.mxu0 0.0
    %1492 = vmatprep.subr.mxu0 0.0
    %1493 = vmatpush1.msra.mxu0 0.0
    %1494 = vmatprep.subr.mxu0 0.0
    %1495 = vmatpush1.msra.mxu0 0.0
    %1496 = vmatprep.subr.mxu0 0.0
    %1497 = vmatpush1.msra.mxu0 0.0
    %1498 = vmatprep.subr.mxu0 0.0
    %1499 = vmatpush1.msra.mxu0 0.0
    %1500 = vmatprep.subr.mxu0 0.0
    %1501 = vmatpush1.msra.mxu0 0.0
    %1502 = vmatprep.mubr.f32.mxu0 0.0
    %v1503 = vand.u32 %v1423, 4294901760
    %v1504 = vsub.f32 %v1423, %v1503
    %v1505 = vand.u32 %v1504, 4294901760
    %v1506 = vsub.f32 %v1504, %v1505
    %v1507 = vand.u32 %v1506, 4294901760
    %1508 = vmatmul.mubr.f32.gmra.mrb[0].mxu0 %v1507
    %v1509 = vpop.f32.mrb[0].mxu0
    %v1510 = vadd.f32 0.0, %v1509
    %v1511 = vpop.f32.mrb[0].mxu0
    %1512 = vmatprep.mubr.f32.mxu0 0.0
    %v1513 = vand.u32 %v1426, 4294901760
    %v1514 = vsub.f32 %v1426, %v1513
    %v1515 = vand.u32 %v1514, 4294901760
    %v1516 = vsub.f32 %v1514, %v1515
    %v1517 = vand.u32 %v1516, 4294901760
    %1518 = vmatmul.mubr.f32.gmra.mrb[0].mxu0 %v1517
    %v1519 = vpop.f32.mrb[0].mxu0
    %v1520 = vadd.f32 0.0, %v1519
    %v1521 = vpop.f32.mrb[0].mxu0
    %1522 = vmatprep.mubr.f32.mxu0 0.0
    %v1523 = vand.u32 %v1429, 4294901760
    %v1524 = vsub.f32 %v1429, %v1523
    %v1525 = vand.u32 %v1524, 4294901760
    %v1526 = vsub.f32 %v1524, %v1525
    %v1527 = vand.u32 %v1526, 4294901760
    %1528 = vmatmul.mubr.f32.gmra.mrb[0].mxu0 %v1527
    %v1529 = vpop.f32.mrb[0].mxu0
    %v1530 = vadd.f32 0.0, %v1529
    %v1531 = vpop.f32.mrb[0].mxu0
    %1532 = vmatprep.mubr.f32.mxu0 0.0
    %v1533 = vand.u32 %v1432, 4294901760
    %v1534 = vsub.f32 %v1432, %v1533
    %v1535 = vand.u32 %v1534, 4294901760
    %v1536 = vsub.f32 %v1534, %v1535
    %v1537 = vand.u32 %v1536, 4294901760
    %1538 = vmatmul.mubr.f32.gmra.mrb[0].mxu0 %v1537
    %v1539 = vpop.f32.mrb[0].mxu0
    %v1540 = vadd.f32 0.0, %v1539
    %v1541 = vpop.f32.mrb[0].mxu0
    %1542 = vdwg.mxu0
    %1543 = vmatprep.subr.mxu0 0.0
    %v1544 = vand.u32 %v1411, 4294901760
    %v1545 = vsub.f32 %v1411, %v1544
    %v1546 = vand.u32 %v1545, 4294901760
    %v1547 = vsub.f32 %v1545, %v1546
    %v1548 = vand.u32 %v1547, 4294901760
    %1549 = vmatpush1.msra.mxu0 %v1548
    %1550 = vmatprep.subr.mxu0 0.0
    %v1551 = vand.u32 %v1413, 4294901760
    %v1552 = vsub.f32 %v1413, %v1551
    %v1553 = vand.u32 %v1552, 4294901760
    %v1554 = vsub.f32 %v1552, %v1553
    %v1555 = vand.u32 %v1554, 4294901760
    %1556 = vmatpush1.msra.mxu0 %v1555
    %1557 = vmatprep.subr.mxu0 0.0
    %v1558 = vand.u32 %v1415, 4294901760
    %v1559 = vsub.f32 %v1415, %v1558
    %v1560 = vand.u32 %v1559, 4294901760
    %v1561 = vsub.f32 %v1559, %v1560
    %v1562 = vand.u32 %v1561, 4294901760
    %1563 = vmatpush1.msra.mxu0 %v1562
    %1564 = vmatprep.subr.mxu0 0.0
    %v1565 = vand.u32 %v1417, 4294901760
    %v1566 = vsub.f32 %v1417, %v1565
    %v1567 = vand.u32 %v1566, 4294901760
    %v1568 = vsub.f32 %v1566, %v1567
    %v1569 = vand.u32 %v1568, 4294901760
    %1570 = vmatpush1.msra.mxu0 %v1569
    %1571 = vmatprep.subr.mxu0 0.0
    %1572 = vmatpush1.msra.mxu0 0.0
    %1573 = vmatprep.subr.mxu0 0.0
    %1574 = vmatpush1.msra.mxu0 0.0
    %1575 = vmatprep.subr.mxu0 0.0
    %1576 = vmatpush1.msra.mxu0 0.0
    %1577 = vmatprep.subr.mxu0 0.0
    %1578 = vmatpush1.msra.mxu0 0.0
    %1579 = vmatprep.subr.mxu0 0.0
    %1580 = vmatpush1.msra.mxu0 0.0
    %1581 = vmatprep.subr.mxu0 0.0
    %1582 = vmatpush1.msra.mxu0 0.0
    %1583 = vmatprep.subr.mxu0 0.0
    %1584 = vmatpush1.msra.mxu0 0.0
    %1585 = vmatprep.subr.mxu0 0.0
    %1586 = vmatpush1.msra.mxu0 0.0
    %1587 = vmatprep.subr.mxu0 0.0
    %1588 = vmatpush1.msra.mxu0 0.0
    %1589 = vmatprep.subr.mxu0 0.0
    %1590 = vmatpush1.msra.mxu0 0.0
    %1591 = vmatprep.subr.mxu0 0.0
    %1592 = vmatpush1.msra.mxu0 0.0
    %1593 = vmatprep.subr.mxu0 0.0
    %1594 = vmatpush1.msra.mxu0 0.0
    %1595 = vmatprep.subr.mxu0 0.0
    %1596 = vmatpush1.msra.mxu0 0.0
    %1597 = vmatprep.subr.mxu0 0.0
    %1598 = vmatpush1.msra.mxu0 0.0
    %1599 = vmatprep.subr.mxu0 0.0
    %1600 = vmatpush1.msra.mxu0 0.0
    %1601 = vmatprep.subr.mxu0 0.0
    %1602 = vmatpush1.msra.mxu0 0.0
    %1603 = vmatprep.subr.mxu0 0.0
    %1604 = vmatpush1.msra.mxu0 0.0
    %1605 = vmatprep.subr.mxu0 0.0
    %1606 = vmatpush1.msra.mxu0 0.0
    %1607 = vmatprep.subr.mxu0 0.0
    %1608 = vmatpush1.msra.mxu0 0.0
    %1609 = vmatprep.subr.mxu0 0.0
    %1610 = vmatpush1.msra.mxu0 0.0
    %1611 = vmatprep.subr.mxu0 0.0
    %1612 = vmatpush1.msra.mxu0 0.0
    %1613 = vmatprep.subr.mxu0 0.0
    %1614 = vmatpush1.msra.mxu0 0.0
    %1615 = vmatprep.subr.mxu0 0.0
    %1616 = vmatpush1.msra.mxu0 0.0
    %1617 = vmatprep.subr.mxu0 0.0
    %1618 = vmatpush1.msra.mxu0 0.0
    %1619 = vmatprep.subr.mxu0 0.0
    %1620 = vmatpush1.msra.mxu0 0.0
    %1621 = vmatprep.subr.mxu0 0.0
    %1622 = vmatpush1.msra.mxu0 0.0
    %1623 = vmatprep.subr.mxu0 0.0
    %1624 = vmatpush1.msra.mxu0 0.0
    %1625 = vmatprep.subr.mxu0 0.0
    %1626 = vmatpush1.msra.mxu0 0.0
    %1627 = vmatprep.mubr.f32.mxu0 0.0
    %v1628 = vand.u32 %v1423, 4294901760
    %1629 = vmatmul.mubr.f32.gmra.mrb[0].mxu0 %v1628
    %v1630 = vpop.f32.mrb[0].mxu0
    %v1631 = vadd.f32 %v1510, %v1630
    %v1632 = vpop.f32.mrb[0].mxu0
    %1633 = vmatprep.mubr.f32.mxu0 0.0
    %v1634 = vand.u32 %v1426, 4294901760
    %1635 = vmatmul.mubr.f32.gmra.mrb[0].mxu0 %v1634
    %v1636 = vpop.f32.mrb[0].mxu0
    %v1637 = vadd.f32 %v1520, %v1636
    %v1638 = vpop.f32.mrb[0].mxu0
    %1639 = vmatprep.mubr.f32.mxu0 0.0
    %v1640 = vand.u32 %v1429, 4294901760
    %1641 = vmatmul.mubr.f32.gmra.mrb[0].mxu0 %v1640
    %v1642 = vpop.f32.mrb[0].mxu0
    %v1643 = vadd.f32 %v1530, %v1642
    %v1644 = vpop.f32.mrb[0].mxu0
    %1645 = vmatprep.mubr.f32.mxu0 0.0
    %v1646 = vand.u32 %v1432, 4294901760
    %1647 = vmatmul.mubr.f32.gmra.mrb[0].mxu0 %v1646
    %v1648 = vpop.f32.mrb[0].mxu0
    %v1649 = vadd.f32 %v1540, %v1648
    %v1650 = vpop.f32.mrb[0].mxu0
    %1651 = vdwg.mxu0
    %1652 = vmatprep.subr.mxu0 0.0
    %v1653 = vand.u32 %v1411, 4294901760
    %v1654 = vsub.f32 %v1411, %v1653
    %1655 = vmatpush1.msra.mxu0 %v1654
    %1656 = vmatprep.subr.mxu0 0.0
    %v1657 = vand.u32 %v1413, 4294901760
    %v1658 = vsub.f32 %v1413, %v1657
    %1659 = vmatpush1.msra.mxu0 %v1658
    %1660 = vmatprep.subr.mxu0 0.0
    %v1661 = vand.u32 %v1415, 4294901760
    %v1662 = vsub.f32 %v1415, %v1661
    %1663 = vmatpush1.msra.mxu0 %v1662
    %1664 = vmatprep.subr.mxu0 0.0
    %v1665 = vand.u32 %v1417, 4294901760
    %v1666 = vsub.f32 %v1417, %v1665
    %1667 = vmatpush1.msra.mxu0 %v1666
    %1668 = vmatprep.subr.mxu0 0.0
    %1669 = vmatpush1.msra.mxu0 0.0
    %1670 = vmatprep.subr.mxu0 0.0
    %1671 = vmatpush1.msra.mxu0 0.0
    %1672 = vmatprep.subr.mxu0 0.0
    %1673 = vmatpush1.msra.mxu0 0.0
    %1674 = vmatprep.subr.mxu0 0.0
    %1675 = vmatpush1.msra.mxu0 0.0
    %1676 = vmatprep.subr.mxu0 0.0
    %1677 = vmatpush1.msra.mxu0 0.0
    %1678 = vmatprep.subr.mxu0 0.0
    %1679 = vmatpush1.msra.mxu0 0.0
    %1680 = vmatprep.subr.mxu0 0.0
    %1681 = vmatpush1.msra.mxu0 0.0
    %1682 = vmatprep.subr.mxu0 0.0
    %1683 = vmatpush1.msra.mxu0 0.0
    %1684 = vmatprep.subr.mxu0 0.0
    %1685 = vmatpush1.msra.mxu0 0.0
    %1686 = vmatprep.subr.mxu0 0.0
    %1687 = vmatpush1.msra.mxu0 0.0
    %1688 = vmatprep.subr.mxu0 0.0
    %1689 = vmatpush1.msra.mxu0 0.0
    %1690 = vmatprep.subr.mxu0 0.0
    %1691 = vmatpush1.msra.mxu0 0.0
    %1692 = vmatprep.subr.mxu0 0.0
    %1693 = vmatpush1.msra.mxu0 0.0
    %1694 = vmatprep.subr.mxu0 0.0
    %1695 = vmatpush1.msra.mxu0 0.0
    %1696 = vmatprep.subr.mxu0 0.0
    %1697 = vmatpush1.msra.mxu0 0.0
    %1698 = vmatprep.subr.mxu0 0.0
    %1699 = vmatpush1.msra.mxu0 0.0
    %1700 = vmatprep.subr.mxu0 0.0
    %1701 = vmatpush1.msra.mxu0 0.0
    %1702 = vmatprep.subr.mxu0 0.0
    %1703 = vmatpush1.msra.mxu0 0.0
    %1704 = vmatprep.subr.mxu0 0.0
    %1705 = vmatpush1.msra.mxu0 0.0
    %1706 = vmatprep.subr.mxu0 0.0
    %1707 = vmatpush1.msra.mxu0 0.0
    %1708 = vmatprep.subr.mxu0 0.0
    %1709 = vmatpush1.msra.mxu0 0.0
    %1710 = vmatprep.subr.mxu0 0.0
    %1711 = vmatpush1.msra.mxu0 0.0
    %1712 = vmatprep.subr.mxu0 0.0
    %1713 = vmatpush1.msra.mxu0 0.0
    %1714 = vmatprep.subr.mxu0 0.0
    %1715 = vmatpush1.msra.mxu0 0.0
    %1716 = vmatprep.subr.mxu0 0.0
    %1717 = vmatpush1.msra.mxu0 0.0
    %1718 = vmatprep.subr.mxu0 0.0
    %1719 = vmatpush1.msra.mxu0 0.0
    %1720 = vmatprep.subr.mxu0 0.0
    %1721 = vmatpush1.msra.mxu0 0.0
    %1722 = vmatprep.subr.mxu0 0.0
    %1723 = vmatpush1.msra.mxu0 0.0
    %1724 = vmatprep.mubr.f32.mxu0 0.0
    %v1725 = vand.u32 %v1423, 4294901760
    %v1726 = vsub.f32 %v1423, %v1725
    %1727 = vmatmul.mubr.f32.gmra.mrb[0].mxu0 %v1726
    %v1728 = vpop.f32.mrb[0].mxu0
    %v1729 = vadd.f32 %v1631, %v1728
    %v1730 = vpop.f32.mrb[0].mxu0
    %1731 = vmatprep.mubr.f32.mxu0 0.0
    %v1732 = vand.u32 %v1426, 4294901760
    %v1733 = vsub.f32 %v1426, %v1732
    %1734 = vmatmul.mubr.f32.gmra.mrb[0].mxu0 %v1733
    %v1735 = vpop.f32.mrb[0].mxu0
    %v1736 = vadd.f32 %v1637, %v1735
    %v1737 = vpop.f32.mrb[0].mxu0
    %1738 = vmatprep.mubr.f32.mxu0 0.0
    %v1739 = vand.u32 %v1429, 4294901760
    %v1740 = vsub.f32 %v1429, %v1739
    %1741 = vmatmul.mubr.f32.gmra.mrb[0].mxu0 %v1740
    %v1742 = vpop.f32.mrb[0].mxu0
    %v1743 = vadd.f32 %v1643, %v1742
    %v1744 = vpop.f32.mrb[0].mxu0
    %1745 = vmatprep.mubr.f32.mxu0 0.0
    %v1746 = vand.u32 %v1432, 4294901760
    %v1747 = vsub.f32 %v1432, %v1746
    %1748 = vmatmul.mubr.f32.gmra.mrb[0].mxu0 %v1747
    %v1749 = vpop.f32.mrb[0].mxu0
    %v1750 = vadd.f32 %v1649, %v1749
    %v1751 = vpop.f32.mrb[0].mxu0
    %1752 = vdwg.mxu0
    %1753 = vmatprep.subr.mxu0 0.0
    %v1754 = vand.u32 %v1411, 4294901760
    %1755 = vmatpush1.msra.mxu0 %v1754
    %1756 = vmatprep.subr.mxu0 0.0
    %v1757 = vand.u32 %v1413, 4294901760
    %1758 = vmatpush1.msra.mxu0 %v1757
    %1759 = vmatprep.subr.mxu0 0.0
    %v1760 = vand.u32 %v1415, 4294901760
    %1761 = vmatpush1.msra.mxu0 %v1760
    %1762 = vmatprep.subr.mxu0 0.0
    %v1763 = vand.u32 %v1417, 4294901760
    %1764 = vmatpush1.msra.mxu0 %v1763
    %1765 = vmatprep.subr.mxu0 0.0
    %1766 = vmatpush1.msra.mxu0 0.0
    %1767 = vmatprep.subr.mxu0 0.0
    %1768 = vmatpush1.msra.mxu0 0.0
    %1769 = vmatprep.subr.mxu0 0.0
    %1770 = vmatpush1.msra.mxu0 0.0
    %1771 = vmatprep.subr.mxu0 0.0
    %1772 = vmatpush1.msra.mxu0 0.0
    %1773 = vmatprep.subr.mxu0 0.0
    %1774 = vmatpush1.msra.mxu0 0.0
    %1775 = vmatprep.subr.mxu0 0.0
    %1776 = vmatpush1.msra.mxu0 0.0
    %1777 = vmatprep.subr.mxu0 0.0
    %1778 = vmatpush1.msra.mxu0 0.0
    %1779 = vmatprep.subr.mxu0 0.0
    %1780 = vmatpush1.msra.mxu0 0.0
    %1781 = vmatprep.subr.mxu0 0.0
    %1782 = vmatpush1.msra.mxu0 0.0
    %1783 = vmatprep.subr.mxu0 0.0
    %1784 = vmatpush1.msra.mxu0 0.0
    %1785 = vmatprep.subr.mxu0 0.0
    %1786 = vmatpush1.msra.mxu0 0.0
    %1787 = vmatprep.subr.mxu0 0.0
    %1788 = vmatpush1.msra.mxu0 0.0
    %1789 = vmatprep.subr.mxu0 0.0
    %1790 = vmatpush1.msra.mxu0 0.0
    %1791 = vmatprep.subr.mxu0 0.0
    %1792 = vmatpush1.msra.mxu0 0.0
    %1793 = vmatprep.subr.mxu0 0.0
    %1794 = vmatpush1.msra.mxu0 0.0
    %1795 = vmatprep.subr.mxu0 0.0
    %1796 = vmatpush1.msra.mxu0 0.0
    %1797 = vmatprep.subr.mxu0 0.0
    %1798 = vmatpush1.msra.mxu0 0.0
    %1799 = vmatprep.subr.mxu0 0.0
    %1800 = vmatpush1.msra.mxu0 0.0
    %1801 = vmatprep.subr.mxu0 0.0
    %1802 = vmatpush1.msra.mxu0 0.0
    %1803 = vmatprep.subr.mxu0 0.0
    %1804 = vmatpush1.msra.mxu0 0.0
    %1805 = vmatprep.subr.mxu0 0.0
    %1806 = vmatpush1.msra.mxu0 0.0
    %1807 = vmatprep.subr.mxu0 0.0
    %1808 = vmatpush1.msra.mxu0 0.0
    %1809 = vmatprep.subr.mxu0 0.0
    %1810 = vmatpush1.msra.mxu0 0.0
    %1811 = vmatprep.subr.mxu0 0.0
    %1812 = vmatpush1.msra.mxu0 0.0
    %1813 = vmatprep.subr.mxu0 0.0
    %1814 = vmatpush1.msra.mxu0 0.0
    %1815 = vmatprep.subr.mxu0 0.0
    %1816 = vmatpush1.msra.mxu0 0.0
    %1817 = vmatprep.subr.mxu0 0.0
    %1818 = vmatpush1.msra.mxu0 0.0
    %1819 = vmatprep.subr.mxu0 0.0
    %1820 = vmatpush1.msra.mxu0 0.0
    %1821 = vmatprep.mubr.f32.mxu0 0.0
    %v1822 = vand.u32 %v1423, 4294901760
    %v1823 = vsub.f32 %v1423, %v1822
    %v1824 = vand.u32 %v1823, 4294901760
    %1825 = vmatmul.mubr.f32.gmra.mrb[0].mxu0 %v1824
    %v1826 = vpop.f32.mrb[0].mxu0
    %v1827 = vadd.f32 %v1729, %v1826
    %v1828 = vpop.f32.mrb[0].mxu0
    %1829 = vmatprep.mubr.f32.mxu0 0.0
    %v1830 = vand.u32 %v1426, 4294901760
    %v1831 = vsub.f32 %v1426, %v1830
    %v1832 = vand.u32 %v1831, 4294901760
    %1833 = vmatmul.mubr.f32.gmra.mrb[0].mxu0 %v1832
    %v1834 = vpop.f32.mrb[0].mxu0
    %v1835 = vadd.f32 %v1736, %v1834
    %v1836 = vpop.f32.mrb[0].mxu0
    %1837 = vmatprep.mubr.f32.mxu0 0.0
    %v1838 = vand.u32 %v1429, 4294901760
    %v1839 = vsub.f32 %v1429, %v1838
    %v1840 = vand.u32 %v1839, 4294901760
    %1841 = vmatmul.mubr.f32.gmra.mrb[0].mxu0 %v1840
    %v1842 = vpop.f32.mrb[0].mxu0
    %v1843 = vadd.f32 %v1743, %v1842
    %v1844 = vpop.f32.mrb[0].mxu0
    %1845 = vmatprep.mubr.f32.mxu0 0.0
    %v1846 = vand.u32 %v1432, 4294901760
    %v1847 = vsub.f32 %v1432, %v1846
    %v1848 = vand.u32 %v1847, 4294901760
    %1849 = vmatmul.mubr.f32.gmra.mrb[0].mxu0 %v1848
    %v1850 = vpop.f32.mrb[0].mxu0
    %v1851 = vadd.f32 %v1750, %v1850
    %v1852 = vpop.f32.mrb[0].mxu0
    %1853 = vdwg.mxu0
    %1854 = vmatprep.subr.mxu0 0.0
    %v1855 = vand.u32 %v1411, 4294901760
    %v1856 = vsub.f32 %v1411, %v1855
    %v1857 = vand.u32 %v1856, 4294901760
    %1858 = vmatpush1.msra.mxu0 %v1857
    %1859 = vmatprep.subr.mxu0 0.0
    %v1860 = vand.u32 %v1413, 4294901760
    %v1861 = vsub.f32 %v1413, %v1860
    %v1862 = vand.u32 %v1861, 4294901760
    %1863 = vmatpush1.msra.mxu0 %v1862
    %1864 = vmatprep.subr.mxu0 0.0
    %v1865 = vand.u32 %v1415, 4294901760
    %v1866 = vsub.f32 %v1415, %v1865
    %v1867 = vand.u32 %v1866, 4294901760
    %1868 = vmatpush1.msra.mxu0 %v1867
    %1869 = vmatprep.subr.mxu0 0.0
    %v1870 = vand.u32 %v1417, 4294901760
    %v1871 = vsub.f32 %v1417, %v1870
    %v1872 = vand.u32 %v1871, 4294901760
    %1873 = vmatpush1.msra.mxu0 %v1872
    %1874 = vmatprep.subr.mxu0 0.0
    %1875 = vmatpush1.msra.mxu0 0.0
    %1876 = vmatprep.subr.mxu0 0.0
    %1877 = vmatpush1.msra.mxu0 0.0
    %1878 = vmatprep.subr.mxu0 0.0
    %1879 = vmatpush1.msra.mxu0 0.0
    %1880 = vmatprep.subr.mxu0 0.0
    %1881 = vmatpush1.msra.mxu0 0.0
    %1882 = vmatprep.subr.mxu0 0.0
    %1883 = vmatpush1.msra.mxu0 0.0
    %1884 = vmatprep.subr.mxu0 0.0
    %1885 = vmatpush1.msra.mxu0 0.0
    %1886 = vmatprep.subr.mxu0 0.0
    %1887 = vmatpush1.msra.mxu0 0.0
    %1888 = vmatprep.subr.mxu0 0.0
    %1889 = vmatpush1.msra.mxu0 0.0
    %1890 = vmatprep.subr.mxu0 0.0
    %1891 = vmatpush1.msra.mxu0 0.0
    %1892 = vmatprep.subr.mxu0 0.0
    %1893 = vmatpush1.msra.mxu0 0.0
    %1894 = vmatprep.subr.mxu0 0.0
    %1895 = vmatpush1.msra.mxu0 0.0
    %1896 = vmatprep.subr.mxu0 0.0
    %1897 = vmatpush1.msra.mxu0 0.0
    %1898 = vmatprep.subr.mxu0 0.0
    %1899 = vmatpush1.msra.mxu0 0.0
    %1900 = vmatprep.subr.mxu0 0.0
    %1901 = vmatpush1.msra.mxu0 0.0
    %1902 = vmatprep.subr.mxu0 0.0
    %1903 = vmatpush1.msra.mxu0 0.0
    %1904 = vmatprep.subr.mxu0 0.0
    %1905 = vmatpush1.msra.mxu0 0.0
    %1906 = vmatprep.subr.mxu0 0.0
    %1907 = vmatpush1.msra.mxu0 0.0
    %1908 = vmatprep.subr.mxu0 0.0
    %1909 = vmatpush1.msra.mxu0 0.0
    %1910 = vmatprep.subr.mxu0 0.0
    %1911 = vmatpush1.msra.mxu0 0.0
    %1912 = vmatprep.subr.mxu0 0.0
    %1913 = vmatpush1.msra.mxu0 0.0
    %1914 = vmatprep.subr.mxu0 0.0
    %1915 = vmatpush1.msra.mxu0 0.0
    %1916 = vmatprep.subr.mxu0 0.0
    %1917 = vmatpush1.msra.mxu0 0.0
    %1918 = vmatprep.subr.mxu0 0.0
    %1919 = vmatpush1.msra.mxu0 0.0
    %1920 = vmatprep.subr.mxu0 0.0
    %1921 = vmatpush1.msra.mxu0 0.0
    %1922 = vmatprep.subr.mxu0 0.0
    %1923 = vmatpush1.msra.mxu0 0.0
    %1924 = vmatprep.subr.mxu0 0.0
    %1925 = vmatpush1.msra.mxu0 0.0
    %1926 = vmatprep.subr.mxu0 0.0
    %1927 = vmatpush1.msra.mxu0 0.0
    %1928 = vmatprep.subr.mxu0 0.0
    %1929 = vmatpush1.msra.mxu0 0.0
    %1930 = vmatprep.mubr.f32.mxu0 0.0
    %v1931 = vand.u32 %v1423, 4294901760
    %1932 = vmatmul.mubr.f32.gmra.mrb[0].mxu0 %v1931
    %v1933 = vpop.f32.mrb[0].mxu0
    %v1934 = vadd.f32 %v1827, %v1933
    %v1935 = vpop.f32.mrb[0].mxu0
    %1936 = vmatprep.mubr.f32.mxu0 0.0
    %v1937 = vand.u32 %v1426, 4294901760
    %1938 = vmatmul.mubr.f32.gmra.mrb[0].mxu0 %v1937
    %v1939 = vpop.f32.mrb[0].mxu0
    %v1940 = vadd.f32 %v1835, %v1939
    %v1941 = vpop.f32.mrb[0].mxu0
    %1942 = vmatprep.mubr.f32.mxu0 0.0
    %v1943 = vand.u32 %v1429, 4294901760
    %1944 = vmatmul.mubr.f32.gmra.mrb[0].mxu0 %v1943
    %v1945 = vpop.f32.mrb[0].mxu0
    %v1946 = vadd.f32 %v1843, %v1945
    %v1947 = vpop.f32.mrb[0].mxu0
    %1948 = vmatprep.mubr.f32.mxu0 0.0
    %v1949 = vand.u32 %v1432, 4294901760
    %1950 = vmatmul.mubr.f32.gmra.mrb[0].mxu0 %v1949
    %v1951 = vpop.f32.mrb[0].mxu0
    %v1952 = vadd.f32 %v1851, %v1951
    %v1953 = vpop.f32.mrb[0].mxu0
    %1954 = vdwg.mxu0
    %1955 = vmatprep.subr.mxu0 0.0
    %v1956 = vand.u32 %v1411, 4294901760
    %1957 = vmatpush1.msra.mxu0 %v1956
    %1958 = vmatprep.subr.mxu0 0.0
    %v1959 = vand.u32 %v1413, 4294901760
    %1960 = vmatpush1.msra.mxu0 %v1959
    %1961 = vmatprep.subr.mxu0 0.0
    %v1962 = vand.u32 %v1415, 4294901760
    %1963 = vmatpush1.msra.mxu0 %v1962
    %1964 = vmatprep.subr.mxu0 0.0
    %v1965 = vand.u32 %v1417, 4294901760
    %1966 = vmatpush1.msra.mxu0 %v1965
    %1967 = vmatprep.subr.mxu0 0.0
    %1968 = vmatpush1.msra.mxu0 0.0
    %1969 = vmatprep.subr.mxu0 0.0
    %1970 = vmatpush1.msra.mxu0 0.0
    %1971 = vmatprep.subr.mxu0 0.0
    %1972 = vmatpush1.msra.mxu0 0.0
    %1973 = vmatprep.subr.mxu0 0.0
    %1974 = vmatpush1.msra.mxu0 0.0
    %1975 = vmatprep.subr.mxu0 0.0
    %1976 = vmatpush1.msra.mxu0 0.0
    %1977 = vmatprep.subr.mxu0 0.0
    %1978 = vmatpush1.msra.mxu0 0.0
    %1979 = vmatprep.subr.mxu0 0.0
    %1980 = vmatpush1.msra.mxu0 0.0
    %1981 = vmatprep.subr.mxu0 0.0
    %1982 = vmatpush1.msra.mxu0 0.0
    %1983 = vmatprep.subr.mxu0 0.0
    %1984 = vmatpush1.msra.mxu0 0.0
    %1985 = vmatprep.subr.mxu0 0.0
    %1986 = vmatpush1.msra.mxu0 0.0
    %1987 = vmatprep.subr.mxu0 0.0
    %1988 = vmatpush1.msra.mxu0 0.0
    %1989 = vmatprep.subr.mxu0 0.0
    %1990 = vmatpush1.msra.mxu0 0.0
    %1991 = vmatprep.subr.mxu0 0.0
    %1992 = vmatpush1.msra.mxu0 0.0
    %1993 = vmatprep.subr.mxu0 0.0
    %1994 = vmatpush1.msra.mxu0 0.0
    %1995 = vmatprep.subr.mxu0 0.0
    %1996 = vmatpush1.msra.mxu0 0.0
    %1997 = vmatprep.subr.mxu0 0.0
    %1998 = vmatpush1.msra.mxu0 0.0
    %1999 = vmatprep.subr.mxu0 0.0
    %2000 = vmatpush1.msra.mxu0 0.0
    %2001 = vmatprep.subr.mxu0 0.0
    %2002 = vmatpush1.msra.mxu0 0.0
    %2003 = vmatprep.subr.mxu0 0.0
    %2004 = vmatpush1.msra.mxu0 0.0
    %2005 = vmatprep.subr.mxu0 0.0
    %2006 = vmatpush1.msra.mxu0 0.0
    %2007 = vmatprep.subr.mxu0 0.0
    %2008 = vmatpush1.msra.mxu0 0.0
    %2009 = vmatprep.subr.mxu0 0.0
    %2010 = vmatpush1.msra.mxu0 0.0
    %2011 = vmatprep.subr.mxu0 0.0
    %2012 = vmatpush1.msra.mxu0 0.0
    %2013 = vmatprep.subr.mxu0 0.0
    %2014 = vmatpush1.msra.mxu0 0.0
    %2015 = vmatprep.subr.mxu0 0.0
    %2016 = vmatpush1.msra.mxu0 0.0
    %2017 = vmatprep.subr.mxu0 0.0
    %2018 = vmatpush1.msra.mxu0 0.0
    %2019 = vmatprep.subr.mxu0 0.0
    %2020 = vmatpush1.msra.mxu0 0.0
    %2021 = vmatprep.subr.mxu0 0.0
    %2022 = vmatpush1.msra.mxu0 0.0
    %2023 = vmatprep.mubr.f32.mxu0 0.0
    %v2024 = vand.u32 %v1423, 4294901760
    %2025 = vmatmul.mubr.f32.gmra.mrb[0].mxu0 %v2024
    %v2026 = vpop.f32.mrb[0].mxu0
    %v2027 = vadd.f32 %v1934, %v2026
    %v2028 = vpop.f32.mrb[0].mxu0
    %2029 = vmatprep.mubr.f32.mxu0 0.0
    %v2030 = vand.u32 %v1426, 4294901760
    %2031 = vmatmul.mubr.f32.gmra.mrb[0].mxu0 %v2030
    %v2032 = vpop.f32.mrb[0].mxu0
    %v2033 = vadd.f32 %v1940, %v2032
    %v2034 = vpop.f32.mrb[0].mxu0
    %2035 = vmatprep.mubr.f32.mxu0 0.0
    %v2036 = vand.u32 %v1429, 4294901760
    %2037 = vmatmul.mubr.f32.gmra.mrb[0].mxu0 %v2036
    %v2038 = vpop.f32.mrb[0].mxu0
    %v2039 = vadd.f32 %v1946, %v2038
    %v2040 = vpop.f32.mrb[0].mxu0
    %2041 = vmatprep.mubr.f32.mxu0 0.0
    %v2042 = vand.u32 %v1432, 4294901760
    %2043 = vmatmul.mubr.f32.gmra.mrb[0].mxu0 %v2042
    %v2044 = vpop.f32.mrb[0].mxu0
    %v2045 = vadd.f32 %v1952, %v2044
    %v2046 = vpop.f32.mrb[0].mxu0
    %2047 = vdwg.mxu0
    %s2048 = scalar_lea.vmem [#allocation8], 32
    %v2049 = vld [vmem:[%s2048] sm:$0xff]
    %v2050 = vld [vmem:[%s2048 + $0x8] sm:$0xff]
    %v2051 = vld [vmem:[%s2048 + $0x10] sm:$0xff]
    %v2052 = vld [vmem:[%s2048 + $0x18] sm:$0xff]
    %2053 = vrot.lane.b32.xlu0 %v711, 120
    %v2054 = vpop.permute.xlu0 %2053
    %2055 = vrot.lane.b32.xlu0 %v712, 120
    %v2056 = vpop.permute.xlu0 %2055
    %2057 = vrot.lane.b32.xlu0 %v713, 120
    %v2058 = vpop.permute.xlu0 %2057
    %2059 = vrot.lane.b32.xlu0 %v714, 120
    %v2060 = vpop.permute.xlu0 %2059
    %2061 = vrot.lane.b32.xlu0 %v690, 88
    %v2062 = vpop.permute.xlu0 %2061
    %2063 = vrot.lane.b32.xlu0 %v696, 88
    %v2064 = vpop.permute.xlu0 %2063
    %2065 = vrot.lane.b32.xlu0 %v702, 88
    %v2066 = vpop.permute.xlu0 %2065
    %2067 = vrot.lane.b32.xlu0 %v708, 88
    %v2068 = vpop.permute.xlu0 %2067
    %v2069 = vsel %vm731, %v2054, 0
    %v2071 = vsel %vm731, %v2056, 0
    %v2073 = vsel %vm731, %v2058, 0
    %v2075 = vsel %vm731, %v2060, 0
    %v2077 = vsel %vm731, %v2062, 0
    %v2079 = vsel %vm731, %v2064, 0
    %v2081 = vsel %vm731, %v2066, 0
    %v2083 = vsel %vm731, %v2068, 0
    %2085 = vmatprep.subr.mxu0 0.0
    %v2086 = vand.u32 %v2077, 4294901760
    %2087 = vmatpush1.xpose.msra.mxu0 %v2086
    %2088 = vmatprep.subr.mxu0 0.0
    %v2089 = vand.u32 %v2079, 4294901760
    %2090 = vmatpush1.xpose.msra.mxu0 %v2089
    %2091 = vmatprep.subr.mxu0 0.0
    %v2092 = vand.u32 %v2081, 4294901760
    %2093 = vmatpush1.xpose.msra.mxu0 %v2092
    %2094 = vmatprep.subr.mxu0 0.0
    %v2095 = vand.u32 %v2083, 4294901760
    %2096 = vmatpush1.xpose.msra.mxu0 %v2095
    %2097 = vmatprep.subr.mxu0 0.0
    %2098 = vmatpush1.xpose.msra.mxu0 0.0
    %2099 = vmatprep.subr.mxu0 0.0
    %2100 = vmatpush1.xpose.msra.mxu0 0.0
    %2101 = vmatprep.subr.mxu0 0.0
    %2102 = vmatpush1.xpose.msra.mxu0 0.0
    %2103 = vmatprep.subr.mxu0 0.0
    %2104 = vmatpush1.xpose.msra.mxu0 0.0
    %2105 = vmatprep.subr.mxu0 0.0
    %2106 = vmatpush1.xpose.msra.mxu0 0.0
    %2107 = vmatprep.subr.mxu0 0.0
    %2108 = vmatpush1.xpose.msra.mxu0 0.0
    %2109 = vmatprep.subr.mxu0 0.0
    %2110 = vmatpush1.xpose.msra.mxu0 0.0
    %2111 = vmatprep.subr.mxu0 0.0
    %2112 = vmatpush1.xpose.msra.mxu0 0.0
    %2113 = vmatprep.subr.mxu0 0.0
    %2114 = vmatpush1.xpose.msra.mxu0 0.0
    %2115 = vmatprep.subr.mxu0 0.0
    %2116 = vmatpush1.xpose.msra.mxu0 0.0
    %2117 = vmatprep.subr.mxu0 0.0
    %2118 = vmatpush1.xpose.msra.mxu0 0.0
    %2119 = vmatprep.subr.mxu0 0.0
    %2120 = vmatpush1.xpose.msra.mxu0 0.0
    %2121 = vmatprep.subr.mxu0 0.0
    %2122 = vmatpush1.xpose.msra.mxu0 0.0
    %2123 = vmatprep.subr.mxu0 0.0
    %2124 = vmatpush1.xpose.msra.mxu0 0.0
    %2125 = vmatprep.subr.mxu0 0.0
    %2126 = vmatpush1.xpose.msra.mxu0 0.0
    %2127 = vmatprep.subr.mxu0 0.0
    %2128 = vmatpush1.xpose.msra.mxu0 0.0
    %2129 = vmatprep.subr.mxu0 0.0
    %2130 = vmatpush1.xpose.msra.mxu0 0.0
    %2131 = vmatprep.subr.mxu0 0.0
    %2132 = vmatpush1.xpose.msra.mxu0 0.0
    %2133 = vmatprep.subr.mxu0 0.0
    %2134 = vmatpush1.xpose.msra.mxu0 0.0
    %2135 = vmatprep.subr.mxu0 0.0
    %2136 = vmatpush1.xpose.msra.mxu0 0.0
    %2137 = vmatprep.subr.mxu0 0.0
    %2138 = vmatpush1.xpose.msra.mxu0 0.0
    %2139 = vmatprep.subr.mxu0 0.0
    %2140 = vmatpush1.xpose.msra.mxu0 0.0
    %2141 = vmatprep.subr.mxu0 0.0
    %2142 = vmatpush1.xpose.msra.mxu0 0.0
    %2143 = vmatprep.subr.mxu0 0.0
    %2144 = vmatpush1.xpose.msra.mxu0 0.0
    %2145 = vmatprep.subr.mxu0 0.0
    %2146 = vmatpush1.xpose.msra.mxu0 0.0
    %2147 = vmatprep.subr.mxu0 0.0
    %2148 = vmatpush1.xpose.msra.mxu0 0.0
    %2149 = vmatprep.subr.mxu0 0.0
    %2150 = vmatpush1.xpose.msra.mxu0 0.0
    %2151 = vmatprep.subr.mxu0 0.0
    %2152 = vmatpush1.xpose.msra.mxu0 0.0
    %2153 = vmatprep.mubr.f32.mxu0 0.0
    %v2154 = vand.u32 %v2069, 4294901760
    %v2155 = vsub.f32 %v2069, %v2154
    %v2156 = vand.u32 %v2155, 4294901760
    %v2157 = vsub.f32 %v2155, %v2156
    %v2158 = vand.u32 %v2157, 4294901760
    %2159 = vmatmul.mubr.f32.gmra.mrb[0].mxu0 %v2158
    %v2160 = vpop.f32.mrb[0].mxu0
    %v2161 = vadd.f32 %v2049, %v2160
    %v2162 = vpop.f32.mrb[0].mxu0
    %2163 = vmatprep.mubr.f32.mxu0 0.0
    %v2164 = vand.u32 %v2071, 4294901760
    %v2165 = vsub.f32 %v2071, %v2164
    %v2166 = vand.u32 %v2165, 4294901760
    %v2167 = vsub.f32 %v2165, %v2166
    %v2168 = vand.u32 %v2167, 4294901760
    %2169 = vmatmul.mubr.f32.gmra.mrb[0].mxu0 %v2168
    %v2170 = vpop.f32.mrb[0].mxu0
    %v2171 = vadd.f32 %v2050, %v2170
    %v2172 = vpop.f32.mrb[0].mxu0
    %2173 = vmatprep.mubr.f32.mxu0 0.0
    %v2174 = vand.u32 %v2073, 4294901760
    %v2175 = vsub.f32 %v2073, %v2174
    %v2176 = vand.u32 %v2175, 4294901760
    %v2177 = vsub.f32 %v2175, %v2176
    %v2178 = vand.u32 %v2177, 4294901760
    %2179 = vmatmul.mubr.f32.gmra.mrb[0].mxu0 %v2178
    %v2180 = vpop.f32.mrb[0].mxu0
    %v2181 = vadd.f32 %v2051, %v2180
    %v2182 = vpop.f32.mrb[0].mxu0
    %2183 = vmatprep.mubr.f32.mxu0 0.0
    %v2184 = vand.u32 %v2075, 4294901760
    %v2185 = vsub.f32 %v2075, %v2184
    %v2186 = vand.u32 %v2185, 4294901760
    %v2187 = vsub.f32 %v2185, %v2186
    %v2188 = vand.u32 %v2187, 4294901760
    %2189 = vmatmul.mubr.f32.gmra.mrb[0].mxu0 %v2188
    %v2190 = vpop.f32.mrb[0].mxu0
    %v2191 = vadd.f32 %v2052, %v2190
    %v2192 = vpop.f32.mrb[0].mxu0
    %2193 = vdwg.mxu0
    %2194 = vmatprep.subr.mxu0 0.0
    %v2195 = vand.u32 %v2077, 4294901760
    %v2196 = vsub.f32 %v2077, %v2195
    %v2197 = vand.u32 %v2196, 4294901760
    %v2198 = vsub.f32 %v2196, %v2197
    %v2199 = vand.u32 %v2198, 4294901760
    %2200 = vmatpush1.xpose.msra.mxu0 %v2199
    %2201 = vmatprep.subr.mxu0 0.0
    %v2202 = vand.u32 %v2079, 4294901760
    %v2203 = vsub.f32 %v2079, %v2202
    %v2204 = vand.u32 %v2203, 4294901760
    %v2205 = vsub.f32 %v2203, %v2204
    %v2206 = vand.u32 %v2205, 4294901760
    %2207 = vmatpush1.xpose.msra.mxu0 %v2206
    %2208 = vmatprep.subr.mxu0 0.0
    %v2209 = vand.u32 %v2081, 4294901760
    %v2210 = vsub.f32 %v2081, %v2209
    %v2211 = vand.u32 %v2210, 4294901760
    %v2212 = vsub.f32 %v2210, %v2211
    %v2213 = vand.u32 %v2212, 4294901760
    %2214 = vmatpush1.xpose.msra.mxu0 %v2213
    %2215 = vmatprep.subr.mxu0 0.0
    %v2216 = vand.u32 %v2083, 4294901760
    %v2217 = vsub.f32 %v2083, %v2216
    %v2218 = vand.u32 %v2217, 4294901760
    %v2219 = vsub.f32 %v2217, %v2218
    %v2220 = vand.u32 %v2219, 4294901760
    %2221 = vmatpush1.xpose.msra.mxu0 %v2220
    %2222 = vmatprep.subr.mxu0 0.0
    %2223 = vmatpush1.xpose.msra.mxu0 0.0
    %2224 = vmatprep.subr.mxu0 0.0
    %2225 = vmatpush1.xpose.msra.mxu0 0.0
    %2226 = vmatprep.subr.mxu0 0.0
    %2227 = vmatpush1.xpose.msra.mxu0 0.0
    %2228 = vmatprep.subr.mxu0 0.0
    %2229 = vmatpush1.xpose.msra.mxu0 0.0
    %2230 = vmatprep.subr.mxu0 0.0
    %2231 = vmatpush1.xpose.msra.mxu0 0.0
    %2232 = vmatprep.subr.mxu0 0.0
    %2233 = vmatpush1.xpose.msra.mxu0 0.0
    %2234 = vmatprep.subr.mxu0 0.0
    %2235 = vmatpush1.xpose.msra.mxu0 0.0
    %2236 = vmatprep.subr.mxu0 0.0
    %2237 = vmatpush1.xpose.msra.mxu0 0.0
    %2238 = vmatprep.subr.mxu0 0.0
    %2239 = vmatpush1.xpose.msra.mxu0 0.0
    %2240 = vmatprep.subr.mxu0 0.0
    %2241 = vmatpush1.xpose.msra.mxu0 0.0
    %2242 = vmatprep.subr.mxu0 0.0
    %2243 = vmatpush1.xpose.msra.mxu0 0.0
    %2244 = vmatprep.subr.mxu0 0.0
    %2245 = vmatpush1.xpose.msra.mxu0 0.0
    %2246 = vmatprep.subr.mxu0 0.0
    %2247 = vmatpush1.xpose.msra.mxu0 0.0
    %2248 = vmatprep.subr.mxu0 0.0
    %2249 = vmatpush1.xpose.msra.mxu0 0.0
    %2250 = vmatprep.subr.mxu0 0.0
    %2251 = vmatpush1.xpose.msra.mxu0 0.0
    %2252 = vmatprep.subr.mxu0 0.0
    %2253 = vmatpush1.xpose.msra.mxu0 0.0
    %2254 = vmatprep.subr.mxu0 0.0
    %2255 = vmatpush1.xpose.msra.mxu0 0.0
    %2256 = vmatprep.subr.mxu0 0.0
    %2257 = vmatpush1.xpose.msra.mxu0 0.0
    %2258 = vmatprep.subr.mxu0 0.0
    %2259 = vmatpush1.xpose.msra.mxu0 0.0
    %2260 = vmatprep.subr.mxu0 0.0
    %2261 = vmatpush1.xpose.msra.mxu0 0.0
    %2262 = vmatprep.subr.mxu0 0.0
    %2263 = vmatpush1.xpose.msra.mxu0 0.0
    %2264 = vmatprep.subr.mxu0 0.0
    %2265 = vmatpush1.xpose.msra.mxu0 0.0
    %2266 = vmatprep.subr.mxu0 0.0
    %2267 = vmatpush1.xpose.msra.mxu0 0.0
    %2268 = vmatprep.subr.mxu0 0.0
    %2269 = vmatpush1.xpose.msra.mxu0 0.0
    %2270 = vmatprep.subr.mxu0 0.0
    %2271 = vmatpush1.xpose.msra.mxu0 0.0
    %2272 = vmatprep.subr.mxu0 0.0
    %2273 = vmatpush1.xpose.msra.mxu0 0.0
    %2274 = vmatprep.subr.mxu0 0.0
    %2275 = vmatpush1.xpose.msra.mxu0 0.0
    %2276 = vmatprep.subr.mxu0 0.0
    %2277 = vmatpush1.xpose.msra.mxu0 0.0
    %2278 = vmatprep.mubr.f32.mxu0 0.0
    %v2279 = vand.u32 %v2069, 4294901760
    %2280 = vmatmul.mubr.f32.gmra.mrb[0].mxu0 %v2279
    %v2281 = vpop.f32.mrb[0].mxu0
    %v2282 = vadd.f32 %v2161, %v2281
    %v2283 = vpop.f32.mrb[0].mxu0
    %2284 = vmatprep.mubr.f32.mxu0 0.0
    %v2285 = vand.u32 %v2071, 4294901760
    %2286 = vmatmul.mubr.f32.gmra.mrb[0].mxu0 %v2285
    %v2287 = vpop.f32.mrb[0].mxu0
    %v2288 = vadd.f32 %v2171, %v2287
    %v2289 = vpop.f32.mrb[0].mxu0
    %2290 = vmatprep.mubr.f32.mxu0 0.0
    %v2291 = vand.u32 %v2073, 4294901760
    %2292 = vmatmul.mubr.f32.gmra.mrb[0].mxu0 %v2291
    %v2293 = vpop.f32.mrb[0].mxu0
    %v2294 = vadd.f32 %v2181, %v2293
    %v2295 = vpop.f32.mrb[0].mxu0
    %2296 = vmatprep.mubr.f32.mxu0 0.0
    %v2297 = vand.u32 %v2075, 4294901760
    %2298 = vmatmul.mubr.f32.gmra.mrb[0].mxu0 %v2297
    %v2299 = vpop.f32.mrb[0].mxu0
    %v2300 = vadd.f32 %v2191, %v2299
    %v2301 = vpop.f32.mrb[0].mxu0
    %2302 = vdwg.mxu0
    %2303 = vmatprep.subr.mxu0 0.0
    %v2304 = vand.u32 %v2077, 4294901760
    %v2305 = vsub.f32 %v2077, %v2304
    %2306 = vmatpush1.xpose.msra.mxu0 %v2305
    %2307 = vmatprep.subr.mxu0 0.0
    %v2308 = vand.u32 %v2079, 4294901760
    %v2309 = vsub.f32 %v2079, %v2308
    %2310 = vmatpush1.xpose.msra.mxu0 %v2309
    %2311 = vmatprep.subr.mxu0 0.0
    %v2312 = vand.u32 %v2081, 4294901760
    %v2313 = vsub.f32 %v2081, %v2312
    %2314 = vmatpush1.xpose.msra.mxu0 %v2313
    %2315 = vmatprep.subr.mxu0 0.0
    %v2316 = vand.u32 %v2083, 4294901760
    %v2317 = vsub.f32 %v2083, %v2316
    %2318 = vmatpush1.xpose.msra.mxu0 %v2317
    %2319 = vmatprep.subr.mxu0 0.0
    %2320 = vmatpush1.xpose.msra.mxu0 0.0
    %2321 = vmatprep.subr.mxu0 0.0
    %2322 = vmatpush1.xpose.msra.mxu0 0.0
    %2323 = vmatprep.subr.mxu0 0.0
    %2324 = vmatpush1.xpose.msra.mxu0 0.0
    %2325 = vmatprep.subr.mxu0 0.0
    %2326 = vmatpush1.xpose.msra.mxu0 0.0
    %2327 = vmatprep.subr.mxu0 0.0
    %2328 = vmatpush1.xpose.msra.mxu0 0.0
    %2329 = vmatprep.subr.mxu0 0.0
    %2330 = vmatpush1.xpose.msra.mxu0 0.0
    %2331 = vmatprep.subr.mxu0 0.0
    %2332 = vmatpush1.xpose.msra.mxu0 0.0
    %2333 = vmatprep.subr.mxu0 0.0
    %2334 = vmatpush1.xpose.msra.mxu0 0.0
    %2335 = vmatprep.subr.mxu0 0.0
    %2336 = vmatpush1.xpose.msra.mxu0 0.0
    %2337 = vmatprep.subr.mxu0 0.0
    %2338 = vmatpush1.xpose.msra.mxu0 0.0
    %2339 = vmatprep.subr.mxu0 0.0
    %2340 = vmatpush1.xpose.msra.mxu0 0.0
    %2341 = vmatprep.subr.mxu0 0.0
    %2342 = vmatpush1.xpose.msra.mxu0 0.0
    %2343 = vmatprep.subr.mxu0 0.0
    %2344 = vmatpush1.xpose.msra.mxu0 0.0
    %2345 = vmatprep.subr.mxu0 0.0
    %2346 = vmatpush1.xpose.msra.mxu0 0.0
    %2347 = vmatprep.subr.mxu0 0.0
    %2348 = vmatpush1.xpose.msra.mxu0 0.0
    %2349 = vmatprep.subr.mxu0 0.0
    %2350 = vmatpush1.xpose.msra.mxu0 0.0
    %2351 = vmatprep.subr.mxu0 0.0
    %2352 = vmatpush1.xpose.msra.mxu0 0.0
    %2353 = vmatprep.subr.mxu0 0.0
    %2354 = vmatpush1.xpose.msra.mxu0 0.0
    %2355 = vmatprep.subr.mxu0 0.0
    %2356 = vmatpush1.xpose.msra.mxu0 0.0
    %2357 = vmatprep.subr.mxu0 0.0
    %2358 = vmatpush1.xpose.msra.mxu0 0.0
    %2359 = vmatprep.subr.mxu0 0.0
    %2360 = vmatpush1.xpose.msra.mxu0 0.0
    %2361 = vmatprep.subr.mxu0 0.0
    %2362 = vmatpush1.xpose.msra.mxu0 0.0
    %2363 = vmatprep.subr.mxu0 0.0
    %2364 = vmatpush1.xpose.msra.mxu0 0.0
    %2365 = vmatprep.subr.mxu0 0.0
    %2366 = vmatpush1.xpose.msra.mxu0 0.0
    %2367 = vmatprep.subr.mxu0 0.0
    %2368 = vmatpush1.xpose.msra.mxu0 0.0
    %2369 = vmatprep.subr.mxu0 0.0
    %2370 = vmatpush1.xpose.msra.mxu0 0.0
    %2371 = vmatprep.subr.mxu0 0.0
    %2372 = vmatpush1.xpose.msra.mxu0 0.0
    %2373 = vmatprep.subr.mxu0 0.0
    %2374 = vmatpush1.xpose.msra.mxu0 0.0
    %2375 = vmatprep.mubr.f32.mxu0 0.0
    %v2376 = vand.u32 %v2069, 4294901760
    %v2377 = vsub.f32 %v2069, %v2376
    %2378 = vmatmul.mubr.f32.gmra.mrb[0].mxu0 %v2377
    %v2379 = vpop.f32.mrb[0].mxu0
    %v2380 = vadd.f32 %v2282, %v2379
    %v2381 = vpop.f32.mrb[0].mxu0
    %2382 = vmatprep.mubr.f32.mxu0 0.0
    %v2383 = vand.u32 %v2071, 4294901760
    %v2384 = vsub.f32 %v2071, %v2383
    %2385 = vmatmul.mubr.f32.gmra.mrb[0].mxu0 %v2384
    %v2386 = vpop.f32.mrb[0].mxu0
    %v2387 = vadd.f32 %v2288, %v2386
    %v2388 = vpop.f32.mrb[0].mxu0
    %2389 = vmatprep.mubr.f32.mxu0 0.0
    %v2390 = vand.u32 %v2073, 4294901760
    %v2391 = vsub.f32 %v2073, %v2390
    %2392 = vmatmul.mubr.f32.gmra.mrb[0].mxu0 %v2391
    %v2393 = vpop.f32.mrb[0].mxu0
    %v2394 = vadd.f32 %v2294, %v2393
    %v2395 = vpop.f32.mrb[0].mxu0
    %2396 = vmatprep.mubr.f32.mxu0 0.0
    %v2397 = vand.u32 %v2075, 4294901760
    %v2398 = vsub.f32 %v2075, %v2397
    %2399 = vmatmul.mubr.f32.gmra.mrb[0].mxu0 %v2398
    %v2400 = vpop.f32.mrb[0].mxu0
    %v2401 = vadd.f32 %v2300, %v2400
    %v2402 = vpop.f32.mrb[0].mxu0
    %2403 = vdwg.mxu0
    %2404 = vmatprep.subr.mxu0 0.0
    %v2405 = vand.u32 %v2077, 4294901760
    %2406 = vmatpush1.xpose.msra.mxu0 %v2405
    %2407 = vmatprep.subr.mxu0 0.0
    %v2408 = vand.u32 %v2079, 4294901760
    %2409 = vmatpush1.xpose.msra.mxu0 %v2408
    %2410 = vmatprep.subr.mxu0 0.0
    %v2411 = vand.u32 %v2081, 4294901760
    %2412 = vmatpush1.xpose.msra.mxu0 %v2411
    %2413 = vmatprep.subr.mxu0 0.0
    %v2414 = vand.u32 %v2083, 4294901760
    %2415 = vmatpush1.xpose.msra.mxu0 %v2414
    %2416 = vmatprep.subr.mxu0 0.0
    %2417 = vmatpush1.xpose.msra.mxu0 0.0
    %2418 = vmatprep.subr.mxu0 0.0
    %2419 = vmatpush1.xpose.msra.mxu0 0.0
    %2420 = vmatprep.subr.mxu0 0.0
    %2421 = vmatpush1.xpose.msra.mxu0 0.0
    %2422 = vmatprep.subr.mxu0 0.0
    %2423 = vmatpush1.xpose.msra.mxu0 0.0
    %2424 = vmatprep.subr.mxu0 0.0
    %2425 = vmatpush1.xpose.msra.mxu0 0.0
    %2426 = vmatprep.subr.mxu0 0.0
    %2427 = vmatpush1.xpose.msra.mxu0 0.0
    %2428 = vmatprep.subr.mxu0 0.0
    %2429 = vmatpush1.xpose.msra.mxu0 0.0
    %2430 = vmatprep.subr.mxu0 0.0
    %2431 = vmatpush1.xpose.msra.mxu0 0.0
    %2432 = vmatprep.subr.mxu0 0.0
    %2433 = vmatpush1.xpose.msra.mxu0 0.0
    %2434 = vmatprep.subr.mxu0 0.0
    %2435 = vmatpush1.xpose.msra.mxu0 0.0
    %2436 = vmatprep.subr.mxu0 0.0
    %2437 = vmatpush1.xpose.msra.mxu0 0.0
    %2438 = vmatprep.subr.mxu0 0.0
    %2439 = vmatpush1.xpose.msra.mxu0 0.0
    %2440 = vmatprep.subr.mxu0 0.0
    %2441 = vmatpush1.xpose.msra.mxu0 0.0
    %2442 = vmatprep.subr.mxu0 0.0
    %2443 = vmatpush1.xpose.msra.mxu0 0.0
    %2444 = vmatprep.subr.mxu0 0.0
    %2445 = vmatpush1.xpose.msra.mxu0 0.0
    %2446 = vmatprep.subr.mxu0 0.0
    %2447 = vmatpush1.xpose.msra.mxu0 0.0
    %2448 = vmatprep.subr.mxu0 0.0
    %2449 = vmatpush1.xpose.msra.mxu0 0.0
    %2450 = vmatprep.subr.mxu0 0.0
    %2451 = vmatpush1.xpose.msra.mxu0 0.0
    %2452 = vmatprep.subr.mxu0 0.0
    %2453 = vmatpush1.xpose.msra.mxu0 0.0
    %2454 = vmatprep.subr.mxu0 0.0
    %2455 = vmatpush1.xpose.msra.mxu0 0.0
    %2456 = vmatprep.subr.mxu0 0.0
    %2457 = vmatpush1.xpose.msra.mxu0 0.0
    %2458 = vmatprep.subr.mxu0 0.0
    %2459 = vmatpush1.xpose.msra.mxu0 0.0
    %2460 = vmatprep.subr.mxu0 0.0
    %2461 = vmatpush1.xpose.msra.mxu0 0.0
    %2462 = vmatprep.subr.mxu0 0.0
    %2463 = vmatpush1.xpose.msra.mxu0 0.0
    %2464 = vmatprep.subr.mxu0 0.0
    %2465 = vmatpush1.xpose.msra.mxu0 0.0
    %2466 = vmatprep.subr.mxu0 0.0
    %2467 = vmatpush1.xpose.msra.mxu0 0.0
    %2468 = vmatprep.subr.mxu0 0.0
    %2469 = vmatpush1.xpose.msra.mxu0 0.0
    %2470 = vmatprep.subr.mxu0 0.0
    %2471 = vmatpush1.xpose.msra.mxu0 0.0
    %2472 = vmatprep.mubr.f32.mxu0 0.0
    %v2473 = vand.u32 %v2069, 4294901760
    %v2474 = vsub.f32 %v2069, %v2473
    %v2475 = vand.u32 %v2474, 4294901760
    %2476 = vmatmul.mubr.f32.gmra.mrb[0].mxu0 %v2475
    %v2477 = vpop.f32.mrb[0].mxu0
    %v2478 = vadd.f32 %v2380, %v2477
    %v2479 = vpop.f32.mrb[0].mxu0
    %2480 = vmatprep.mubr.f32.mxu0 0.0
    %v2481 = vand.u32 %v2071, 4294901760
    %v2482 = vsub.f32 %v2071, %v2481
    %v2483 = vand.u32 %v2482, 4294901760
    %2484 = vmatmul.mubr.f32.gmra.mrb[0].mxu0 %v2483
    %v2485 = vpop.f32.mrb[0].mxu0
    %v2486 = vadd.f32 %v2387, %v2485
    %v2487 = vpop.f32.mrb[0].mxu0
    %2488 = vmatprep.mubr.f32.mxu0 0.0
    %v2489 = vand.u32 %v2073, 4294901760
    %v2490 = vsub.f32 %v2073, %v2489
    %v2491 = vand.u32 %v2490, 4294901760
    %2492 = vmatmul.mubr.f32.gmra.mrb[0].mxu0 %v2491
    %v2493 = vpop.f32.mrb[0].mxu0
    %v2494 = vadd.f32 %v2394, %v2493
    %v2495 = vpop.f32.mrb[0].mxu0
    %2496 = vmatprep.mubr.f32.mxu0 0.0
    %v2497 = vand.u32 %v2075, 4294901760
    %v2498 = vsub.f32 %v2075, %v2497
    %v2499 = vand.u32 %v2498, 4294901760
    %2500 = vmatmul.mubr.f32.gmra.mrb[0].mxu0 %v2499
    %v2501 = vpop.f32.mrb[0].mxu0
    %v2502 = vadd.f32 %v2401, %v2501
    %v2503 = vpop.f32.mrb[0].mxu0
    %2504 = vdwg.mxu0
    %2505 = vmatprep.subr.mxu0 0.0
    %v2506 = vand.u32 %v2077, 4294901760
    %v2507 = vsub.f32 %v2077, %v2506
    %v2508 = vand.u32 %v2507, 4294901760
    %2509 = vmatpush1.xpose.msra.mxu0 %v2508
    %2510 = vmatprep.subr.mxu0 0.0
    %v2511 = vand.u32 %v2079, 4294901760
    %v2512 = vsub.f32 %v2079, %v2511
    %v2513 = vand.u32 %v2512, 4294901760
    %2514 = vmatpush1.xpose.msra.mxu0 %v2513
    %2515 = vmatprep.subr.mxu0 0.0
    %v2516 = vand.u32 %v2081, 4294901760
    %v2517 = vsub.f32 %v2081, %v2516
    %v2518 = vand.u32 %v2517, 4294901760
    %2519 = vmatpush1.xpose.msra.mxu0 %v2518
    %2520 = vmatprep.subr.mxu0 0.0
    %v2521 = vand.u32 %v2083, 4294901760
    %v2522 = vsub.f32 %v2083, %v2521
    %v2523 = vand.u32 %v2522, 4294901760
    %2524 = vmatpush1.xpose.msra.mxu0 %v2523
    %2525 = vmatprep.subr.mxu0 0.0
    %2526 = vmatpush1.xpose.msra.mxu0 0.0
    %2527 = vmatprep.subr.mxu0 0.0
    %2528 = vmatpush1.xpose.msra.mxu0 0.0
    %2529 = vmatprep.subr.mxu0 0.0
    %2530 = vmatpush1.xpose.msra.mxu0 0.0
    %2531 = vmatprep.subr.mxu0 0.0
    %2532 = vmatpush1.xpose.msra.mxu0 0.0
    %2533 = vmatprep.subr.mxu0 0.0
    %2534 = vmatpush1.xpose.msra.mxu0 0.0
    %2535 = vmatprep.subr.mxu0 0.0
    %2536 = vmatpush1.xpose.msra.mxu0 0.0
    %2537 = vmatprep.subr.mxu0 0.0
    %2538 = vmatpush1.xpose.msra.mxu0 0.0
    %2539 = vmatprep.subr.mxu0 0.0
    %2540 = vmatpush1.xpose.msra.mxu0 0.0
    %2541 = vmatprep.subr.mxu0 0.0
    %2542 = vmatpush1.xpose.msra.mxu0 0.0
    %2543 = vmatprep.subr.mxu0 0.0
    %2544 = vmatpush1.xpose.msra.mxu0 0.0
    %2545 = vmatprep.subr.mxu0 0.0
    %2546 = vmatpush1.xpose.msra.mxu0 0.0
    %2547 = vmatprep.subr.mxu0 0.0
    %2548 = vmatpush1.xpose.msra.mxu0 0.0
    %2549 = vmatprep.subr.mxu0 0.0
    %2550 = vmatpush1.xpose.msra.mxu0 0.0
    %2551 = vmatprep.subr.mxu0 0.0
    %2552 = vmatpush1.xpose.msra.mxu0 0.0
    %2553 = vmatprep.subr.mxu0 0.0
    %2554 = vmatpush1.xpose.msra.mxu0 0.0
    %2555 = vmatprep.subr.mxu0 0.0
    %2556 = vmatpush1.xpose.msra.mxu0 0.0
    %2557 = vmatprep.subr.mxu0 0.0
    %2558 = vmatpush1.xpose.msra.mxu0 0.0
    %2559 = vmatprep.subr.mxu0 0.0
    %2560 = vmatpush1.xpose.msra.mxu0 0.0
    %2561 = vmatprep.subr.mxu0 0.0
    %2562 = vmatpush1.xpose.msra.mxu0 0.0
    %2563 = vmatprep.subr.mxu0 0.0
    %2564 = vmatpush1.xpose.msra.mxu0 0.0
    %2565 = vmatprep.subr.mxu0 0.0
    %2566 = vmatpush1.xpose.msra.mxu0 0.0
    %2567 = vmatprep.subr.mxu0 0.0
    %2568 = vmatpush1.xpose.msra.mxu0 0.0
    %2569 = vmatprep.subr.mxu0 0.0
    %2570 = vmatpush1.xpose.msra.mxu0 0.0
    %2571 = vmatprep.subr.mxu0 0.0
    %2572 = vmatpush1.xpose.msra.mxu0 0.0
    %2573 = vmatprep.subr.mxu0 0.0
    %2574 = vmatpush1.xpose.msra.mxu0 0.0
    %2575 = vmatprep.subr.mxu0 0.0
    %2576 = vmatpush1.xpose.msra.mxu0 0.0
    %2577 = vmatprep.subr.mxu0 0.0
    %2578 = vmatpush1.xpose.msra.mxu0 0.0
    %2579 = vmatprep.subr.mxu0 0.0
    %2580 = vmatpush1.xpose.msra.mxu0 0.0
    %2581 = vmatprep.mubr.f32.mxu0 0.0
    %v2582 = vand.u32 %v2069, 4294901760
    %2583 = vmatmul.mubr.f32.gmra.mrb[0].mxu0 %v2582
    %v2584 = vpop.f32.mrb[0].mxu0
    %v2585 = vadd.f32 %v2478, %v2584
    %v2586 = vpop.f32.mrb[0].mxu0
    %2587 = vmatprep.mubr.f32.mxu0 0.0
    %v2588 = vand.u32 %v2071, 4294901760
    %2589 = vmatmul.mubr.f32.gmra.mrb[0].mxu0 %v2588
    %v2590 = vpop.f32.mrb[0].mxu0
    %v2591 = vadd.f32 %v2486, %v2590
    %v2592 = vpop.f32.mrb[0].mxu0
    %2593 = vmatprep.mubr.f32.mxu0 0.0
    %v2594 = vand.u32 %v2073, 4294901760
    %2595 = vmatmul.mubr.f32.gmra.mrb[0].mxu0 %v2594
    %v2596 = vpop.f32.mrb[0].mxu0
    %v2597 = vadd.f32 %v2494, %v2596
    %v2598 = vpop.f32.mrb[0].mxu0
    %2599 = vmatprep.mubr.f32.mxu0 0.0
    %v2600 = vand.u32 %v2075, 4294901760
    %2601 = vmatmul.mubr.f32.gmra.mrb[0].mxu0 %v2600
    %v2602 = vpop.f32.mrb[0].mxu0
    %v2603 = vadd.f32 %v2502, %v2602
    %v2604 = vpop.f32.mrb[0].mxu0
    %2605 = vdwg.mxu0
    %2606 = vmatprep.subr.mxu0 0.0
    %v2607 = vand.u32 %v2077, 4294901760
    %2608 = vmatpush1.xpose.msra.mxu0 %v2607
    %2609 = vmatprep.subr.mxu0 0.0
    %v2610 = vand.u32 %v2079, 4294901760
    %2611 = vmatpush1.xpose.msra.mxu0 %v2610
    %2612 = vmatprep.subr.mxu0 0.0
    %v2613 = vand.u32 %v2081, 4294901760
    %2614 = vmatpush1.xpose.msra.mxu0 %v2613
    %2615 = vmatprep.subr.mxu0 0.0
    %v2616 = vand.u32 %v2083, 4294901760
    %2617 = vmatpush1.xpose.msra.mxu0 %v2616
    %2618 = vmatprep.subr.mxu0 0.0
    %2619 = vmatpush1.xpose.msra.mxu0 0.0
    %2620 = vmatprep.subr.mxu0 0.0
    %2621 = vmatpush1.xpose.msra.mxu0 0.0
    %2622 = vmatprep.subr.mxu0 0.0
    %2623 = vmatpush1.xpose.msra.mxu0 0.0
    %2624 = vmatprep.subr.mxu0 0.0
    %2625 = vmatpush1.xpose.msra.mxu0 0.0
    %2626 = vmatprep.subr.mxu0 0.0
    %2627 = vmatpush1.xpose.msra.mxu0 0.0
    %2628 = vmatprep.subr.mxu0 0.0
    %2629 = vmatpush1.xpose.msra.mxu0 0.0
    %2630 = vmatprep.subr.mxu0 0.0
    %2631 = vmatpush1.xpose.msra.mxu0 0.0
    %2632 = vmatprep.subr.mxu0 0.0
    %2633 = vmatpush1.xpose.msra.mxu0 0.0
    %2634 = vmatprep.subr.mxu0 0.0
    %2635 = vmatpush1.xpose.msra.mxu0 0.0
    %2636 = vmatprep.subr.mxu0 0.0
    %2637 = vmatpush1.xpose.msra.mxu0 0.0
    %2638 = vmatprep.subr.mxu0 0.0
    %2639 = vmatpush1.xpose.msra.mxu0 0.0
    %2640 = vmatprep.subr.mxu0 0.0
    %2641 = vmatpush1.xpose.msra.mxu0 0.0
    %2642 = vmatprep.subr.mxu0 0.0
    %2643 = vmatpush1.xpose.msra.mxu0 0.0
    %2644 = vmatprep.subr.mxu0 0.0
    %2645 = vmatpush1.xpose.msra.mxu0 0.0
    %2646 = vmatprep.subr.mxu0 0.0
    %2647 = vmatpush1.xpose.msra.mxu0 0.0
    %2648 = vmatprep.subr.mxu0 0.0
    %2649 = vmatpush1.xpose.msra.mxu0 0.0
    %2650 = vmatprep.subr.mxu0 0.0
    %2651 = vmatpush1.xpose.msra.mxu0 0.0
    %2652 = vmatprep.subr.mxu0 0.0
    %2653 = vmatpush1.xpose.msra.mxu0 0.0
    %2654 = vmatprep.subr.mxu0 0.0
    %2655 = vmatpush1.xpose.msra.mxu0 0.0
    %2656 = vmatprep.subr.mxu0 0.0
    %2657 = vmatpush1.xpose.msra.mxu0 0.0
    %2658 = vmatprep.subr.mxu0 0.0
    %2659 = vmatpush1.xpose.msra.mxu0 0.0
    %2660 = vmatprep.subr.mxu0 0.0
    %2661 = vmatpush1.xpose.msra.mxu0 0.0
    %2662 = vmatprep.subr.mxu0 0.0
    %2663 = vmatpush1.xpose.msra.mxu0 0.0
    %2664 = vmatprep.subr.mxu0 0.0
    %2665 = vmatpush1.xpose.msra.mxu0 0.0
    %2666 = vmatprep.subr.mxu0 0.0
    %2667 = vmatpush1.xpose.msra.mxu0 0.0
    %2668 = vmatprep.subr.mxu0 0.0
    %2669 = vmatpush1.xpose.msra.mxu0 0.0
    %2670 = vmatprep.subr.mxu0 0.0
    %2671 = vmatpush1.xpose.msra.mxu0 0.0
    %2672 = vmatprep.subr.mxu0 0.0
    %2673 = vmatpush1.xpose.msra.mxu0 0.0
    %2674 = vmatprep.mubr.f32.mxu0 0.0
    %v2675 = vand.u32 %v2069, 4294901760
    %2676 = vmatmul.mubr.f32.gmra.mrb[0].mxu0 %v2675
    %v2677 = vpop.f32.mrb[0].mxu0
    %v2678 = vadd.f32 %v2585, %v2677
    %v2679 = vpop.f32.mrb[0].mxu0
    %2680 = vmatprep.mubr.f32.mxu0 0.0
    %v2681 = vand.u32 %v2071, 4294901760
    %2682 = vmatmul.mubr.f32.gmra.mrb[0].mxu0 %v2681
    %v2683 = vpop.f32.mrb[0].mxu0
    %v2684 = vadd.f32 %v2591, %v2683
    %v2685 = vpop.f32.mrb[0].mxu0
    %2686 = vmatprep.mubr.f32.mxu0 0.0
    %v2687 = vand.u32 %v2073, 4294901760
    %2688 = vmatmul.mubr.f32.gmra.mrb[0].mxu0 %v2687
    %v2689 = vpop.f32.mrb[0].mxu0
    %v2690 = vadd.f32 %v2597, %v2689
    %v2691 = vpop.f32.mrb[0].mxu0
    %2692 = vmatprep.mubr.f32.mxu0 0.0
    %v2693 = vand.u32 %v2075, 4294901760
    %2694 = vmatmul.mubr.f32.gmra.mrb[0].mxu0 %v2693
    %v2695 = vpop.f32.mrb[0].mxu0
    %v2696 = vadd.f32 %v2603, %v2695
    %v2697 = vpop.f32.mrb[0].mxu0
    %2698 = vdwg.mxu0
    %v2699 = vsel %vm84, %v2678, -inf
    %2700 = vmax.xlane.f32.xlu0 %v2699
    %v2701 = vpop.xlane.xlu0 %2700
    %v2702 = vsel %vm84, %v2684, -inf
    %2703 = vmax.xlane.f32.xlu0 %v2702
    %v2704 = vpop.xlane.xlu0 %2703
    %v2705 = vsel %vm84, %v2690, -inf
    %2706 = vmax.xlane.f32.xlu0 %v2705
    %v2707 = vpop.xlane.xlu0 %2706
    %v2708 = vsel %vm84, %v2696, -inf
    %2709 = vmax.xlane.f32.xlu0 %v2708
    %v2710 = vpop.xlane.xlu0 %2709
    %v2711 = vsub.f32 %v2678, %v2701
    %v2712 = vsub.f32 %v2684, %v2704
    %v2713 = vsub.f32 %v2690, %v2707
    %v2714 = vsub.f32 %v2696, %v2710
    %v2715 = vmul.f32 %v2711, 1.442695
    %v2716 = vpow.pop %v2715
    %v2717 = vmul.f32 %v2712, 1.442695
    %v2718 = vpow.pop %v2717
    %v2719 = vmul.f32 %v2713, 1.442695
    %v2720 = vpow.pop %v2719
    %v2721 = vmul.f32 %v2714, 1.442695
    %v2722 = vpow.pop %v2721
    %v2723 = vsel %vm84, %v2716, 0.0
    %2724 = vadd.xlane.f32.xlu0 %v2723
    %v2725 = vpop.xlane.xlu0 %2724
    %v2726 = vsel %vm84, %v2718, 0.0
    %2727 = vadd.xlane.f32.xlu0 %v2726
    %v2728 = vpop.xlane.xlu0 %2727
    %v2729 = vsel %vm84, %v2720, 0.0
    %2730 = vadd.xlane.f32.xlu0 %v2729
    %v2731 = vpop.xlane.xlu0 %2730
    %v2732 = vsel %vm84, %v2722, 0.0
    %2733 = vadd.xlane.f32.xlu0 %v2732
    %v2734 = vpop.xlane.xlu0 %2733
    %v2735 = vrcp.pop %v2725
    %v2736 = vrcp.pop %v2728
    %v2737 = vrcp.pop %v2731
    %v2738 = vrcp.pop %v2734
    %v2739 = vmul.f32 %v2716, %v2735
    %v2740 = vmul.f32 %v2718, %v2736
    %v2741 = vmul.f32 %v2720, %v2737
    %v2742 = vmul.f32 %v2722, %v2738
    %2743 = vrot.lane.b32.xlu0 %v690, 56
    %v2744 = vpop.permute.xlu0 %2743
    %2745 = vrot.lane.b32.xlu0 %v696, 56
    %v2746 = vpop.permute.xlu0 %2745
    %2747 = vrot.lane.b32.xlu0 %v702, 56
    %v2748 = vpop.permute.xlu0 %2747
    %2749 = vrot.lane.b32.xlu0 %v708, 56
    %v2750 = vpop.permute.xlu0 %2749
    %v2756 = vsel %vm84, %v2739, 0
    %v2759 = vsel %vm84, %v2740, 0
    %v2762 = vsel %vm84, %v2741, 0
    %v2765 = vsel %vm84, %v2742, 0
    %2767 = vmatprep.subr.mxu0 0.0
    %v2768 = vand.u32 %v2744, 4294901760
    %2769 = vmatpush1.msra.mxu0 %v2768
    %2770 = vmatprep.subr.mxu0 0.0
    %v2771 = vand.u32 %v2746, 4294901760
    %2772 = vmatpush1.msra.mxu0 %v2771
    %2773 = vmatprep.subr.mxu0 0.0
    %v2774 = vand.u32 %v2748, 4294901760
    %2775 = vmatpush1.msra.mxu0 %v2774
    %2776 = vmatprep.subr.mxu0 0.0
    %v2777 = vand.u32 %v2750, 4294901760
    %2778 = vmatpush1.msra.mxu0 %v2777
    %2779 = vmatprep.subr.mxu0 0.0
    %2780 = vmatpush1.msra.mxu0 0.0
    %2781 = vmatprep.subr.mxu0 0.0
    %2782 = vmatpush1.msra.mxu0 0.0
    %2783 = vmatprep.subr.mxu0 0.0
    %2784 = vmatpush1.msra.mxu0 0.0
    %2785 = vmatprep.subr.mxu0 0.0
    %2786 = vmatpush1.msra.mxu0 0.0
    %2787 = vmatprep.subr.mxu0 0.0
    %2788 = vmatpush1.msra.mxu0 0.0
    %2789 = vmatprep.subr.mxu0 0.0
    %2790 = vmatpush1.msra.mxu0 0.0
    %2791 = vmatprep.subr.mxu0 0.0
    %2792 = vmatpush1.msra.mxu0 0.0
    %2793 = vmatprep.subr.mxu0 0.0
    %2794 = vmatpush1.msra.mxu0 0.0
    %2795 = vmatprep.subr.mxu0 0.0
    %2796 = vmatpush1.msra.mxu0 0.0
    %2797 = vmatprep.subr.mxu0 0.0
    %2798 = vmatpush1.msra.mxu0 0.0
    %2799 = vmatprep.subr.mxu0 0.0
    %2800 = vmatpush1.msra.mxu0 0.0
    %2801 = vmatprep.subr.mxu0 0.0
    %2802 = vmatpush1.msra.mxu0 0.0
    %2803 = vmatprep.subr.mxu0 0.0
    %2804 = vmatpush1.msra.mxu0 0.0
    %2805 = vmatprep.subr.mxu0 0.0
    %2806 = vmatpush1.msra.mxu0 0.0
    %2807 = vmatprep.subr.mxu0 0.0
    %2808 = vmatpush1.msra.mxu0 0.0
    %2809 = vmatprep.subr.mxu0 0.0
    %2810 = vmatpush1.msra.mxu0 0.0
    %2811 = vmatprep.subr.mxu0 0.0
    %2812 = vmatpush1.msra.mxu0 0.0
    %2813 = vmatprep.subr.mxu0 0.0
    %2814 = vmatpush1.msra.mxu0 0.0
    %2815 = vmatprep.subr.mxu0 0.0
    %2816 = vmatpush1.msra.mxu0 0.0
    %2817 = vmatprep.subr.mxu0 0.0
    %2818 = vmatpush1.msra.mxu0 0.0
    %2819 = vmatprep.subr.mxu0 0.0
    %2820 = vmatpush1.msra.mxu0 0.0
    %2821 = vmatprep.subr.mxu0 0.0
    %2822 = vmatpush1.msra.mxu0 0.0
    %2823 = vmatprep.subr.mxu0 0.0
    %2824 = vmatpush1.msra.mxu0 0.0
    %2825 = vmatprep.subr.mxu0 0.0
    %2826 = vmatpush1.msra.mxu0 0.0
    %2827 = vmatprep.subr.mxu0 0.0
    %2828 = vmatpush1.msra.mxu0 0.0
    %2829 = vmatprep.subr.mxu0 0.0
    %2830 = vmatpush1.msra.mxu0 0.0
    %2831 = vmatprep.subr.mxu0 0.0
    %2832 = vmatpush1.msra.mxu0 0.0
    %2833 = vmatprep.subr.mxu0 0.0
    %2834 = vmatpush1.msra.mxu0 0.0
    %2835 = vmatprep.mubr.f32.mxu0 0.0
    %v2836 = vand.u32 %v2756, 4294901760
    %v2837 = vsub.f32 %v2756, %v2836
    %v2838 = vand.u32 %v2837, 4294901760
    %v2839 = vsub.f32 %v2837, %v2838
    %v2840 = vand.u32 %v2839, 4294901760
    %2841 = vmatmul.mubr.f32.gmra.mrb[0].mxu0 %v2840
    %v2842 = vpop.f32.mrb[0].mxu0
    %v2843 = vadd.f32 0.0, %v2842
    %v2844 = vpop.f32.mrb[0].mxu0
    %2845 = vmatprep.mubr.f32.mxu0 0.0
    %v2846 = vand.u32 %v2759, 4294901760
    %v2847 = vsub.f32 %v2759, %v2846
    %v2848 = vand.u32 %v2847, 4294901760
    %v2849 = vsub.f32 %v2847, %v2848
    %v2850 = vand.u32 %v2849, 4294901760
    %2851 = vmatmul.mubr.f32.gmra.mrb[0].mxu0 %v2850
    %v2852 = vpop.f32.mrb[0].mxu0
    %v2853 = vadd.f32 0.0, %v2852
    %v2854 = vpop.f32.mrb[0].mxu0
    %2855 = vmatprep.mubr.f32.mxu0 0.0
    %v2856 = vand.u32 %v2762, 4294901760
    %v2857 = vsub.f32 %v2762, %v2856
    %v2858 = vand.u32 %v2857, 4294901760
    %v2859 = vsub.f32 %v2857, %v2858
    %v2860 = vand.u32 %v2859, 4294901760
    %2861 = vmatmul.mubr.f32.gmra.mrb[0].mxu0 %v2860
    %v2862 = vpop.f32.mrb[0].mxu0
    %v2863 = vadd.f32 0.0, %v2862
    %v2864 = vpop.f32.mrb[0].mxu0
    %2865 = vmatprep.mubr.f32.mxu0 0.0
    %v2866 = vand.u32 %v2765, 4294901760
    %v2867 = vsub.f32 %v2765, %v2866
    %v2868 = vand.u32 %v2867, 4294901760
    %v2869 = vsub.f32 %v2867, %v2868
    %v2870 = vand.u32 %v2869, 4294901760
    %2871 = vmatmul.mubr.f32.gmra.mrb[0].mxu0 %v2870
    %v2872 = vpop.f32.mrb[0].mxu0
    %v2873 = vadd.f32 0.0, %v2872
    %v2874 = vpop.f32.mrb[0].mxu0
    %2875 = vdwg.mxu0
    %2876 = vmatprep.subr.mxu0 0.0
    %v2877 = vand.u32 %v2744, 4294901760
    %v2878 = vsub.f32 %v2744, %v2877
    %v2879 = vand.u32 %v2878, 4294901760
    %v2880 = vsub.f32 %v2878, %v2879
    %v2881 = vand.u32 %v2880, 4294901760
    %2882 = vmatpush1.msra.mxu0 %v2881
    %2883 = vmatprep.subr.mxu0 0.0
    %v2884 = vand.u32 %v2746, 4294901760
    %v2885 = vsub.f32 %v2746, %v2884
    %v2886 = vand.u32 %v2885, 4294901760
    %v2887 = vsub.f32 %v2885, %v2886
    %v2888 = vand.u32 %v2887, 4294901760
    %2889 = vmatpush1.msra.mxu0 %v2888
    %2890 = vmatprep.subr.mxu0 0.0
    %v2891 = vand.u32 %v2748, 4294901760
    %v2892 = vsub.f32 %v2748, %v2891
    %v2893 = vand.u32 %v2892, 4294901760
    %v2894 = vsub.f32 %v2892, %v2893
    %v2895 = vand.u32 %v2894, 4294901760
    %2896 = vmatpush1.msra.mxu0 %v2895
    %2897 = vmatprep.subr.mxu0 0.0
    %v2898 = vand.u32 %v2750, 4294901760
    %v2899 = vsub.f32 %v2750, %v2898
    %v2900 = vand.u32 %v2899, 4294901760
    %v2901 = vsub.f32 %v2899, %v2900
    %v2902 = vand.u32 %v2901, 4294901760
    %2903 = vmatpush1.msra.mxu0 %v2902
    %2904 = vmatprep.subr.mxu0 0.0
    %2905 = vmatpush1.msra.mxu0 0.0
    %2906 = vmatprep.subr.mxu0 0.0
    %2907 = vmatpush1.msra.mxu0 0.0
    %2908 = vmatprep.subr.mxu0 0.0
    %2909 = vmatpush1.msra.mxu0 0.0
    %2910 = vmatprep.subr.mxu0 0.0
    %2911 = vmatpush1.msra.mxu0 0.0
    %2912 = vmatprep.subr.mxu0 0.0
    %2913 = vmatpush1.msra.mxu0 0.0
    %2914 = vmatprep.subr.mxu0 0.0
    %2915 = vmatpush1.msra.mxu0 0.0
    %2916 = vmatprep.subr.mxu0 0.0
    %2917 = vmatpush1.msra.mxu0 0.0
    %2918 = vmatprep.subr.mxu0 0.0
    %2919 = vmatpush1.msra.mxu0 0.0
    %2920 = vmatprep.subr.mxu0 0.0
    %2921 = vmatpush1.msra.mxu0 0.0
    %2922 = vmatprep.subr.mxu0 0.0
    %2923 = vmatpush1.msra.mxu0 0.0
    %2924 = vmatprep.subr.mxu0 0.0
    %2925 = vmatpush1.msra.mxu0 0.0
    %2926 = vmatprep.subr.mxu0 0.0
    %2927 = vmatpush1.msra.mxu0 0.0
    %2928 = vmatprep.subr.mxu0 0.0
    %2929 = vmatpush1.msra.mxu0 0.0
    %2930 = vmatprep.subr.mxu0 0.0
    %2931 = vmatpush1.msra.mxu0 0.0
    %2932 = vmatprep.subr.mxu0 0.0
    %2933 = vmatpush1.msra.mxu0 0.0
    %2934 = vmatprep.subr.mxu0 0.0
    %2935 = vmatpush1.msra.mxu0 0.0
    %2936 = vmatprep.subr.mxu0 0.0
    %2937 = vmatpush1.msra.mxu0 0.0
    %2938 = vmatprep.subr.mxu0 0.0
    %2939 = vmatpush1.msra.mxu0 0.0
    %2940 = vmatprep.subr.mxu0 0.0
    %2941 = vmatpush1.msra.mxu0 0.0
    %2942 = vmatprep.subr.mxu0 0.0
    %2943 = vmatpush1.msra.mxu0 0.0
    %2944 = vmatprep.subr.mxu0 0.0
    %2945 = vmatpush1.msra.mxu0 0.0
    %2946 = vmatprep.subr.mxu0 0.0
    %2947 = vmatpush1.msra.mxu0 0.0
    %2948 = vmatprep.subr.mxu0 0.0
    %2949 = vmatpush1.msra.mxu0 0.0
    %2950 = vmatprep.subr.mxu0 0.0
    %2951 = vmatpush1.msra.mxu0 0.0
    %2952 = vmatprep.subr.mxu0 0.0
    %2953 = vmatpush1.msra.mxu0 0.0
    %2954 = vmatprep.subr.mxu0 0.0
    %2955 = vmatpush1.msra.mxu0 0.0
    %2956 = vmatprep.subr.mxu0 0.0
    %2957 = vmatpush1.msra.mxu0 0.0
    %2958 = vmatprep.subr.mxu0 0.0
    %2959 = vmatpush1.msra.mxu0 0.0
    %2960 = vmatprep.mubr.f32.mxu0 0.0
    %v2961 = vand.u32 %v2756, 4294901760
    %2962 = vmatmul.mubr.f32.gmra.mrb[0].mxu0 %v2961
    %v2963 = vpop.f32.mrb[0].mxu0
    %v2964 = vadd.f32 %v2843, %v2963
    %v2965 = vpop.f32.mrb[0].mxu0
    %2966 = vmatprep.mubr.f32.mxu0 0.0
    %v2967 = vand.u32 %v2759, 4294901760
    %2968 = vmatmul.mubr.f32.gmra.mrb[0].mxu0 %v2967
    %v2969 = vpop.f32.mrb[0].mxu0
    %v2970 = vadd.f32 %v2853, %v2969
    %v2971 = vpop.f32.mrb[0].mxu0
    %2972 = vmatprep.mubr.f32.mxu0 0.0
    %v2973 = vand.u32 %v2762, 4294901760
    %2974 = vmatmul.mubr.f32.gmra.mrb[0].mxu0 %v2973
    %v2975 = vpop.f32.mrb[0].mxu0
    %v2976 = vadd.f32 %v2863, %v2975
    %v2977 = vpop.f32.mrb[0].mxu0
    %2978 = vmatprep.mubr.f32.mxu0 0.0
    %v2979 = vand.u32 %v2765, 4294901760
    %2980 = vmatmul.mubr.f32.gmra.mrb[0].mxu0 %v2979
    %v2981 = vpop.f32.mrb[0].mxu0
    %v2982 = vadd.f32 %v2873, %v2981
    %v2983 = vpop.f32.mrb[0].mxu0
    %2984 = vdwg.mxu0
    %2985 = vmatprep.subr.mxu0 0.0
    %v2986 = vand.u32 %v2744, 4294901760
    %v2987 = vsub.f32 %v2744, %v2986
    %2988 = vmatpush1.msra.mxu0 %v2987
    %2989 = vmatprep.subr.mxu0 0.0
    %v2990 = vand.u32 %v2746, 4294901760
    %v2991 = vsub.f32 %v2746, %v2990
    %2992 = vmatpush1.msra.mxu0 %v2991
    %2993 = vmatprep.subr.mxu0 0.0
    %v2994 = vand.u32 %v2748, 4294901760
    %v2995 = vsub.f32 %v2748, %v2994
    %2996 = vmatpush1.msra.mxu0 %v2995
    %2997 = vmatprep.subr.mxu0 0.0
    %v2998 = vand.u32 %v2750, 4294901760
    %v2999 = vsub.f32 %v2750, %v2998
    %3000 = vmatpush1.msra.mxu0 %v2999
    %3001 = vmatprep.subr.mxu0 0.0
    %3002 = vmatpush1.msra.mxu0 0.0
    %3003 = vmatprep.subr.mxu0 0.0
    %3004 = vmatpush1.msra.mxu0 0.0
    %3005 = vmatprep.subr.mxu0 0.0
    %3006 = vmatpush1.msra.mxu0 0.0
    %3007 = vmatprep.subr.mxu0 0.0
    %3008 = vmatpush1.msra.mxu0 0.0
    %3009 = vmatprep.subr.mxu0 0.0
    %3010 = vmatpush1.msra.mxu0 0.0
    %3011 = vmatprep.subr.mxu0 0.0
    %3012 = vmatpush1.msra.mxu0 0.0
    %3013 = vmatprep.subr.mxu0 0.0
    %3014 = vmatpush1.msra.mxu0 0.0
    %3015 = vmatprep.subr.mxu0 0.0
    %3016 = vmatpush1.msra.mxu0 0.0
    %3017 = vmatprep.subr.mxu0 0.0
    %3018 = vmatpush1.msra.mxu0 0.0
    %3019 = vmatprep.subr.mxu0 0.0
    %3020 = vmatpush1.msra.mxu0 0.0
    %3021 = vmatprep.subr.mxu0 0.0
    %3022 = vmatpush1.msra.mxu0 0.0
    %3023 = vmatprep.subr.mxu0 0.0
    %3024 = vmatpush1.msra.mxu0 0.0
    %3025 = vmatprep.subr.mxu0 0.0
    %3026 = vmatpush1.msra.mxu0 0.0
    %3027 = vmatprep.subr.mxu0 0.0
    %3028 = vmatpush1.msra.mxu0 0.0
    %3029 = vmatprep.subr.mxu0 0.0
    %3030 = vmatpush1.msra.mxu0 0.0
    %3031 = vmatprep.subr.mxu0 0.0
    %3032 = vmatpush1.msra.mxu0 0.0
    %3033 = vmatprep.subr.mxu0 0.0
    %3034 = vmatpush1.msra.mxu0 0.0
    %3035 = vmatprep.subr.mxu0 0.0
    %3036 = vmatpush1.msra.mxu0 0.0
    %3037 = vmatprep.subr.mxu0 0.0
    %3038 = vmatpush1.msra.mxu0 0.0
    %3039 = vmatprep.subr.mxu0 0.0
    %3040 = vmatpush1.msra.mxu0 0.0
    %3041 = vmatprep.subr.mxu0 0.0
    %3042 = vmatpush1.msra.mxu0 0.0
    %3043 = vmatprep.subr.mxu0 0.0
    %3044 = vmatpush1.msra.mxu0 0.0
    %3045 = vmatprep.subr.mxu0 0.0
    %3046 = vmatpush1.msra.mxu0 0.0
    %3047 = vmatprep.subr.mxu0 0.0
    %3048 = vmatpush1.msra.mxu0 0.0
    %3049 = vmatprep.subr.mxu0 0.0
    %3050 = vmatpush1.msra.mxu0 0.0
    %3051 = vmatprep.subr.mxu0 0.0
    %3052 = vmatpush1.msra.mxu0 0.0
    %3053 = vmatprep.subr.mxu0 0.0
    %3054 = vmatpush1.msra.mxu0 0.0
    %3055 = vmatprep.subr.mxu0 0.0
    %3056 = vmatpush1.msra.mxu0 0.0
    %3057 = vmatprep.mubr.f32.mxu0 0.0
    %v3058 = vand.u32 %v2756, 4294901760
    %v3059 = vsub.f32 %v2756, %v3058
    %3060 = vmatmul.mubr.f32.gmra.mrb[0].mxu0 %v3059
    %v3061 = vpop.f32.mrb[0].mxu0
    %v3062 = vadd.f32 %v2964, %v3061
    %v3063 = vpop.f32.mrb[0].mxu0
    %3064 = vmatprep.mubr.f32.mxu0 0.0
    %v3065 = vand.u32 %v2759, 4294901760
    %v3066 = vsub.f32 %v2759, %v3065
    %3067 = vmatmul.mubr.f32.gmra.mrb[0].mxu0 %v3066
    %v3068 = vpop.f32.mrb[0].mxu0
    %v3069 = vadd.f32 %v2970, %v3068
    %v3070 = vpop.f32.mrb[0].mxu0
    %3071 = vmatprep.mubr.f32.mxu0 0.0
    %v3072 = vand.u32 %v2762, 4294901760
    %v3073 = vsub.f32 %v2762, %v3072
    %3074 = vmatmul.mubr.f32.gmra.mrb[0].mxu0 %v3073
    %v3075 = vpop.f32.mrb[0].mxu0
    %v3076 = vadd.f32 %v2976, %v3075
    %v3077 = vpop.f32.mrb[0].mxu0
    %3078 = vmatprep.mubr.f32.mxu0 0.0
    %v3079 = vand.u32 %v2765, 4294901760
    %v3080 = vsub.f32 %v2765, %v3079
    %3081 = vmatmul.mubr.f32.gmra.mrb[0].mxu0 %v3080
    %v3082 = vpop.f32.mrb[0].mxu0
    %v3083 = vadd.f32 %v2982, %v3082
    %v3084 = vpop.f32.mrb[0].mxu0
    %3085 = vdwg.mxu0
    %3086 = vmatprep.subr.mxu0 0.0
    %v3087 = vand.u32 %v2744, 4294901760
    %3088 = vmatpush1.msra.mxu0 %v3087
    %3089 = vmatprep.subr.mxu0 0.0
    %v3090 = vand.u32 %v2746, 4294901760
    %3091 = vmatpush1.msra.mxu0 %v3090
    %3092 = vmatprep.subr.mxu0 0.0
    %v3093 = vand.u32 %v2748, 4294901760
    %3094 = vmatpush1.msra.mxu0 %v3093
    %3095 = vmatprep.subr.mxu0 0.0
    %v3096 = vand.u32 %v2750, 4294901760
    %3097 = vmatpush1.msra.mxu0 %v3096
    %3098 = vmatprep.subr.mxu0 0.0
    %3099 = vmatpush1.msra.mxu0 0.0
    %3100 = vmatprep.subr.mxu0 0.0
    %3101 = vmatpush1.msra.mxu0 0.0
    %3102 = vmatprep.subr.mxu0 0.0
    %3103 = vmatpush1.msra.mxu0 0.0
    %3104 = vmatprep.subr.mxu0 0.0
    %3105 = vmatpush1.msra.mxu0 0.0
    %3106 = vmatprep.subr.mxu0 0.0
    %3107 = vmatpush1.msra.mxu0 0.0
    %3108 = vmatprep.subr.mxu0 0.0
    %3109 = vmatpush1.msra.mxu0 0.0
    %3110 = vmatprep.subr.mxu0 0.0
    %3111 = vmatpush1.msra.mxu0 0.0
    %3112 = vmatprep.subr.mxu0 0.0
    %3113 = vmatpush1.msra.mxu0 0.0
    %3114 = vmatprep.subr.mxu0 0.0
    %3115 = vmatpush1.msra.mxu0 0.0
    %3116 = vmatprep.subr.mxu0 0.0
    %3117 = vmatpush1.msra.mxu0 0.0
    %3118 = vmatprep.subr.mxu0 0.0
    %3119 = vmatpush1.msra.mxu0 0.0
    %3120 = vmatprep.subr.mxu0 0.0
    %3121 = vmatpush1.msra.mxu0 0.0
    %3122 = vmatprep.subr.mxu0 0.0
    %3123 = vmatpush1.msra.mxu0 0.0
    %3124 = vmatprep.subr.mxu0 0.0
    %3125 = vmatpush1.msra.mxu0 0.0
    %3126 = vmatprep.subr.mxu0 0.0
    %3127 = vmatpush1.msra.mxu0 0.0
    %3128 = vmatprep.subr.mxu0 0.0
    %3129 = vmatpush1.msra.mxu0 0.0
    %3130 = vmatprep.subr.mxu0 0.0
    %3131 = vmatpush1.msra.mxu0 0.0
    %3132 = vmatprep.subr.mxu0 0.0
    %3133 = vmatpush1.msra.mxu0 0.0
    %3134 = vmatprep.subr.mxu0 0.0
    %3135 = vmatpush1.msra.mxu0 0.0
    %3136 = vmatprep.subr.mxu0 0.0
    %3137 = vmatpush1.msra.mxu0 0.0
    %3138 = vmatprep.subr.mxu0 0.0
    %3139 = vmatpush1.msra.mxu0 0.0
    %3140 = vmatprep.subr.mxu0 0.0
    %3141 = vmatpush1.msra.mxu0 0.0
    %3142 = vmatprep.subr.mxu0 0.0
    %3143 = vmatpush1.msra.mxu0 0.0
    %3144 = vmatprep.subr.mxu0 0.0
    %3145 = vmatpush1.msra.mxu0 0.0
    %3146 = vmatprep.subr.mxu0 0.0
    %3147 = vmatpush1.msra.mxu0 0.0
    %3148 = vmatprep.subr.mxu0 0.0
    %3149 = vmatpush1.msra.mxu0 0.0
    %3150 = vmatprep.subr.mxu0 0.0
    %3151 = vmatpush1.msra.mxu0 0.0
    %3152 = vmatprep.subr.mxu0 0.0
    %3153 = vmatpush1.msra.mxu0 0.0
    %3154 = vmatprep.mubr.f32.mxu0 0.0
    %v3155 = vand.u32 %v2756, 4294901760
    %v3156 = vsub.f32 %v2756, %v3155
    %v3157 = vand.u32 %v3156, 4294901760
    %3158 = vmatmul.mubr.f32.gmra.mrb[0].mxu0 %v3157
    %v3159 = vpop.f32.mrb[0].mxu0
    %v3160 = vadd.f32 %v3062, %v3159
    %v3161 = vpop.f32.mrb[0].mxu0
    %3162 = vmatprep.mubr.f32.mxu0 0.0
    %v3163 = vand.u32 %v2759, 4294901760
    %v3164 = vsub.f32 %v2759, %v3163
    %v3165 = vand.u32 %v3164, 4294901760
    %3166 = vmatmul.mubr.f32.gmra.mrb[0].mxu0 %v3165
    %v3167 = vpop.f32.mrb[0].mxu0
    %v3168 = vadd.f32 %v3069, %v3167
    %v3169 = vpop.f32.mrb[0].mxu0
    %3170 = vmatprep.mubr.f32.mxu0 0.0
    %v3171 = vand.u32 %v2762, 4294901760
    %v3172 = vsub.f32 %v2762, %v3171
    %v3173 = vand.u32 %v3172, 4294901760
    %3174 = vmatmul.mubr.f32.gmra.mrb[0].mxu0 %v3173
    %v3175 = vpop.f32.mrb[0].mxu0
    %v3176 = vadd.f32 %v3076, %v3175
    %v3177 = vpop.f32.mrb[0].mxu0
    %3178 = vmatprep.mubr.f32.mxu0 0.0
    %v3179 = vand.u32 %v2765, 4294901760
    %v3180 = vsub.f32 %v2765, %v3179
    %v3181 = vand.u32 %v3180, 4294901760
    %3182 = vmatmul.mubr.f32.gmra.mrb[0].mxu0 %v3181
    %v3183 = vpop.f32.mrb[0].mxu0
    %v3184 = vadd.f32 %v3083, %v3183
    %v3185 = vpop.f32.mrb[0].mxu0
    %3186 = vdwg.mxu0
    %3187 = vmatprep.subr.mxu0 0.0
    %v3188 = vand.u32 %v2744, 4294901760
    %v3189 = vsub.f32 %v2744, %v3188
    %v3190 = vand.u32 %v3189, 4294901760
    %3191 = vmatpush1.msra.mxu0 %v3190
    %3192 = vmatprep.subr.mxu0 0.0
    %v3193 = vand.u32 %v2746, 4294901760
    %v3194 = vsub.f32 %v2746, %v3193
    %v3195 = vand.u32 %v3194, 4294901760
    %3196 = vmatpush1.msra.mxu0 %v3195
    %3197 = vmatprep.subr.mxu0 0.0
    %v3198 = vand.u32 %v2748, 4294901760
    %v3199 = vsub.f32 %v2748, %v3198
    %v3200 = vand.u32 %v3199, 4294901760
    %3201 = vmatpush1.msra.mxu0 %v3200
    %3202 = vmatprep.subr.mxu0 0.0
    %v3203 = vand.u32 %v2750, 4294901760
    %v3204 = vsub.f32 %v2750, %v3203
    %v3205 = vand.u32 %v3204, 4294901760
    %3206 = vmatpush1.msra.mxu0 %v3205
    %3207 = vmatprep.subr.mxu0 0.0
    %3208 = vmatpush1.msra.mxu0 0.0
    %3209 = vmatprep.subr.mxu0 0.0
    %3210 = vmatpush1.msra.mxu0 0.0
    %3211 = vmatprep.subr.mxu0 0.0
    %3212 = vmatpush1.msra.mxu0 0.0
    %3213 = vmatprep.subr.mxu0 0.0
    %3214 = vmatpush1.msra.mxu0 0.0
    %3215 = vmatprep.subr.mxu0 0.0
    %3216 = vmatpush1.msra.mxu0 0.0
    %3217 = vmatprep.subr.mxu0 0.0
    %3218 = vmatpush1.msra.mxu0 0.0
    %3219 = vmatprep.subr.mxu0 0.0
    %3220 = vmatpush1.msra.mxu0 0.0
    %3221 = vmatprep.subr.mxu0 0.0
    %3222 = vmatpush1.msra.mxu0 0.0
    %3223 = vmatprep.subr.mxu0 0.0
    %3224 = vmatpush1.msra.mxu0 0.0
    %3225 = vmatprep.subr.mxu0 0.0
    %3226 = vmatpush1.msra.mxu0 0.0
    %3227 = vmatprep.subr.mxu0 0.0
    %3228 = vmatpush1.msra.mxu0 0.0
    %3229 = vmatprep.subr.mxu0 0.0
    %3230 = vmatpush1.msra.mxu0 0.0
    %3231 = vmatprep.subr.mxu0 0.0
    %3232 = vmatpush1.msra.mxu0 0.0
    %3233 = vmatprep.subr.mxu0 0.0
    %3234 = vmatpush1.msra.mxu0 0.0
    %3235 = vmatprep.subr.mxu0 0.0
    %3236 = vmatpush1.msra.mxu0 0.0
    %3237 = vmatprep.subr.mxu0 0.0
    %3238 = vmatpush1.msra.mxu0 0.0
    %3239 = vmatprep.subr.mxu0 0.0
    %3240 = vmatpush1.msra.mxu0 0.0
    %3241 = vmatprep.subr.mxu0 0.0
    %3242 = vmatpush1.msra.mxu0 0.0
    %3243 = vmatprep.subr.mxu0 0.0
    %3244 = vmatpush1.msra.mxu0 0.0
    %3245 = vmatprep.subr.mxu0 0.0
    %3246 = vmatpush1.msra.mxu0 0.0
    %3247 = vmatprep.subr.mxu0 0.0
    %3248 = vmatpush1.msra.mxu0 0.0
    %3249 = vmatprep.subr.mxu0 0.0
    %3250 = vmatpush1.msra.mxu0 0.0
    %3251 = vmatprep.subr.mxu0 0.0
    %3252 = vmatpush1.msra.mxu0 0.0
    %3253 = vmatprep.subr.mxu0 0.0
    %3254 = vmatpush1.msra.mxu0 0.0
    %3255 = vmatprep.subr.mxu0 0.0
    %3256 = vmatpush1.msra.mxu0 0.0
    %3257 = vmatprep.subr.mxu0 0.0
    %3258 = vmatpush1.msra.mxu0 0.0
    %3259 = vmatprep.subr.mxu0 0.0
    %3260 = vmatpush1.msra.mxu0 0.0
    %3261 = vmatprep.subr.mxu0 0.0
    %3262 = vmatpush1.msra.mxu0 0.0
    %3263 = vmatprep.mubr.f32.mxu0 0.0
    %v3264 = vand.u32 %v2756, 4294901760
    %3265 = vmatmul.mubr.f32.gmra.mrb[0].mxu0 %v3264
    %v3266 = vpop.f32.mrb[0].mxu0
    %v3267 = vadd.f32 %v3160, %v3266
    %v3268 = vpop.f32.mrb[0].mxu0
    %3269 = vmatprep.mubr.f32.mxu0 0.0
    %v3270 = vand.u32 %v2759, 4294901760
    %3271 = vmatmul.mubr.f32.gmra.mrb[0].mxu0 %v3270
    %v3272 = vpop.f32.mrb[0].mxu0
    %v3273 = vadd.f32 %v3168, %v3272
    %v3274 = vpop.f32.mrb[0].mxu0
    %3275 = vmatprep.mubr.f32.mxu0 0.0
    %v3276 = vand.u32 %v2762, 4294901760
    %3277 = vmatmul.mubr.f32.gmra.mrb[0].mxu0 %v3276
    %v3278 = vpop.f32.mrb[0].mxu0
    %v3279 = vadd.f32 %v3176, %v3278
    %v3280 = vpop.f32.mrb[0].mxu0
    %3281 = vmatprep.mubr.f32.mxu0 0.0
    %v3282 = vand.u32 %v2765, 4294901760
    %3283 = vmatmul.mubr.f32.gmra.mrb[0].mxu0 %v3282
    %v3284 = vpop.f32.mrb[0].mxu0
    %v3285 = vadd.f32 %v3184, %v3284
    %v3286 = vpop.f32.mrb[0].mxu0
    %3287 = vdwg.mxu0
    %3288 = vmatprep.subr.mxu0 0.0
    %v3289 = vand.u32 %v2744, 4294901760
    %3290 = vmatpush1.msra.mxu0 %v3289
    %3291 = vmatprep.subr.mxu0 0.0
    %v3292 = vand.u32 %v2746, 4294901760
    %3293 = vmatpush1.msra.mxu0 %v3292
    %3294 = vmatprep.subr.mxu0 0.0
    %v3295 = vand.u32 %v2748, 4294901760
    %3296 = vmatpush1.msra.mxu0 %v3295
    %3297 = vmatprep.subr.mxu0 0.0
    %v3298 = vand.u32 %v2750, 4294901760
    %3299 = vmatpush1.msra.mxu0 %v3298
    %3300 = vmatprep.subr.mxu0 0.0
    %3301 = vmatpush1.msra.mxu0 0.0
    %3302 = vmatprep.subr.mxu0 0.0
    %3303 = vmatpush1.msra.mxu0 0.0
    %3304 = vmatprep.subr.mxu0 0.0
    %3305 = vmatpush1.msra.mxu0 0.0
    %3306 = vmatprep.subr.mxu0 0.0
    %3307 = vmatpush1.msra.mxu0 0.0
    %3308 = vmatprep.subr.mxu0 0.0
    %3309 = vmatpush1.msra.mxu0 0.0
    %3310 = vmatprep.subr.mxu0 0.0
    %3311 = vmatpush1.msra.mxu0 0.0
    %3312 = vmatprep.subr.mxu0 0.0
    %3313 = vmatpush1.msra.mxu0 0.0
    %3314 = vmatprep.subr.mxu0 0.0
    %3315 = vmatpush1.msra.mxu0 0.0
    %3316 = vmatprep.subr.mxu0 0.0
    %3317 = vmatpush1.msra.mxu0 0.0
    %3318 = vmatprep.subr.mxu0 0.0
    %3319 = vmatpush1.msra.mxu0 0.0
    %3320 = vmatprep.subr.mxu0 0.0
    %3321 = vmatpush1.msra.mxu0 0.0
    %3322 = vmatprep.subr.mxu0 0.0
    %3323 = vmatpush1.msra.mxu0 0.0
    %3324 = vmatprep.subr.mxu0 0.0
    %3325 = vmatpush1.msra.mxu0 0.0
    %3326 = vmatprep.subr.mxu0 0.0
    %3327 = vmatpush1.msra.mxu0 0.0
    %3328 = vmatprep.subr.mxu0 0.0
    %3329 = vmatpush1.msra.mxu0 0.0
    %3330 = vmatprep.subr.mxu0 0.0
    %3331 = vmatpush1.msra.mxu0 0.0
    %3332 = vmatprep.subr.mxu0 0.0
    %3333 = vmatpush1.msra.mxu0 0.0
    %3334 = vmatprep.subr.mxu0 0.0
    %3335 = vmatpush1.msra.mxu0 0.0
    %3336 = vmatprep.subr.mxu0 0.0
    %3337 = vmatpush1.msra.mxu0 0.0
    %3338 = vmatprep.subr.mxu0 0.0
    %3339 = vmatpush1.msra.mxu0 0.0
    %3340 = vmatprep.subr.mxu0 0.0
    %3341 = vmatpush1.msra.mxu0 0.0
    %3342 = vmatprep.subr.mxu0 0.0
    %3343 = vmatpush1.msra.mxu0 0.0
    %3344 = vmatprep.subr.mxu0 0.0
    %3345 = vmatpush1.msra.mxu0 0.0
    %3346 = vmatprep.subr.mxu0 0.0
    %3347 = vmatpush1.msra.mxu0 0.0
    %3348 = vmatprep.subr.mxu0 0.0
    %3349 = vmatpush1.msra.mxu0 0.0
    %3350 = vmatprep.subr.mxu0 0.0
    %3351 = vmatpush1.msra.mxu0 0.0
    %3352 = vmatprep.subr.mxu0 0.0
    %3353 = vmatpush1.msra.mxu0 0.0
    %3354 = vmatprep.subr.mxu0 0.0
    %3355 = vmatpush1.msra.mxu0 0.0
    %3356 = vmatprep.mubr.f32.mxu0 0.0
    %v3357 = vand.u32 %v2756, 4294901760
    %3358 = vmatmul.mubr.f32.gmra.mrb[0].mxu0 %v3357
    %v3359 = vpop.f32.mrb[0].mxu0
    %v3360 = vadd.f32 %v3267, %v3359
    %v3361 = vpop.f32.mrb[0].mxu0
    %3362 = vmatprep.mubr.f32.mxu0 0.0
    %v3363 = vand.u32 %v2759, 4294901760
    %3364 = vmatmul.mubr.f32.gmra.mrb[0].mxu0 %v3363
    %v3365 = vpop.f32.mrb[0].mxu0
    %v3366 = vadd.f32 %v3273, %v3365
    %v3367 = vpop.f32.mrb[0].mxu0
    %3368 = vmatprep.mubr.f32.mxu0 0.0
    %v3369 = vand.u32 %v2762, 4294901760
    %3370 = vmatmul.mubr.f32.gmra.mrb[0].mxu0 %v3369
    %v3371 = vpop.f32.mrb[0].mxu0
    %v3372 = vadd.f32 %v3279, %v3371
    %v3373 = vpop.f32.mrb[0].mxu0
    %3374 = vmatprep.mubr.f32.mxu0 0.0
    %v3375 = vand.u32 %v2765, 4294901760
    %3376 = vmatmul.mubr.f32.gmra.mrb[0].mxu0 %v3375
    %v3377 = vpop.f32.mrb[0].mxu0
    %v3378 = vadd.f32 %v3285, %v3377
    %v3379 = vpop.f32.mrb[0].mxu0
    %3380 = vdwg.mxu0
    %s3381 = scalar_lea.vmem [#allocation8], 64
    %v3382 = vld [vmem:[%s3381] sm:$0xff]
    %v3383 = vld [vmem:[%s3381 + $0x8] sm:$0xff]
    %v3384 = vld [vmem:[%s3381 + $0x10] sm:$0xff]
    %v3385 = vld [vmem:[%s3381 + $0x18] sm:$0xff]
    %3386 = vrot.lane.b32.xlu0 %v711, 112
    %v3387 = vpop.permute.xlu0 %3386
    %3388 = vrot.lane.b32.xlu0 %v712, 112
    %v3389 = vpop.permute.xlu0 %3388
    %3390 = vrot.lane.b32.xlu0 %v713, 112
    %v3391 = vpop.permute.xlu0 %3390
    %3392 = vrot.lane.b32.xlu0 %v714, 112
    %v3393 = vpop.permute.xlu0 %3392
    %3394 = vrot.lane.b32.xlu0 %v690, 80
    %v3395 = vpop.permute.xlu0 %3394
    %3396 = vrot.lane.b32.xlu0 %v696, 80
    %v3397 = vpop.permute.xlu0 %3396
    %3398 = vrot.lane.b32.xlu0 %v702, 80
    %v3399 = vpop.permute.xlu0 %3398
    %3400 = vrot.lane.b32.xlu0 %v708, 80
    %v3401 = vpop.permute.xlu0 %3400
    %v3402 = vsel %vm731, %v3387, 0
    %v3404 = vsel %vm731, %v3389, 0
    %v3406 = vsel %vm731, %v3391, 0
    %v3408 = vsel %vm731, %v3393, 0
    %v3410 = vsel %vm731, %v3395, 0
    %v3412 = vsel %vm731, %v3397, 0
    %v3414 = vsel %vm731, %v3399, 0
    %v3416 = vsel %vm731, %v3401, 0
    %3418 = vmatprep.subr.mxu0 0.0
    %v3419 = vand.u32 %v3410, 4294901760
    %3420 = vmatpush1.xpose.msra.mxu0 %v3419
    %3421 = vmatprep.subr.mxu0 0.0
    %v3422 = vand.u32 %v3412, 4294901760
    %3423 = vmatpush1.xpose.msra.mxu0 %v3422
    %3424 = vmatprep.subr.mxu0 0.0
    %v3425 = vand.u32 %v3414, 4294901760
    %3426 = vmatpush1.xpose.msra.mxu0 %v3425
    %3427 = vmatprep.subr.mxu0 0.0
    %v3428 = vand.u32 %v3416, 4294901760
    %3429 = vmatpush1.xpose.msra.mxu0 %v3428
    %3430 = vmatprep.subr.mxu0 0.0
    %3431 = vmatpush1.xpose.msra.mxu0 0.0
    %3432 = vmatprep.subr.mxu0 0.0
    %3433 = vmatpush1.xpose.msra.mxu0 0.0
    %3434 = vmatprep.subr.mxu0 0.0
    %3435 = vmatpush1.xpose.msra.mxu0 0.0
    %3436 = vmatprep.subr.mxu0 0.0
    %3437 = vmatpush1.xpose.msra.mxu0 0.0
    %3438 = vmatprep.subr.mxu0 0.0
    %3439 = vmatpush1.xpose.msra.mxu0 0.0
    %3440 = vmatprep.subr.mxu0 0.0
    %3441 = vmatpush1.xpose.msra.mxu0 0.0
    %3442 = vmatprep.subr.mxu0 0.0
    %3443 = vmatpush1.xpose.msra.mxu0 0.0
    %3444 = vmatprep.subr.mxu0 0.0
    %3445 = vmatpush1.xpose.msra.mxu0 0.0
    %3446 = vmatprep.subr.mxu0 0.0
    %3447 = vmatpush1.xpose.msra.mxu0 0.0
    %3448 = vmatprep.subr.mxu0 0.0
    %3449 = vmatpush1.xpose.msra.mxu0 0.0
    %3450 = vmatprep.subr.mxu0 0.0
    %3451 = vmatpush1.xpose.msra.mxu0 0.0
    %3452 = vmatprep.subr.mxu0 0.0
    %3453 = vmatpush1.xpose.msra.mxu0 0.0
    %3454 = vmatprep.subr.mxu0 0.0
    %3455 = vmatpush1.xpose.msra.mxu0 0.0
    %3456 = vmatprep.subr.mxu0 0.0
    %3457 = vmatpush1.xpose.msra.mxu0 0.0
    %3458 = vmatprep.subr.mxu0 0.0
    %3459 = vmatpush1.xpose.msra.mxu0 0.0
    %3460 = vmatprep.subr.mxu0 0.0
    %3461 = vmatpush1.xpose.msra.mxu0 0.0
    %3462 = vmatprep.subr.mxu0 0.0
    %3463 = vmatpush1.xpose.msra.mxu0 0.0
    %3464 = vmatprep.subr.mxu0 0.0
    %3465 = vmatpush1.xpose.msra.mxu0 0.0
    %3466 = vmatprep.subr.mxu0 0.0
    %3467 = vmatpush1.xpose.msra.mxu0 0.0
    %3468 = vmatprep.subr.mxu0 0.0
    %3469 = vmatpush1.xpose.msra.mxu0 0.0
    %3470 = vmatprep.subr.mxu0 0.0
    %3471 = vmatpush1.xpose.msra.mxu0 0.0
    %3472 = vmatprep.subr.mxu0 0.0
    %3473 = vmatpush1.xpose.msra.mxu0 0.0
    %3474 = vmatprep.subr.mxu0 0.0
    %3475 = vmatpush1.xpose.msra.mxu0 0.0
    %3476 = vmatprep.subr.mxu0 0.0
    %3477 = vmatpush1.xpose.msra.mxu0 0.0
    %3478 = vmatprep.subr.mxu0 0.0
    %3479 = vmatpush1.xpose.msra.mxu0 0.0
    %3480 = vmatprep.subr.mxu0 0.0
    %3481 = vmatpush1.xpose.msra.mxu0 0.0
    %3482 = vmatprep.subr.mxu0 0.0
    %3483 = vmatpush1.xpose.msra.mxu0 0.0
    %3484 = vmatprep.subr.mxu0 0.0
    %3485 = vmatpush1.xpose.msra.mxu0 0.0
    %3486 = vmatprep.mubr.f32.mxu0 0.0
    %v3487 = vand.u32 %v3402, 4294901760
    %v3488 = vsub.f32 %v3402, %v3487
    %v3489 = vand.u32 %v3488, 4294901760
    %v3490 = vsub.f32 %v3488, %v3489
    %v3491 = vand.u32 %v3490, 4294901760
    %3492 = vmatmul.mubr.f32.gmra.mrb[0].mxu0 %v3491
    %v3493 = vpop.f32.mrb[0].mxu0
    %v3494 = vadd.f32 %v3382, %v3493
    %v3495 = vpop.f32.mrb[0].mxu0
    %3496 = vmatprep.mubr.f32.mxu0 0.0
    %v3497 = vand.u32 %v3404, 4294901760
    %v3498 = vsub.f32 %v3404, %v3497
    %v3499 = vand.u32 %v3498, 4294901760
    %v3500 = vsub.f32 %v3498, %v3499
    %v3501 = vand.u32 %v3500, 4294901760
    %3502 = vmatmul.mubr.f32.gmra.mrb[0].mxu0 %v3501
    %v3503 = vpop.f32.mrb[0].mxu0
    %v3504 = vadd.f32 %v3383, %v3503
    %v3505 = vpop.f32.mrb[0].mxu0
    %3506 = vmatprep.mubr.f32.mxu0 0.0
    %v3507 = vand.u32 %v3406, 4294901760
    %v3508 = vsub.f32 %v3406, %v3507
    %v3509 = vand.u32 %v3508, 4294901760
    %v3510 = vsub.f32 %v3508, %v3509
    %v3511 = vand.u32 %v3510, 4294901760
    %3512 = vmatmul.mubr.f32.gmra.mrb[0].mxu0 %v3511
    %v3513 = vpop.f32.mrb[0].mxu0
    %v3514 = vadd.f32 %v3384, %v3513
    %v3515 = vpop.f32.mrb[0].mxu0
    %3516 = vmatprep.mubr.f32.mxu0 0.0
    %v3517 = vand.u32 %v3408, 4294901760
    %v3518 = vsub.f32 %v3408, %v3517
    %v3519 = vand.u32 %v3518, 4294901760
    %v3520 = vsub.f32 %v3518, %v3519
    %v3521 = vand.u32 %v3520, 4294901760
    %3522 = vmatmul.mubr.f32.gmra.mrb[0].mxu0 %v3521
    %v3523 = vpop.f32.mrb[0].mxu0
    %v3524 = vadd.f32 %v3385, %v3523
    %v3525 = vpop.f32.mrb[0].mxu0
    %3526 = vdwg.mxu0
    %3527 = vmatprep.subr.mxu0 0.0
    %v3528 = vand.u32 %v3410, 4294901760
    %v3529 = vsub.f32 %v3410, %v3528
    %v3530 = vand.u32 %v3529, 4294901760
    %v3531 = vsub.f32 %v3529, %v3530
    %v3532 = vand.u32 %v3531, 4294901760
    %3533 = vmatpush1.xpose.msra.mxu0 %v3532
    %3534 = vmatprep.subr.mxu0 0.0
    %v3535 = vand.u32 %v3412, 4294901760
    %v3536 = vsub.f32 %v3412, %v3535
    %v3537 = vand.u32 %v3536, 4294901760
    %v3538 = vsub.f32 %v3536, %v3537
    %v3539 = vand.u32 %v3538, 4294901760
    %3540 = vmatpush1.xpose.msra.mxu0 %v3539
    %3541 = vmatprep.subr.mxu0 0.0
    %v3542 = vand.u32 %v3414, 4294901760
    %v3543 = vsub.f32 %v3414, %v3542
    %v3544 = vand.u32 %v3543, 4294901760
    %v3545 = vsub.f32 %v3543, %v3544
    %v3546 = vand.u32 %v3545, 4294901760
    %3547 = vmatpush1.xpose.msra.mxu0 %v3546
    %3548 = vmatprep.subr.mxu0 0.0
    %v3549 = vand.u32 %v3416, 4294901760
    %v3550 = vsub.f32 %v3416, %v3549
    %v3551 = vand.u32 %v3550, 4294901760
    %v3552 = vsub.f32 %v3550, %v3551
    %v3553 = vand.u32 %v3552, 4294901760
    %3554 = vmatpush1.xpose.msra.mxu0 %v3553
    %3555 = vmatprep.subr.mxu0 0.0
    %3556 = vmatpush1.xpose.msra.mxu0 0.0
    %3557 = vmatprep.subr.mxu0 0.0
    %3558 = vmatpush1.xpose.msra.mxu0 0.0
    %3559 = vmatprep.subr.mxu0 0.0
    %3560 = vmatpush1.xpose.msra.mxu0 0.0
    %3561 = vmatprep.subr.mxu0 0.0
    %3562 = vmatpush1.xpose.msra.mxu0 0.0
    %3563 = vmatprep.subr.mxu0 0.0
    %3564 = vmatpush1.xpose.msra.mxu0 0.0
    %3565 = vmatprep.subr.mxu0 0.0
    %3566 = vmatpush1.xpose.msra.mxu0 0.0
    %3567 = vmatprep.subr.mxu0 0.0
    %3568 = vmatpush1.xpose.msra.mxu0 0.0
    %3569 = vmatprep.subr.mxu0 0.0
    %3570 = vmatpush1.xpose.msra.mxu0 0.0
    %3571 = vmatprep.subr.mxu0 0.0
    %3572 = vmatpush1.xpose.msra.mxu0 0.0
    %3573 = vmatprep.subr.mxu0 0.0
    %3574 = vmatpush1.xpose.msra.mxu0 0.0
    %3575 = vmatprep.subr.mxu0 0.0
    %3576 = vmatpush1.xpose.msra.mxu0 0.0
    %3577 = vmatprep.subr.mxu0 0.0
    %3578 = vmatpush1.xpose.msra.mxu0 0.0
    %3579 = vmatprep.subr.mxu0 0.0
    %3580 = vmatpush1.xpose.msra.mxu0 0.0
    %3581 = vmatprep.subr.mxu0 0.0
    %3582 = vmatpush1.xpose.msra.mxu0 0.0
    %3583 = vmatprep.subr.mxu0 0.0
    %3584 = vmatpush1.xpose.msra.mxu0 0.0
    %3585 = vmatprep.subr.mxu0 0.0
    %3586 = vmatpush1.xpose.msra.mxu0 0.0
    %3587 = vmatprep.subr.mxu0 0.0
    %3588 = vmatpush1.xpose.msra.mxu0 0.0
    %3589 = vmatprep.subr.mxu0 0.0
    %3590 = vmatpush1.xpose.msra.mxu0 0.0
    %3591 = vmatprep.subr.mxu0 0.0
    %3592 = vmatpush1.xpose.msra.mxu0 0.0
    %3593 = vmatprep.subr.mxu0 0.0
    %3594 = vmatpush1.xpose.msra.mxu0 0.0
    %3595 = vmatprep.subr.mxu0 0.0
    %3596 = vmatpush1.xpose.msra.mxu0 0.0
    %3597 = vmatprep.subr.mxu0 0.0
    %3598 = vmatpush1.xpose.msra.mxu0 0.0
    %3599 = vmatprep.subr.mxu0 0.0
    %3600 = vmatpush1.xpose.msra.mxu0 0.0
    %3601 = vmatprep.subr.mxu0 0.0
    %3602 = vmatpush1.xpose.msra.mxu0 0.0
    %3603 = vmatprep.subr.mxu0 0.0
    %3604 = vmatpush1.xpose.msra.mxu0 0.0
    %3605 = vmatprep.subr.mxu0 0.0
    %3606 = vmatpush1.xpose.msra.mxu0 0.0
    %3607 = vmatprep.subr.mxu0 0.0
    %3608 = vmatpush1.xpose.msra.mxu0 0.0
    %3609 = vmatprep.subr.mxu0 0.0
    %3610 = vmatpush1.xpose.msra.mxu0 0.0
    %3611 = vmatprep.mubr.f32.mxu0 0.0
    %v3612 = vand.u32 %v3402, 4294901760
    %3613 = vmatmul.mubr.f32.gmra.mrb[0].mxu0 %v3612
    %v3614 = vpop.f32.mrb[0].mxu0
    %v3615 = vadd.f32 %v3494, %v3614
    %v3616 = vpop.f32.mrb[0].mxu0
    %3617 = vmatprep.mubr.f32.mxu0 0.0
    %v3618 = vand.u32 %v3404, 4294901760
    %3619 = vmatmul.mubr.f32.gmra.mrb[0].mxu0 %v3618
    %v3620 = vpop.f32.mrb[0].mxu0
    %v3621 = vadd.f32 %v3504, %v3620
    %v3622 = vpop.f32.mrb[0].mxu0
    %3623 = vmatprep.mubr.f32.mxu0 0.0
    %v3624 = vand.u32 %v3406, 4294901760
    %3625 = vmatmul.mubr.f32.gmra.mrb[0].mxu0 %v3624
    %v3626 = vpop.f32.mrb[0].mxu0
    %v3627 = vadd.f32 %v3514, %v3626
    %v3628 = vpop.f32.mrb[0].mxu0
    %3629 = vmatprep.mubr.f32.mxu0 0.0
    %v3630 = vand.u32 %v3408, 4294901760
    %3631 = vmatmul.mubr.f32.gmra.mrb[0].mxu0 %v3630
    %v3632 = vpop.f32.mrb[0].mxu0
    %v3633 = vadd.f32 %v3524, %v3632
    %v3634 = vpop.f32.mrb[0].mxu0
    %3635 = vdwg.mxu0
    %3636 = vmatprep.subr.mxu0 0.0
    %v3637 = vand.u32 %v3410, 4294901760
    %v3638 = vsub.f32 %v3410, %v3637
    %3639 = vmatpush1.xpose.msra.mxu0 %v3638
    %3640 = vmatprep.subr.mxu0 0.0
    %v3641 = vand.u32 %v3412, 4294901760
    %v3642 = vsub.f32 %v3412, %v3641
    %3643 = vmatpush1.xpose.msra.mxu0 %v3642
    %3644 = vmatprep.subr.mxu0 0.0
    %v3645 = vand.u32 %v3414, 4294901760
    %v3646 = vsub.f32 %v3414, %v3645
    %3647 = vmatpush1.xpose.msra.mxu0 %v3646
    %3648 = vmatprep.subr.mxu0 0.0
    %v3649 = vand.u32 %v3416, 4294901760
    %v3650 = vsub.f32 %v3416, %v3649
    %3651 = vmatpush1.xpose.msra.mxu0 %v3650
    %3652 = vmatprep.subr.mxu0 0.0
    %3653 = vmatpush1.xpose.msra.mxu0 0.0
    %3654 = vmatprep.subr.mxu0 0.0
    %3655 = vmatpush1.xpose.msra.mxu0 0.0
    %3656 = vmatprep.subr.mxu0 0.0
    %3657 = vmatpush1.xpose.msra.mxu0 0.0
    %3658 = vmatprep.subr.mxu0 0.0
    %3659 = vmatpush1.xpose.msra.mxu0 0.0
    %3660 = vmatprep.subr.mxu0 0.0
    %3661 = vmatpush1.xpose.msra.mxu0 0.0
    %3662 = vmatprep.subr.mxu0 0.0
    %3663 = vmatpush1.xpose.msra.mxu0 0.0
    %3664 = vmatprep.subr.mxu0 0.0
    %3665 = vmatpush1.xpose.msra.mxu0 0.0
    %3666 = vmatprep.subr.mxu0 0.0
    %3667 = vmatpush1.xpose.msra.mxu0 0.0
    %3668 = vmatprep.subr.mxu0 0.0
    %3669 = vmatpush1.xpose.msra.mxu0 0.0
    %3670 = vmatprep.subr.mxu0 0.0
    %3671 = vmatpush1.xpose.msra.mxu0 0.0
    %3672 = vmatprep.subr.mxu0 0.0
    %3673 = vmatpush1.xpose.msra.mxu0 0.0
    %3674 = vmatprep.subr.mxu0 0.0
    %3675 = vmatpush1.xpose.msra.mxu0 0.0
    %3676 = vmatprep.subr.mxu0 0.0
    %3677 = vmatpush1.xpose.msra.mxu0 0.0
    %3678 = vmatprep.subr.mxu0 0.0
    %3679 = vmatpush1.xpose.msra.mxu0 0.0
    %3680 = vmatprep.subr.mxu0 0.0
    %3681 = vmatpush1.xpose.msra.mxu0 0.0
    %3682 = vmatprep.subr.mxu0 0.0
    %3683 = vmatpush1.xpose.msra.mxu0 0.0
    %3684 = vmatprep.subr.mxu0 0.0
    %3685 = vmatpush1.xpose.msra.mxu0 0.0
    %3686 = vmatprep.subr.mxu0 0.0
    %3687 = vmatpush1.xpose.msra.mxu0 0.0
    %3688 = vmatprep.subr.mxu0 0.0
    %3689 = vmatpush1.xpose.msra.mxu0 0.0
    %3690 = vmatprep.subr.mxu0 0.0
    %3691 = vmatpush1.xpose.msra.mxu0 0.0
    %3692 = vmatprep.subr.mxu0 0.0
    %3693 = vmatpush1.xpose.msra.mxu0 0.0
    %3694 = vmatprep.subr.mxu0 0.0
    %3695 = vmatpush1.xpose.msra.mxu0 0.0
    %3696 = vmatprep.subr.mxu0 0.0
    %3697 = vmatpush1.xpose.msra.mxu0 0.0
    %3698 = vmatprep.subr.mxu0 0.0
    %3699 = vmatpush1.xpose.msra.mxu0 0.0
    %3700 = vmatprep.subr.mxu0 0.0
    %3701 = vmatpush1.xpose.msra.mxu0 0.0
    %3702 = vmatprep.subr.mxu0 0.0
    %3703 = vmatpush1.xpose.msra.mxu0 0.0
    %3704 = vmatprep.subr.mxu0 0.0
    %3705 = vmatpush1.xpose.msra.mxu0 0.0
    %3706 = vmatprep.subr.mxu0 0.0
    %3707 = vmatpush1.xpose.msra.mxu0 0.0
    %3708 = vmatprep.mubr.f32.mxu0 0.0
    %v3709 = vand.u32 %v3402, 4294901760
    %v3710 = vsub.f32 %v3402, %v3709
    %3711 = vmatmul.mubr.f32.gmra.mrb[0].mxu0 %v3710
    %v3712 = vpop.f32.mrb[0].mxu0
    %v3713 = vadd.f32 %v3615, %v3712
    %v3714 = vpop.f32.mrb[0].mxu0
    %3715 = vmatprep.mubr.f32.mxu0 0.0
    %v3716 = vand.u32 %v3404, 4294901760
    %v3717 = vsub.f32 %v3404, %v3716
    %3718 = vmatmul.mubr.f32.gmra.mrb[0].mxu0 %v3717
    %v3719 = vpop.f32.mrb[0].mxu0
    %v3720 = vadd.f32 %v3621, %v3719
    %v3721 = vpop.f32.mrb[0].mxu0
    %3722 = vmatprep.mubr.f32.mxu0 0.0
    %v3723 = vand.u32 %v3406, 4294901760
    %v3724 = vsub.f32 %v3406, %v3723
    %3725 = vmatmul.mubr.f32.gmra.mrb[0].mxu0 %v3724
    %v3726 = vpop.f32.mrb[0].mxu0
    %v3727 = vadd.f32 %v3627, %v3726
    %v3728 = vpop.f32.mrb[0].mxu0
    %3729 = vmatprep.mubr.f32.mxu0 0.0
    %v3730 = vand.u32 %v3408, 4294901760
    %v3731 = vsub.f32 %v3408, %v3730
    %3732 = vmatmul.mubr.f32.gmra.mrb[0].mxu0 %v3731
    %v3733 = vpop.f32.mrb[0].mxu0
    %v3734 = vadd.f32 %v3633, %v3733
    %v3735 = vpop.f32.mrb[0].mxu0
    %3736 = vdwg.mxu0
    %3737 = vmatprep.subr.mxu0 0.0
    %v3738 = vand.u32 %v3410, 4294901760
    %3739 = vmatpush1.xpose.msra.mxu0 %v3738
    %3740 = vmatprep.subr.mxu0 0.0
    %v3741 = vand.u32 %v3412, 4294901760
    %3742 = vmatpush1.xpose.msra.mxu0 %v3741
    %3743 = vmatprep.subr.mxu0 0.0
    %v3744 = vand.u32 %v3414, 4294901760
    %3745 = vmatpush1.xpose.msra.mxu0 %v3744
    %3746 = vmatprep.subr.mxu0 0.0
    %v3747 = vand.u32 %v3416, 4294901760
    %3748 = vmatpush1.xpose.msra.mxu0 %v3747
    %3749 = vmatprep.subr.mxu0 0.0
    %3750 = vmatpush1.xpose.msra.mxu0 0.0
    %3751 = vmatprep.subr.mxu0 0.0
    %3752 = vmatpush1.xpose.msra.mxu0 0.0
    %3753 = vmatprep.subr.mxu0 0.0
    %3754 = vmatpush1.xpose.msra.mxu0 0.0
    %3755 = vmatprep.subr.mxu0 0.0
    %3756 = vmatpush1.xpose.msra.mxu0 0.0
    %3757 = vmatprep.subr.mxu0 0.0
    %3758 = vmatpush1.xpose.msra.mxu0 0.0
    %3759 = vmatprep.subr.mxu0 0.0
    %3760 = vmatpush1.xpose.msra.mxu0 0.0
    %3761 = vmatprep.subr.mxu0 0.0
    %3762 = vmatpush1.xpose.msra.mxu0 0.0
    %3763 = vmatprep.subr.mxu0 0.0
    %3764 = vmatpush1.xpose.msra.mxu0 0.0
    %3765 = vmatprep.subr.mxu0 0.0
    %3766 = vmatpush1.xpose.msra.mxu0 0.0
    %3767 = vmatprep.subr.mxu0 0.0
    %3768 = vmatpush1.xpose.msra.mxu0 0.0
    %3769 = vmatprep.subr.mxu0 0.0
    %3770 = vmatpush1.xpose.msra.mxu0 0.0
    %3771 = vmatprep.subr.mxu0 0.0
    %3772 = vmatpush1.xpose.msra.mxu0 0.0
    %3773 = vmatprep.subr.mxu0 0.0
    %3774 = vmatpush1.xpose.msra.mxu0 0.0
    %3775 = vmatprep.subr.mxu0 0.0
    %3776 = vmatpush1.xpose.msra.mxu0 0.0
    %3777 = vmatprep.subr.mxu0 0.0
    %3778 = vmatpush1.xpose.msra.mxu0 0.0
    %3779 = vmatprep.subr.mxu0 0.0
    %3780 = vmatpush1.xpose.msra.mxu0 0.0
    %3781 = vmatprep.subr.mxu0 0.0
    %3782 = vmatpush1.xpose.msra.mxu0 0.0
    %3783 = vmatprep.subr.mxu0 0.0
    %3784 = vmatpush1.xpose.msra.mxu0 0.0
    %3785 = vmatprep.subr.mxu0 0.0
    %3786 = vmatpush1.xpose.msra.mxu0 0.0
    %3787 = vmatprep.subr.mxu0 0.0
    %3788 = vmatpush1.xpose.msra.mxu0 0.0
    %3789 = vmatprep.subr.mxu0 0.0
    %3790 = vmatpush1.xpose.msra.mxu0 0.0
    %3791 = vmatprep.subr.mxu0 0.0
    %3792 = vmatpush1.xpose.msra.mxu0 0.0
    %3793 = vmatprep.subr.mxu0 0.0
    %3794 = vmatpush1.xpose.msra.mxu0 0.0
    %3795 = vmatprep.subr.mxu0 0.0
    %3796 = vmatpush1.xpose.msra.mxu0 0.0
    %3797 = vmatprep.subr.mxu0 0.0
    %3798 = vmatpush1.xpose.msra.mxu0 0.0
    %3799 = vmatprep.subr.mxu0 0.0
    %3800 = vmatpush1.xpose.msra.mxu0 0.0
    %3801 = vmatprep.subr.mxu0 0.0
    %3802 = vmatpush1.xpose.msra.mxu0 0.0
    %3803 = vmatprep.subr.mxu0 0.0
    %3804 = vmatpush1.xpose.msra.mxu0 0.0
    %3805 = vmatprep.mubr.f32.mxu0 0.0
    %v3806 = vand.u32 %v3402, 4294901760
    %v3807 = vsub.f32 %v3402, %v3806
    %v3808 = vand.u32 %v3807, 4294901760
    %3809 = vmatmul.mubr.f32.gmra.mrb[0].mxu0 %v3808
    %v3810 = vpop.f32.mrb[0].mxu0
    %v3811 = vadd.f32 %v3713, %v3810
    %v3812 = vpop.f32.mrb[0].mxu0
    %3813 = vmatprep.mubr.f32.mxu0 0.0
    %v3814 = vand.u32 %v3404, 4294901760
    %v3815 = vsub.f32 %v3404, %v3814
    %v3816 = vand.u32 %v3815, 4294901760
    %3817 = vmatmul.mubr.f32.gmra.mrb[0].mxu0 %v3816
    %v3818 = vpop.f32.mrb[0].mxu0
    %v3819 = vadd.f32 %v3720, %v3818
    %v3820 = vpop.f32.mrb[0].mxu0
    %3821 = vmatprep.mubr.f32.mxu0 0.0
    %v3822 = vand.u32 %v3406, 4294901760
    %v3823 = vsub.f32 %v3406, %v3822
    %v3824 = vand.u32 %v3823, 4294901760
    %3825 = vmatmul.mubr.f32.gmra.mrb[0].mxu0 %v3824
    %v3826 = vpop.f32.mrb[0].mxu0
    %v3827 = vadd.f32 %v3727, %v3826
    %v3828 = vpop.f32.mrb[0].mxu0
    %3829 = vmatprep.mubr.f32.mxu0 0.0
    %v3830 = vand.u32 %v3408, 4294901760
    %v3831 = vsub.f32 %v3408, %v3830
    %v3832 = vand.u32 %v3831, 4294901760
    %3833 = vmatmul.mubr.f32.gmra.mrb[0].mxu0 %v3832
    %v3834 = vpop.f32.mrb[0].mxu0
    %v3835 = vadd.f32 %v3734, %v3834
    %v3836 = vpop.f32.mrb[0].mxu0
    %3837 = vdwg.mxu0
    %3838 = vmatprep.subr.mxu0 0.0
    %v3839 = vand.u32 %v3410, 4294901760
    %v3840 = vsub.f32 %v3410, %v3839
    %v3841 = vand.u32 %v3840, 4294901760
    %3842 = vmatpush1.xpose.msra.mxu0 %v3841
    %3843 = vmatprep.subr.mxu0 0.0
    %v3844 = vand.u32 %v3412, 4294901760
    %v3845 = vsub.f32 %v3412, %v3844
    %v3846 = vand.u32 %v3845, 4294901760
    %3847 = vmatpush1.xpose.msra.mxu0 %v3846
    %3848 = vmatprep.subr.mxu0 0.0
    %v3849 = vand.u32 %v3414, 4294901760
    %v3850 = vsub.f32 %v3414, %v3849
    %v3851 = vand.u32 %v3850, 4294901760
    %3852 = vmatpush1.xpose.msra.mxu0 %v3851
    %3853 = vmatprep.subr.mxu0 0.0
    %v3854 = vand.u32 %v3416, 4294901760
    %v3855 = vsub.f32 %v3416, %v3854
    %v3856 = vand.u32 %v3855, 4294901760
    %3857 = vmatpush1.xpose.msra.mxu0 %v3856
    %3858 = vmatprep.subr.mxu0 0.0
    %3859 = vmatpush1.xpose.msra.mxu0 0.0
    %3860 = vmatprep.subr.mxu0 0.0
    %3861 = vmatpush1.xpose.msra.mxu0 0.0
    %3862 = vmatprep.subr.mxu0 0.0
    %3863 = vmatpush1.xpose.msra.mxu0 0.0
    %3864 = vmatprep.subr.mxu0 0.0
    %3865 = vmatpush1.xpose.msra.mxu0 0.0
    %3866 = vmatprep.subr.mxu0 0.0
    %3867 = vmatpush1.xpose.msra.mxu0 0.0
    %3868 = vmatprep.subr.mxu0 0.0
    %3869 = vmatpush1.xpose.msra.mxu0 0.0
    %3870 = vmatprep.subr.mxu0 0.0
    %3871 = vmatpush1.xpose.msra.mxu0 0.0
    %3872 = vmatprep.subr.mxu0 0.0
    %3873 = vmatpush1.xpose.msra.mxu0 0.0
    %3874 = vmatprep.subr.mxu0 0.0
    %3875 = vmatpush1.xpose.msra.mxu0 0.0
    %3876 = vmatprep.subr.mxu0 0.0
    %3877 = vmatpush1.xpose.msra.mxu0 0.0
    %3878 = vmatprep.subr.mxu0 0.0
    %3879 = vmatpush1.xpose.msra.mxu0 0.0
    %3880 = vmatprep.subr.mxu0 0.0
    %3881 = vmatpush1.xpose.msra.mxu0 0.0
    %3882 = vmatprep.subr.mxu0 0.0
    %3883 = vmatpush1.xpose.msra.mxu0 0.0
    %3884 = vmatprep.subr.mxu0 0.0
    %3885 = vmatpush1.xpose.msra.mxu0 0.0
    %3886 = vmatprep.subr.mxu0 0.0
    %3887 = vmatpush1.xpose.msra.mxu0 0.0
    %3888 = vmatprep.subr.mxu0 0.0
    %3889 = vmatpush1.xpose.msra.mxu0 0.0
    %3890 = vmatprep.subr.mxu0 0.0
    %3891 = vmatpush1.xpose.msra.mxu0 0.0
    %3892 = vmatprep.subr.mxu0 0.0
    %3893 = vmatpush1.xpose.msra.mxu0 0.0
    %3894 = vmatprep.subr.mxu0 0.0
    %3895 = vmatpush1.xpose.msra.mxu0 0.0
    %3896 = vmatprep.subr.mxu0 0.0
    %3897 = vmatpush1.xpose.msra.mxu0 0.0
    %3898 = vmatprep.subr.mxu0 0.0
    %3899 = vmatpush1.xpose.msra.mxu0 0.0
    %3900 = vmatprep.subr.mxu0 0.0
    %3901 = vmatpush1.xpose.msra.mxu0 0.0
    %3902 = vmatprep.subr.mxu0 0.0
    %3903 = vmatpush1.xpose.msra.mxu0 0.0
    %3904 = vmatprep.subr.mxu0 0.0
    %3905 = vmatpush1.xpose.msra.mxu0 0.0
    %3906 = vmatprep.subr.mxu0 0.0
    %3907 = vmatpush1.xpose.msra.mxu0 0.0
    %3908 = vmatprep.subr.mxu0 0.0
    %3909 = vmatpush1.xpose.msra.mxu0 0.0
    %3910 = vmatprep.subr.mxu0 0.0
    %3911 = vmatpush1.xpose.msra.mxu0 0.0
    %3912 = vmatprep.subr.mxu0 0.0
    %3913 = vmatpush1.xpose.msra.mxu0 0.0
    %3914 = vmatprep.mubr.f32.mxu0 0.0
    %v3915 = vand.u32 %v3402, 4294901760
    %3916 = vmatmul.mubr.f32.gmra.mrb[0].mxu0 %v3915
    %v3917 = vpop.f32.mrb[0].mxu0
    %v3918 = vadd.f32 %v3811, %v3917
    %v3919 = vpop.f32.mrb[0].mxu0
    %3920 = vmatprep.mubr.f32.mxu0 0.0
    %v3921 = vand.u32 %v3404, 4294901760
    %3922 = vmatmul.mubr.f32.gmra.mrb[0].mxu0 %v3921
    %v3923 = vpop.f32.mrb[0].mxu0
    %v3924 = vadd.f32 %v3819, %v3923
    %v3925 = vpop.f32.mrb[0].mxu0
    %3926 = vmatprep.mubr.f32.mxu0 0.0
    %v3927 = vand.u32 %v3406, 4294901760
    %3928 = vmatmul.mubr.f32.gmra.mrb[0].mxu0 %v3927
    %v3929 = vpop.f32.mrb[0].mxu0
    %v3930 = vadd.f32 %v3827, %v3929
    %v3931 = vpop.f32.mrb[0].mxu0
    %3932 = vmatprep.mubr.f32.mxu0 0.0
    %v3933 = vand.u32 %v3408, 4294901760
    %3934 = vmatmul.mubr.f32.gmra.mrb[0].mxu0 %v3933
    %v3935 = vpop.f32.mrb[0].mxu0
    %v3936 = vadd.f32 %v3835, %v3935
    %v3937 = vpop.f32.mrb[0].mxu0
    %3938 = vdwg.mxu0
    %3939 = vmatprep.subr.mxu0 0.0
    %v3940 = vand.u32 %v3410, 4294901760
    %3941 = vmatpush1.xpose.msra.mxu0 %v3940
    %3942 = vmatprep.subr.mxu0 0.0
    %v3943 = vand.u32 %v3412, 4294901760
    %3944 = vmatpush1.xpose.msra.mxu0 %v3943
    %3945 = vmatprep.subr.mxu0 0.0
    %v3946 = vand.u32 %v3414, 4294901760
    %3947 = vmatpush1.xpose.msra.mxu0 %v3946
    %3948 = vmatprep.subr.mxu0 0.0
    %v3949 = vand.u32 %v3416, 4294901760
    %3950 = vmatpush1.xpose.msra.mxu0 %v3949
    %3951 = vmatprep.subr.mxu0 0.0
    %3952 = vmatpush1.xpose.msra.mxu0 0.0
    %3953 = vmatprep.subr.mxu0 0.0
    %3954 = vmatpush1.xpose.msra.mxu0 0.0
    %3955 = vmatprep.subr.mxu0 0.0
    %3956 = vmatpush1.xpose.msra.mxu0 0.0
    %3957 = vmatprep.subr.mxu0 0.0
    %3958 = vmatpush1.xpose.msra.mxu0 0.0
    %3959 = vmatprep.subr.mxu0 0.0
    %3960 = vmatpush1.xpose.msra.mxu0 0.0
    %3961 = vmatprep.subr.mxu0 0.0
    %3962 = vmatpush1.xpose.msra.mxu0 0.0
    %3963 = vmatprep.subr.mxu0 0.0
    %3964 = vmatpush1.xpose.msra.mxu0 0.0
    %3965 = vmatprep.subr.mxu0 0.0
    %3966 = vmatpush1.xpose.msra.mxu0 0.0
    %3967 = vmatprep.subr.mxu0 0.0
    %3968 = vmatpush1.xpose.msra.mxu0 0.0
    %3969 = vmatprep.subr.mxu0 0.0
    %3970 = vmatpush1.xpose.msra.mxu0 0.0
    %3971 = vmatprep.subr.mxu0 0.0
    %3972 = vmatpush1.xpose.msra.mxu0 0.0
    %3973 = vmatprep.subr.mxu0 0.0
    %3974 = vmatpush1.xpose.msra.mxu0 0.0
    %3975 = vmatprep.subr.mxu0 0.0
    %3976 = vmatpush1.xpose.msra.mxu0 0.0
    %3977 = vmatprep.subr.mxu0 0.0
    %3978 = vmatpush1.xpose.msra.mxu0 0.0
    %3979 = vmatprep.subr.mxu0 0.0
    %3980 = vmatpush1.xpose.msra.mxu0 0.0
    %3981 = vmatprep.subr.mxu0 0.0
    %3982 = vmatpush1.xpose.msra.mxu0 0.0
    %3983 = vmatprep.subr.mxu0 0.0
    %3984 = vmatpush1.xpose.msra.mxu0 0.0
    %3985 = vmatprep.subr.mxu0 0.0
    %3986 = vmatpush1.xpose.msra.mxu0 0.0
    %3987 = vmatprep.subr.mxu0 0.0
    %3988 = vmatpush1.xpose.msra.mxu0 0.0
    %3989 = vmatprep.subr.mxu0 0.0
    %3990 = vmatpush1.xpose.msra.mxu0 0.0
    %3991 = vmatprep.subr.mxu0 0.0
    %3992 = vmatpush1.xpose.msra.mxu0 0.0
    %3993 = vmatprep.subr.mxu0 0.0
    %3994 = vmatpush1.xpose.msra.mxu0 0.0
    %3995 = vmatprep.subr.mxu0 0.0
    %3996 = vmatpush1.xpose.msra.mxu0 0.0
    %3997 = vmatprep.subr.mxu0 0.0
    %3998 = vmatpush1.xpose.msra.mxu0 0.0
    %3999 = vmatprep.subr.mxu0 0.0
    %4000 = vmatpush1.xpose.msra.mxu0 0.0
    %4001 = vmatprep.subr.mxu0 0.0
    %4002 = vmatpush1.xpose.msra.mxu0 0.0
    %4003 = vmatprep.subr.mxu0 0.0
    %4004 = vmatpush1.xpose.msra.mxu0 0.0
    %4005 = vmatprep.subr.mxu0 0.0
    %4006 = vmatpush1.xpose.msra.mxu0 0.0
    %4007 = vmatprep.mubr.f32.mxu0 0.0
    %v4008 = vand.u32 %v3402, 4294901760
    %4009 = vmatmul.mubr.f32.gmra.mrb[0].mxu0 %v4008
    %v4010 = vpop.f32.mrb[0].mxu0
    %v4011 = vadd.f32 %v3918, %v4010
    %v4012 = vpop.f32.mrb[0].mxu0
    %4013 = vmatprep.mubr.f32.mxu0 0.0
    %v4014 = vand.u32 %v3404, 4294901760
    %4015 = vmatmul.mubr.f32.gmra.mrb[0].mxu0 %v4014
    %v4016 = vpop.f32.mrb[0].mxu0
    %v4017 = vadd.f32 %v3924, %v4016
    %v4018 = vpop.f32.mrb[0].mxu0
    %4019 = vmatprep.mubr.f32.mxu0 0.0
    %v4020 = vand.u32 %v3406, 4294901760
    %4021 = vmatmul.mubr.f32.gmra.mrb[0].mxu0 %v4020
    %v4022 = vpop.f32.mrb[0].mxu0
    %v4023 = vadd.f32 %v3930, %v4022
    %v4024 = vpop.f32.mrb[0].mxu0
    %4025 = vmatprep.mubr.f32.mxu0 0.0
    %v4026 = vand.u32 %v3408, 4294901760
    %4027 = vmatmul.mubr.f32.gmra.mrb[0].mxu0 %v4026
    %v4028 = vpop.f32.mrb[0].mxu0
    %v4029 = vadd.f32 %v3936, %v4028
    %v4030 = vpop.f32.mrb[0].mxu0
    %4031 = vdwg.mxu0
    %v4032 = vsel %vm84, %v4011, -inf
    %4033 = vmax.xlane.f32.xlu0 %v4032
    %v4034 = vpop.xlane.xlu0 %4033
    %v4035 = vsel %vm84, %v4017, -inf
    %4036 = vmax.xlane.f32.xlu0 %v4035
    %v4037 = vpop.xlane.xlu0 %4036
    %v4038 = vsel %vm84, %v4023, -inf
    %4039 = vmax.xlane.f32.xlu0 %v4038
    %v4040 = vpop.xlane.xlu0 %4039
    %v4041 = vsel %vm84, %v4029, -inf
    %4042 = vmax.xlane.f32.xlu0 %v4041
    %v4043 = vpop.xlane.xlu0 %4042
    %v4044 = vsub.f32 %v4011, %v4034
    %v4045 = vsub.f32 %v4017, %v4037
    %v4046 = vsub.f32 %v4023, %v4040
    %v4047 = vsub.f32 %v4029, %v4043
    %v4048 = vmul.f32 %v4044, 1.442695
    %v4049 = vpow.pop %v4048
    %v4050 = vmul.f32 %v4045, 1.442695
    %v4051 = vpow.pop %v4050
    %v4052 = vmul.f32 %v4046, 1.442695
    %v4053 = vpow.pop %v4052
    %v4054 = vmul.f32 %v4047, 1.442695
    %v4055 = vpow.pop %v4054
    %v4056 = vsel %vm84, %v4049, 0.0
    %4057 = vadd.xlane.f32.xlu0 %v4056
    %v4058 = vpop.xlane.xlu0 %4057
    %v4059 = vsel %vm84, %v4051, 0.0
    %4060 = vadd.xlane.f32.xlu0 %v4059
    %v4061 = vpop.xlane.xlu0 %4060
    %v4062 = vsel %vm84, %v4053, 0.0
    %4063 = vadd.xlane.f32.xlu0 %v4062
    %v4064 = vpop.xlane.xlu0 %4063
    %v4065 = vsel %vm84, %v4055, 0.0
    %4066 = vadd.xlane.f32.xlu0 %v4065
    %v4067 = vpop.xlane.xlu0 %4066
    %v4068 = vrcp.pop %v4058
    %v4069 = vrcp.pop %v4061
    %v4070 = vrcp.pop %v4064
    %v4071 = vrcp.pop %v4067
    %v4072 = vmul.f32 %v4049, %v4068
    %v4073 = vmul.f32 %v4051, %v4069
    %v4074 = vmul.f32 %v4053, %v4070
    %v4075 = vmul.f32 %v4055, %v4071
    %4076 = vrot.lane.b32.xlu0 %v690, 48
    %v4077 = vpop.permute.xlu0 %4076
    %4078 = vrot.lane.b32.xlu0 %v696, 48
    %v4079 = vpop.permute.xlu0 %4078
    %4080 = vrot.lane.b32.xlu0 %v702, 48
    %v4081 = vpop.permute.xlu0 %4080
    %4082 = vrot.lane.b32.xlu0 %v708, 48
    %v4083 = vpop.permute.xlu0 %4082
    %v4089 = vsel %vm84, %v4072, 0
    %v4092 = vsel %vm84, %v4073, 0
    %v4095 = vsel %vm84, %v4074, 0
    %v4098 = vsel %vm84, %v4075, 0
    %4100 = vmatprep.subr.mxu0 0.0
    %v4101 = vand.u32 %v4077, 4294901760
    %4102 = vmatpush1.msra.mxu0 %v4101
    %4103 = vmatprep.subr.mxu0 0.0
    %v4104 = vand.u32 %v4079, 4294901760
    %4105 = vmatpush1.msra.mxu0 %v4104
    %4106 = vmatprep.subr.mxu0 0.0
    %v4107 = vand.u32 %v4081, 4294901760
    %4108 = vmatpush1.msra.mxu0 %v4107
    %4109 = vmatprep.subr.mxu0 0.0
    %v4110 = vand.u32 %v4083, 4294901760
    %4111 = vmatpush1.msra.mxu0 %v4110
    %4112 = vmatprep.subr.mxu0 0.0
    %4113 = vmatpush1.msra.mxu0 0.0
    %4114 = vmatprep.subr.mxu0 0.0
    %4115 = vmatpush1.msra.mxu0 0.0
    %4116 = vmatprep.subr.mxu0 0.0
    %4117 = vmatpush1.msra.mxu0 0.0
    %4118 = vmatprep.subr.mxu0 0.0
    %4119 = vmatpush1.msra.mxu0 0.0
    %4120 = vmatprep.subr.mxu0 0.0
    %4121 = vmatpush1.msra.mxu0 0.0
    %4122 = vmatprep.subr.mxu0 0.0
    %4123 = vmatpush1.msra.mxu0 0.0
    %4124 = vmatprep.subr.mxu0 0.0
    %4125 = vmatpush1.msra.mxu0 0.0
    %4126 = vmatprep.subr.mxu0 0.0
    %4127 = vmatpush1.msra.mxu0 0.0
    %4128 = vmatprep.subr.mxu0 0.0
    %4129 = vmatpush1.msra.mxu0 0.0
    %4130 = vmatprep.subr.mxu0 0.0
    %4131 = vmatpush1.msra.mxu0 0.0
    %4132 = vmatprep.subr.mxu0 0.0
    %4133 = vmatpush1.msra.mxu0 0.0
    %4134 = vmatprep.subr.mxu0 0.0
    %4135 = vmatpush1.msra.mxu0 0.0
    %4136 = vmatprep.subr.mxu0 0.0
    %4137 = vmatpush1.msra.mxu0 0.0
    %4138 = vmatprep.subr.mxu0 0.0
    %4139 = vmatpush1.msra.mxu0 0.0
    %4140 = vmatprep.subr.mxu0 0.0
    %4141 = vmatpush1.msra.mxu0 0.0
    %4142 = vmatprep.subr.mxu0 0.0
    %4143 = vmatpush1.msra.mxu0 0.0
    %4144 = vmatprep.subr.mxu0 0.0
    %4145 = vmatpush1.msra.mxu0 0.0
    %4146 = vmatprep.subr.mxu0 0.0
    %4147 = vmatpush1.msra.mxu0 0.0
    %4148 = vmatprep.subr.mxu0 0.0
    %4149 = vmatpush1.msra.mxu0 0.0
    %4150 = vmatprep.subr.mxu0 0.0
    %4151 = vmatpush1.msra.mxu0 0.0
    %4152 = vmatprep.subr.mxu0 0.0
    %4153 = vmatpush1.msra.mxu0 0.0
    %4154 = vmatprep.subr.mxu0 0.0
    %4155 = vmatpush1.msra.mxu0 0.0
    %4156 = vmatprep.subr.mxu0 0.0
    %4157 = vmatpush1.msra.mxu0 0.0
    %4158 = vmatprep.subr.mxu0 0.0
    %4159 = vmatpush1.msra.mxu0 0.0
    %4160 = vmatprep.subr.mxu0 0.0
    %4161 = vmatpush1.msra.mxu0 0.0
    %4162 = vmatprep.subr.mxu0 0.0
    %4163 = vmatpush1.msra.mxu0 0.0
    %4164 = vmatprep.subr.mxu0 0.0
    %4165 = vmatpush1.msra.mxu0 0.0
    %4166 = vmatprep.subr.mxu0 0.0
    %4167 = vmatpush1.msra.mxu0 0.0
    %4168 = vmatprep.mubr.f32.mxu0 0.0
    %v4169 = vand.u32 %v4089, 4294901760
    %v4170 = vsub.f32 %v4089, %v4169
    %v4171 = vand.u32 %v4170, 4294901760
    %v4172 = vsub.f32 %v4170, %v4171
    %v4173 = vand.u32 %v4172, 4294901760
    %4174 = vmatmul.mubr.f32.gmra.mrb[0].mxu0 %v4173
    %v4175 = vpop.f32.mrb[0].mxu0
    %v4176 = vadd.f32 0.0, %v4175
    %v4177 = vpop.f32.mrb[0].mxu0
    %4178 = vmatprep.mubr.f32.mxu0 0.0
    %v4179 = vand.u32 %v4092, 4294901760
    %v4180 = vsub.f32 %v4092, %v4179
    %v4181 = vand.u32 %v4180, 4294901760
    %v4182 = vsub.f32 %v4180, %v4181
    %v4183 = vand.u32 %v4182, 4294901760
    %4184 = vmatmul.mubr.f32.gmra.mrb[0].mxu0 %v4183
    %v4185 = vpop.f32.mrb[0].mxu0
    %v4186 = vadd.f32 0.0, %v4185
    %v4187 = vpop.f32.mrb[0].mxu0
    %4188 = vmatprep.mubr.f32.mxu0 0.0
    %v4189 = vand.u32 %v4095, 4294901760
    %v4190 = vsub.f32 %v4095, %v4189
    %v4191 = vand.u32 %v4190, 4294901760
    %v4192 = vsub.f32 %v4190, %v4191
    %v4193 = vand.u32 %v4192, 4294901760
    %4194 = vmatmul.mubr.f32.gmra.mrb[0].mxu0 %v4193
    %v4195 = vpop.f32.mrb[0].mxu0
    %v4196 = vadd.f32 0.0, %v4195
    %v4197 = vpop.f32.mrb[0].mxu0
    %4198 = vmatprep.mubr.f32.mxu0 0.0
    %v4199 = vand.u32 %v4098, 4294901760
    %v4200 = vsub.f32 %v4098, %v4199
    %v4201 = vand.u32 %v4200, 4294901760
    %v4202 = vsub.f32 %v4200, %v4201
    %v4203 = vand.u32 %v4202, 4294901760
    %4204 = vmatmul.mubr.f32.gmra.mrb[0].mxu0 %v4203
    %v4205 = vpop.f32.mrb[0].mxu0
    %v4206 = vadd.f32 0.0, %v4205
    %v4207 = vpop.f32.mrb[0].mxu0
    %4208 = vdwg.mxu0
    %4209 = vmatprep.subr.mxu0 0.0
    %v4210 = vand.u32 %v4077, 4294901760
    %v4211 = vsub.f32 %v4077, %v4210
    %v4212 = vand.u32 %v4211, 4294901760
    %v4213 = vsub.f32 %v4211, %v4212
    %v4214 = vand.u32 %v4213, 4294901760
    %4215 = vmatpush1.msra.mxu0 %v4214
    %4216 = vmatprep.subr.mxu0 0.0
    %v4217 = vand.u32 %v4079, 4294901760
    %v4218 = vsub.f32 %v4079, %v4217
    %v4219 = vand.u32 %v4218, 4294901760
    %v4220 = vsub.f32 %v4218, %v4219
    %v4221 = vand.u32 %v4220, 4294901760
    %4222 = vmatpush1.msra.mxu0 %v4221
    %4223 = vmatprep.subr.mxu0 0.0
    %v4224 = vand.u32 %v4081, 4294901760
    %v4225 = vsub.f32 %v4081, %v4224
    %v4226 = vand.u32 %v4225, 4294901760
    %v4227 = vsub.f32 %v4225, %v4226
    %v4228 = vand.u32 %v4227, 4294901760
    %4229 = vmatpush1.msra.mxu0 %v4228
    %4230 = vmatprep.subr.mxu0 0.0
    %v4231 = vand.u32 %v4083, 4294901760
    %v4232 = vsub.f32 %v4083, %v4231
    %v4233 = vand.u32 %v4232, 4294901760
    %v4234 = vsub.f32 %v4232, %v4233
    %v4235 = vand.u32 %v4234, 4294901760
    %4236 = vmatpush1.msra.mxu0 %v4235
    %4237 = vmatprep.subr.mxu0 0.0
    %4238 = vmatpush1.msra.mxu0 0.0
    %4239 = vmatprep.subr.mxu0 0.0
    %4240 = vmatpush1.msra.mxu0 0.0
    %4241 = vmatprep.subr.mxu0 0.0
    %4242 = vmatpush1.msra.mxu0 0.0
    %4243 = vmatprep.subr.mxu0 0.0
    %4244 = vmatpush1.msra.mxu0 0.0
    %4245 = vmatprep.subr.mxu0 0.0
    %4246 = vmatpush1.msra.mxu0 0.0
    %4247 = vmatprep.subr.mxu0 0.0
    %4248 = vmatpush1.msra.mxu0 0.0
    %4249 = vmatprep.subr.mxu0 0.0
    %4250 = vmatpush1.msra.mxu0 0.0
    %4251 = vmatprep.subr.mxu0 0.0
    %4252 = vmatpush1.msra.mxu0 0.0
    %4253 = vmatprep.subr.mxu0 0.0
    %4254 = vmatpush1.msra.mxu0 0.0
    %4255 = vmatprep.subr.mxu0 0.0
    %4256 = vmatpush1.msra.mxu0 0.0
    %4257 = vmatprep.subr.mxu0 0.0
    %4258 = vmatpush1.msra.mxu0 0.0
    %4259 = vmatprep.subr.mxu0 0.0
    %4260 = vmatpush1.msra.mxu0 0.0
    %4261 = vmatprep.subr.mxu0 0.0
    %4262 = vmatpush1.msra.mxu0 0.0
    %4263 = vmatprep.subr.mxu0 0.0
    %4264 = vmatpush1.msra.mxu0 0.0
    %4265 = vmatprep.subr.mxu0 0.0
    %4266 = vmatpush1.msra.mxu0 0.0
    %4267 = vmatprep.subr.mxu0 0.0
    %4268 = vmatpush1.msra.mxu0 0.0
    %4269 = vmatprep.subr.mxu0 0.0
    %4270 = vmatpush1.msra.mxu0 0.0
    %4271 = vmatprep.subr.mxu0 0.0
    %4272 = vmatpush1.msra.mxu0 0.0
    %4273 = vmatprep.subr.mxu0 0.0
    %4274 = vmatpush1.msra.mxu0 0.0
    %4275 = vmatprep.subr.mxu0 0.0
    %4276 = vmatpush1.msra.mxu0 0.0
    %4277 = vmatprep.subr.mxu0 0.0
    %4278 = vmatpush1.msra.mxu0 0.0
    %4279 = vmatprep.subr.mxu0 0.0
    %4280 = vmatpush1.msra.mxu0 0.0
    %4281 = vmatprep.subr.mxu0 0.0
    %4282 = vmatpush1.msra.mxu0 0.0
    %4283 = vmatprep.subr.mxu0 0.0
    %4284 = vmatpush1.msra.mxu0 0.0
    %4285 = vmatprep.subr.mxu0 0.0
    %4286 = vmatpush1.msra.mxu0 0.0
    %4287 = vmatprep.subr.mxu0 0.0
    %4288 = vmatpush1.msra.mxu0 0.0
    %4289 = vmatprep.subr.mxu0 0.0
    %4290 = vmatpush1.msra.mxu0 0.0
    %4291 = vmatprep.subr.mxu0 0.0
    %4292 = vmatpush1.msra.mxu0 0.0
    %4293 = vmatprep.mubr.f32.mxu0 0.0
    %v4294 = vand.u32 %v4089, 4294901760
    %4295 = vmatmul.mubr.f32.gmra.mrb[0].mxu0 %v4294
    %v4296 = vpop.f32.mrb[0].mxu0
    %v4297 = vadd.f32 %v4176, %v4296
    %v4298 = vpop.f32.mrb[0].mxu0
    %4299 = vmatprep.mubr.f32.mxu0 0.0
    %v4300 = vand.u32 %v4092, 4294901760
    %4301 = vmatmul.mubr.f32.gmra.mrb[0].mxu0 %v4300
    %v4302 = vpop.f32.mrb[0].mxu0
    %v4303 = vadd.f32 %v4186, %v4302
    %v4304 = vpop.f32.mrb[0].mxu0
    %4305 = vmatprep.mubr.f32.mxu0 0.0
    %v4306 = vand.u32 %v4095, 4294901760
    %4307 = vmatmul.mubr.f32.gmra.mrb[0].mxu0 %v4306
    %v4308 = vpop.f32.mrb[0].mxu0
    %v4309 = vadd.f32 %v4196, %v4308
    %v4310 = vpop.f32.mrb[0].mxu0
    %4311 = vmatprep.mubr.f32.mxu0 0.0
    %v4312 = vand.u32 %v4098, 4294901760
    %4313 = vmatmul.mubr.f32.gmra.mrb[0].mxu0 %v4312
    %v4314 = vpop.f32.mrb[0].mxu0
    %v4315 = vadd.f32 %v4206, %v4314
    %v4316 = vpop.f32.mrb[0].mxu0
    %4317 = vdwg.mxu0
    %4318 = vmatprep.subr.mxu0 0.0
    %v4319 = vand.u32 %v4077, 4294901760
    %v4320 = vsub.f32 %v4077, %v4319
    %4321 = vmatpush1.msra.mxu0 %v4320
    %4322 = vmatprep.subr.mxu0 0.0
    %v4323 = vand.u32 %v4079, 4294901760
    %v4324 = vsub.f32 %v4079, %v4323
    %4325 = vmatpush1.msra.mxu0 %v4324
    %4326 = vmatprep.subr.mxu0 0.0
    %v4327 = vand.u32 %v4081, 4294901760
    %v4328 = vsub.f32 %v4081, %v4327
    %4329 = vmatpush1.msra.mxu0 %v4328
    %4330 = vmatprep.subr.mxu0 0.0
    %v4331 = vand.u32 %v4083, 4294901760
    %v4332 = vsub.f32 %v4083, %v4331
    %4333 = vmatpush1.msra.mxu0 %v4332
    %4334 = vmatprep.subr.mxu0 0.0
    %4335 = vmatpush1.msra.mxu0 0.0
    %4336 = vmatprep.subr.mxu0 0.0
    %4337 = vmatpush1.msra.mxu0 0.0
    %4338 = vmatprep.subr.mxu0 0.0
    %4339 = vmatpush1.msra.mxu0 0.0
    %4340 = vmatprep.subr.mxu0 0.0
    %4341 = vmatpush1.msra.mxu0 0.0
    %4342 = vmatprep.subr.mxu0 0.0
    %4343 = vmatpush1.msra.mxu0 0.0
    %4344 = vmatprep.subr.mxu0 0.0
    %4345 = vmatpush1.msra.mxu0 0.0
    %4346 = vmatprep.subr.mxu0 0.0
    %4347 = vmatpush1.msra.mxu0 0.0
    %4348 = vmatprep.subr.mxu0 0.0
    %4349 = vmatpush1.msra.mxu0 0.0
    %4350 = vmatprep.subr.mxu0 0.0
    %4351 = vmatpush1.msra.mxu0 0.0
    %4352 = vmatprep.subr.mxu0 0.0
    %4353 = vmatpush1.msra.mxu0 0.0
    %4354 = vmatprep.subr.mxu0 0.0
    %4355 = vmatpush1.msra.mxu0 0.0
    %4356 = vmatprep.subr.mxu0 0.0
    %4357 = vmatpush1.msra.mxu0 0.0
    %4358 = vmatprep.subr.mxu0 0.0
    %4359 = vmatpush1.msra.mxu0 0.0
    %4360 = vmatprep.subr.mxu0 0.0
    %4361 = vmatpush1.msra.mxu0 0.0
    %4362 = vmatprep.subr.mxu0 0.0
    %4363 = vmatpush1.msra.mxu0 0.0
    %4364 = vmatprep.subr.mxu0 0.0
    %4365 = vmatpush1.msra.mxu0 0.0
    %4366 = vmatprep.subr.mxu0 0.0
    %4367 = vmatpush1.msra.mxu0 0.0
    %4368 = vmatprep.subr.mxu0 0.0
    %4369 = vmatpush1.msra.mxu0 0.0
    %4370 = vmatprep.subr.mxu0 0.0
    %4371 = vmatpush1.msra.mxu0 0.0
    %4372 = vmatprep.subr.mxu0 0.0
    %4373 = vmatpush1.msra.mxu0 0.0
    %4374 = vmatprep.subr.mxu0 0.0
    %4375 = vmatpush1.msra.mxu0 0.0
    %4376 = vmatprep.subr.mxu0 0.0
    %4377 = vmatpush1.msra.mxu0 0.0
    %4378 = vmatprep.subr.mxu0 0.0
    %4379 = vmatpush1.msra.mxu0 0.0
    %4380 = vmatprep.subr.mxu0 0.0
    %4381 = vmatpush1.msra.mxu0 0.0
    %4382 = vmatprep.subr.mxu0 0.0
    %4383 = vmatpush1.msra.mxu0 0.0
    %4384 = vmatprep.subr.mxu0 0.0
    %4385 = vmatpush1.msra.mxu0 0.0
    %4386 = vmatprep.subr.mxu0 0.0
    %4387 = vmatpush1.msra.mxu0 0.0
    %4388 = vmatprep.subr.mxu0 0.0
    %4389 = vmatpush1.msra.mxu0 0.0
    %4390 = vmatprep.mubr.f32.mxu0 0.0
    %v4391 = vand.u32 %v4089, 4294901760
    %v4392 = vsub.f32 %v4089, %v4391
    %4393 = vmatmul.mubr.f32.gmra.mrb[0].mxu0 %v4392
    %v4394 = vpop.f32.mrb[0].mxu0
    %v4395 = vadd.f32 %v4297, %v4394
    %v4396 = vpop.f32.mrb[0].mxu0
    %4397 = vmatprep.mubr.f32.mxu0 0.0
    %v4398 = vand.u32 %v4092, 4294901760
    %v4399 = vsub.f32 %v4092, %v4398
    %4400 = vmatmul.mubr.f32.gmra.mrb[0].mxu0 %v4399
    %v4401 = vpop.f32.mrb[0].mxu0
    %v4402 = vadd.f32 %v4303, %v4401
    %v4403 = vpop.f32.mrb[0].mxu0
    %4404 = vmatprep.mubr.f32.mxu0 0.0
    %v4405 = vand.u32 %v4095, 4294901760
    %v4406 = vsub.f32 %v4095, %v4405
    %4407 = vmatmul.mubr.f32.gmra.mrb[0].mxu0 %v4406
    %v4408 = vpop.f32.mrb[0].mxu0
    %v4409 = vadd.f32 %v4309, %v4408
    %v4410 = vpop.f32.mrb[0].mxu0
    %4411 = vmatprep.mubr.f32.mxu0 0.0
    %v4412 = vand.u32 %v4098, 4294901760
    %v4413 = vsub.f32 %v4098, %v4412
    %4414 = vmatmul.mubr.f32.gmra.mrb[0].mxu0 %v4413
    %v4415 = vpop.f32.mrb[0].mxu0
    %v4416 = vadd.f32 %v4315, %v4415
    %v4417 = vpop.f32.mrb[0].mxu0
    %4418 = vdwg.mxu0
    %4419 = vmatprep.subr.mxu0 0.0
    %v4420 = vand.u32 %v4077, 4294901760
    %4421 = vmatpush1.msra.mxu0 %v4420
    %4422 = vmatprep.subr.mxu0 0.0
    %v4423 = vand.u32 %v4079, 4294901760
    %4424 = vmatpush1.msra.mxu0 %v4423
    %4425 = vmatprep.subr.mxu0 0.0
    %v4426 = vand.u32 %v4081, 4294901760
    %4427 = vmatpush1.msra.mxu0 %v4426
    %4428 = vmatprep.subr.mxu0 0.0
    %v4429 = vand.u32 %v4083, 4294901760
    %4430 = vmatpush1.msra.mxu0 %v4429
    %4431 = vmatprep.subr.mxu0 0.0
    %4432 = vmatpush1.msra.mxu0 0.0
    %4433 = vmatprep.subr.mxu0 0.0
    %4434 = vmatpush1.msra.mxu0 0.0
    %4435 = vmatprep.subr.mxu0 0.0
    %4436 = vmatpush1.msra.mxu0 0.0
    %4437 = vmatprep.subr.mxu0 0.0
    %4438 = vmatpush1.msra.mxu0 0.0
    %4439 = vmatprep.subr.mxu0 0.0
    %4440 = vmatpush1.msra.mxu0 0.0
    %4441 = vmatprep.subr.mxu0 0.0
    %4442 = vmatpush1.msra.mxu0 0.0
    %4443 = vmatprep.subr.mxu0 0.0
    %4444 = vmatpush1.msra.mxu0 0.0
    %4445 = vmatprep.subr.mxu0 0.0
    %4446 = vmatpush1.msra.mxu0 0.0
    %4447 = vmatprep.subr.mxu0 0.0
    %4448 = vmatpush1.msra.mxu0 0.0
    %4449 = vmatprep.subr.mxu0 0.0
    %4450 = vmatpush1.msra.mxu0 0.0
    %4451 = vmatprep.subr.mxu0 0.0
    %4452 = vmatpush1.msra.mxu0 0.0
    %4453 = vmatprep.subr.mxu0 0.0
    %4454 = vmatpush1.msra.mxu0 0.0
    %4455 = vmatprep.subr.mxu0 0.0
    %4456 = vmatpush1.msra.mxu0 0.0
    %4457 = vmatprep.subr.mxu0 0.0
    %4458 = vmatpush1.msra.mxu0 0.0
    %4459 = vmatprep.subr.mxu0 0.0
    %4460 = vmatpush1.msra.mxu0 0.0
    %4461 = vmatprep.subr.mxu0 0.0
    %4462 = vmatpush1.msra.mxu0 0.0
    %4463 = vmatprep.subr.mxu0 0.0
    %4464 = vmatpush1.msra.mxu0 0.0
    %4465 = vmatprep.subr.mxu0 0.0
    %4466 = vmatpush1.msra.mxu0 0.0
    %4467 = vmatprep.subr.mxu0 0.0
    %4468 = vmatpush1.msra.mxu0 0.0
    %4469 = vmatprep.subr.mxu0 0.0
    %4470 = vmatpush1.msra.mxu0 0.0
    %4471 = vmatprep.subr.mxu0 0.0
    %4472 = vmatpush1.msra.mxu0 0.0
    %4473 = vmatprep.subr.mxu0 0.0
    %4474 = vmatpush1.msra.mxu0 0.0
    %4475 = vmatprep.subr.mxu0 0.0
    %4476 = vmatpush1.msra.mxu0 0.0
    %4477 = vmatprep.subr.mxu0 0.0
    %4478 = vmatpush1.msra.mxu0 0.0
    %4479 = vmatprep.subr.mxu0 0.0
    %4480 = vmatpush1.msra.mxu0 0.0
    %4481 = vmatprep.subr.mxu0 0.0
    %4482 = vmatpush1.msra.mxu0 0.0
    %4483 = vmatprep.subr.mxu0 0.0
    %4484 = vmatpush1.msra.mxu0 0.0
    %4485 = vmatprep.subr.mxu0 0.0
    %4486 = vmatpush1.msra.mxu0 0.0
    %4487 = vmatprep.mubr.f32.mxu0 0.0
    %v4488 = vand.u32 %v4089, 4294901760
    %v4489 = vsub.f32 %v4089, %v4488
    %v4490 = vand.u32 %v4489, 4294901760
    %4491 = vmatmul.mubr.f32.gmra.mrb[0].mxu0 %v4490
    %v4492 = vpop.f32.mrb[0].mxu0
    %v4493 = vadd.f32 %v4395, %v4492
    %v4494 = vpop.f32.mrb[0].mxu0
    %4495 = vmatprep.mubr.f32.mxu0 0.0
    %v4496 = vand.u32 %v4092, 4294901760
    %v4497 = vsub.f32 %v4092, %v4496
    %v4498 = vand.u32 %v4497, 4294901760
    %4499 = vmatmul.mubr.f32.gmra.mrb[0].mxu0 %v4498
    %v4500 = vpop.f32.mrb[0].mxu0
    %v4501 = vadd.f32 %v4402, %v4500
    %v4502 = vpop.f32.mrb[0].mxu0
    %4503 = vmatprep.mubr.f32.mxu0 0.0
    %v4504 = vand.u32 %v4095, 4294901760
    %v4505 = vsub.f32 %v4095, %v4504
    %v4506 = vand.u32 %v4505, 4294901760
    %4507 = vmatmul.mubr.f32.gmra.mrb[0].mxu0 %v4506
    %v4508 = vpop.f32.mrb[0].mxu0
    %v4509 = vadd.f32 %v4409, %v4508
    %v4510 = vpop.f32.mrb[0].mxu0
    %4511 = vmatprep.mubr.f32.mxu0 0.0
    %v4512 = vand.u32 %v4098, 4294901760
    %v4513 = vsub.f32 %v4098, %v4512
    %v4514 = vand.u32 %v4513, 4294901760
    %4515 = vmatmul.mubr.f32.gmra.mrb[0].mxu0 %v4514
    %v4516 = vpop.f32.mrb[0].mxu0
    %v4517 = vadd.f32 %v4416, %v4516
    %v4518 = vpop.f32.mrb[0].mxu0
    %4519 = vdwg.mxu0
    %4520 = vmatprep.subr.mxu0 0.0
    %v4521 = vand.u32 %v4077, 4294901760
    %v4522 = vsub.f32 %v4077, %v4521
    %v4523 = vand.u32 %v4522, 4294901760
    %4524 = vmatpush1.msra.mxu0 %v4523
    %4525 = vmatprep.subr.mxu0 0.0
    %v4526 = vand.u32 %v4079, 4294901760
    %v4527 = vsub.f32 %v4079, %v4526
    %v4528 = vand.u32 %v4527, 4294901760
    %4529 = vmatpush1.msra.mxu0 %v4528
    %4530 = vmatprep.subr.mxu0 0.0
    %v4531 = vand.u32 %v4081, 4294901760
    %v4532 = vsub.f32 %v4081, %v4531
    %v4533 = vand.u32 %v4532, 4294901760
    %4534 = vmatpush1.msra.mxu0 %v4533
    %4535 = vmatprep.subr.mxu0 0.0
    %v4536 = vand.u32 %v4083, 4294901760
    %v4537 = vsub.f32 %v4083, %v4536
    %v4538 = vand.u32 %v4537, 4294901760
    %4539 = vmatpush1.msra.mxu0 %v4538
    %4540 = vmatprep.subr.mxu0 0.0
    %4541 = vmatpush1.msra.mxu0 0.0
    %4542 = vmatprep.subr.mxu0 0.0
    %4543 = vmatpush1.msra.mxu0 0.0
    %4544 = vmatprep.subr.mxu0 0.0
    %4545 = vmatpush1.msra.mxu0 0.0
    %4546 = vmatprep.subr.mxu0 0.0
    %4547 = vmatpush1.msra.mxu0 0.0
    %4548 = vmatprep.subr.mxu0 0.0
    %4549 = vmatpush1.msra.mxu0 0.0
    %4550 = vmatprep.subr.mxu0 0.0
    %4551 = vmatpush1.msra.mxu0 0.0
    %4552 = vmatprep.subr.mxu0 0.0
    %4553 = vmatpush1.msra.mxu0 0.0
    %4554 = vmatprep.subr.mxu0 0.0
    %4555 = vmatpush1.msra.mxu0 0.0
    %4556 = vmatprep.subr.mxu0 0.0
    %4557 = vmatpush1.msra.mxu0 0.0
    %4558 = vmatprep.subr.mxu0 0.0
    %4559 = vmatpush1.msra.mxu0 0.0
    %4560 = vmatprep.subr.mxu0 0.0
    %4561 = vmatpush1.msra.mxu0 0.0
    %4562 = vmatprep.subr.mxu0 0.0
    %4563 = vmatpush1.msra.mxu0 0.0
    %4564 = vmatprep.subr.mxu0 0.0
    %4565 = vmatpush1.msra.mxu0 0.0
    %4566 = vmatprep.subr.mxu0 0.0
    %4567 = vmatpush1.msra.mxu0 0.0
    %4568 = vmatprep.subr.mxu0 0.0
    %4569 = vmatpush1.msra.mxu0 0.0
    %4570 = vmatprep.subr.mxu0 0.0
    %4571 = vmatpush1.msra.mxu0 0.0
    %4572 = vmatprep.subr.mxu0 0.0
    %4573 = vmatpush1.msra.mxu0 0.0
    %4574 = vmatprep.subr.mxu0 0.0
    %4575 = vmatpush1.msra.mxu0 0.0
    %4576 = vmatprep.subr.mxu0 0.0
    %4577 = vmatpush1.msra.mxu0 0.0
    %4578 = vmatprep.subr.mxu0 0.0
    %4579 = vmatpush1.msra.mxu0 0.0
    %4580 = vmatprep.subr.mxu0 0.0
    %4581 = vmatpush1.msra.mxu0 0.0
    %4582 = vmatprep.subr.mxu0 0.0
    %4583 = vmatpush1.msra.mxu0 0.0
    %4584 = vmatprep.subr.mxu0 0.0
    %4585 = vmatpush1.msra.mxu0 0.0
    %4586 = vmatprep.subr.mxu0 0.0
    %4587 = vmatpush1.msra.mxu0 0.0
    %4588 = vmatprep.subr.mxu0 0.0
    %4589 = vmatpush1.msra.mxu0 0.0
    %4590 = vmatprep.subr.mxu0 0.0
    %4591 = vmatpush1.msra.mxu0 0.0
    %4592 = vmatprep.subr.mxu0 0.0
    %4593 = vmatpush1.msra.mxu0 0.0
    %4594 = vmatprep.subr.mxu0 0.0
    %4595 = vmatpush1.msra.mxu0 0.0
    %4596 = vmatprep.mubr.f32.mxu0 0.0
    %v4597 = vand.u32 %v4089, 4294901760
    %4598 = vmatmul.mubr.f32.gmra.mrb[0].mxu0 %v4597
    %v4599 = vpop.f32.mrb[0].mxu0
    %v4600 = vadd.f32 %v4493, %v4599
    %v4601 = vpop.f32.mrb[0].mxu0
    %4602 = vmatprep.mubr.f32.mxu0 0.0
    %v4603 = vand.u32 %v4092, 4294901760
    %4604 = vmatmul.mubr.f32.gmra.mrb[0].mxu0 %v4603
    %v4605 = vpop.f32.mrb[0].mxu0
    %v4606 = vadd.f32 %v4501, %v4605
    %v4607 = vpop.f32.mrb[0].mxu0
    %4608 = vmatprep.mubr.f32.mxu0 0.0
    %v4609 = vand.u32 %v4095, 4294901760
    %4610 = vmatmul.mubr.f32.gmra.mrb[0].mxu0 %v4609
    %v4611 = vpop.f32.mrb[0].mxu0
    %v4612 = vadd.f32 %v4509, %v4611
    %v4613 = vpop.f32.mrb[0].mxu0
    %4614 = vmatprep.mubr.f32.mxu0 0.0
    %v4615 = vand.u32 %v4098, 4294901760
    %4616 = vmatmul.mubr.f32.gmra.mrb[0].mxu0 %v4615
    %v4617 = vpop.f32.mrb[0].mxu0
    %v4618 = vadd.f32 %v4517, %v4617
    %v4619 = vpop.f32.mrb[0].mxu0
    %4620 = vdwg.mxu0
    %4621 = vmatprep.subr.mxu0 0.0
    %v4622 = vand.u32 %v4077, 4294901760
    %4623 = vmatpush1.msra.mxu0 %v4622
    %4624 = vmatprep.subr.mxu0 0.0
    %v4625 = vand.u32 %v4079, 4294901760
    %4626 = vmatpush1.msra.mxu0 %v4625
    %4627 = vmatprep.subr.mxu0 0.0
    %v4628 = vand.u32 %v4081, 4294901760
    %4629 = vmatpush1.msra.mxu0 %v4628
    %4630 = vmatprep.subr.mxu0 0.0
    %v4631 = vand.u32 %v4083, 4294901760
    %4632 = vmatpush1.msra.mxu0 %v4631
    %4633 = vmatprep.subr.mxu0 0.0
    %4634 = vmatpush1.msra.mxu0 0.0
    %4635 = vmatprep.subr.mxu0 0.0
    %4636 = vmatpush1.msra.mxu0 0.0
    %4637 = vmatprep.subr.mxu0 0.0
    %4638 = vmatpush1.msra.mxu0 0.0
    %4639 = vmatprep.subr.mxu0 0.0
    %4640 = vmatpush1.msra.mxu0 0.0
    %4641 = vmatprep.subr.mxu0 0.0
    %4642 = vmatpush1.msra.mxu0 0.0
    %4643 = vmatprep.subr.mxu0 0.0
    %4644 = vmatpush1.msra.mxu0 0.0
    %4645 = vmatprep.subr.mxu0 0.0
    %4646 = vmatpush1.msra.mxu0 0.0
    %4647 = vmatprep.subr.mxu0 0.0
    %4648 = vmatpush1.msra.mxu0 0.0
    %4649 = vmatprep.subr.mxu0 0.0
    %4650 = vmatpush1.msra.mxu0 0.0
    %4651 = vmatprep.subr.mxu0 0.0
    %4652 = vmatpush1.msra.mxu0 0.0
    %4653 = vmatprep.subr.mxu0 0.0
    %4654 = vmatpush1.msra.mxu0 0.0
    %4655 = vmatprep.subr.mxu0 0.0
    %4656 = vmatpush1.msra.mxu0 0.0
    %4657 = vmatprep.subr.mxu0 0.0
    %4658 = vmatpush1.msra.mxu0 0.0
    %4659 = vmatprep.subr.mxu0 0.0
    %4660 = vmatpush1.msra.mxu0 0.0
    %4661 = vmatprep.subr.mxu0 0.0
    %4662 = vmatpush1.msra.mxu0 0.0
    %4663 = vmatprep.subr.mxu0 0.0
    %4664 = vmatpush1.msra.mxu0 0.0
    %4665 = vmatprep.subr.mxu0 0.0
    %4666 = vmatpush1.msra.mxu0 0.0
    %4667 = vmatprep.subr.mxu0 0.0
    %4668 = vmatpush1.msra.mxu0 0.0
    %4669 = vmatprep.subr.mxu0 0.0
    %4670 = vmatpush1.msra.mxu0 0.0
    %4671 = vmatprep.subr.mxu0 0.0
    %4672 = vmatpush1.msra.mxu0 0.0
    %4673 = vmatprep.subr.mxu0 0.0
    %4674 = vmatpush1.msra.mxu0 0.0
    %4675 = vmatprep.subr.mxu0 0.0
    %4676 = vmatpush1.msra.mxu0 0.0
    %4677 = vmatprep.subr.mxu0 0.0
    %4678 = vmatpush1.msra.mxu0 0.0
    %4679 = vmatprep.subr.mxu0 0.0
    %4680 = vmatpush1.msra.mxu0 0.0
    %4681 = vmatprep.subr.mxu0 0.0
    %4682 = vmatpush1.msra.mxu0 0.0
    %4683 = vmatprep.subr.mxu0 0.0
    %4684 = vmatpush1.msra.mxu0 0.0
    %4685 = vmatprep.subr.mxu0 0.0
    %4686 = vmatpush1.msra.mxu0 0.0
    %4687 = vmatprep.subr.mxu0 0.0
    %4688 = vmatpush1.msra.mxu0 0.0
    %4689 = vmatprep.mubr.f32.mxu0 0.0
    %v4690 = vand.u32 %v4089, 4294901760
    %4691 = vmatmul.mubr.f32.gmra.mrb[0].mxu0 %v4690
    %v4692 = vpop.f32.mrb[0].mxu0
    %v4693 = vadd.f32 %v4600, %v4692
    %v4694 = vpop.f32.mrb[0].mxu0
    %4695 = vmatprep.mubr.f32.mxu0 0.0
    %v4696 = vand.u32 %v4092, 4294901760
    %4697 = vmatmul.mubr.f32.gmra.mrb[0].mxu0 %v4696
    %v4698 = vpop.f32.mrb[0].mxu0
    %v4699 = vadd.f32 %v4606, %v4698
    %v4700 = vpop.f32.mrb[0].mxu0
    %4701 = vmatprep.mubr.f32.mxu0 0.0
    %v4702 = vand.u32 %v4095, 4294901760
    %4703 = vmatmul.mubr.f32.gmra.mrb[0].mxu0 %v4702
    %v4704 = vpop.f32.mrb[0].mxu0
    %v4705 = vadd.f32 %v4612, %v4704
    %v4706 = vpop.f32.mrb[0].mxu0
    %4707 = vmatprep.mubr.f32.mxu0 0.0
    %v4708 = vand.u32 %v4098, 4294901760
    %4709 = vmatmul.mubr.f32.gmra.mrb[0].mxu0 %v4708
    %v4710 = vpop.f32.mrb[0].mxu0
    %v4711 = vadd.f32 %v4618, %v4710
    %v4712 = vpop.f32.mrb[0].mxu0
    %4713 = vdwg.mxu0
    %s4714 = scalar_lea.vmem [#allocation8], 96
    %v4715 = vld [vmem:[%s4714] sm:$0xff]
    %v4716 = vld [vmem:[%s4714 + $0x8] sm:$0xff]
    %v4717 = vld [vmem:[%s4714 + $0x10] sm:$0xff]
    %v4718 = vld [vmem:[%s4714 + $0x18] sm:$0xff]
    %4719 = vrot.lane.b32.xlu0 %v711, 104
    %v4720 = vpop.permute.xlu0 %4719
    %4721 = vrot.lane.b32.xlu0 %v712, 104
    %v4722 = vpop.permute.xlu0 %4721
    %4723 = vrot.lane.b32.xlu0 %v713, 104
    %v4724 = vpop.permute.xlu0 %4723
    %4725 = vrot.lane.b32.xlu0 %v714, 104
    %v4726 = vpop.permute.xlu0 %4725
    %4727 = vrot.lane.b32.xlu0 %v690, 72
    %v4728 = vpop.permute.xlu0 %4727
    %4729 = vrot.lane.b32.xlu0 %v696, 72
    %v4730 = vpop.permute.xlu0 %4729
    %4731 = vrot.lane.b32.xlu0 %v702, 72
    %v4732 = vpop.permute.xlu0 %4731
    %4733 = vrot.lane.b32.xlu0 %v708, 72
    %v4734 = vpop.permute.xlu0 %4733
    %v4735 = vsel %vm731, %v4720, 0
    %v4737 = vsel %vm731, %v4722, 0
    %v4739 = vsel %vm731, %v4724, 0
    %v4741 = vsel %vm731, %v4726, 0
    %v4743 = vsel %vm731, %v4728, 0
    %v4745 = vsel %vm731, %v4730, 0
    %v4747 = vsel %vm731, %v4732, 0
    %v4749 = vsel %vm731, %v4734, 0
    %4751 = vmatprep.subr.mxu0 0.0
    %v4752 = vand.u32 %v4743, 4294901760
    %4753 = vmatpush1.xpose.msra.mxu0 %v4752
    %4754 = vmatprep.subr.mxu0 0.0
    %v4755 = vand.u32 %v4745, 4294901760
    %4756 = vmatpush1.xpose.msra.mxu0 %v4755
    %4757 = vmatprep.subr.mxu0 0.0
    %v4758 = vand.u32 %v4747, 4294901760
    %4759 = vmatpush1.xpose.msra.mxu0 %v4758
    %4760 = vmatprep.subr.mxu0 0.0
    %v4761 = vand.u32 %v4749, 4294901760
    %4762 = vmatpush1.xpose.msra.mxu0 %v4761
    %4763 = vmatprep.subr.mxu0 0.0
    %4764 = vmatpush1.xpose.msra.mxu0 0.0
    %4765 = vmatprep.subr.mxu0 0.0
    %4766 = vmatpush1.xpose.msra.mxu0 0.0
    %4767 = vmatprep.subr.mxu0 0.0
    %4768 = vmatpush1.xpose.msra.mxu0 0.0
    %4769 = vmatprep.subr.mxu0 0.0
    %4770 = vmatpush1.xpose.msra.mxu0 0.0
    %4771 = vmatprep.subr.mxu0 0.0
    %4772 = vmatpush1.xpose.msra.mxu0 0.0
    %4773 = vmatprep.subr.mxu0 0.0
    %4774 = vmatpush1.xpose.msra.mxu0 0.0
    %4775 = vmatprep.subr.mxu0 0.0
    %4776 = vmatpush1.xpose.msra.mxu0 0.0
    %4777 = vmatprep.subr.mxu0 0.0
    %4778 = vmatpush1.xpose.msra.mxu0 0.0
    %4779 = vmatprep.subr.mxu0 0.0
    %4780 = vmatpush1.xpose.msra.mxu0 0.0
    %4781 = vmatprep.subr.mxu0 0.0
    %4782 = vmatpush1.xpose.msra.mxu0 0.0
    %4783 = vmatprep.subr.mxu0 0.0
    %4784 = vmatpush1.xpose.msra.mxu0 0.0
    %4785 = vmatprep.subr.mxu0 0.0
    %4786 = vmatpush1.xpose.msra.mxu0 0.0
    %4787 = vmatprep.subr.mxu0 0.0
    %4788 = vmatpush1.xpose.msra.mxu0 0.0
    %4789 = vmatprep.subr.mxu0 0.0
    %4790 = vmatpush1.xpose.msra.mxu0 0.0
    %4791 = vmatprep.subr.mxu0 0.0
    %4792 = vmatpush1.xpose.msra.mxu0 0.0
    %4793 = vmatprep.subr.mxu0 0.0
    %4794 = vmatpush1.xpose.msra.mxu0 0.0
    %4795 = vmatprep.subr.mxu0 0.0
    %4796 = vmatpush1.xpose.msra.mxu0 0.0
    %4797 = vmatprep.subr.mxu0 0.0
    %4798 = vmatpush1.xpose.msra.mxu0 0.0
    %4799 = vmatprep.subr.mxu0 0.0
    %4800 = vmatpush1.xpose.msra.mxu0 0.0
    %4801 = vmatprep.subr.mxu0 0.0
    %4802 = vmatpush1.xpose.msra.mxu0 0.0
    %4803 = vmatprep.subr.mxu0 0.0
    %4804 = vmatpush1.xpose.msra.mxu0 0.0
    %4805 = vmatprep.subr.mxu0 0.0
    %4806 = vmatpush1.xpose.msra.mxu0 0.0
    %4807 = vmatprep.subr.mxu0 0.0
    %4808 = vmatpush1.xpose.msra.mxu0 0.0
    %4809 = vmatprep.subr.mxu0 0.0
    %4810 = vmatpush1.xpose.msra.mxu0 0.0
    %4811 = vmatprep.subr.mxu0 0.0
    %4812 = vmatpush1.xpose.msra.mxu0 0.0
    %4813 = vmatprep.subr.mxu0 0.0
    %4814 = vmatpush1.xpose.msra.mxu0 0.0
    %4815 = vmatprep.subr.mxu0 0.0
    %4816 = vmatpush1.xpose.msra.mxu0 0.0
    %4817 = vmatprep.subr.mxu0 0.0
    %4818 = vmatpush1.xpose.msra.mxu0 0.0
    %4819 = vmatprep.mubr.f32.mxu0 0.0
    %v4820 = vand.u32 %v4735, 4294901760
    %v4821 = vsub.f32 %v4735, %v4820
    %v4822 = vand.u32 %v4821, 4294901760
    %v4823 = vsub.f32 %v4821, %v4822
    %v4824 = vand.u32 %v4823, 4294901760
    %4825 = vmatmul.mubr.f32.gmra.mrb[0].mxu0 %v4824
    %v4826 = vpop.f32.mrb[0].mxu0
    %v4827 = vadd.f32 %v4715, %v4826
    %v4828 = vpop.f32.mrb[0].mxu0
    %4829 = vmatprep.mubr.f32.mxu0 0.0
    %v4830 = vand.u32 %v4737, 4294901760
    %v4831 = vsub.f32 %v4737, %v4830
    %v4832 = vand.u32 %v4831, 4294901760
    %v4833 = vsub.f32 %v4831, %v4832
    %v4834 = vand.u32 %v4833, 4294901760
    %4835 = vmatmul.mubr.f32.gmra.mrb[0].mxu0 %v4834
    %v4836 = vpop.f32.mrb[0].mxu0
    %v4837 = vadd.f32 %v4716, %v4836
    %v4838 = vpop.f32.mrb[0].mxu0
    %4839 = vmatprep.mubr.f32.mxu0 0.0
    %v4840 = vand.u32 %v4739, 4294901760
    %v4841 = vsub.f32 %v4739, %v4840
    %v4842 = vand.u32 %v4841, 4294901760
    %v4843 = vsub.f32 %v4841, %v4842
    %v4844 = vand.u32 %v4843, 4294901760
    %4845 = vmatmul.mubr.f32.gmra.mrb[0].mxu0 %v4844
    %v4846 = vpop.f32.mrb[0].mxu0
    %v4847 = vadd.f32 %v4717, %v4846
    %v4848 = vpop.f32.mrb[0].mxu0
    %4849 = vmatprep.mubr.f32.mxu0 0.0
    %v4850 = vand.u32 %v4741, 4294901760
    %v4851 = vsub.f32 %v4741, %v4850
    %v4852 = vand.u32 %v4851, 4294901760
    %v4853 = vsub.f32 %v4851, %v4852
    %v4854 = vand.u32 %v4853, 4294901760
    %4855 = vmatmul.mubr.f32.gmra.mrb[0].mxu0 %v4854
    %v4856 = vpop.f32.mrb[0].mxu0
    %v4857 = vadd.f32 %v4718, %v4856
    %v4858 = vpop.f32.mrb[0].mxu0
    %4859 = vdwg.mxu0
    %4860 = vmatprep.subr.mxu0 0.0
    %v4861 = vand.u32 %v4743, 4294901760
    %v4862 = vsub.f32 %v4743, %v4861
    %v4863 = vand.u32 %v4862, 4294901760
    %v4864 = vsub.f32 %v4862, %v4863
    %v4865 = vand.u32 %v4864, 4294901760
    %4866 = vmatpush1.xpose.msra.mxu0 %v4865
    %4867 = vmatprep.subr.mxu0 0.0
    %v4868 = vand.u32 %v4745, 4294901760
    %v4869 = vsub.f32 %v4745, %v4868
    %v4870 = vand.u32 %v4869, 4294901760
    %v4871 = vsub.f32 %v4869, %v4870
    %v4872 = vand.u32 %v4871, 4294901760
    %4873 = vmatpush1.xpose.msra.mxu0 %v4872
    %4874 = vmatprep.subr.mxu0 0.0
    %v4875 = vand.u32 %v4747, 4294901760
    %v4876 = vsub.f32 %v4747, %v4875
    %v4877 = vand.u32 %v4876, 4294901760
    %v4878 = vsub.f32 %v4876, %v4877
    %v4879 = vand.u32 %v4878, 4294901760
    %4880 = vmatpush1.xpose.msra.mxu0 %v4879
    %4881 = vmatprep.subr.mxu0 0.0
    %v4882 = vand.u32 %v4749, 4294901760
    %v4883 = vsub.f32 %v4749, %v4882
    %v4884 = vand.u32 %v4883, 4294901760
    %v4885 = vsub.f32 %v4883, %v4884
    %v4886 = vand.u32 %v4885, 4294901760
    %4887 = vmatpush1.xpose.msra.mxu0 %v4886
    %4888 = vmatprep.subr.mxu0 0.0
    %4889 = vmatpush1.xpose.msra.mxu0 0.0
    %4890 = vmatprep.subr.mxu0 0.0
    %4891 = vmatpush1.xpose.msra.mxu0 0.0
    %4892 = vmatprep.subr.mxu0 0.0
    %4893 = vmatpush1.xpose.msra.mxu0 0.0
    %4894 = vmatprep.subr.mxu0 0.0
    %4895 = vmatpush1.xpose.msra.mxu0 0.0
    %4896 = vmatprep.subr.mxu0 0.0
    %4897 = vmatpush1.xpose.msra.mxu0 0.0
    %4898 = vmatprep.subr.mxu0 0.0
    %4899 = vmatpush1.xpose.msra.mxu0 0.0
    %4900 = vmatprep.subr.mxu0 0.0
    %4901 = vmatpush1.xpose.msra.mxu0 0.0
    %4902 = vmatprep.subr.mxu0 0.0
    %4903 = vmatpush1.xpose.msra.mxu0 0.0
    %4904 = vmatprep.subr.mxu0 0.0
    %4905 = vmatpush1.xpose.msra.mxu0 0.0
    %4906 = vmatprep.subr.mxu0 0.0
    %4907 = vmatpush1.xpose.msra.mxu0 0.0
    %4908 = vmatprep.subr.mxu0 0.0
    %4909 = vmatpush1.xpose.msra.mxu0 0.0
    %4910 = vmatprep.subr.mxu0 0.0
    %4911 = vmatpush1.xpose.msra.mxu0 0.0
    %4912 = vmatprep.subr.mxu0 0.0
    %4913 = vmatpush1.xpose.msra.mxu0 0.0
    %4914 = vmatprep.subr.mxu0 0.0
    %4915 = vmatpush1.xpose.msra.mxu0 0.0
    %4916 = vmatprep.subr.mxu0 0.0
    %4917 = vmatpush1.xpose.msra.mxu0 0.0
    %4918 = vmatprep.subr.mxu0 0.0
    %4919 = vmatpush1.xpose.msra.mxu0 0.0
    %4920 = vmatprep.subr.mxu0 0.0
    %4921 = vmatpush1.xpose.msra.mxu0 0.0
    %4922 = vmatprep.subr.mxu0 0.0
    %4923 = vmatpush1.xpose.msra.mxu0 0.0
    %4924 = vmatprep.subr.mxu0 0.0
    %4925 = vmatpush1.xpose.msra.mxu0 0.0
    %4926 = vmatprep.subr.mxu0 0.0
    %4927 = vmatpush1.xpose.msra.mxu0 0.0
    %4928 = vmatprep.subr.mxu0 0.0
    %4929 = vmatpush1.xpose.msra.mxu0 0.0
    %4930 = vmatprep.subr.mxu0 0.0
    %4931 = vmatpush1.xpose.msra.mxu0 0.0
    %4932 = vmatprep.subr.mxu0 0.0
    %4933 = vmatpush1.xpose.msra.mxu0 0.0
    %4934 = vmatprep.subr.mxu0 0.0
    %4935 = vmatpush1.xpose.msra.mxu0 0.0
    %4936 = vmatprep.subr.mxu0 0.0
    %4937 = vmatpush1.xpose.msra.mxu0 0.0
    %4938 = vmatprep.subr.mxu0 0.0
    %4939 = vmatpush1.xpose.msra.mxu0 0.0
    %4940 = vmatprep.subr.mxu0 0.0
    %4941 = vmatpush1.xpose.msra.mxu0 0.0
    %4942 = vmatprep.subr.mxu0 0.0
    %4943 = vmatpush1.xpose.msra.mxu0 0.0
    %4944 = vmatprep.mubr.f32.mxu0 0.0
    %v4945 = vand.u32 %v4735, 4294901760
    %4946 = vmatmul.mubr.f32.gmra.mrb[0].mxu0 %v4945
    %v4947 = vpop.f32.mrb[0].mxu0
    %v4948 = vadd.f32 %v4827, %v4947
    %v4949 = vpop.f32.mrb[0].mxu0
    %4950 = vmatprep.mubr.f32.mxu0 0.0
    %v4951 = vand.u32 %v4737, 4294901760
    %4952 = vmatmul.mubr.f32.gmra.mrb[0].mxu0 %v4951
    %v4953 = vpop.f32.mrb[0].mxu0
    %v4954 = vadd.f32 %v4837, %v4953
    %v4955 = vpop.f32.mrb[0].mxu0
    %4956 = vmatprep.mubr.f32.mxu0 0.0
    %v4957 = vand.u32 %v4739, 4294901760
    %4958 = vmatmul.mubr.f32.gmra.mrb[0].mxu0 %v4957
    %v4959 = vpop.f32.mrb[0].mxu0
    %v4960 = vadd.f32 %v4847, %v4959
    %v4961 = vpop.f32.mrb[0].mxu0
    %4962 = vmatprep.mubr.f32.mxu0 0.0
    %v4963 = vand.u32 %v4741, 4294901760
    %4964 = vmatmul.mubr.f32.gmra.mrb[0].mxu0 %v4963
    %v4965 = vpop.f32.mrb[0].mxu0
    %v4966 = vadd.f32 %v4857, %v4965
    %v4967 = vpop.f32.mrb[0].mxu0
    %4968 = vdwg.mxu0
    %4969 = vmatprep.subr.mxu0 0.0
    %v4970 = vand.u32 %v4743, 4294901760
    %v4971 = vsub.f32 %v4743, %v4970
    %4972 = vmatpush1.xpose.msra.mxu0 %v4971
    %4973 = vmatprep.subr.mxu0 0.0
    %v4974 = vand.u32 %v4745, 4294901760
    %v4975 = vsub.f32 %v4745, %v4974
    %4976 = vmatpush1.xpose.msra.mxu0 %v4975
    %4977 = vmatprep.subr.mxu0 0.0
    %v4978 = vand.u32 %v4747, 4294901760
    %v4979 = vsub.f32 %v4747, %v4978
    %4980 = vmatpush1.xpose.msra.mxu0 %v4979
    %4981 = vmatprep.subr.mxu0 0.0
    %v4982 = vand.u32 %v4749, 4294901760
    %v4983 = vsub.f32 %v4749, %v4982
    %4984 = vmatpush1.xpose.msra.mxu0 %v4983
    %4985 = vmatprep.subr.mxu0 0.0
    %4986 = vmatpush1.xpose.msra.mxu0 0.0
    %4987 = vmatprep.subr.mxu0 0.0
    %4988 = vmatpush1.xpose.msra.mxu0 0.0
    %4989 = vmatprep.subr.mxu0 0.0
    %4990 = vmatpush1.xpose.msra.mxu0 0.0
    %4991 = vmatprep.subr.mxu0 0.0
    %4992 = vmatpush1.xpose.msra.mxu0 0.0
    %4993 = vmatprep.subr.mxu0 0.0
    %4994 = vmatpush1.xpose.msra.mxu0 0.0
    %4995 = vmatprep.subr.mxu0 0.0
    %4996 = vmatpush1.xpose.msra.mxu0 0.0
    %4997 = vmatprep.subr.mxu0 0.0
    %4998 = vmatpush1.xpose.msra.mxu0 0.0
    %4999 = vmatprep.subr.mxu0 0.0
    %5000 = vmatpush1.xpose.msra.mxu0 0.0
    %5001 = vmatprep.subr.mxu0 0.0
    %5002 = vmatpush1.xpose.msra.mxu0 0.0
    %5003 = vmatprep.subr.mxu0 0.0
    %5004 = vmatpush1.xpose.msra.mxu0 0.0
    %5005 = vmatprep.subr.mxu0 0.0
    %5006 = vmatpush1.xpose.msra.mxu0 0.0
    %5007 = vmatprep.subr.mxu0 0.0
    %5008 = vmatpush1.xpose.msra.mxu0 0.0
    %5009 = vmatprep.subr.mxu0 0.0
    %5010 = vmatpush1.xpose.msra.mxu0 0.0
    %5011 = vmatprep.subr.mxu0 0.0
    %5012 = vmatpush1.xpose.msra.mxu0 0.0
    %5013 = vmatprep.subr.mxu0 0.0
    %5014 = vmatpush1.xpose.msra.mxu0 0.0
    %5015 = vmatprep.subr.mxu0 0.0
    %5016 = vmatpush1.xpose.msra.mxu0 0.0
    %5017 = vmatprep.subr.mxu0 0.0
    %5018 = vmatpush1.xpose.msra.mxu0 0.0
    %5019 = vmatprep.subr.mxu0 0.0
    %5020 = vmatpush1.xpose.msra.mxu0 0.0
    %5021 = vmatprep.subr.mxu0 0.0
    %5022 = vmatpush1.xpose.msra.mxu0 0.0
    %5023 = vmatprep.subr.mxu0 0.0
    %5024 = vmatpush1.xpose.msra.mxu0 0.0
    %5025 = vmatprep.subr.mxu0 0.0
    %5026 = vmatpush1.xpose.msra.mxu0 0.0
    %5027 = vmatprep.subr.mxu0 0.0
    %5028 = vmatpush1.xpose.msra.mxu0 0.0
    %5029 = vmatprep.subr.mxu0 0.0
    %5030 = vmatpush1.xpose.msra.mxu0 0.0
    %5031 = vmatprep.subr.mxu0 0.0
    %5032 = vmatpush1.xpose.msra.mxu0 0.0
    %5033 = vmatprep.subr.mxu0 0.0
    %5034 = vmatpush1.xpose.msra.mxu0 0.0
    %5035 = vmatprep.subr.mxu0 0.0
    %5036 = vmatpush1.xpose.msra.mxu0 0.0
    %5037 = vmatprep.subr.mxu0 0.0
    %5038 = vmatpush1.xpose.msra.mxu0 0.0
    %5039 = vmatprep.subr.mxu0 0.0
    %5040 = vmatpush1.xpose.msra.mxu0 0.0
    %5041 = vmatprep.mubr.f32.mxu0 0.0
    %v5042 = vand.u32 %v4735, 4294901760
    %v5043 = vsub.f32 %v4735, %v5042
    %5044 = vmatmul.mubr.f32.gmra.mrb[0].mxu0 %v5043
    %v5045 = vpop.f32.mrb[0].mxu0
    %v5046 = vadd.f32 %v4948, %v5045
    %v5047 = vpop.f32.mrb[0].mxu0
    %5048 = vmatprep.mubr.f32.mxu0 0.0
    %v5049 = vand.u32 %v4737, 4294901760
    %v5050 = vsub.f32 %v4737, %v5049
    %5051 = vmatmul.mubr.f32.gmra.mrb[0].mxu0 %v5050
    %v5052 = vpop.f32.mrb[0].mxu0
    %v5053 = vadd.f32 %v4954, %v5052
    %v5054 = vpop.f32.mrb[0].mxu0
    %5055 = vmatprep.mubr.f32.mxu0 0.0
    %v5056 = vand.u32 %v4739, 4294901760
    %v5057 = vsub.f32 %v4739, %v5056
    %5058 = vmatmul.mubr.f32.gmra.mrb[0].mxu0 %v5057
    %v5059 = vpop.f32.mrb[0].mxu0
    %v5060 = vadd.f32 %v4960, %v5059
    %v5061 = vpop.f32.mrb[0].mxu0
    %5062 = vmatprep.mubr.f32.mxu0 0.0
    %v5063 = vand.u32 %v4741, 4294901760
    %v5064 = vsub.f32 %v4741, %v5063
    %5065 = vmatmul.mubr.f32.gmra.mrb[0].mxu0 %v5064
    %v5066 = vpop.f32.mrb[0].mxu0
    %v5067 = vadd.f32 %v4966, %v5066
    %v5068 = vpop.f32.mrb[0].mxu0
    %5069 = vdwg.mxu0
    %5070 = vmatprep.subr.mxu0 0.0
    %v5071 = vand.u32 %v4743, 4294901760
    %5072 = vmatpush1.xpose.msra.mxu0 %v5071
    %5073 = vmatprep.subr.mxu0 0.0
    %v5074 = vand.u32 %v4745, 4294901760
    %5075 = vmatpush1.xpose.msra.mxu0 %v5074
    %5076 = vmatprep.subr.mxu0 0.0
    %v5077 = vand.u32 %v4747, 4294901760
    %5078 = vmatpush1.xpose.msra.mxu0 %v5077
    %5079 = vmatprep.subr.mxu0 0.0
    %v5080 = vand.u32 %v4749, 4294901760
    %5081 = vmatpush1.xpose.msra.mxu0 %v5080
    %5082 = vmatprep.subr.mxu0 0.0
    %5083 = vmatpush1.xpose.msra.mxu0 0.0
    %5084 = vmatprep.subr.mxu0 0.0
    %5085 = vmatpush1.xpose.msra.mxu0 0.0
    %5086 = vmatprep.subr.mxu0 0.0
    %5087 = vmatpush1.xpose.msra.mxu0 0.0
    %5088 = vmatprep.subr.mxu0 0.0
    %5089 = vmatpush1.xpose.msra.mxu0 0.0
    %5090 = vmatprep.subr.mxu0 0.0
    %5091 = vmatpush1.xpose.msra.mxu0 0.0
    %5092 = vmatprep.subr.mxu0 0.0
    %5093 = vmatpush1.xpose.msra.mxu0 0.0
    %5094 = vmatprep.subr.mxu0 0.0
    %5095 = vmatpush1.xpose.msra.mxu0 0.0
    %5096 = vmatprep.subr.mxu0 0.0
    %5097 = vmatpush1.xpose.msra.mxu0 0.0
    %5098 = vmatprep.subr.mxu0 0.0
    %5099 = vmatpush1.xpose.msra.mxu0 0.0
    %5100 = vmatprep.subr.mxu0 0.0
    %5101 = vmatpush1.xpose.msra.mxu0 0.0
    %5102 = vmatprep.subr.mxu0 0.0
    %5103 = vmatpush1.xpose.msra.mxu0 0.0
    %5104 = vmatprep.subr.mxu0 0.0
    %5105 = vmatpush1.xpose.msra.mxu0 0.0
    %5106 = vmatprep.subr.mxu0 0.0
    %5107 = vmatpush1.xpose.msra.mxu0 0.0
    %5108 = vmatprep.subr.mxu0 0.0
    %5109 = vmatpush1.xpose.msra.mxu0 0.0
    %5110 = vmatprep.subr.mxu0 0.0
    %5111 = vmatpush1.xpose.msra.mxu0 0.0
    %5112 = vmatprep.subr.mxu0 0.0
    %5113 = vmatpush1.xpose.msra.mxu0 0.0
    %5114 = vmatprep.subr.mxu0 0.0
    %5115 = vmatpush1.xpose.msra.mxu0 0.0
    %5116 = vmatprep.subr.mxu0 0.0
    %5117 = vmatpush1.xpose.msra.mxu0 0.0
    %5118 = vmatprep.subr.mxu0 0.0
    %5119 = vmatpush1.xpose.msra.mxu0 0.0
    %5120 = vmatprep.subr.mxu0 0.0
    %5121 = vmatpush1.xpose.msra.mxu0 0.0
    %5122 = vmatprep.subr.mxu0 0.0
    %5123 = vmatpush1.xpose.msra.mxu0 0.0
    %5124 = vmatprep.subr.mxu0 0.0
    %5125 = vmatpush1.xpose.msra.mxu0 0.0
    %5126 = vmatprep.subr.mxu0 0.0
    %5127 = vmatpush1.xpose.msra.mxu0 0.0
    %5128 = vmatprep.subr.mxu0 0.0
    %5129 = vmatpush1.xpose.msra.mxu0 0.0
    %5130 = vmatprep.subr.mxu0 0.0
    %5131 = vmatpush1.xpose.msra.mxu0 0.0
    %5132 = vmatprep.subr.mxu0 0.0
    %5133 = vmatpush1.xpose.msra.mxu0 0.0
    %5134 = vmatprep.subr.mxu0 0.0
    %5135 = vmatpush1.xpose.msra.mxu0 0.0
    %5136 = vmatprep.subr.mxu0 0.0
    %5137 = vmatpush1.xpose.msra.mxu0 0.0
    %5138 = vmatprep.mubr.f32.mxu0 0.0
    %v5139 = vand.u32 %v4735, 4294901760
    %v5140 = vsub.f32 %v4735, %v5139
    %v5141 = vand.u32 %v5140, 4294901760
    %5142 = vmatmul.mubr.f32.gmra.mrb[0].mxu0 %v5141
    %v5143 = vpop.f32.mrb[0].mxu0
    %v5144 = vadd.f32 %v5046, %v5143
    %v5145 = vpop.f32.mrb[0].mxu0
    %5146 = vmatprep.mubr.f32.mxu0 0.0
    %v5147 = vand.u32 %v4737, 4294901760
    %v5148 = vsub.f32 %v4737, %v5147
    %v5149 = vand.u32 %v5148, 4294901760
    %5150 = vmatmul.mubr.f32.gmra.mrb[0].mxu0 %v5149
    %v5151 = vpop.f32.mrb[0].mxu0
    %v5152 = vadd.f32 %v5053, %v5151
    %v5153 = vpop.f32.mrb[0].mxu0
    %5154 = vmatprep.mubr.f32.mxu0 0.0
    %v5155 = vand.u32 %v4739, 4294901760
    %v5156 = vsub.f32 %v4739, %v5155
    %v5157 = vand.u32 %v5156, 4294901760
    %5158 = vmatmul.mubr.f32.gmra.mrb[0].mxu0 %v5157
    %v5159 = vpop.f32.mrb[0].mxu0
    %v5160 = vadd.f32 %v5060, %v5159
    %v5161 = vpop.f32.mrb[0].mxu0
    %5162 = vmatprep.mubr.f32.mxu0 0.0
    %v5163 = vand.u32 %v4741, 4294901760
    %v5164 = vsub.f32 %v4741, %v5163
    %v5165 = vand.u32 %v5164, 4294901760
    %5166 = vmatmul.mubr.f32.gmra.mrb[0].mxu0 %v5165
    %v5167 = vpop.f32.mrb[0].mxu0
    %v5168 = vadd.f32 %v5067, %v5167
    %v5169 = vpop.f32.mrb[0].mxu0
    %5170 = vdwg.mxu0
    %5171 = vmatprep.subr.mxu0 0.0
    %v5172 = vand.u32 %v4743, 4294901760
    %v5173 = vsub.f32 %v4743, %v5172
    %v5174 = vand.u32 %v5173, 4294901760
    %5175 = vmatpush1.xpose.msra.mxu0 %v5174
    %5176 = vmatprep.subr.mxu0 0.0
    %v5177 = vand.u32 %v4745, 4294901760
    %v5178 = vsub.f32 %v4745, %v5177
    %v5179 = vand.u32 %v5178, 4294901760
    %5180 = vmatpush1.xpose.msra.mxu0 %v5179
    %5181 = vmatprep.subr.mxu0 0.0
    %v5182 = vand.u32 %v4747, 4294901760
    %v5183 = vsub.f32 %v4747, %v5182
    %v5184 = vand.u32 %v5183, 4294901760
    %5185 = vmatpush1.xpose.msra.mxu0 %v5184
    %5186 = vmatprep.subr.mxu0 0.0
    %v5187 = vand.u32 %v4749, 4294901760
    %v5188 = vsub.f32 %v4749, %v5187
    %v5189 = vand.u32 %v5188, 4294901760
    %5190 = vmatpush1.xpose.msra.mxu0 %v5189
    %5191 = vmatprep.subr.mxu0 0.0
    %5192 = vmatpush1.xpose.msra.mxu0 0.0
    %5193 = vmatprep.subr.mxu0 0.0
    %5194 = vmatpush1.xpose.msra.mxu0 0.0
    %5195 = vmatprep.subr.mxu0 0.0
    %5196 = vmatpush1.xpose.msra.mxu0 0.0
    %5197 = vmatprep.subr.mxu0 0.0
    %5198 = vmatpush1.xpose.msra.mxu0 0.0
    %5199 = vmatprep.subr.mxu0 0.0
    %5200 = vmatpush1.xpose.msra.mxu0 0.0
    %5201 = vmatprep.subr.mxu0 0.0
    %5202 = vmatpush1.xpose.msra.mxu0 0.0
    %5203 = vmatprep.subr.mxu0 0.0
    %5204 = vmatpush1.xpose.msra.mxu0 0.0
    %5205 = vmatprep.subr.mxu0 0.0
    %5206 = vmatpush1.xpose.msra.mxu0 0.0
    %5207 = vmatprep.subr.mxu0 0.0
    %5208 = vmatpush1.xpose.msra.mxu0 0.0
    %5209 = vmatprep.subr.mxu0 0.0
    %5210 = vmatpush1.xpose.msra.mxu0 0.0
    %5211 = vmatprep.subr.mxu0 0.0
    %5212 = vmatpush1.xpose.msra.mxu0 0.0
    %5213 = vmatprep.subr.mxu0 0.0
    %5214 = vmatpush1.xpose.msra.mxu0 0.0
    %5215 = vmatprep.subr.mxu0 0.0
    %5216 = vmatpush1.xpose.msra.mxu0 0.0
    %5217 = vmatprep.subr.mxu0 0.0
    %5218 = vmatpush1.xpose.msra.mxu0 0.0
    %5219 = vmatprep.subr.mxu0 0.0
    %5220 = vmatpush1.xpose.msra.mxu0 0.0
    %5221 = vmatprep.subr.mxu0 0.0
    %5222 = vmatpush1.xpose.msra.mxu0 0.0
    %5223 = vmatprep.subr.mxu0 0.0
    %5224 = vmatpush1.xpose.msra.mxu0 0.0
    %5225 = vmatprep.subr.mxu0 0.0
    %5226 = vmatpush1.xpose.msra.mxu0 0.0
    %5227 = vmatprep.subr.mxu0 0.0
    %5228 = vmatpush1.xpose.msra.mxu0 0.0
    %5229 = vmatprep.subr.mxu0 0.0
    %5230 = vmatpush1.xpose.msra.mxu0 0.0
    %5231 = vmatprep.subr.mxu0 0.0
    %5232 = vmatpush1.xpose.msra.mxu0 0.0
    %5233 = vmatprep.subr.mxu0 0.0
    %5234 = vmatpush1.xpose.msra.mxu0 0.0
    %5235 = vmatprep.subr.mxu0 0.0
    %5236 = vmatpush1.xpose.msra.mxu0 0.0
    %5237 = vmatprep.subr.mxu0 0.0
    %5238 = vmatpush1.xpose.msra.mxu0 0.0
    %5239 = vmatprep.subr.mxu0 0.0
    %5240 = vmatpush1.xpose.msra.mxu0 0.0
    %5241 = vmatprep.subr.mxu0 0.0
    %5242 = vmatpush1.xpose.msra.mxu0 0.0
    %5243 = vmatprep.subr.mxu0 0.0
    %5244 = vmatpush1.xpose.msra.mxu0 0.0
    %5245 = vmatprep.subr.mxu0 0.0
    %5246 = vmatpush1.xpose.msra.mxu0 0.0
    %5247 = vmatprep.mubr.f32.mxu0 0.0
    %v5248 = vand.u32 %v4735, 4294901760
    %5249 = vmatmul.mubr.f32.gmra.mrb[0].mxu0 %v5248
    %v5250 = vpop.f32.mrb[0].mxu0
    %v5251 = vadd.f32 %v5144, %v5250
    %v5252 = vpop.f32.mrb[0].mxu0
    %5253 = vmatprep.mubr.f32.mxu0 0.0
    %v5254 = vand.u32 %v4737, 4294901760
    %5255 = vmatmul.mubr.f32.gmra.mrb[0].mxu0 %v5254
    %v5256 = vpop.f32.mrb[0].mxu0
    %v5257 = vadd.f32 %v5152, %v5256
    %v5258 = vpop.f32.mrb[0].mxu0
    %5259 = vmatprep.mubr.f32.mxu0 0.0
    %v5260 = vand.u32 %v4739, 4294901760
    %5261 = vmatmul.mubr.f32.gmra.mrb[0].mxu0 %v5260
    %v5262 = vpop.f32.mrb[0].mxu0
    %v5263 = vadd.f32 %v5160, %v5262
    %v5264 = vpop.f32.mrb[0].mxu0
    %5265 = vmatprep.mubr.f32.mxu0 0.0
    %v5266 = vand.u32 %v4741, 4294901760
    %5267 = vmatmul.mubr.f32.gmra.mrb[0].mxu0 %v5266
    %v5268 = vpop.f32.mrb[0].mxu0
    %v5269 = vadd.f32 %v5168, %v5268
    %v5270 = vpop.f32.mrb[0].mxu0
    %5271 = vdwg.mxu0
    %5272 = vmatprep.subr.mxu0 0.0
    %v5273 = vand.u32 %v4743, 4294901760
    %5274 = vmatpush1.xpose.msra.mxu0 %v5273
    %5275 = vmatprep.subr.mxu0 0.0
    %v5276 = vand.u32 %v4745, 4294901760
    %5277 = vmatpush1.xpose.msra.mxu0 %v5276
    %5278 = vmatprep.subr.mxu0 0.0
    %v5279 = vand.u32 %v4747, 4294901760
    %5280 = vmatpush1.xpose.msra.mxu0 %v5279
    %5281 = vmatprep.subr.mxu0 0.0
    %v5282 = vand.u32 %v4749, 4294901760
    %5283 = vmatpush1.xpose.msra.mxu0 %v5282
    %5284 = vmatprep.subr.mxu0 0.0
    %5285 = vmatpush1.xpose.msra.mxu0 0.0
    %5286 = vmatprep.subr.mxu0 0.0
    %5287 = vmatpush1.xpose.msra.mxu0 0.0
    %5288 = vmatprep.subr.mxu0 0.0
    %5289 = vmatpush1.xpose.msra.mxu0 0.0
    %5290 = vmatprep.subr.mxu0 0.0
    %5291 = vmatpush1.xpose.msra.mxu0 0.0
    %5292 = vmatprep.subr.mxu0 0.0
    %5293 = vmatpush1.xpose.msra.mxu0 0.0
    %5294 = vmatprep.subr.mxu0 0.0
    %5295 = vmatpush1.xpose.msra.mxu0 0.0
    %5296 = vmatprep.subr.mxu0 0.0
    %5297 = vmatpush1.xpose.msra.mxu0 0.0
    %5298 = vmatprep.subr.mxu0 0.0
    %5299 = vmatpush1.xpose.msra.mxu0 0.0
    %5300 = vmatprep.subr.mxu0 0.0
    %5301 = vmatpush1.xpose.msra.mxu0 0.0
    %5302 = vmatprep.subr.mxu0 0.0
    %5303 = vmatpush1.xpose.msra.mxu0 0.0
    %5304 = vmatprep.subr.mxu0 0.0
    %5305 = vmatpush1.xpose.msra.mxu0 0.0
    %5306 = vmatprep.subr.mxu0 0.0
    %5307 = vmatpush1.xpose.msra.mxu0 0.0
    %5308 = vmatprep.subr.mxu0 0.0
    %5309 = vmatpush1.xpose.msra.mxu0 0.0
    %5310 = vmatprep.subr.mxu0 0.0
    %5311 = vmatpush1.xpose.msra.mxu0 0.0
    %5312 = vmatprep.subr.mxu0 0.0
    %5313 = vmatpush1.xpose.msra.mxu0 0.0
    %5314 = vmatprep.subr.mxu0 0.0
    %5315 = vmatpush1.xpose.msra.mxu0 0.0
    %5316 = vmatprep.subr.mxu0 0.0
    %5317 = vmatpush1.xpose.msra.mxu0 0.0
    %5318 = vmatprep.subr.mxu0 0.0
    %5319 = vmatpush1.xpose.msra.mxu0 0.0
    %5320 = vmatprep.subr.mxu0 0.0
    %5321 = vmatpush1.xpose.msra.mxu0 0.0
    %5322 = vmatprep.subr.mxu0 0.0
    %5323 = vmatpush1.xpose.msra.mxu0 0.0
    %5324 = vmatprep.subr.mxu0 0.0
    %5325 = vmatpush1.xpose.msra.mxu0 0.0
    %5326 = vmatprep.subr.mxu0 0.0
    %5327 = vmatpush1.xpose.msra.mxu0 0.0
    %5328 = vmatprep.subr.mxu0 0.0
    %5329 = vmatpush1.xpose.msra.mxu0 0.0
    %5330 = vmatprep.subr.mxu0 0.0
    %5331 = vmatpush1.xpose.msra.mxu0 0.0
    %5332 = vmatprep.subr.mxu0 0.0
    %5333 = vmatpush1.xpose.msra.mxu0 0.0
    %5334 = vmatprep.subr.mxu0 0.0
    %5335 = vmatpush1.xpose.msra.mxu0 0.0
    %5336 = vmatprep.subr.mxu0 0.0
    %5337 = vmatpush1.xpose.msra.mxu0 0.0
    %5338 = vmatprep.subr.mxu0 0.0
    %5339 = vmatpush1.xpose.msra.mxu0 0.0
    %5340 = vmatprep.mubr.f32.mxu0 0.0
    %v5341 = vand.u32 %v4735, 4294901760
    %5342 = vmatmul.mubr.f32.gmra.mrb[0].mxu0 %v5341
    %v5343 = vpop.f32.mrb[0].mxu0
    %v5344 = vadd.f32 %v5251, %v5343
    %v5345 = vpop.f32.mrb[0].mxu0
    %5346 = vmatprep.mubr.f32.mxu0 0.0
    %v5347 = vand.u32 %v4737, 4294901760
    %5348 = vmatmul.mubr.f32.gmra.mrb[0].mxu0 %v5347
    %v5349 = vpop.f32.mrb[0].mxu0
    %v5350 = vadd.f32 %v5257, %v5349
    %v5351 = vpop.f32.mrb[0].mxu0
    %5352 = vmatprep.mubr.f32.mxu0 0.0
    %v5353 = vand.u32 %v4739, 4294901760
    %5354 = vmatmul.mubr.f32.gmra.mrb[0].mxu0 %v5353
    %v5355 = vpop.f32.mrb[0].mxu0
    %v5356 = vadd.f32 %v5263, %v5355
    %v5357 = vpop.f32.mrb[0].mxu0
    %5358 = vmatprep.mubr.f32.mxu0 0.0
    %v5359 = vand.u32 %v4741, 4294901760
    %5360 = vmatmul.mubr.f32.gmra.mrb[0].mxu0 %v5359
    %v5361 = vpop.f32.mrb[0].mxu0
    %v5362 = vadd.f32 %v5269, %v5361
    %v5363 = vpop.f32.mrb[0].mxu0
    %5364 = vdwg.mxu0
    %v5365 = vsel %vm84, %v5344, -inf
    %5366 = vmax.xlane.f32.xlu0 %v5365
    %v5367 = vpop.xlane.xlu0 %5366
    %v5368 = vsel %vm84, %v5350, -inf
    %5369 = vmax.xlane.f32.xlu0 %v5368
    %v5370 = vpop.xlane.xlu0 %5369
    %v5371 = vsel %vm84, %v5356, -inf
    %5372 = vmax.xlane.f32.xlu0 %v5371
    %v5373 = vpop.xlane.xlu0 %5372
    %v5374 = vsel %vm84, %v5362, -inf
    %5375 = vmax.xlane.f32.xlu0 %v5374
    %v5376 = vpop.xlane.xlu0 %5375
    %v5377 = vsub.f32 %v5344, %v5367
    %v5378 = vsub.f32 %v5350, %v5370
    %v5379 = vsub.f32 %v5356, %v5373
    %v5380 = vsub.f32 %v5362, %v5376
    %v5381 = vmul.f32 %v5377, 1.442695
    %v5382 = vpow.pop %v5381
    %v5383 = vmul.f32 %v5378, 1.442695
    %v5384 = vpow.pop %v5383
    %v5385 = vmul.f32 %v5379, 1.442695
    %v5386 = vpow.pop %v5385
    %v5387 = vmul.f32 %v5380, 1.442695
    %v5388 = vpow.pop %v5387
    %v5389 = vsel %vm84, %v5382, 0.0
    %5390 = vadd.xlane.f32.xlu0 %v5389
    %v5391 = vpop.xlane.xlu0 %5390
    %v5392 = vsel %vm84, %v5384, 0.0
    %5393 = vadd.xlane.f32.xlu0 %v5392
    %v5394 = vpop.xlane.xlu0 %5393
    %v5395 = vsel %vm84, %v5386, 0.0
    %5396 = vadd.xlane.f32.xlu0 %v5395
    %v5397 = vpop.xlane.xlu0 %5396
    %v5398 = vsel %vm84, %v5388, 0.0
    %5399 = vadd.xlane.f32.xlu0 %v5398
    %v5400 = vpop.xlane.xlu0 %5399
    %v5401 = vrcp.pop %v5391
    %v5402 = vrcp.pop %v5394
    %v5403 = vrcp.pop %v5397
    %v5404 = vrcp.pop %v5400
    %v5405 = vmul.f32 %v5382, %v5401
    %v5406 = vmul.f32 %v5384, %v5402
    %v5407 = vmul.f32 %v5386, %v5403
    %v5408 = vmul.f32 %v5388, %v5404
    %5409 = vrot.lane.b32.xlu0 %v690, 40
    %v5410 = vpop.permute.xlu0 %5409
    %5411 = vrot.lane.b32.xlu0 %v696, 40
    %v5412 = vpop.permute.xlu0 %5411
    %5413 = vrot.lane.b32.xlu0 %v702, 40
    %v5414 = vpop.permute.xlu0 %5413
    %5415 = vrot.lane.b32.xlu0 %v708, 40
    %v5416 = vpop.permute.xlu0 %5415
    %v5422 = vsel %vm84, %v5405, 0
    %v5425 = vsel %vm84, %v5406, 0
    %v5428 = vsel %vm84, %v5407, 0
    %v5431 = vsel %vm84, %v5408, 0
    %5433 = vmatprep.subr.mxu0 0.0
    %v5434 = vand.u32 %v5410, 4294901760
    %5435 = vmatpush1.msra.mxu0 %v5434
    %5436 = vmatprep.subr.mxu0 0.0
    %v5437 = vand.u32 %v5412, 4294901760
    %5438 = vmatpush1.msra.mxu0 %v5437
    %5439 = vmatprep.subr.mxu0 0.0
    %v5440 = vand.u32 %v5414, 4294901760
    %5441 = vmatpush1.msra.mxu0 %v5440
    %5442 = vmatprep.subr.mxu0 0.0
    %v5443 = vand.u32 %v5416, 4294901760
    %5444 = vmatpush1.msra.mxu0 %v5443
    %5445 = vmatprep.subr.mxu0 0.0
    %5446 = vmatpush1.msra.mxu0 0.0
    %5447 = vmatprep.subr.mxu0 0.0
    %5448 = vmatpush1.msra.mxu0 0.0
    %5449 = vmatprep.subr.mxu0 0.0
    %5450 = vmatpush1.msra.mxu0 0.0
    %5451 = vmatprep.subr.mxu0 0.0
    %5452 = vmatpush1.msra.mxu0 0.0
    %5453 = vmatprep.subr.mxu0 0.0
    %5454 = vmatpush1.msra.mxu0 0.0
    %5455 = vmatprep.subr.mxu0 0.0
    %5456 = vmatpush1.msra.mxu0 0.0
    %5457 = vmatprep.subr.mxu0 0.0
    %5458 = vmatpush1.msra.mxu0 0.0
    %5459 = vmatprep.subr.mxu0 0.0
    %5460 = vmatpush1.msra.mxu0 0.0
    %5461 = vmatprep.subr.mxu0 0.0
    %5462 = vmatpush1.msra.mxu0 0.0
    %5463 = vmatprep.subr.mxu0 0.0
    %5464 = vmatpush1.msra.mxu0 0.0
    %5465 = vmatprep.subr.mxu0 0.0
    %5466 = vmatpush1.msra.mxu0 0.0
    %5467 = vmatprep.subr.mxu0 0.0
    %5468 = vmatpush1.msra.mxu0 0.0
    %5469 = vmatprep.subr.mxu0 0.0
    %5470 = vmatpush1.msra.mxu0 0.0
    %5471 = vmatprep.subr.mxu0 0.0
    %5472 = vmatpush1.msra.mxu0 0.0
    %5473 = vmatprep.subr.mxu0 0.0
    %5474 = vmatpush1.msra.mxu0 0.0
    %5475 = vmatprep.subr.mxu0 0.0
    %5476 = vmatpush1.msra.mxu0 0.0
    %5477 = vmatprep.subr.mxu0 0.0
    %5478 = vmatpush1.msra.mxu0 0.0
    %5479 = vmatprep.subr.mxu0 0.0
    %5480 = vmatpush1.msra.mxu0 0.0
    %5481 = vmatprep.subr.mxu0 0.0
    %5482 = vmatpush1.msra.mxu0 0.0
    %5483 = vmatprep.subr.mxu0 0.0
    %5484 = vmatpush1.msra.mxu0 0.0
    %5485 = vmatprep.subr.mxu0 0.0
    %5486 = vmatpush1.msra.mxu0 0.0
    %5487 = vmatprep.subr.mxu0 0.0
    %5488 = vmatpush1.msra.mxu0 0.0
    %5489 = vmatprep.subr.mxu0 0.0
    %5490 = vmatpush1.msra.mxu0 0.0
    %5491 = vmatprep.subr.mxu0 0.0
    %5492 = vmatpush1.msra.mxu0 0.0
    %5493 = vmatprep.subr.mxu0 0.0
    %5494 = vmatpush1.msra.mxu0 0.0
    %5495 = vmatprep.subr.mxu0 0.0
    %5496 = vmatpush1.msra.mxu0 0.0
    %5497 = vmatprep.subr.mxu0 0.0
    %5498 = vmatpush1.msra.mxu0 0.0
    %5499 = vmatprep.subr.mxu0 0.0
    %5500 = vmatpush1.msra.mxu0 0.0
    %5501 = vmatprep.mubr.f32.mxu0 0.0
    %v5502 = vand.u32 %v5422, 4294901760
    %v5503 = vsub.f32 %v5422, %v5502
    %v5504 = vand.u32 %v5503, 4294901760
    %v5505 = vsub.f32 %v5503, %v5504
    %v5506 = vand.u32 %v5505, 4294901760
    %5507 = vmatmul.mubr.f32.gmra.mrb[0].mxu0 %v5506
    %v5508 = vpop.f32.mrb[0].mxu0
    %v5509 = vadd.f32 0.0, %v5508
    %v5510 = vpop.f32.mrb[0].mxu0
    %5511 = vmatprep.mubr.f32.mxu0 0.0
    %v5512 = vand.u32 %v5425, 4294901760
    %v5513 = vsub.f32 %v5425, %v5512
    %v5514 = vand.u32 %v5513, 4294901760
    %v5515 = vsub.f32 %v5513, %v5514
    %v5516 = vand.u32 %v5515, 4294901760
    %5517 = vmatmul.mubr.f32.gmra.mrb[0].mxu0 %v5516
    %v5518 = vpop.f32.mrb[0].mxu0
    %v5519 = vadd.f32 0.0, %v5518
    %v5520 = vpop.f32.mrb[0].mxu0
    %5521 = vmatprep.mubr.f32.mxu0 0.0
    %v5522 = vand.u32 %v5428, 4294901760
    %v5523 = vsub.f32 %v5428, %v5522
    %v5524 = vand.u32 %v5523, 4294901760
    %v5525 = vsub.f32 %v5523, %v5524
    %v5526 = vand.u32 %v5525, 4294901760
    %5527 = vmatmul.mubr.f32.gmra.mrb[0].mxu0 %v5526
    %v5528 = vpop.f32.mrb[0].mxu0
    %v5529 = vadd.f32 0.0, %v5528
    %v5530 = vpop.f32.mrb[0].mxu0
    %5531 = vmatprep.mubr.f32.mxu0 0.0
    %v5532 = vand.u32 %v5431, 4294901760
    %v5533 = vsub.f32 %v5431, %v5532
    %v5534 = vand.u32 %v5533, 4294901760
    %v5535 = vsub.f32 %v5533, %v5534
    %v5536 = vand.u32 %v5535, 4294901760
    %5537 = vmatmul.mubr.f32.gmra.mrb[0].mxu0 %v5536
    %v5538 = vpop.f32.mrb[0].mxu0
    %v5539 = vadd.f32 0.0, %v5538
    %v5540 = vpop.f32.mrb[0].mxu0
    %5541 = vdwg.mxu0
    %5542 = vmatprep.subr.mxu0 0.0
    %v5543 = vand.u32 %v5410, 4294901760
    %v5544 = vsub.f32 %v5410, %v5543
    %v5545 = vand.u32 %v5544, 4294901760
    %v5546 = vsub.f32 %v5544, %v5545
    %v5547 = vand.u32 %v5546, 4294901760
    %5548 = vmatpush1.msra.mxu0 %v5547
    %5549 = vmatprep.subr.mxu0 0.0
    %v5550 = vand.u32 %v5412, 4294901760
    %v5551 = vsub.f32 %v5412, %v5550
    %v5552 = vand.u32 %v5551, 4294901760
    %v5553 = vsub.f32 %v5551, %v5552
    %v5554 = vand.u32 %v5553, 4294901760
    %5555 = vmatpush1.msra.mxu0 %v5554
    %5556 = vmatprep.subr.mxu0 0.0
    %v5557 = vand.u32 %v5414, 4294901760
    %v5558 = vsub.f32 %v5414, %v5557
    %v5559 = vand.u32 %v5558, 4294901760
    %v5560 = vsub.f32 %v5558, %v5559
    %v5561 = vand.u32 %v5560, 4294901760
    %5562 = vmatpush1.msra.mxu0 %v5561
    %5563 = vmatprep.subr.mxu0 0.0
    %v5564 = vand.u32 %v5416, 4294901760
    %v5565 = vsub.f32 %v5416, %v5564
    %v5566 = vand.u32 %v5565, 4294901760
    %v5567 = vsub.f32 %v5565, %v5566
    %v5568 = vand.u32 %v5567, 4294901760
    %5569 = vmatpush1.msra.mxu0 %v5568
    %5570 = vmatprep.subr.mxu0 0.0
    %5571 = vmatpush1.msra.mxu0 0.0
    %5572 = vmatprep.subr.mxu0 0.0
    %5573 = vmatpush1.msra.mxu0 0.0
    %5574 = vmatprep.subr.mxu0 0.0
    %5575 = vmatpush1.msra.mxu0 0.0
    %5576 = vmatprep.subr.mxu0 0.0
    %5577 = vmatpush1.msra.mxu0 0.0
    %5578 = vmatprep.subr.mxu0 0.0
    %5579 = vmatpush1.msra.mxu0 0.0
    %5580 = vmatprep.subr.mxu0 0.0
    %5581 = vmatpush1.msra.mxu0 0.0
    %5582 = vmatprep.subr.mxu0 0.0
    %5583 = vmatpush1.msra.mxu0 0.0
    %5584 = vmatprep.subr.mxu0 0.0
    %5585 = vmatpush1.msra.mxu0 0.0
    %5586 = vmatprep.subr.mxu0 0.0
    %5587 = vmatpush1.msra.mxu0 0.0
    %5588 = vmatprep.subr.mxu0 0.0
    %5589 = vmatpush1.msra.mxu0 0.0
    %5590 = vmatprep.subr.mxu0 0.0
    %5591 = vmatpush1.msra.mxu0 0.0
    %5592 = vmatprep.subr.mxu0 0.0
    %5593 = vmatpush1.msra.mxu0 0.0
    %5594 = vmatprep.subr.mxu0 0.0
    %5595 = vmatpush1.msra.mxu0 0.0
    %5596 = vmatprep.subr.mxu0 0.0
    %5597 = vmatpush1.msra.mxu0 0.0
    %5598 = vmatprep.subr.mxu0 0.0
    %5599 = vmatpush1.msra.mxu0 0.0
    %5600 = vmatprep.subr.mxu0 0.0
    %5601 = vmatpush1.msra.mxu0 0.0
    %5602 = vmatprep.subr.mxu0 0.0
    %5603 = vmatpush1.msra.mxu0 0.0
    %5604 = vmatprep.subr.mxu0 0.0
    %5605 = vmatpush1.msra.mxu0 0.0
    %5606 = vmatprep.subr.mxu0 0.0
    %5607 = vmatpush1.msra.mxu0 0.0
    %5608 = vmatprep.subr.mxu0 0.0
    %5609 = vmatpush1.msra.mxu0 0.0
    %5610 = vmatprep.subr.mxu0 0.0
    %5611 = vmatpush1.msra.mxu0 0.0
    %5612 = vmatprep.subr.mxu0 0.0
    %5613 = vmatpush1.msra.mxu0 0.0
    %5614 = vmatprep.subr.mxu0 0.0
    %5615 = vmatpush1.msra.mxu0 0.0
    %5616 = vmatprep.subr.mxu0 0.0
    %5617 = vmatpush1.msra.mxu0 0.0
    %5618 = vmatprep.subr.mxu0 0.0
    %5619 = vmatpush1.msra.mxu0 0.0
    %5620 = vmatprep.subr.mxu0 0.0
    %5621 = vmatpush1.msra.mxu0 0.0
    %5622 = vmatprep.subr.mxu0 0.0
    %5623 = vmatpush1.msra.mxu0 0.0
    %5624 = vmatprep.subr.mxu0 0.0
    %5625 = vmatpush1.msra.mxu0 0.0
    %5626 = vmatprep.mubr.f32.mxu0 0.0
    %v5627 = vand.u32 %v5422, 4294901760
    %5628 = vmatmul.mubr.f32.gmra.mrb[0].mxu0 %v5627
    %v5629 = vpop.f32.mrb[0].mxu0
    %v5630 = vadd.f32 %v5509, %v5629
    %v5631 = vpop.f32.mrb[0].mxu0
    %5632 = vmatprep.mubr.f32.mxu0 0.0
    %v5633 = vand.u32 %v5425, 4294901760
    %5634 = vmatmul.mubr.f32.gmra.mrb[0].mxu0 %v5633
    %v5635 = vpop.f32.mrb[0].mxu0
    %v5636 = vadd.f32 %v5519, %v5635
    %v5637 = vpop.f32.mrb[0].mxu0
    %5638 = vmatprep.mubr.f32.mxu0 0.0
    %v5639 = vand.u32 %v5428, 4294901760
    %5640 = vmatmul.mubr.f32.gmra.mrb[0].mxu0 %v5639
    %v5641 = vpop.f32.mrb[0].mxu0
    %v5642 = vadd.f32 %v5529, %v5641
    %v5643 = vpop.f32.mrb[0].mxu0
    %5644 = vmatprep.mubr.f32.mxu0 0.0
    %v5645 = vand.u32 %v5431, 4294901760
    %5646 = vmatmul.mubr.f32.gmra.mrb[0].mxu0 %v5645
    %v5647 = vpop.f32.mrb[0].mxu0
    %v5648 = vadd.f32 %v5539, %v5647
    %v5649 = vpop.f32.mrb[0].mxu0
    %5650 = vdwg.mxu0
    %5651 = vmatprep.subr.mxu0 0.0
    %v5652 = vand.u32 %v5410, 4294901760
    %v5653 = vsub.f32 %v5410, %v5652
    %5654 = vmatpush1.msra.mxu0 %v5653
    %5655 = vmatprep.subr.mxu0 0.0
    %v5656 = vand.u32 %v5412, 4294901760
    %v5657 = vsub.f32 %v5412, %v5656
    %5658 = vmatpush1.msra.mxu0 %v5657
    %5659 = vmatprep.subr.mxu0 0.0
    %v5660 = vand.u32 %v5414, 4294901760
    %v5661 = vsub.f32 %v5414, %v5660
    %5662 = vmatpush1.msra.mxu0 %v5661
    %5663 = vmatprep.subr.mxu0 0.0
    %v5664 = vand.u32 %v5416, 4294901760
    %v5665 = vsub.f32 %v5416, %v5664
    %5666 = vmatpush1.msra.mxu0 %v5665
    %5667 = vmatprep.subr.mxu0 0.0
    %5668 = vmatpush1.msra.mxu0 0.0
    %5669 = vmatprep.subr.mxu0 0.0
    %5670 = vmatpush1.msra.mxu0 0.0
    %5671 = vmatprep.subr.mxu0 0.0
    %5672 = vmatpush1.msra.mxu0 0.0
    %5673 = vmatprep.subr.mxu0 0.0
    %5674 = vmatpush1.msra.mxu0 0.0
    %5675 = vmatprep.subr.mxu0 0.0
    %5676 = vmatpush1.msra.mxu0 0.0
    %5677 = vmatprep.subr.mxu0 0.0
    %5678 = vmatpush1.msra.mxu0 0.0
    %5679 = vmatprep.subr.mxu0 0.0
    %5680 = vmatpush1.msra.mxu0 0.0
    %5681 = vmatprep.subr.mxu0 0.0
    %5682 = vmatpush1.msra.mxu0 0.0
    %5683 = vmatprep.subr.mxu0 0.0
    %5684 = vmatpush1.msra.mxu0 0.0
    %5685 = vmatprep.subr.mxu0 0.0
    %5686 = vmatpush1.msra.mxu0 0.0
    %5687 = vmatprep.subr.mxu0 0.0
    %5688 = vmatpush1.msra.mxu0 0.0
    %5689 = vmatprep.subr.mxu0 0.0
    %5690 = vmatpush1.msra.mxu0 0.0
    %5691 = vmatprep.subr.mxu0 0.0
    %5692 = vmatpush1.msra.mxu0 0.0
    %5693 = vmatprep.subr.mxu0 0.0
    %5694 = vmatpush1.msra.mxu0 0.0
    %5695 = vmatprep.subr.mxu0 0.0
    %5696 = vmatpush1.msra.mxu0 0.0
    %5697 = vmatprep.subr.mxu0 0.0
    %5698 = vmatpush1.msra.mxu0 0.0
    %5699 = vmatprep.subr.mxu0 0.0
    %5700 = vmatpush1.msra.mxu0 0.0
    %5701 = vmatprep.subr.mxu0 0.0
    %5702 = vmatpush1.msra.mxu0 0.0
    %5703 = vmatprep.subr.mxu0 0.0
    %5704 = vmatpush1.msra.mxu0 0.0
    %5705 = vmatprep.subr.mxu0 0.0
    %5706 = vmatpush1.msra.mxu0 0.0
    %5707 = vmatprep.subr.mxu0 0.0
    %5708 = vmatpush1.msra.mxu0 0.0
    %5709 = vmatprep.subr.mxu0 0.0
    %5710 = vmatpush1.msra.mxu0 0.0
    %5711 = vmatprep.subr.mxu0 0.0
    %5712 = vmatpush1.msra.mxu0 0.0
    %5713 = vmatprep.subr.mxu0 0.0
    %5714 = vmatpush1.msra.mxu0 0.0
    %5715 = vmatprep.subr.mxu0 0.0
    %5716 = vmatpush1.msra.mxu0 0.0
    %5717 = vmatprep.subr.mxu0 0.0
    %5718 = vmatpush1.msra.mxu0 0.0
    %5719 = vmatprep.subr.mxu0 0.0
    %5720 = vmatpush1.msra.mxu0 0.0
    %5721 = vmatprep.subr.mxu0 0.0
    %5722 = vmatpush1.msra.mxu0 0.0
    %5723 = vmatprep.mubr.f32.mxu0 0.0
    %v5724 = vand.u32 %v5422, 4294901760
    %v5725 = vsub.f32 %v5422, %v5724
    %5726 = vmatmul.mubr.f32.gmra.mrb[0].mxu0 %v5725
    %v5727 = vpop.f32.mrb[0].mxu0
    %v5728 = vadd.f32 %v5630, %v5727
    %v5729 = vpop.f32.mrb[0].mxu0
    %5730 = vmatprep.mubr.f32.mxu0 0.0
    %v5731 = vand.u32 %v5425, 4294901760
    %v5732 = vsub.f32 %v5425, %v5731
    %5733 = vmatmul.mubr.f32.gmra.mrb[0].mxu0 %v5732
    %v5734 = vpop.f32.mrb[0].mxu0
    %v5735 = vadd.f32 %v5636, %v5734
    %v5736 = vpop.f32.mrb[0].mxu0
    %5737 = vmatprep.mubr.f32.mxu0 0.0
    %v5738 = vand.u32 %v5428, 4294901760
    %v5739 = vsub.f32 %v5428, %v5738
    %5740 = vmatmul.mubr.f32.gmra.mrb[0].mxu0 %v5739
    %v5741 = vpop.f32.mrb[0].mxu0
    %v5742 = vadd.f32 %v5642, %v5741
    %v5743 = vpop.f32.mrb[0].mxu0
    %5744 = vmatprep.mubr.f32.mxu0 0.0
    %v5745 = vand.u32 %v5431, 4294901760
    %v5746 = vsub.f32 %v5431, %v5745
    %5747 = vmatmul.mubr.f32.gmra.mrb[0].mxu0 %v5746
    %v5748 = vpop.f32.mrb[0].mxu0
    %v5749 = vadd.f32 %v5648, %v5748
    %v5750 = vpop.f32.mrb[0].mxu0
    %5751 = vdwg.mxu0
    %5752 = vmatprep.subr.mxu0 0.0
    %v5753 = vand.u32 %v5410, 4294901760
    %5754 = vmatpush1.msra.mxu0 %v5753
    %5755 = vmatprep.subr.mxu0 0.0
    %v5756 = vand.u32 %v5412, 4294901760
    %5757 = vmatpush1.msra.mxu0 %v5756
    %5758 = vmatprep.subr.mxu0 0.0
    %v5759 = vand.u32 %v5414, 4294901760
    %5760 = vmatpush1.msra.mxu0 %v5759
    %5761 = vmatprep.subr.mxu0 0.0
    %v5762 = vand.u32 %v5416, 4294901760
    %5763 = vmatpush1.msra.mxu0 %v5762
    %5764 = vmatprep.subr.mxu0 0.0
    %5765 = vmatpush1.msra.mxu0 0.0
    %5766 = vmatprep.subr.mxu0 0.0
    %5767 = vmatpush1.msra.mxu0 0.0
    %5768 = vmatprep.subr.mxu0 0.0
    %5769 = vmatpush1.msra.mxu0 0.0
    %5770 = vmatprep.subr.mxu0 0.0
    %5771 = vmatpush1.msra.mxu0 0.0
    %5772 = vmatprep.subr.mxu0 0.0
    %5773 = vmatpush1.msra.mxu0 0.0
    %5774 = vmatprep.subr.mxu0 0.0
    %5775 = vmatpush1.msra.mxu0 0.0
    %5776 = vmatprep.subr.mxu0 0.0
    %5777 = vmatpush1.msra.mxu0 0.0
    %5778 = vmatprep.subr.mxu0 0.0
    %5779 = vmatpush1.msra.mxu0 0.0
    %5780 = vmatprep.subr.mxu0 0.0
    %5781 = vmatpush1.msra.mxu0 0.0
    %5782 = vmatprep.subr.mxu0 0.0
    %5783 = vmatpush1.msra.mxu0 0.0
    %5784 = vmatprep.subr.mxu0 0.0
    %5785 = vmatpush1.msra.mxu0 0.0
    %5786 = vmatprep.subr.mxu0 0.0
    %5787 = vmatpush1.msra.mxu0 0.0
    %5788 = vmatprep.subr.mxu0 0.0
    %5789 = vmatpush1.msra.mxu0 0.0
    %5790 = vmatprep.subr.mxu0 0.0
    %5791 = vmatpush1.msra.mxu0 0.0
    %5792 = vmatprep.subr.mxu0 0.0
    %5793 = vmatpush1.msra.mxu0 0.0
    %5794 = vmatprep.subr.mxu0 0.0
    %5795 = vmatpush1.msra.mxu0 0.0
    %5796 = vmatprep.subr.mxu0 0.0
    %5797 = vmatpush1.msra.mxu0 0.0
    %5798 = vmatprep.subr.mxu0 0.0
    %5799 = vmatpush1.msra.mxu0 0.0
    %5800 = vmatprep.subr.mxu0 0.0
    %5801 = vmatpush1.msra.mxu0 0.0
    %5802 = vmatprep.subr.mxu0 0.0
    %5803 = vmatpush1.msra.mxu0 0.0
    %5804 = vmatprep.subr.mxu0 0.0
    %5805 = vmatpush1.msra.mxu0 0.0
    %5806 = vmatprep.subr.mxu0 0.0
    %5807 = vmatpush1.msra.mxu0 0.0
    %5808 = vmatprep.subr.mxu0 0.0
    %5809 = vmatpush1.msra.mxu0 0.0
    %5810 = vmatprep.subr.mxu0 0.0
    %5811 = vmatpush1.msra.mxu0 0.0
    %5812 = vmatprep.subr.mxu0 0.0
    %5813 = vmatpush1.msra.mxu0 0.0
    %5814 = vmatprep.subr.mxu0 0.0
    %5815 = vmatpush1.msra.mxu0 0.0
    %5816 = vmatprep.subr.mxu0 0.0
    %5817 = vmatpush1.msra.mxu0 0.0
    %5818 = vmatprep.subr.mxu0 0.0
    %5819 = vmatpush1.msra.mxu0 0.0
    %5820 = vmatprep.mubr.f32.mxu0 0.0
    %v5821 = vand.u32 %v5422, 4294901760
    %v5822 = vsub.f32 %v5422, %v5821
    %v5823 = vand.u32 %v5822, 4294901760
    %5824 = vmatmul.mubr.f32.gmra.mrb[0].mxu0 %v5823
    %v5825 = vpop.f32.mrb[0].mxu0
    %v5826 = vadd.f32 %v5728, %v5825
    %v5827 = vpop.f32.mrb[0].mxu0
    %5828 = vmatprep.mubr.f32.mxu0 0.0
    %v5829 = vand.u32 %v5425, 4294901760
    %v5830 = vsub.f32 %v5425, %v5829
    %v5831 = vand.u32 %v5830, 4294901760
    %5832 = vmatmul.mubr.f32.gmra.mrb[0].mxu0 %v5831
    %v5833 = vpop.f32.mrb[0].mxu0
    %v5834 = vadd.f32 %v5735, %v5833
    %v5835 = vpop.f32.mrb[0].mxu0
    %5836 = vmatprep.mubr.f32.mxu0 0.0
    %v5837 = vand.u32 %v5428, 4294901760
    %v5838 = vsub.f32 %v5428, %v5837
    %v5839 = vand.u32 %v5838, 4294901760
    %5840 = vmatmul.mubr.f32.gmra.mrb[0].mxu0 %v5839
    %v5841 = vpop.f32.mrb[0].mxu0
    %v5842 = vadd.f32 %v5742, %v5841
    %v5843 = vpop.f32.mrb[0].mxu0
    %5844 = vmatprep.mubr.f32.mxu0 0.0
    %v5845 = vand.u32 %v5431, 4294901760
    %v5846 = vsub.f32 %v5431, %v5845
    %v5847 = vand.u32 %v5846, 4294901760
    %5848 = vmatmul.mubr.f32.gmra.mrb[0].mxu0 %v5847
    %v5849 = vpop.f32.mrb[0].mxu0
    %v5850 = vadd.f32 %v5749, %v5849
    %v5851 = vpop.f32.mrb[0].mxu0
    %5852 = vdwg.mxu0
    %5853 = vmatprep.subr.mxu0 0.0
    %v5854 = vand.u32 %v5410, 4294901760
    %v5855 = vsub.f32 %v5410, %v5854
    %v5856 = vand.u32 %v5855, 4294901760
    %5857 = vmatpush1.msra.mxu0 %v5856
    %5858 = vmatprep.subr.mxu0 0.0
    %v5859 = vand.u32 %v5412, 4294901760
    %v5860 = vsub.f32 %v5412, %v5859
    %v5861 = vand.u32 %v5860, 4294901760
    %5862 = vmatpush1.msra.mxu0 %v5861
    %5863 = vmatprep.subr.mxu0 0.0
    %v5864 = vand.u32 %v5414, 4294901760
    %v5865 = vsub.f32 %v5414, %v5864
    %v5866 = vand.u32 %v5865, 4294901760
    %5867 = vmatpush1.msra.mxu0 %v5866
    %5868 = vmatprep.subr.mxu0 0.0
    %v5869 = vand.u32 %v5416, 4294901760
    %v5870 = vsub.f32 %v5416, %v5869
    %v5871 = vand.u32 %v5870, 4294901760
    %5872 = vmatpush1.msra.mxu0 %v5871
    %5873 = vmatprep.subr.mxu0 0.0
    %5874 = vmatpush1.msra.mxu0 0.0
    %5875 = vmatprep.subr.mxu0 0.0
    %5876 = vmatpush1.msra.mxu0 0.0
    %5877 = vmatprep.subr.mxu0 0.0
    %5878 = vmatpush1.msra.mxu0 0.0
    %5879 = vmatprep.subr.mxu0 0.0
    %5880 = vmatpush1.msra.mxu0 0.0
    %5881 = vmatprep.subr.mxu0 0.0
    %5882 = vmatpush1.msra.mxu0 0.0
    %5883 = vmatprep.subr.mxu0 0.0
    %5884 = vmatpush1.msra.mxu0 0.0
    %5885 = vmatprep.subr.mxu0 0.0
    %5886 = vmatpush1.msra.mxu0 0.0
    %5887 = vmatprep.subr.mxu0 0.0
    %5888 = vmatpush1.msra.mxu0 0.0
    %5889 = vmatprep.subr.mxu0 0.0
    %5890 = vmatpush1.msra.mxu0 0.0
    %5891 = vmatprep.subr.mxu0 0.0
    %5892 = vmatpush1.msra.mxu0 0.0
    %5893 = vmatprep.subr.mxu0 0.0
    %5894 = vmatpush1.msra.mxu0 0.0
    %5895 = vmatprep.subr.mxu0 0.0
    %5896 = vmatpush1.msra.mxu0 0.0
    %5897 = vmatprep.subr.mxu0 0.0
    %5898 = vmatpush1.msra.mxu0 0.0
    %5899 = vmatprep.subr.mxu0 0.0
    %5900 = vmatpush1.msra.mxu0 0.0
    %5901 = vmatprep.subr.mxu0 0.0
    %5902 = vmatpush1.msra.mxu0 0.0
    %5903 = vmatprep.subr.mxu0 0.0
    %5904 = vmatpush1.msra.mxu0 0.0
    %5905 = vmatprep.subr.mxu0 0.0
    %5906 = vmatpush1.msra.mxu0 0.0
    %5907 = vmatprep.subr.mxu0 0.0
    %5908 = vmatpush1.msra.mxu0 0.0
    %5909 = vmatprep.subr.mxu0 0.0
    %5910 = vmatpush1.msra.mxu0 0.0
    %5911 = vmatprep.subr.mxu0 0.0
    %5912 = vmatpush1.msra.mxu0 0.0
    %5913 = vmatprep.subr.mxu0 0.0
    %5914 = vmatpush1.msra.mxu0 0.0
    %5915 = vmatprep.subr.mxu0 0.0
    %5916 = vmatpush1.msra.mxu0 0.0
    %5917 = vmatprep.subr.mxu0 0.0
    %5918 = vmatpush1.msra.mxu0 0.0
    %5919 = vmatprep.subr.mxu0 0.0
    %5920 = vmatpush1.msra.mxu0 0.0
    %5921 = vmatprep.subr.mxu0 0.0
    %5922 = vmatpush1.msra.mxu0 0.0
    %5923 = vmatprep.subr.mxu0 0.0
    %5924 = vmatpush1.msra.mxu0 0.0
    %5925 = vmatprep.subr.mxu0 0.0
    %5926 = vmatpush1.msra.mxu0 0.0
    %5927 = vmatprep.subr.mxu0 0.0
    %5928 = vmatpush1.msra.mxu0 0.0
    %5929 = vmatprep.mubr.f32.mxu0 0.0
    %v5930 = vand.u32 %v5422, 4294901760
    %5931 = vmatmul.mubr.f32.gmra.mrb[0].mxu0 %v5930
    %v5932 = vpop.f32.mrb[0].mxu0
    %v5933 = vadd.f32 %v5826, %v5932
    %v5934 = vpop.f32.mrb[0].mxu0
    %5935 = vmatprep.mubr.f32.mxu0 0.0
    %v5936 = vand.u32 %v5425, 4294901760
    %5937 = vmatmul.mubr.f32.gmra.mrb[0].mxu0 %v5936
    %v5938 = vpop.f32.mrb[0].mxu0
    %v5939 = vadd.f32 %v5834, %v5938
    %v5940 = vpop.f32.mrb[0].mxu0
    %5941 = vmatprep.mubr.f32.mxu0 0.0
    %v5942 = vand.u32 %v5428, 4294901760
    %5943 = vmatmul.mubr.f32.gmra.mrb[0].mxu0 %v5942
    %v5944 = vpop.f32.mrb[0].mxu0
    %v5945 = vadd.f32 %v5842, %v5944
    %v5946 = vpop.f32.mrb[0].mxu0
    %5947 = vmatprep.mubr.f32.mxu0 0.0
    %v5948 = vand.u32 %v5431, 4294901760
    %5949 = vmatmul.mubr.f32.gmra.mrb[0].mxu0 %v5948
    %v5950 = vpop.f32.mrb[0].mxu0
    %v5951 = vadd.f32 %v5850, %v5950
    %v5952 = vpop.f32.mrb[0].mxu0
    %5953 = vdwg.mxu0
    %5954 = vmatprep.subr.mxu0 0.0
    %v5955 = vand.u32 %v5410, 4294901760
    %5956 = vmatpush1.msra.mxu0 %v5955
    %5957 = vmatprep.subr.mxu0 0.0
    %v5958 = vand.u32 %v5412, 4294901760
    %5959 = vmatpush1.msra.mxu0 %v5958
    %5960 = vmatprep.subr.mxu0 0.0
    %v5961 = vand.u32 %v5414, 4294901760
    %5962 = vmatpush1.msra.mxu0 %v5961
    %5963 = vmatprep.subr.mxu0 0.0
    %v5964 = vand.u32 %v5416, 4294901760
    %5965 = vmatpush1.msra.mxu0 %v5964
    %5966 = vmatprep.subr.mxu0 0.0
    %5967 = vmatpush1.msra.mxu0 0.0
    %5968 = vmatprep.subr.mxu0 0.0
    %5969 = vmatpush1.msra.mxu0 0.0
    %5970 = vmatprep.subr.mxu0 0.0
    %5971 = vmatpush1.msra.mxu0 0.0
    %5972 = vmatprep.subr.mxu0 0.0
    %5973 = vmatpush1.msra.mxu0 0.0
    %5974 = vmatprep.subr.mxu0 0.0
    %5975 = vmatpush1.msra.mxu0 0.0
    %5976 = vmatprep.subr.mxu0 0.0
    %5977 = vmatpush1.msra.mxu0 0.0
    %5978 = vmatprep.subr.mxu0 0.0
    %5979 = vmatpush1.msra.mxu0 0.0
    %5980 = vmatprep.subr.mxu0 0.0
    %5981 = vmatpush1.msra.mxu0 0.0
    %5982 = vmatprep.subr.mxu0 0.0
    %5983 = vmatpush1.msra.mxu0 0.0
    %5984 = vmatprep.subr.mxu0 0.0
    %5985 = vmatpush1.msra.mxu0 0.0
    %5986 = vmatprep.subr.mxu0 0.0
    %5987 = vmatpush1.msra.mxu0 0.0
    %5988 = vmatprep.subr.mxu0 0.0
    %5989 = vmatpush1.msra.mxu0 0.0
    %5990 = vmatprep.subr.mxu0 0.0
    %5991 = vmatpush1.msra.mxu0 0.0
    %5992 = vmatprep.subr.mxu0 0.0
    %5993 = vmatpush1.msra.mxu0 0.0
    %5994 = vmatprep.subr.mxu0 0.0
    %5995 = vmatpush1.msra.mxu0 0.0
    %5996 = vmatprep.subr.mxu0 0.0
    %5997 = vmatpush1.msra.mxu0 0.0
    %5998 = vmatprep.subr.mxu0 0.0
    %5999 = vmatpush1.msra.mxu0 0.0
    %6000 = vmatprep.subr.mxu0 0.0
    %6001 = vmatpush1.msra.mxu0 0.0
    %6002 = vmatprep.subr.mxu0 0.0
    %6003 = vmatpush1.msra.mxu0 0.0
    %6004 = vmatprep.subr.mxu0 0.0
    %6005 = vmatpush1.msra.mxu0 0.0
    %6006 = vmatprep.subr.mxu0 0.0
    %6007 = vmatpush1.msra.mxu0 0.0
    %6008 = vmatprep.subr.mxu0 0.0
    %6009 = vmatpush1.msra.mxu0 0.0
    %6010 = vmatprep.subr.mxu0 0.0
    %6011 = vmatpush1.msra.mxu0 0.0
    %6012 = vmatprep.subr.mxu0 0.0
    %6013 = vmatpush1.msra.mxu0 0.0
    %6014 = vmatprep.subr.mxu0 0.0
    %6015 = vmatpush1.msra.mxu0 0.0
    %6016 = vmatprep.subr.mxu0 0.0
    %6017 = vmatpush1.msra.mxu0 0.0
    %6018 = vmatprep.subr.mxu0 0.0
    %6019 = vmatpush1.msra.mxu0 0.0
    %6020 = vmatprep.subr.mxu0 0.0
    %6021 = vmatpush1.msra.mxu0 0.0
    %6022 = vmatprep.mubr.f32.mxu0 0.0
    %v6023 = vand.u32 %v5422, 4294901760
    %6024 = vmatmul.mubr.f32.gmra.mrb[0].mxu0 %v6023
    %v6025 = vpop.f32.mrb[0].mxu0
    %v6026 = vadd.f32 %v5933, %v6025
    %v6027 = vpop.f32.mrb[0].mxu0
    %6028 = vmatprep.mubr.f32.mxu0 0.0
    %v6029 = vand.u32 %v5425, 4294901760
    %6030 = vmatmul.mubr.f32.gmra.mrb[0].mxu0 %v6029
    %v6031 = vpop.f32.mrb[0].mxu0
    %v6032 = vadd.f32 %v5939, %v6031
    %v6033 = vpop.f32.mrb[0].mxu0
    %6034 = vmatprep.mubr.f32.mxu0 0.0
    %v6035 = vand.u32 %v5428, 4294901760
    %6036 = vmatmul.mubr.f32.gmra.mrb[0].mxu0 %v6035
    %v6037 = vpop.f32.mrb[0].mxu0
    %v6038 = vadd.f32 %v5945, %v6037
    %v6039 = vpop.f32.mrb[0].mxu0
    %6040 = vmatprep.mubr.f32.mxu0 0.0
    %v6041 = vand.u32 %v5431, 4294901760
    %6042 = vmatmul.mubr.f32.gmra.mrb[0].mxu0 %v6041
    %v6043 = vpop.f32.mrb[0].mxu0
    %v6044 = vadd.f32 %v5951, %v6043
    %v6045 = vpop.f32.mrb[0].mxu0
    %6046 = vdwg.mxu0
    %6051 = vrot.lane.b32.xlu0 %v3360, 8
    %v6052 = vpop.permute.xlu0 %6051
    %6053 = vrot.lane.b32.xlu0 %v3366, 8
    %v6054 = vpop.permute.xlu0 %6053
    %6055 = vrot.lane.b32.xlu0 %v3372, 8
    %v6056 = vpop.permute.xlu0 %6055
    %6057 = vrot.lane.b32.xlu0 %v3378, 8
    %v6058 = vpop.permute.xlu0 %6057
    %6067 = vrot.lane.b32.xlu0 %v4693, 16
    %v6068 = vpop.permute.xlu0 %6067
    %6069 = vrot.lane.b32.xlu0 %v4699, 16
    %v6070 = vpop.permute.xlu0 %6069
    %6071 = vrot.lane.b32.xlu0 %v4705, 16
    %v6072 = vpop.permute.xlu0 %6071
    %6073 = vrot.lane.b32.xlu0 %v4711, 16
    %v6074 = vpop.permute.xlu0 %6073
    %6083 = vrot.lane.b32.xlu0 %v6026, 24
    %v6084 = vpop.permute.xlu0 %6083
    %6085 = vrot.lane.b32.xlu0 %v6032, 24
    %v6086 = vpop.permute.xlu0 %6085
    %6087 = vrot.lane.b32.xlu0 %v6038, 24
    %v6088 = vpop.permute.xlu0 %6087
    %6089 = vrot.lane.b32.xlu0 %v6044, 24
    %v6090 = vpop.permute.xlu0 %6089
    %v6095 = vsel %vm731, %v2027, %v6052
    %v6096 = vsel %vm731, %v2033, %v6054
    %v6097 = vsel %vm731, %v2039, %v6056
    %v6098 = vsel %vm731, %v2045, %v6058
    %vm6099 = vcmask 130048
    %v6100 = vsel %vm6099, %v6095, %v6068
    %v6101 = vsel %vm6099, %v6096, %v6070
    %v6102 = vsel %vm6099, %v6097, %v6072
    %v6103 = vsel %vm6099, %v6098, %v6074
    %vm6104 = vcmask 195584
    %v6105 = vsel %vm6104, %v6100, %v6084
    %v6106 = vsel %vm6104, %v6101, %v6086
    %v6107 = vsel %vm6104, %v6102, %v6088
    %v6108 = vsel %vm6104, %v6103, %v6090
    %v6109 = vld [vmem:[#allocation7] sm:$0xff]
    %v6110 = vld [vmem:[#allocation7 + $0x8] sm:$0xff]
    %v6111 = vld [vmem:[#allocation7 + $0x10] sm:$0xff]
    %v6112 = vld [vmem:[#allocation7 + $0x18] sm:$0xff]
    %v6113 = vld [vmem:[%s3] sm:$0x1]
    %v6115 = vlaneseq
    %v6116 = vshrl.u32 %v6115, 7
    %v6117 = vsub.s32 0, %v6116
    %v6118 = vrot.slane %v6113, %v6117
    %v6121 = vsel %vm84, %v6105, 0
    %v6124 = vsel %vm84, %v6106, 0
    %v6127 = vsel %vm84, %v6107, 0
    %v6130 = vsel %vm84, %v6108, 0
    %6132 = vmatprep.subr.mxu0 0.0
    %v6133 = vand.u32 %v6109, 4294901760
    %6134 = vmatpush1.msra.mxu0 %v6133
    %6135 = vmatprep.subr.mxu0 0.0
    %v6136 = vand.u32 %v6110, 4294901760
    %6137 = vmatpush1.msra.mxu0 %v6136
    %6138 = vmatprep.subr.mxu0 0.0
    %v6139 = vand.u32 %v6111, 4294901760
    %6140 = vmatpush1.msra.mxu0 %v6139
    %6141 = vmatprep.subr.mxu0 0.0
    %v6142 = vand.u32 %v6112, 4294901760
    %6143 = vmatpush1.msra.mxu0 %v6142
    %6144 = vmatprep.subr.mxu0 0.0
    %6145 = vmatpush1.msra.mxu0 0.0
    %6146 = vmatprep.subr.mxu0 0.0
    %6147 = vmatpush1.msra.mxu0 0.0
    %6148 = vmatprep.subr.mxu0 0.0
    %6149 = vmatpush1.msra.mxu0 0.0
    %6150 = vmatprep.subr.mxu0 0.0
    %6151 = vmatpush1.msra.mxu0 0.0
    %6152 = vmatprep.subr.mxu0 0.0
    %6153 = vmatpush1.msra.mxu0 0.0
    %6154 = vmatprep.subr.mxu0 0.0
    %6155 = vmatpush1.msra.mxu0 0.0
    %6156 = vmatprep.subr.mxu0 0.0
    %6157 = vmatpush1.msra.mxu0 0.0
    %6158 = vmatprep.subr.mxu0 0.0
    %6159 = vmatpush1.msra.mxu0 0.0
    %6160 = vmatprep.subr.mxu0 0.0
    %6161 = vmatpush1.msra.mxu0 0.0
    %6162 = vmatprep.subr.mxu0 0.0
    %6163 = vmatpush1.msra.mxu0 0.0
    %6164 = vmatprep.subr.mxu0 0.0
    %6165 = vmatpush1.msra.mxu0 0.0
    %6166 = vmatprep.subr.mxu0 0.0
    %6167 = vmatpush1.msra.mxu0 0.0
    %6168 = vmatprep.subr.mxu0 0.0
    %6169 = vmatpush1.msra.mxu0 0.0
    %6170 = vmatprep.subr.mxu0 0.0
    %6171 = vmatpush1.msra.mxu0 0.0
    %6172 = vmatprep.subr.mxu0 0.0
    %6173 = vmatpush1.msra.mxu0 0.0
    %6174 = vmatprep.subr.mxu0 0.0
    %6175 = vmatpush1.msra.mxu0 0.0
    %6176 = vmatprep.subr.mxu0 0.0
    %6177 = vmatpush1.msra.mxu0 0.0
    %6178 = vmatprep.subr.mxu0 0.0
    %6179 = vmatpush1.msra.mxu0 0.0
    %6180 = vmatprep.subr.mxu0 0.0
    %6181 = vmatpush1.msra.mxu0 0.0
    %6182 = vmatprep.subr.mxu0 0.0
    %6183 = vmatpush1.msra.mxu0 0.0
    %6184 = vmatprep.subr.mxu0 0.0
    %6185 = vmatpush1.msra.mxu0 0.0
    %6186 = vmatprep.subr.mxu0 0.0
    %6187 = vmatpush1.msra.mxu0 0.0
    %6188 = vmatprep.subr.mxu0 0.0
    %6189 = vmatpush1.msra.mxu0 0.0
    %6190 = vmatprep.subr.mxu0 0.0
    %6191 = vmatpush1.msra.mxu0 0.0
    %6192 = vmatprep.subr.mxu0 0.0
    %6193 = vmatpush1.msra.mxu0 0.0
    %6194 = vmatprep.subr.mxu0 0.0
    %6195 = vmatpush1.msra.mxu0 0.0
    %6196 = vmatprep.subr.mxu0 0.0
    %6197 = vmatpush1.msra.mxu0 0.0
    %6198 = vmatprep.subr.mxu0 0.0
    %6199 = vmatpush1.msra.mxu0 0.0
    %6200 = vmatprep.mubr.f32.mxu0 0.0
    %v6201 = vand.u32 %v6121, 4294901760
    %v6202 = vsub.f32 %v6121, %v6201
    %v6203 = vand.u32 %v6202, 4294901760
    %v6204 = vsub.f32 %v6202, %v6203
    %v6205 = vand.u32 %v6204, 4294901760
    %6206 = vmatmul.mubr.f32.gmra.mrb[0].mxu0 %v6205
    %v6207 = vpop.f32.mrb[0].mxu0
    %v6208 = vadd.f32 %v6118, %v6207
    %v6209 = vpop.f32.mrb[0].mxu0
    %6210 = vmatprep.mubr.f32.mxu0 0.0
    %v6211 = vand.u32 %v6124, 4294901760
    %v6212 = vsub.f32 %v6124, %v6211
    %v6213 = vand.u32 %v6212, 4294901760
    %v6214 = vsub.f32 %v6212, %v6213
    %v6215 = vand.u32 %v6214, 4294901760
    %6216 = vmatmul.mubr.f32.gmra.mrb[0].mxu0 %v6215
    %v6217 = vpop.f32.mrb[0].mxu0
    %v6218 = vadd.f32 %v6118, %v6217
    %v6219 = vpop.f32.mrb[0].mxu0
    %6220 = vmatprep.mubr.f32.mxu0 0.0
    %v6221 = vand.u32 %v6127, 4294901760
    %v6222 = vsub.f32 %v6127, %v6221
    %v6223 = vand.u32 %v6222, 4294901760
    %v6224 = vsub.f32 %v6222, %v6223
    %v6225 = vand.u32 %v6224, 4294901760
    %6226 = vmatmul.mubr.f32.gmra.mrb[0].mxu0 %v6225
    %v6227 = vpop.f32.mrb[0].mxu0
    %v6228 = vadd.f32 %v6118, %v6227
    %v6229 = vpop.f32.mrb[0].mxu0
    %6230 = vmatprep.mubr.f32.mxu0 0.0
    %v6231 = vand.u32 %v6130, 4294901760
    %v6232 = vsub.f32 %v6130, %v6231
    %v6233 = vand.u32 %v6232, 4294901760
    %v6234 = vsub.f32 %v6232, %v6233
    %v6235 = vand.u32 %v6234, 4294901760
    %6236 = vmatmul.mubr.f32.gmra.mrb[0].mxu0 %v6235
    %v6237 = vpop.f32.mrb[0].mxu0
    %v6238 = vadd.f32 %v6118, %v6237
    %v6239 = vpop.f32.mrb[0].mxu0
    %6240 = vdwg.mxu0
    %6241 = vmatprep.subr.mxu0 0.0
    %v6242 = vand.u32 %v6109, 4294901760
    %v6243 = vsub.f32 %v6109, %v6242
    %v6244 = vand.u32 %v6243, 4294901760
    %v6245 = vsub.f32 %v6243, %v6244
    %v6246 = vand.u32 %v6245, 4294901760
    %6247 = vmatpush1.msra.mxu0 %v6246
    %6248 = vmatprep.subr.mxu0 0.0
    %v6249 = vand.u32 %v6110, 4294901760
    %v6250 = vsub.f32 %v6110, %v6249
    %v6251 = vand.u32 %v6250, 4294901760
    %v6252 = vsub.f32 %v6250, %v6251
    %v6253 = vand.u32 %v6252, 4294901760
    %6254 = vmatpush1.msra.mxu0 %v6253
    %6255 = vmatprep.subr.mxu0 0.0
    %v6256 = vand.u32 %v6111, 4294901760
    %v6257 = vsub.f32 %v6111, %v6256
    %v6258 = vand.u32 %v6257, 4294901760
    %v6259 = vsub.f32 %v6257, %v6258
    %v6260 = vand.u32 %v6259, 4294901760
    %6261 = vmatpush1.msra.mxu0 %v6260
    %6262 = vmatprep.subr.mxu0 0.0
    %v6263 = vand.u32 %v6112, 4294901760
    %v6264 = vsub.f32 %v6112, %v6263
    %v6265 = vand.u32 %v6264, 4294901760
    %v6266 = vsub.f32 %v6264, %v6265
    %v6267 = vand.u32 %v6266, 4294901760
    %6268 = vmatpush1.msra.mxu0 %v6267
    %6269 = vmatprep.subr.mxu0 0.0
    %6270 = vmatpush1.msra.mxu0 0.0
    %6271 = vmatprep.subr.mxu0 0.0
    %6272 = vmatpush1.msra.mxu0 0.0
    %6273 = vmatprep.subr.mxu0 0.0
    %6274 = vmatpush1.msra.mxu0 0.0
    %6275 = vmatprep.subr.mxu0 0.0
    %6276 = vmatpush1.msra.mxu0 0.0
    %6277 = vmatprep.subr.mxu0 0.0
    %6278 = vmatpush1.msra.mxu0 0.0
    %6279 = vmatprep.subr.mxu0 0.0
    %6280 = vmatpush1.msra.mxu0 0.0
    %6281 = vmatprep.subr.mxu0 0.0
    %6282 = vmatpush1.msra.mxu0 0.0
    %6283 = vmatprep.subr.mxu0 0.0
    %6284 = vmatpush1.msra.mxu0 0.0
    %6285 = vmatprep.subr.mxu0 0.0
    %6286 = vmatpush1.msra.mxu0 0.0
    %6287 = vmatprep.subr.mxu0 0.0
    %6288 = vmatpush1.msra.mxu0 0.0
    %6289 = vmatprep.subr.mxu0 0.0
    %6290 = vmatpush1.msra.mxu0 0.0
    %6291 = vmatprep.subr.mxu0 0.0
    %6292 = vmatpush1.msra.mxu0 0.0
    %6293 = vmatprep.subr.mxu0 0.0
    %6294 = vmatpush1.msra.mxu0 0.0
    %6295 = vmatprep.subr.mxu0 0.0
    %6296 = vmatpush1.msra.mxu0 0.0
    %6297 = vmatprep.subr.mxu0 0.0
    %6298 = vmatpush1.msra.mxu0 0.0
    %6299 = vmatprep.subr.mxu0 0.0
    %6300 = vmatpush1.msra.mxu0 0.0
    %6301 = vmatprep.subr.mxu0 0.0
    %6302 = vmatpush1.msra.mxu0 0.0
    %6303 = vmatprep.subr.mxu0 0.0
    %6304 = vmatpush1.msra.mxu0 0.0
    %6305 = vmatprep.subr.mxu0 0.0
    %6306 = vmatpush1.msra.mxu0 0.0
    %6307 = vmatprep.subr.mxu0 0.0
    %6308 = vmatpush1.msra.mxu0 0.0
    %6309 = vmatprep.subr.mxu0 0.0
    %6310 = vmatpush1.msra.mxu0 0.0
    %6311 = vmatprep.subr.mxu0 0.0
    %6312 = vmatpush1.msra.mxu0 0.0
    %6313 = vmatprep.subr.mxu0 0.0
    %6314 = vmatpush1.msra.mxu0 0.0
    %6315 = vmatprep.subr.mxu0 0.0
    %6316 = vmatpush1.msra.mxu0 0.0
    %6317 = vmatprep.subr.mxu0 0.0
    %6318 = vmatpush1.msra.mxu0 0.0
    %6319 = vmatprep.subr.mxu0 0.0
    %6320 = vmatpush1.msra.mxu0 0.0
    %6321 = vmatprep.subr.mxu0 0.0
    %6322 = vmatpush1.msra.mxu0 0.0
    %6323 = vmatprep.subr.mxu0 0.0
    %6324 = vmatpush1.msra.mxu0 0.0
    %6325 = vmatprep.mubr.f32.mxu0 0.0
    %v6326 = vand.u32 %v6121, 4294901760
    %6327 = vmatmul.mubr.f32.gmra.mrb[0].mxu0 %v6326
    %v6328 = vpop.f32.mrb[0].mxu0
    %v6329 = vadd.f32 %v6208, %v6328
    %v6330 = vpop.f32.mrb[0].mxu0
    %6331 = vmatprep.mubr.f32.mxu0 0.0
    %v6332 = vand.u32 %v6124, 4294901760
    %6333 = vmatmul.mubr.f32.gmra.mrb[0].mxu0 %v6332
    %v6334 = vpop.f32.mrb[0].mxu0
    %v6335 = vadd.f32 %v6218, %v6334
    %v6336 = vpop.f32.mrb[0].mxu0
    %6337 = vmatprep.mubr.f32.mxu0 0.0
    %v6338 = vand.u32 %v6127, 4294901760
    %6339 = vmatmul.mubr.f32.gmra.mrb[0].mxu0 %v6338
    %v6340 = vpop.f32.mrb[0].mxu0
    %v6341 = vadd.f32 %v6228, %v6340
    %v6342 = vpop.f32.mrb[0].mxu0
    %6343 = vmatprep.mubr.f32.mxu0 0.0
    %v6344 = vand.u32 %v6130, 4294901760
    %6345 = vmatmul.mubr.f32.gmra.mrb[0].mxu0 %v6344
    %v6346 = vpop.f32.mrb[0].mxu0
    %v6347 = vadd.f32 %v6238, %v6346
    %v6348 = vpop.f32.mrb[0].mxu0
    %6349 = vdwg.mxu0
    %6350 = vmatprep.subr.mxu0 0.0
    %v6351 = vand.u32 %v6109, 4294901760
    %v6352 = vsub.f32 %v6109, %v6351
    %6353 = vmatpush1.msra.mxu0 %v6352
    %6354 = vmatprep.subr.mxu0 0.0
    %v6355 = vand.u32 %v6110, 4294901760
    %v6356 = vsub.f32 %v6110, %v6355
    %6357 = vmatpush1.msra.mxu0 %v6356
    %6358 = vmatprep.subr.mxu0 0.0
    %v6359 = vand.u32 %v6111, 4294901760
    %v6360 = vsub.f32 %v6111, %v6359
    %6361 = vmatpush1.msra.mxu0 %v6360
    %6362 = vmatprep.subr.mxu0 0.0
    %v6363 = vand.u32 %v6112, 4294901760
    %v6364 = vsub.f32 %v6112, %v6363
    %6365 = vmatpush1.msra.mxu0 %v6364
    %6366 = vmatprep.subr.mxu0 0.0
    %6367 = vmatpush1.msra.mxu0 0.0
    %6368 = vmatprep.subr.mxu0 0.0
    %6369 = vmatpush1.msra.mxu0 0.0
    %6370 = vmatprep.subr.mxu0 0.0
    %6371 = vmatpush1.msra.mxu0 0.0
    %6372 = vmatprep.subr.mxu0 0.0
    %6373 = vmatpush1.msra.mxu0 0.0
    %6374 = vmatprep.subr.mxu0 0.0
    %6375 = vmatpush1.msra.mxu0 0.0
    %6376 = vmatprep.subr.mxu0 0.0
    %6377 = vmatpush1.msra.mxu0 0.0
    %6378 = vmatprep.subr.mxu0 0.0
    %6379 = vmatpush1.msra.mxu0 0.0
    %6380 = vmatprep.subr.mxu0 0.0
    %6381 = vmatpush1.msra.mxu0 0.0
    %6382 = vmatprep.subr.mxu0 0.0
    %6383 = vmatpush1.msra.mxu0 0.0
    %6384 = vmatprep.subr.mxu0 0.0
    %6385 = vmatpush1.msra.mxu0 0.0
    %6386 = vmatprep.subr.mxu0 0.0
    %6387 = vmatpush1.msra.mxu0 0.0
    %6388 = vmatprep.subr.mxu0 0.0
    %6389 = vmatpush1.msra.mxu0 0.0
    %6390 = vmatprep.subr.mxu0 0.0
    %6391 = vmatpush1.msra.mxu0 0.0
    %6392 = vmatprep.subr.mxu0 0.0
    %6393 = vmatpush1.msra.mxu0 0.0
    %6394 = vmatprep.subr.mxu0 0.0
    %6395 = vmatpush1.msra.mxu0 0.0
    %6396 = vmatprep.subr.mxu0 0.0
    %6397 = vmatpush1.msra.mxu0 0.0
    %6398 = vmatprep.subr.mxu0 0.0
    %6399 = vmatpush1.msra.mxu0 0.0
    %6400 = vmatprep.subr.mxu0 0.0
    %6401 = vmatpush1.msra.mxu0 0.0
    %6402 = vmatprep.subr.mxu0 0.0
    %6403 = vmatpush1.msra.mxu0 0.0
    %6404 = vmatprep.subr.mxu0 0.0
    %6405 = vmatpush1.msra.mxu0 0.0
    %6406 = vmatprep.subr.mxu0 0.0
    %6407 = vmatpush1.msra.mxu0 0.0
    %6408 = vmatprep.subr.mxu0 0.0
    %6409 = vmatpush1.msra.mxu0 0.0
    %6410 = vmatprep.subr.mxu0 0.0
    %6411 = vmatpush1.msra.mxu0 0.0
    %6412 = vmatprep.subr.mxu0 0.0
    %6413 = vmatpush1.msra.mxu0 0.0
    %6414 = vmatprep.subr.mxu0 0.0
    %6415 = vmatpush1.msra.mxu0 0.0
    %6416 = vmatprep.subr.mxu0 0.0
    %6417 = vmatpush1.msra.mxu0 0.0
    %6418 = vmatprep.subr.mxu0 0.0
    %6419 = vmatpush1.msra.mxu0 0.0
    %6420 = vmatprep.subr.mxu0 0.0
    %6421 = vmatpush1.msra.mxu0 0.0
    %6422 = vmatprep.mubr.f32.mxu0 0.0
    %v6423 = vand.u32 %v6121, 4294901760
    %v6424 = vsub.f32 %v6121, %v6423
    %6425 = vmatmul.mubr.f32.gmra.mrb[0].mxu0 %v6424
    %v6426 = vpop.f32.mrb[0].mxu0
    %v6427 = vadd.f32 %v6329, %v6426
    %v6428 = vpop.f32.mrb[0].mxu0
    %6429 = vmatprep.mubr.f32.mxu0 0.0
    %v6430 = vand.u32 %v6124, 4294901760
    %v6431 = vsub.f32 %v6124, %v6430
    %6432 = vmatmul.mubr.f32.gmra.mrb[0].mxu0 %v6431
    %v6433 = vpop.f32.mrb[0].mxu0
    %v6434 = vadd.f32 %v6335, %v6433
    %v6435 = vpop.f32.mrb[0].mxu0
    %6436 = vmatprep.mubr.f32.mxu0 0.0
    %v6437 = vand.u32 %v6127, 4294901760
    %v6438 = vsub.f32 %v6127, %v6437
    %6439 = vmatmul.mubr.f32.gmra.mrb[0].mxu0 %v6438
    %v6440 = vpop.f32.mrb[0].mxu0
    %v6441 = vadd.f32 %v6341, %v6440
    %v6442 = vpop.f32.mrb[0].mxu0
    %6443 = vmatprep.mubr.f32.mxu0 0.0
    %v6444 = vand.u32 %v6130, 4294901760
    %v6445 = vsub.f32 %v6130, %v6444
    %6446 = vmatmul.mubr.f32.gmra.mrb[0].mxu0 %v6445
    %v6447 = vpop.f32.mrb[0].mxu0
    %v6448 = vadd.f32 %v6347, %v6447
    %v6449 = vpop.f32.mrb[0].mxu0
    %6450 = vdwg.mxu0
    %6451 = vmatprep.subr.mxu0 0.0
    %v6452 = vand.u32 %v6109, 4294901760
    %6453 = vmatpush1.msra.mxu0 %v6452
    %6454 = vmatprep.subr.mxu0 0.0
    %v6455 = vand.u32 %v6110, 4294901760
    %6456 = vmatpush1.msra.mxu0 %v6455
    %6457 = vmatprep.subr.mxu0 0.0
    %v6458 = vand.u32 %v6111, 4294901760
    %6459 = vmatpush1.msra.mxu0 %v6458
    %6460 = vmatprep.subr.mxu0 0.0
    %v6461 = vand.u32 %v6112, 4294901760
    %6462 = vmatpush1.msra.mxu0 %v6461
    %6463 = vmatprep.subr.mxu0 0.0
    %6464 = vmatpush1.msra.mxu0 0.0
    %6465 = vmatprep.subr.mxu0 0.0
    %6466 = vmatpush1.msra.mxu0 0.0
    %6467 = vmatprep.subr.mxu0 0.0
    %6468 = vmatpush1.msra.mxu0 0.0
    %6469 = vmatprep.subr.mxu0 0.0
    %6470 = vmatpush1.msra.mxu0 0.0
    %6471 = vmatprep.subr.mxu0 0.0
    %6472 = vmatpush1.msra.mxu0 0.0
    %6473 = vmatprep.subr.mxu0 0.0
    %6474 = vmatpush1.msra.mxu0 0.0
    %6475 = vmatprep.subr.mxu0 0.0
    %6476 = vmatpush1.msra.mxu0 0.0
    %6477 = vmatprep.subr.mxu0 0.0
    %6478 = vmatpush1.msra.mxu0 0.0
    %6479 = vmatprep.subr.mxu0 0.0
    %6480 = vmatpush1.msra.mxu0 0.0
    %6481 = vmatprep.subr.mxu0 0.0
    %6482 = vmatpush1.msra.mxu0 0.0
    %6483 = vmatprep.subr.mxu0 0.0
    %6484 = vmatpush1.msra.mxu0 0.0
    %6485 = vmatprep.subr.mxu0 0.0
    %6486 = vmatpush1.msra.mxu0 0.0
    %6487 = vmatprep.subr.mxu0 0.0
    %6488 = vmatpush1.msra.mxu0 0.0
    %6489 = vmatprep.subr.mxu0 0.0
    %6490 = vmatpush1.msra.mxu0 0.0
    %6491 = vmatprep.subr.mxu0 0.0
    %6492 = vmatpush1.msra.mxu0 0.0
    %6493 = vmatprep.subr.mxu0 0.0
    %6494 = vmatpush1.msra.mxu0 0.0
    %6495 = vmatprep.subr.mxu0 0.0
    %6496 = vmatpush1.msra.mxu0 0.0
    %6497 = vmatprep.subr.mxu0 0.0
    %6498 = vmatpush1.msra.mxu0 0.0
    %6499 = vmatprep.subr.mxu0 0.0
    %6500 = vmatpush1.msra.mxu0 0.0
    %6501 = vmatprep.subr.mxu0 0.0
    %6502 = vmatpush1.msra.mxu0 0.0
    %6503 = vmatprep.subr.mxu0 0.0
    %6504 = vmatpush1.msra.mxu0 0.0
    %6505 = vmatprep.subr.mxu0 0.0
    %6506 = vmatpush1.msra.mxu0 0.0
    %6507 = vmatprep.subr.mxu0 0.0
    %6508 = vmatpush1.msra.mxu0 0.0
    %6509 = vmatprep.subr.mxu0 0.0
    %6510 = vmatpush1.msra.mxu0 0.0
    %6511 = vmatprep.subr.mxu0 0.0
    %6512 = vmatpush1.msra.mxu0 0.0
    %6513 = vmatprep.subr.mxu0 0.0
    %6514 = vmatpush1.msra.mxu0 0.0
    %6515 = vmatprep.subr.mxu0 0.0
    %6516 = vmatpush1.msra.mxu0 0.0
    %6517 = vmatprep.subr.mxu0 0.0
    %6518 = vmatpush1.msra.mxu0 0.0
    %6519 = vmatprep.mubr.f32.mxu0 0.0
    %v6520 = vand.u32 %v6121, 4294901760
    %v6521 = vsub.f32 %v6121, %v6520
    %v6522 = vand.u32 %v6521, 4294901760
    %6523 = vmatmul.mubr.f32.gmra.mrb[0].mxu0 %v6522
    %v6524 = vpop.f32.mrb[0].mxu0
    %v6525 = vadd.f32 %v6427, %v6524
    %v6526 = vpop.f32.mrb[0].mxu0
    %6527 = vmatprep.mubr.f32.mxu0 0.0
    %v6528 = vand.u32 %v6124, 4294901760
    %v6529 = vsub.f32 %v6124, %v6528
    %v6530 = vand.u32 %v6529, 4294901760
    %6531 = vmatmul.mubr.f32.gmra.mrb[0].mxu0 %v6530
    %v6532 = vpop.f32.mrb[0].mxu0
    %v6533 = vadd.f32 %v6434, %v6532
    %v6534 = vpop.f32.mrb[0].mxu0
    %6535 = vmatprep.mubr.f32.mxu0 0.0
    %v6536 = vand.u32 %v6127, 4294901760
    %v6537 = vsub.f32 %v6127, %v6536
    %v6538 = vand.u32 %v6537, 4294901760
    %6539 = vmatmul.mubr.f32.gmra.mrb[0].mxu0 %v6538
    %v6540 = vpop.f32.mrb[0].mxu0
    %v6541 = vadd.f32 %v6441, %v6540
    %v6542 = vpop.f32.mrb[0].mxu0
    %6543 = vmatprep.mubr.f32.mxu0 0.0
    %v6544 = vand.u32 %v6130, 4294901760
    %v6545 = vsub.f32 %v6130, %v6544
    %v6546 = vand.u32 %v6545, 4294901760
    %6547 = vmatmul.mubr.f32.gmra.mrb[0].mxu0 %v6546
    %v6548 = vpop.f32.mrb[0].mxu0
    %v6549 = vadd.f32 %v6448, %v6548
    %v6550 = vpop.f32.mrb[0].mxu0
    %6551 = vdwg.mxu0
    %6552 = vmatprep.subr.mxu0 0.0
    %v6553 = vand.u32 %v6109, 4294901760
    %v6554 = vsub.f32 %v6109, %v6553
    %v6555 = vand.u32 %v6554, 4294901760
    %6556 = vmatpush1.msra.mxu0 %v6555
    %6557 = vmatprep.subr.mxu0 0.0
    %v6558 = vand.u32 %v6110, 4294901760
    %v6559 = vsub.f32 %v6110, %v6558
    %v6560 = vand.u32 %v6559, 4294901760
    %6561 = vmatpush1.msra.mxu0 %v6560
    %6562 = vmatprep.subr.mxu0 0.0
    %v6563 = vand.u32 %v6111, 4294901760
    %v6564 = vsub.f32 %v6111, %v6563
    %v6565 = vand.u32 %v6564, 4294901760
    %6566 = vmatpush1.msra.mxu0 %v6565
    %6567 = vmatprep.subr.mxu0 0.0
    %v6568 = vand.u32 %v6112, 4294901760
    %v6569 = vsub.f32 %v6112, %v6568
    %v6570 = vand.u32 %v6569, 4294901760
    %6571 = vmatpush1.msra.mxu0 %v6570
    %6572 = vmatprep.subr.mxu0 0.0
    %6573 = vmatpush1.msra.mxu0 0.0
    %6574 = vmatprep.subr.mxu0 0.0
    %6575 = vmatpush1.msra.mxu0 0.0
    %6576 = vmatprep.subr.mxu0 0.0
    %6577 = vmatpush1.msra.mxu0 0.0
    %6578 = vmatprep.subr.mxu0 0.0
    %6579 = vmatpush1.msra.mxu0 0.0
    %6580 = vmatprep.subr.mxu0 0.0
    %6581 = vmatpush1.msra.mxu0 0.0
    %6582 = vmatprep.subr.mxu0 0.0
    %6583 = vmatpush1.msra.mxu0 0.0
    %6584 = vmatprep.subr.mxu0 0.0
    %6585 = vmatpush1.msra.mxu0 0.0
    %6586 = vmatprep.subr.mxu0 0.0
    %6587 = vmatpush1.msra.mxu0 0.0
    %6588 = vmatprep.subr.mxu0 0.0
    %6589 = vmatpush1.msra.mxu0 0.0
    %6590 = vmatprep.subr.mxu0 0.0
    %6591 = vmatpush1.msra.mxu0 0.0
    %6592 = vmatprep.subr.mxu0 0.0
    %6593 = vmatpush1.msra.mxu0 0.0
    %6594 = vmatprep.subr.mxu0 0.0
    %6595 = vmatpush1.msra.mxu0 0.0
    %6596 = vmatprep.subr.mxu0 0.0
    %6597 = vmatpush1.msra.mxu0 0.0
    %6598 = vmatprep.subr.mxu0 0.0
    %6599 = vmatpush1.msra.mxu0 0.0
    %6600 = vmatprep.subr.mxu0 0.0
    %6601 = vmatpush1.msra.mxu0 0.0
    %6602 = vmatprep.subr.mxu0 0.0
    %6603 = vmatpush1.msra.mxu0 0.0
    %6604 = vmatprep.subr.mxu0 0.0
    %6605 = vmatpush1.msra.mxu0 0.0
    %6606 = vmatprep.subr.mxu0 0.0
    %6607 = vmatpush1.msra.mxu0 0.0
    %6608 = vmatprep.subr.mxu0 0.0
    %6609 = vmatpush1.msra.mxu0 0.0
    %6610 = vmatprep.subr.mxu0 0.0
    %6611 = vmatpush1.msra.mxu0 0.0
    %6612 = vmatprep.subr.mxu0 0.0
    %6613 = vmatpush1.msra.mxu0 0.0
    %6614 = vmatprep.subr.mxu0 0.0
    %6615 = vmatpush1.msra.mxu0 0.0
    %6616 = vmatprep.subr.mxu0 0.0
    %6617 = vmatpush1.msra.mxu0 0.0
    %6618 = vmatprep.subr.mxu0 0.0
    %6619 = vmatpush1.msra.mxu0 0.0
    %6620 = vmatprep.subr.mxu0 0.0
    %6621 = vmatpush1.msra.mxu0 0.0
    %6622 = vmatprep.subr.mxu0 0.0
    %6623 = vmatpush1.msra.mxu0 0.0
    %6624 = vmatprep.subr.mxu0 0.0
    %6625 = vmatpush1.msra.mxu0 0.0
    %6626 = vmatprep.subr.mxu0 0.0
    %6627 = vmatpush1.msra.mxu0 0.0
    %6628 = vmatprep.mubr.f32.mxu0 0.0
    %v6629 = vand.u32 %v6121, 4294901760
    %6630 = vmatmul.mubr.f32.gmra.mrb[0].mxu0 %v6629
    %v6631 = vpop.f32.mrb[0].mxu0
    %v6632 = vadd.f32 %v6525, %v6631
    %v6633 = vpop.f32.mrb[0].mxu0
    %6634 = vmatprep.mubr.f32.mxu0 0.0
    %v6635 = vand.u32 %v6124, 4294901760
    %6636 = vmatmul.mubr.f32.gmra.mrb[0].mxu0 %v6635
    %v6637 = vpop.f32.mrb[0].mxu0
    %v6638 = vadd.f32 %v6533, %v6637
    %v6639 = vpop.f32.mrb[0].mxu0
    %6640 = vmatprep.mubr.f32.mxu0 0.0
    %v6641 = vand.u32 %v6127, 4294901760
    %6642 = vmatmul.mubr.f32.gmra.mrb[0].mxu0 %v6641
    %v6643 = vpop.f32.mrb[0].mxu0
    %v6644 = vadd.f32 %v6541, %v6643
    %v6645 = vpop.f32.mrb[0].mxu0
    %6646 = vmatprep.mubr.f32.mxu0 0.0
    %v6647 = vand.u32 %v6130, 4294901760
    %6648 = vmatmul.mubr.f32.gmra.mrb[0].mxu0 %v6647
    %v6649 = vpop.f32.mrb[0].mxu0
    %v6650 = vadd.f32 %v6549, %v6649
    %v6651 = vpop.f32.mrb[0].mxu0
    %6652 = vdwg.mxu0
    %6653 = vmatprep.subr.mxu0 0.0
    %v6654 = vand.u32 %v6109, 4294901760
    %6655 = vmatpush1.msra.mxu0 %v6654
    %6656 = vmatprep.subr.mxu0 0.0
    %v6657 = vand.u32 %v6110, 4294901760
    %6658 = vmatpush1.msra.mxu0 %v6657
    %6659 = vmatprep.subr.mxu0 0.0
    %v6660 = vand.u32 %v6111, 4294901760
    %6661 = vmatpush1.msra.mxu0 %v6660
    %6662 = vmatprep.subr.mxu0 0.0
    %v6663 = vand.u32 %v6112, 4294901760
    %6664 = vmatpush1.msra.mxu0 %v6663
    %6665 = vmatprep.subr.mxu0 0.0
    %6666 = vmatpush1.msra.mxu0 0.0
    %6667 = vmatprep.subr.mxu0 0.0
    %6668 = vmatpush1.msra.mxu0 0.0
    %6669 = vmatprep.subr.mxu0 0.0
    %6670 = vmatpush1.msra.mxu0 0.0
    %6671 = vmatprep.subr.mxu0 0.0
    %6672 = vmatpush1.msra.mxu0 0.0
    %6673 = vmatprep.subr.mxu0 0.0
    %6674 = vmatpush1.msra.mxu0 0.0
    %6675 = vmatprep.subr.mxu0 0.0
    %6676 = vmatpush1.msra.mxu0 0.0
    %6677 = vmatprep.subr.mxu0 0.0
    %6678 = vmatpush1.msra.mxu0 0.0
    %6679 = vmatprep.subr.mxu0 0.0
    %6680 = vmatpush1.msra.mxu0 0.0
    %6681 = vmatprep.subr.mxu0 0.0
    %6682 = vmatpush1.msra.mxu0 0.0
    %6683 = vmatprep.subr.mxu0 0.0
    %6684 = vmatpush1.msra.mxu0 0.0
    %6685 = vmatprep.subr.mxu0 0.0
    %6686 = vmatpush1.msra.mxu0 0.0
    %6687 = vmatprep.subr.mxu0 0.0
    %6688 = vmatpush1.msra.mxu0 0.0
    %6689 = vmatprep.subr.mxu0 0.0
    %6690 = vmatpush1.msra.mxu0 0.0
    %6691 = vmatprep.subr.mxu0 0.0
    %6692 = vmatpush1.msra.mxu0 0.0
    %6693 = vmatprep.subr.mxu0 0.0
    %6694 = vmatpush1.msra.mxu0 0.0
    %6695 = vmatprep.subr.mxu0 0.0
    %6696 = vmatpush1.msra.mxu0 0.0
    %6697 = vmatprep.subr.mxu0 0.0
    %6698 = vmatpush1.msra.mxu0 0.0
    %6699 = vmatprep.subr.mxu0 0.0
    %6700 = vmatpush1.msra.mxu0 0.0
    %6701 = vmatprep.subr.mxu0 0.0
    %6702 = vmatpush1.msra.mxu0 0.0
    %6703 = vmatprep.subr.mxu0 0.0
    %6704 = vmatpush1.msra.mxu0 0.0
    %6705 = vmatprep.subr.mxu0 0.0
    %6706 = vmatpush1.msra.mxu0 0.0
    %6707 = vmatprep.subr.mxu0 0.0
    %6708 = vmatpush1.msra.mxu0 0.0
    %6709 = vmatprep.subr.mxu0 0.0
    %6710 = vmatpush1.msra.mxu0 0.0
    %6711 = vmatprep.subr.mxu0 0.0
    %6712 = vmatpush1.msra.mxu0 0.0
    %6713 = vmatprep.subr.mxu0 0.0
    %6714 = vmatpush1.msra.mxu0 0.0
    %6715 = vmatprep.subr.mxu0 0.0
    %6716 = vmatpush1.msra.mxu0 0.0
    %6717 = vmatprep.subr.mxu0 0.0
    %6718 = vmatpush1.msra.mxu0 0.0
    %6719 = vmatprep.subr.mxu0 0.0
    %6720 = vmatpush1.msra.mxu0 0.0
    %6721 = vmatprep.mubr.f32.mxu0 0.0
    %v6722 = vand.u32 %v6121, 4294901760
    %6723 = vmatmul.mubr.f32.gmra.mrb[0].mxu0 %v6722
    %v6724 = vpop.f32.mrb[0].mxu0
    %v6725 = vadd.f32 %v6632, %v6724
    %v6726 = vpop.f32.mrb[0].mxu0
    %6727 = vmatprep.mubr.f32.mxu0 0.0
    %v6728 = vand.u32 %v6124, 4294901760
    %6729 = vmatmul.mubr.f32.gmra.mrb[0].mxu0 %v6728
    %v6730 = vpop.f32.mrb[0].mxu0
    %v6731 = vadd.f32 %v6638, %v6730
    %v6732 = vpop.f32.mrb[0].mxu0
    %6733 = vmatprep.mubr.f32.mxu0 0.0
    %v6734 = vand.u32 %v6127, 4294901760
    %6735 = vmatmul.mubr.f32.gmra.mrb[0].mxu0 %v6734
    %v6736 = vpop.f32.mrb[0].mxu0
    %v6737 = vadd.f32 %v6644, %v6736
    %v6738 = vpop.f32.mrb[0].mxu0
    %6739 = vmatprep.mubr.f32.mxu0 0.0
    %v6740 = vand.u32 %v6130, 4294901760
    %6741 = vmatmul.mubr.f32.gmra.mrb[0].mxu0 %v6740
    %v6742 = vpop.f32.mrb[0].mxu0
    %v6743 = vadd.f32 %v6650, %v6742
    %v6744 = vpop.f32.mrb[0].mxu0
    %6745 = vdwg.mxu0
    %6746 = vst.msk [vmem:[#allocation10] sm:$0xff] %vm84, %v6725
    %6747 = vst.msk [vmem:[#allocation10 + $0x8] sm:$0xff] %vm84, %v6731
    %6748 = vst.msk [vmem:[#allocation10 + $0x10] sm:$0xff] %vm84, %v6737
    %6749 = vst.msk [vmem:[#allocation10 + $0x18] sm:$0xff] %vm84, %v6743
    // Predicated region
    $region38: #{tpu_custom_call.1} parent=1 // pred_check
      _
    $region39: #{tpu_custom_call.1} parent=1 // pred_check_branch
      %6751 = sbr.rel (0) target = $region41
    $region40: #{tpu_custom_call.1} parent=1 // pred_region
      %s6753 = ssub.s32 512, 512
      %6754 = vsyncadd [#allocation4], %s6753
      %s6755 = sshll.u32 [#allocation10], 4
      %s6756 = int_to_ptr.vmem [resolvable:$true] %s6755
      %6761 = dma.vmem_to_hbm [thread:$0]  %s6756, 512, %s5, [#allocation4], 128, 128, 8
    $region41: #{tpu_custom_call.1} parent=1 // pred_fallthru
      _
    // Predicated region
    $region42: #{tpu_custom_call.1} parent=1 // pred_check
      _
    $region43: #{tpu_custom_call.1} parent=1 // pred_check_branch
      %6763 = sbr.rel (0) target = $region45
    $region44: #{tpu_custom_call.1} parent=1 // pred_region
      %6764 = dma.done [#allocation4], 512
    $region45: #{tpu_custom_call.1} parent=1 // pred_fallthru
      _
    %6765 = vsyncpa [#allocation3], 1
    %6766 = vsyncpa [#allocation6], 1
    %6767 = vsyncpa [#allocation9], 1
    %6768 = vsyncpa [#allocation4], 1

</llo_original>
